<compile_context>
chip_gen: v6e
topology: v6e:2x2x1
jax: 0.10.0
libtpu: 0.0.40
codegen_flags: <defaults>
</compile_context>

<pallas_src>
import functools

import jax
import jax.numpy as jnp
from jax.experimental import pallas as pl
from jax.experimental.pallas import tpu as pltpu

BN_EPS = 1e-5
MXU_DTYPE = jnp.bfloat16      # MXU matmul input dtype (accumulation stays f32)


# ------------------------------ Pallas kernel ------------------------------ #
def _resblock_kernel(x_ref, w1_ref, w2_ref, aff_ref, out_ref, hpad_ref,
                     *, H, W, C, B_blk):
    """Fused ResBlock for B_blk images of the batch.

    x_ref:   (B_blk, PR, C) f32   zero-padded input, PR=(H+3)*(W+2), flattened
                                  (image pixel (y,x) lives at (y+1)*Wp + 1 + x)
    w*_ref:  (9, C, C)      bf16  conv weights, per-tap (Cin, Cout)
    aff_ref: (4, C)         f32   rows: [s1, b1, s2, b2] folded-BN scale/bias
    out_ref: (B_blk, R, C)  f32   output on the padded-width grid, R = H*(W+2)
    hpad_ref:(PR, C)        bf16  scratch: zero-padded intermediate h
    """
    Wp = W + 2
    R = H * Wp
    PR = (H + 3) * Wp
    f32 = jnp.float32

    s1 = aff_ref[0:1, :]
    b1 = aff_ref[1:2, :]
    s2 = aff_ref[2:3, :]
    b2 = aff_ref[3:4, :]

    # Validity mask of the padded-width grid, built in-kernel: row r = y*Wp+xw
    # is a real pixel iff xw < W.  Exact-integer float math (values < 2^24)
    # avoids vector integer division; +0.5 makes the floor robust to rounding.
    r_idx = jax.lax.broadcasted_iota(jnp.int32, (R, C), 0).astype(f32)
    q = jnp.floor((r_idx + 0.5) * (1.0 / Wp))
    col = r_idx - q * Wp                      # exact column index as float
    col_valid = col < (W - 0.5)

    # hpad halo rows (never covered by the interior store) -> zero per grid
    # step; the interior (including its pad columns) is fully rewritten below.
    hpad_ref[0:Wp + 1, :] = jnp.zeros((Wp + 1, C), dtype=hpad_ref.dtype)
    lo = (H + 1) * Wp + 1
    hpad_ref[lo:PR, :] = jnp.zeros((PR - lo, C), dtype=hpad_ref.dtype)

    def conv9(load_tap, w_ref):
        """3x3 SAME conv as 9 accumulating matmuls on contiguous slices."""
        acc = None
        for j in range(9):
            off = (j // 3) * Wp + (j % 3)
            t = jnp.dot(load_tap(off), w_ref[j], preferred_element_type=f32)
            acc = t if acc is None else acc + t
        return acc

    for b in range(B_blk):                    # static unroll over the batch block
        # --- stage 1: conv1 + folded BN1 + ReLU, stored once as bf16 ---------
        acc1 = conv9(
            lambda off, b=b: x_ref[b, off:off + R, :].astype(MXU_DTYPE), w1_ref)
        h = jnp.maximum(acc1 * s1 + b1, 0.0)
        h = jnp.where(col_valid, h, 0.0)      # junk cols -> 0 == stage-2 padding
        hpad_ref[Wp + 1:Wp + 1 + R, :] = h.astype(hpad_ref.dtype)

        # --- stage 2: conv2 + folded BN2 + residual + ReLU --------------------
        acc2 = conv9(lambda off: hpad_ref[off:off + R, :], w2_ref)
        res = x_ref[b, Wp + 1:Wp + 1 + R, :]  # f32 residual, grid-aligned
        y2 = jnp.maximum(acc2 * s2 + b2 + res, 0.0)
        out_ref[b] = y2.astype(out_ref.dtype)


# ------------------------------ ResBlock glue ------------------------------ #
def fold_bn(conv_bias, gamma, beta, running_mean, running_var):
    scale = gamma / jnp.sqrt(running_var + BN_EPS)
    bias = beta + scale * (conv_bias - running_mean)
    return scale, bias


def _pick_batch_block(n, max_unroll=4):
    """Largest divisor of n that keeps >= 2 grid steps (pipelining / megacore)
    when n >= 2, and bounds in-kernel unrolling."""
    best = 1
    for b in range(2, max_unroll + 1):
        if n % b == 0 and n // b >= 2:
            best = b
    return best


def resblock_forward(x_nchw, params, batch_block=None):
    N, C, H, W = x_nchw.shape
    Wp = W + 2
    R = H * Wp
    PR = (H + 3) * Wp
    # tap reads go up to index 2*Wp + 2 + R - 1; keep them inside the buffer
    assert 2 * Wp + 2 + R <= PR, "tap reads would overrun the padded buffer"

    B_blk = _pick_batch_block(N) if batch_block is None else batch_block
    assert N % B_blk == 0, "batch block must divide N"

    # layout glue: NCHW -> NHWC -> zero-padded flattened layout, one fused pass
    x_nhwc = jnp.transpose(x_nchw, (0, 2, 3, 1))
    x_flat = jnp.pad(x_nhwc, ((0, 0), (1, 2), (1, 1), (0, 0)))
    x_flat = x_flat.reshape(N, PR, C).astype(jnp.float32)

    # conv weights: OIHW -> per-tap (9, Cin, Cout) bf16
    w1 = jnp.transpose(params["w1"], (2, 3, 1, 0)).reshape(9, C, C).astype(MXU_DTYPE)
    w2 = jnp.transpose(params["w2"], (2, 3, 1, 0)).reshape(9, C, C).astype(MXU_DTYPE)

    s1, b1 = fold_bn(params["b1"], params["g1"], params["beta1"],
                     params["m1"], params["v1"])
    s2, b2 = fold_bn(params["b2"], params["g2"], params["beta2"],
                     params["m2"], params["v2"])
    affine = jnp.stack([s1, b1, s2, b2]).astype(jnp.float32)        # (4, C)

    # VMEM budget: double-buffered in/out blocks + weights + bf16 hpad scratch.
    step_bytes = (2 * (B_blk * PR * C * 4 + B_blk * R * C * 4)
                  + 2 * 9 * C * C * 2 + 4 * C * 4 + PR * C * 2)
    vmem_limit = int(min(48 * 2**20, max(32 * 2**20, 4 * step_bytes)))

    kernel = functools.partial(_resblock_kernel, H=H, W=W, C=C, B_blk=B_blk)

    out_grid = pl.pallas_call(
        kernel,
        out_shape=jax.ShapeDtypeStruct((N, R, C), jnp.float32),
        grid_spec=pltpu.PrefetchScalarGridSpec(
            num_scalar_prefetch=0,
            grid=(N // B_blk,),
            in_specs=[
                pl.BlockSpec((B_blk, PR, C), lambda n: (n, 0, 0)),   # padded x
                pl.BlockSpec((9, C, C), lambda n: (0, 0, 0)),        # w1 taps
                pl.BlockSpec((9, C, C), lambda n: (0, 0, 0)),        # w2 taps
                pl.BlockSpec((4, C), lambda n: (0, 0)),              # BN affine
            ],
            out_specs=pl.BlockSpec((B_blk, R, C), lambda n: (n, 0, 0)),
            scratch_shapes=[pltpu.VMEM((PR, C), MXU_DTYPE)],         # bf16 hpad
        ),
        compiler_params=pltpu.CompilerParams(
            dimension_semantics=("parallel",),
            vmem_limit_bytes=vmem_limit,
        ),
    )(x_flat, w1, w2, affine)

    # drop the 2 junk columns of the padded-width grid, back to NCHW
    out = out_grid.reshape(N, H, Wp, C)[:, :, :W, :]
    return jnp.transpose(out, (0, 3, 1, 2))


def init_resblock_params(key, num_hidden):
    ks = jax.random.split(key, 12)
    bound = 1.0 / jnp.sqrt(num_hidden * 9.0)

    def conv_w(k):  # PyTorch OIHW layout
        return jax.random.uniform(k, (num_hidden, num_hidden, 3, 3),
                                  jnp.float32, -bound, bound)

    def conv_b(k):
        return jax.random.uniform(k, (num_hidden,), jnp.float32, -bound, bound)

    return dict(
        w1=conv_w(ks[0]), b1=conv_b(ks[1]),
        g1=1.0 + 0.1 * jax.random.normal(ks[2], (num_hidden,), jnp.float32),
        beta1=0.1 * jax.random.normal(ks[3], (num_hidden,), jnp.float32),
        m1=0.1 * jax.random.normal(ks[4], (num_hidden,), jnp.float32),
        v1=jax.random.uniform(ks[5], (num_hidden,), jnp.float32, 0.5, 1.5),
        w2=conv_w(ks[6]), b2=conv_b(ks[7]),
        g2=1.0 + 0.1 * jax.random.normal(ks[8], (num_hidden,), jnp.float32),
        beta2=0.1 * jax.random.normal(ks[9], (num_hidden,), jnp.float32),
        m2=0.1 * jax.random.normal(ks[10], (num_hidden,), jnp.float32),
        v2=jax.random.uniform(ks[11], (num_hidden,), jnp.float32, 0.5, 1.5),
    )


# ---------------------- pure-JAX reference (NCHW, like PyTorch) ------------ #
def resblock_reference(x, p):
    def conv(x, w, b):
        y = jax.lax.conv_general_dilated(
            x, w, window_strides=(1, 1), padding=((1, 1), (1, 1)),
            dimension_numbers=("NCHW", "OIHW", "NCHW"))
        return y + b[None, :, None, None]

    def bn(y, g, beta, m, v):
        return ((y - m[None, :, None, None])
                / jnp.sqrt(v[None, :, None, None] + BN_EPS)
                * g[None, :, None, None] + beta[None, :, None, None])

    h = jax.nn.relu(bn(conv(x, p["w1"], p["b1"]),
                       p["g1"], p["beta1"], p["m1"], p["v1"]))
    o = bn(conv(h, p["w2"], p["b2"]),
           p["g2"], p["beta2"], p["m2"], p["v2"]) + x
    return jax.nn.relu(o)


# ----------------------------------- main ----------------------------------- #
if __name__ == "__main__":
    key = jax.random.PRNGKey(0)
    k_x, k_p = jax.random.split(key)

    N, C, H, W = 2, 32, 16, 16          # batch=2, num_hidden=32, spatial=16
    x = jax.random.normal(k_x, (N, C, H, W), jnp.float32)
    params = init_resblock_params(k_p, C)

    out = jax.jit(resblock_forward)(x, params)
    out = jax.block_until_ready(out)

    ref = resblock_reference(x, params)
    assert out.shape == ref.shape == (N, C, H, W)
    max_err = float(jnp.max(jnp.abs(out - ref)))
    # bf16 MXU inputs (f32 accumulation) bound the error floor (~1e-2 at these
    # shapes); with MXU_DTYPE=float32 this check passes at 1e-4.
    tol = 2e-2 if MXU_DTYPE == jnp.bfloat16 else 1e-4
    assert max_err < tol, f"mismatch vs reference, max abs err = {max_err}"

    print("KERNEL_OK")
</pallas_src>

<mosaic_0001>
module attributes {stable_mosaic.version = 11 : i64} {
  func.func @_resblock_kernel(%arg0: i32, %arg1: memref<1x342x32xf32, #tpu.memory_space<vmem>>, %arg2: memref<9x32x32xbf16, #tpu.memory_space<vmem>>, %arg3: memref<9x32x32xbf16, #tpu.memory_space<vmem>>, %arg4: memref<4x32xf32, #tpu.memory_space<vmem>>, %arg5: memref<1x288x32xf32, #tpu.memory_space<vmem>>, %arg6: memref<342x32xbf16, #tpu.memory_space<vmem>>) attributes {dimension_semantics = [#tpu.dimension_semantics<parallel>], iteration_bounds = array<i64: 2>, scalar_prefetch = 0 : i64, scratch_operands = 1 : i64, tpu.core_type = #tpu.core_type<tc>, window_params = [{transform_indices = @transform_0, window_bounds = array<i64: 1, 342, 32>}, {pipeline_mode = #tpu.pipeline_mode<synchronous>, transform_indices = @transform_1, window_bounds = array<i64: 9, 32, 32>}, {pipeline_mode = #tpu.pipeline_mode<synchronous>, transform_indices = @transform_2, window_bounds = array<i64: 9, 32, 32>}, {pipeline_mode = #tpu.pipeline_mode<synchronous>, transform_indices = @transform_3, window_bounds = array<i64: 4, 32>}, {transform_indices = @transform_4, window_bounds = array<i64: 1, 288, 32>}]} {
    %c0 = arith.constant 0 : index
    %c0_0 = arith.constant 0 : index
    %0 = vector.load %arg4[%c0, %c0_0] : memref<4x32xf32, #tpu.memory_space<vmem>>, vector<1x32xf32>
    %c1 = arith.constant 1 : index
    %c0_1 = arith.constant 0 : index
    %1 = vector.load %arg4[%c1, %c0_1] : memref<4x32xf32, #tpu.memory_space<vmem>>, vector<1x32xf32>
    %c2 = arith.constant 2 : index
    %c0_2 = arith.constant 0 : index
    %2 = vector.load %arg4[%c2, %c0_2] : memref<4x32xf32, #tpu.memory_space<vmem>>, vector<1x32xf32>
    %c3 = arith.constant 3 : index
    %c0_3 = arith.constant 0 : index
    %3 = vector.load %arg4[%c3, %c0_3] : memref<4x32xf32, #tpu.memory_space<vmem>>, vector<1x32xf32>
    %4 = tpu.iota {dimensions = array<i32: 0>} : vector<288x32xi32>
    %5 = arith.sitofp %4 : vector<288x32xi32> to vector<288x32xf32>
    %cst = arith.constant 5.000000e-01 : f32
    %6 = vector.broadcast %cst : f32 to vector<288x32xf32>
    %7 = arith.addf %5, %6 : vector<288x32xf32>
    %cst_4 = arith.constant 0.055555556 : f32
    %8 = vector.broadcast %cst_4 : f32 to vector<288x32xf32>
    %9 = arith.mulf %7, %8 : vector<288x32xf32>
    %10 = math.floor %9 : vector<288x32xf32>
    %cst_5 = arith.constant 1.800000e+01 : f32
    %11 = vector.broadcast %cst_5 : f32 to vector<288x32xf32>
    %12 = arith.mulf %10, %11 : vector<288x32xf32>
    %13 = arith.subf %5, %12 : vector<288x32xf32>
    %cst_6 = arith.constant 1.550000e+01 : f32
    %14 = vector.broadcast %cst_6 : f32 to vector<288x32xf32>
    %15 = arith.cmpf olt, %13, %14 : vector<288x32xf32>
    %cst_7 = arith.constant 0.000000e+00 : bf16
    %16 = vector.broadcast %cst_7 : bf16 to vector<19x32xbf16>
    %c0_8 = arith.constant 0 : index
    %c0_9 = arith.constant 0 : index
    %17 = vector.load %arg6[%c0_8, %c0_9] : memref<342x32xbf16, #tpu.memory_space<vmem>>, vector<19x32xbf16>
    tpu.vector_store %arg6[%c0_8, %c0_9], %16 {strides = array<i32>} : memref<342x32xbf16, #tpu.memory_space<vmem>>, vector<19x32xbf16>,
    %cst_10 = arith.constant 0.000000e+00 : bf16
    %18 = vector.broadcast %cst_10 : bf16 to vector<35x32xbf16>
    %c307 = arith.constant 307 : index
    %c0_11 = arith.constant 0 : index
    %19 = vector.load %arg6[%c307, %c0_11] : memref<342x32xbf16, #tpu.memory_space<vmem>>, vector<35x32xbf16>
    tpu.vector_store %arg6[%c307, %c0_11], %18 {strides = array<i32>} : memref<342x32xbf16, #tpu.memory_space<vmem>>, vector<35x32xbf16>,
    %c0_12 = arith.constant 0 : index
    %c0_13 = arith.constant 0 : index
    %c0_14 = arith.constant 0 : index
    %20 = vector.load %arg1[%c0_12, %c0_13, %c0_14] : memref<1x342x32xf32, #tpu.memory_space<vmem>>, vector<1x288x32xf32>
    %21 = vector.shape_cast %20 : vector<1x288x32xf32> to vector<288x32xf32>
    %22 = arith.truncf %21 : vector<288x32xf32> to vector<288x32xbf16>
    %c0_15 = arith.constant 0 : index
    %c0_16 = arith.constant 0 : index
    %c0_17 = arith.constant 0 : index
    %23 = vector.load %arg2[%c0_15, %c0_16, %c0_17] : memref<9x32x32xbf16, #tpu.memory_space<vmem>>, vector<1x32x32xbf16>
    %24 = vector.shape_cast %23 : vector<1x32x32xbf16> to vector<32x32xbf16>
    %cst_18 = arith.constant dense<0.000000e+00> : vector<288x32xf32>
    %25 = tpu.matmul %22, %24, %cst_18 {dimension_numbers = #tpu.dot_dimension_numbers<[1], [0], [0], [1], [0, 0, 1, 1], [], []>} : vector<288x32xbf16>, vector<32x32xbf16>, vector<288x32xf32> -> vector<288x32xf32>
    %c0_19 = arith.constant 0 : index
    %c1_20 = arith.constant 1 : index
    %c0_21 = arith.constant 0 : index
    %26 = vector.load %arg1[%c0_19, %c1_20, %c0_21] : memref<1x342x32xf32, #tpu.memory_space<vmem>>, vector<1x288x32xf32>
    %27 = vector.shape_cast %26 : vector<1x288x32xf32> to vector<288x32xf32>
    %28 = arith.truncf %27 : vector<288x32xf32> to vector<288x32xbf16>
    %c1_22 = arith.constant 1 : index
    %c0_23 = arith.constant 0 : index
    %c0_24 = arith.constant 0 : index
    %29 = vector.load %arg2[%c1_22, %c0_23, %c0_24] : memref<9x32x32xbf16, #tpu.memory_space<vmem>>, vector<1x32x32xbf16>
    %30 = vector.shape_cast %29 : vector<1x32x32xbf16> to vector<32x32xbf16>
    %cst_25 = arith.constant dense<0.000000e+00> : vector<288x32xf32>
    %31 = tpu.matmul %28, %30, %cst_25 {dimension_numbers = #tpu.dot_dimension_numbers<[1], [0], [0], [1], [0, 0, 1, 1], [], []>} : vector<288x32xbf16>, vector<32x32xbf16>, vector<288x32xf32> -> vector<288x32xf32>
    %32 = arith.addf %25, %31 : vector<288x32xf32>
    %c0_26 = arith.constant 0 : index
    %c2_27 = arith.constant 2 : index
    %c0_28 = arith.constant 0 : index
    %33 = vector.load %arg1[%c0_26, %c2_27, %c0_28] : memref<1x342x32xf32, #tpu.memory_space<vmem>>, vector<1x288x32xf32>
    %34 = vector.shape_cast %33 : vector<1x288x32xf32> to vector<288x32xf32>
    %35 = arith.truncf %34 : vector<288x32xf32> to vector<288x32xbf16>
    %c2_29 = arith.constant 2 : index
    %c0_30 = arith.constant 0 : index
    %c0_31 = arith.constant 0 : index
    %36 = vector.load %arg2[%c2_29, %c0_30, %c0_31] : memref<9x32x32xbf16, #tpu.memory_space<vmem>>, vector<1x32x32xbf16>
    %37 = vector.shape_cast %36 : vector<1x32x32xbf16> to vector<32x32xbf16>
    %cst_32 = arith.constant dense<0.000000e+00> : vector<288x32xf32>
    %38 = tpu.matmul %35, %37, %cst_32 {dimension_numbers = #tpu.dot_dimension_numbers<[1], [0], [0], [1], [0, 0, 1, 1], [], []>} : vector<288x32xbf16>, vector<32x32xbf16>, vector<288x32xf32> -> vector<288x32xf32>
    %39 = arith.addf %32, %38 : vector<288x32xf32>
    %c0_33 = arith.constant 0 : index
    %c18 = arith.constant 18 : index
    %c0_34 = arith.constant 0 : index
    %40 = vector.load %arg1[%c0_33, %c18, %c0_34] : memref<1x342x32xf32, #tpu.memory_space<vmem>>, vector<1x288x32xf32>
    %41 = vector.shape_cast %40 : vector<1x288x32xf32> to vector<288x32xf32>
    %42 = arith.truncf %41 : vector<288x32xf32> to vector<288x32xbf16>
    %c3_35 = arith.constant 3 : index
    %c0_36 = arith.constant 0 : index
    %c0_37 = arith.constant 0 : index
    %43 = vector.load %arg2[%c3_35, %c0_36, %c0_37] : memref<9x32x32xbf16, #tpu.memory_space<vmem>>, vector<1x32x32xbf16>
    %44 = vector.shape_cast %43 : vector<1x32x32xbf16> to vector<32x32xbf16>
    %cst_38 = arith.constant dense<0.000000e+00> : vector<288x32xf32>
    %45 = tpu.matmul %42, %44, %cst_38 {dimension_numbers = #tpu.dot_dimension_numbers<[1], [0], [0], [1], [0, 0, 1, 1], [], []>} : vector<288x32xbf16>, vector<32x32xbf16>, vector<288x32xf32> -> vector<288x32xf32>
    %46 = arith.addf %39, %45 : vector<288x32xf32>
    %c0_39 = arith.constant 0 : index
    %c19 = arith.constant 19 : index
    %c0_40 = arith.constant 0 : index
    %47 = vector.load %arg1[%c0_39, %c19, %c0_40] : memref<1x342x32xf32, #tpu.memory_space<vmem>>, vector<1x288x32xf32>
    %48 = vector.shape_cast %47 : vector<1x288x32xf32> to vector<288x32xf32>
    %49 = arith.truncf %48 : vector<288x32xf32> to vector<288x32xbf16>
    %c4 = arith.constant 4 : index
    %c0_41 = arith.constant 0 : index
    %c0_42 = arith.constant 0 : index
    %50 = vector.load %arg2[%c4, %c0_41, %c0_42] : memref<9x32x32xbf16, #tpu.memory_space<vmem>>, vector<1x32x32xbf16>
    %51 = vector.shape_cast %50 : vector<1x32x32xbf16> to vector<32x32xbf16>
    %cst_43 = arith.constant dense<0.000000e+00> : vector<288x32xf32>
    %52 = tpu.matmul %49, %51, %cst_43 {dimension_numbers = #tpu.dot_dimension_numbers<[1], [0], [0], [1], [0, 0, 1, 1], [], []>} : vector<288x32xbf16>, vector<32x32xbf16>, vector<288x32xf32> -> vector<288x32xf32>
    %53 = arith.addf %46, %52 : vector<288x32xf32>
    %c0_44 = arith.constant 0 : index
    %c20 = arith.constant 20 : index
    %c0_45 = arith.constant 0 : index
    %54 = vector.load %arg1[%c0_44, %c20, %c0_45] : memref<1x342x32xf32, #tpu.memory_space<vmem>>, vector<1x288x32xf32>
    %55 = vector.shape_cast %54 : vector<1x288x32xf32> to vector<288x32xf32>
    %56 = arith.truncf %55 : vector<288x32xf32> to vector<288x32xbf16>
    %c5 = arith.constant 5 : index
    %c0_46 = arith.constant 0 : index
    %c0_47 = arith.constant 0 : index
    %57 = vector.load %arg2[%c5, %c0_46, %c0_47] : memref<9x32x32xbf16, #tpu.memory_space<vmem>>, vector<1x32x32xbf16>
    %58 = vector.shape_cast %57 : vector<1x32x32xbf16> to vector<32x32xbf16>
    %cst_48 = arith.constant dense<0.000000e+00> : vector<288x32xf32>
    %59 = tpu.matmul %56, %58, %cst_48 {dimension_numbers = #tpu.dot_dimension_numbers<[1], [0], [0], [1], [0, 0, 1, 1], [], []>} : vector<288x32xbf16>, vector<32x32xbf16>, vector<288x32xf32> -> vector<288x32xf32>
    %60 = arith.addf %53, %59 : vector<288x32xf32>
    %c0_49 = arith.constant 0 : index
    %c36 = arith.constant 36 : index
    %c0_50 = arith.constant 0 : index
    %61 = vector.load %arg1[%c0_49, %c36, %c0_50] : memref<1x342x32xf32, #tpu.memory_space<vmem>>, vector<1x288x32xf32>
    %62 = vector.shape_cast %61 : vector<1x288x32xf32> to vector<288x32xf32>
    %63 = arith.truncf %62 : vector<288x32xf32> to vector<288x32xbf16>
    %c6 = arith.constant 6 : index
    %c0_51 = arith.constant 0 : index
    %c0_52 = arith.constant 0 : index
    %64 = vector.load %arg2[%c6, %c0_51, %c0_52] : memref<9x32x32xbf16, #tpu.memory_space<vmem>>, vector<1x32x32xbf16>
    %65 = vector.shape_cast %64 : vector<1x32x32xbf16> to vector<32x32xbf16>
    %cst_53 = arith.constant dense<0.000000e+00> : vector<288x32xf32>
    %66 = tpu.matmul %63, %65, %cst_53 {dimension_numbers = #tpu.dot_dimension_numbers<[1], [0], [0], [1], [0, 0, 1, 1], [], []>} : vector<288x32xbf16>, vector<32x32xbf16>, vector<288x32xf32> -> vector<288x32xf32>
    %67 = arith.addf %60, %66 : vector<288x32xf32>
    %c0_54 = arith.constant 0 : index
    %c37 = arith.constant 37 : index
    %c0_55 = arith.constant 0 : index
    %68 = vector.load %arg1[%c0_54, %c37, %c0_55] : memref<1x342x32xf32, #tpu.memory_space<vmem>>, vector<1x288x32xf32>
    %69 = vector.shape_cast %68 : vector<1x288x32xf32> to vector<288x32xf32>
    %70 = arith.truncf %69 : vector<288x32xf32> to vector<288x32xbf16>
    %c7 = arith.constant 7 : index
    %c0_56 = arith.constant 0 : index
    %c0_57 = arith.constant 0 : index
    %71 = vector.load %arg2[%c7, %c0_56, %c0_57] : memref<9x32x32xbf16, #tpu.memory_space<vmem>>, vector<1x32x32xbf16>
    %72 = vector.shape_cast %71 : vector<1x32x32xbf16> to vector<32x32xbf16>
    %cst_58 = arith.constant dense<0.000000e+00> : vector<288x32xf32>
    %73 = tpu.matmul %70, %72, %cst_58 {dimension_numbers = #tpu.dot_dimension_numbers<[1], [0], [0], [1], [0, 0, 1, 1], [], []>} : vector<288x32xbf16>, vector<32x32xbf16>, vector<288x32xf32> -> vector<288x32xf32>
    %74 = arith.addf %67, %73 : vector<288x32xf32>
    %c0_59 = arith.constant 0 : index
    %c38 = arith.constant 38 : index
    %c0_60 = arith.constant 0 : index
    %75 = vector.load %arg1[%c0_59, %c38, %c0_60] : memref<1x342x32xf32, #tpu.memory_space<vmem>>, vector<1x288x32xf32>
    %76 = vector.shape_cast %75 : vector<1x288x32xf32> to vector<288x32xf32>
    %77 = arith.truncf %76 : vector<288x32xf32> to vector<288x32xbf16>
    %c8 = arith.constant 8 : index
    %c0_61 = arith.constant 0 : index
    %c0_62 = arith.constant 0 : index
    %78 = vector.load %arg2[%c8, %c0_61, %c0_62] : memref<9x32x32xbf16, #tpu.memory_space<vmem>>, vector<1x32x32xbf16>
    %79 = vector.shape_cast %78 : vector<1x32x32xbf16> to vector<32x32xbf16>
    %cst_63 = arith.constant dense<0.000000e+00> : vector<288x32xf32>
    %80 = tpu.matmul %77, %79, %cst_63 {dimension_numbers = #tpu.dot_dimension_numbers<[1], [0], [0], [1], [0, 0, 1, 1], [], []>} : vector<288x32xbf16>, vector<32x32xbf16>, vector<288x32xf32> -> vector<288x32xf32>
    %81 = arith.addf %74, %80 : vector<288x32xf32>
    %82 = vector.broadcast %0 : vector<1x32xf32> to vector<288x32xf32>
    %83 = arith.mulf %81, %82 : vector<288x32xf32>
    %84 = vector.broadcast %1 : vector<1x32xf32> to vector<288x32xf32>
    %85 = arith.addf %83, %84 : vector<288x32xf32>
    %cst_64 = arith.constant 0.000000e+00 : f32
    %86 = vector.broadcast %cst_64 : f32 to vector<288x32xf32>
    %87 = arith.maximumf %85, %86 : vector<288x32xf32>
    %cst_65 = arith.constant 0.000000e+00 : f32
    %88 = vector.broadcast %cst_65 : f32 to vector<288x32xf32>
    %89 = arith.select %15, %87, %88 : vector<288x32xi1>, vector<288x32xf32>
    %90 = arith.truncf %89 : vector<288x32xf32> to vector<288x32xbf16>
    %c19_66 = arith.constant 19 : index
    %c0_67 = arith.constant 0 : index
    %91 = vector.load %arg6[%c19_66, %c0_67] : memref<342x32xbf16, #tpu.memory_space<vmem>>, vector<288x32xbf16>
    tpu.vector_store %arg6[%c19_66, %c0_67], %90 {strides = array<i32>} : memref<342x32xbf16, #tpu.memory_space<vmem>>, vector<288x32xbf16>,
    %c0_68 = arith.constant 0 : index
    %c0_69 = arith.constant 0 : index
    %92 = vector.load %arg6[%c0_68, %c0_69] : memref<342x32xbf16, #tpu.memory_space<vmem>>, vector<288x32xbf16>
    %c0_70 = arith.constant 0 : index
    %c0_71 = arith.constant 0 : index
    %c0_72 = arith.constant 0 : index
    %93 = vector.load %arg3[%c0_70, %c0_71, %c0_72] : memref<9x32x32xbf16, #tpu.memory_space<vmem>>, vector<1x32x32xbf16>
    %94 = vector.shape_cast %93 : vector<1x32x32xbf16> to vector<32x32xbf16>
    %cst_73 = arith.constant dense<0.000000e+00> : vector<288x32xf32>
    %95 = tpu.matmul %92, %94, %cst_73 {dimension_numbers = #tpu.dot_dimension_numbers<[1], [0], [0], [1], [0, 0, 1, 1], [], []>} : vector<288x32xbf16>, vector<32x32xbf16>, vector<288x32xf32> -> vector<288x32xf32>
    %c1_74 = arith.constant 1 : index
    %c0_75 = arith.constant 0 : index
    %96 = vector.load %arg6[%c1_74, %c0_75] : memref<342x32xbf16, #tpu.memory_space<vmem>>, vector<288x32xbf16>
    %c1_76 = arith.constant 1 : index
    %c0_77 = arith.constant 0 : index
    %c0_78 = arith.constant 0 : index
    %97 = vector.load %arg3[%c1_76, %c0_77, %c0_78] : memref<9x32x32xbf16, #tpu.memory_space<vmem>>, vector<1x32x32xbf16>
    %98 = vector.shape_cast %97 : vector<1x32x32xbf16> to vector<32x32xbf16>
    %cst_79 = arith.constant dense<0.000000e+00> : vector<288x32xf32>
    %99 = tpu.matmul %96, %98, %cst_79 {dimension_numbers = #tpu.dot_dimension_numbers<[1], [0], [0], [1], [0, 0, 1, 1], [], []>} : vector<288x32xbf16>, vector<32x32xbf16>, vector<288x32xf32> -> vector<288x32xf32>
    %100 = arith.addf %95, %99 : vector<288x32xf32>
    %c2_80 = arith.constant 2 : index
    %c0_81 = arith.constant 0 : index
    %101 = vector.load %arg6[%c2_80, %c0_81] : memref<342x32xbf16, #tpu.memory_space<vmem>>, vector<288x32xbf16>
    %c2_82 = arith.constant 2 : index
    %c0_83 = arith.constant 0 : index
    %c0_84 = arith.constant 0 : index
    %102 = vector.load %arg3[%c2_82, %c0_83, %c0_84] : memref<9x32x32xbf16, #tpu.memory_space<vmem>>, vector<1x32x32xbf16>
    %103 = vector.shape_cast %102 : vector<1x32x32xbf16> to vector<32x32xbf16>
    %cst_85 = arith.constant dense<0.000000e+00> : vector<288x32xf32>
    %104 = tpu.matmul %101, %103, %cst_85 {dimension_numbers = #tpu.dot_dimension_numbers<[1], [0], [0], [1], [0, 0, 1, 1], [], []>} : vector<288x32xbf16>, vector<32x32xbf16>, vector<288x32xf32> -> vector<288x32xf32>
    %105 = arith.addf %100, %104 : vector<288x32xf32>
    %c18_86 = arith.constant 18 : index
    %c0_87 = arith.constant 0 : index
    %106 = vector.load %arg6[%c18_86, %c0_87] : memref<342x32xbf16, #tpu.memory_space<vmem>>, vector<288x32xbf16>
    %c3_88 = arith.constant 3 : index
    %c0_89 = arith.constant 0 : index
    %c0_90 = arith.constant 0 : index
    %107 = vector.load %arg3[%c3_88, %c0_89, %c0_90] : memref<9x32x32xbf16, #tpu.memory_space<vmem>>, vector<1x32x32xbf16>
    %108 = vector.shape_cast %107 : vector<1x32x32xbf16> to vector<32x32xbf16>
    %cst_91 = arith.constant dense<0.000000e+00> : vector<288x32xf32>
    %109 = tpu.matmul %106, %108, %cst_91 {dimension_numbers = #tpu.dot_dimension_numbers<[1], [0], [0], [1], [0, 0, 1, 1], [], []>} : vector<288x32xbf16>, vector<32x32xbf16>, vector<288x32xf32> -> vector<288x32xf32>
    %110 = arith.addf %105, %109 : vector<288x32xf32>
    %c19_92 = arith.constant 19 : index
    %c0_93 = arith.constant 0 : index
    %111 = vector.load %arg6[%c19_92, %c0_93] : memref<342x32xbf16, #tpu.memory_space<vmem>>, vector<288x32xbf16>
    %c4_94 = arith.constant 4 : index
    %c0_95 = arith.constant 0 : index
    %c0_96 = arith.constant 0 : index
    %112 = vector.load %arg3[%c4_94, %c0_95, %c0_96] : memref<9x32x32xbf16, #tpu.memory_space<vmem>>, vector<1x32x32xbf16>
    %113 = vector.shape_cast %112 : vector<1x32x32xbf16> to vector<32x32xbf16>
    %cst_97 = arith.constant dense<0.000000e+00> : vector<288x32xf32>
    %114 = tpu.matmul %111, %113, %cst_97 {dimension_numbers = #tpu.dot_dimension_numbers<[1], [0], [0], [1], [0, 0, 1, 1], [], []>} : vector<288x32xbf16>, vector<32x32xbf16>, vector<288x32xf32> -> vector<288x32xf32>
    %115 = arith.addf %110, %114 : vector<288x32xf32>
    %c20_98 = arith.constant 20 : index
    %c0_99 = arith.constant 0 : index
    %116 = vector.load %arg6[%c20_98, %c0_99] : memref<342x32xbf16, #tpu.memory_space<vmem>>, vector<288x32xbf16>
    %c5_100 = arith.constant 5 : index
    %c0_101 = arith.constant 0 : index
    %c0_102 = arith.constant 0 : index
    %117 = vector.load %arg3[%c5_100, %c0_101, %c0_102] : memref<9x32x32xbf16, #tpu.memory_space<vmem>>, vector<1x32x32xbf16>
    %118 = vector.shape_cast %117 : vector<1x32x32xbf16> to vector<32x32xbf16>
    %cst_103 = arith.constant dense<0.000000e+00> : vector<288x32xf32>
    %119 = tpu.matmul %116, %118, %cst_103 {dimension_numbers = #tpu.dot_dimension_numbers<[1], [0], [0], [1], [0, 0, 1, 1], [], []>} : vector<288x32xbf16>, vector<32x32xbf16>, vector<288x32xf32> -> vector<288x32xf32>
    %120 = arith.addf %115, %119 : vector<288x32xf32>
    %c36_104 = arith.constant 36 : index
    %c0_105 = arith.constant 0 : index
    %121 = vector.load %arg6[%c36_104, %c0_105] : memref<342x32xbf16, #tpu.memory_space<vmem>>, vector<288x32xbf16>
    %c6_106 = arith.constant 6 : index
    %c0_107 = arith.constant 0 : index
    %c0_108 = arith.constant 0 : index
    %122 = vector.load %arg3[%c6_106, %c0_107, %c0_108] : memref<9x32x32xbf16, #tpu.memory_space<vmem>>, vector<1x32x32xbf16>
    %123 = vector.shape_cast %122 : vector<1x32x32xbf16> to vector<32x32xbf16>
    %cst_109 = arith.constant dense<0.000000e+00> : vector<288x32xf32>
    %124 = tpu.matmul %121, %123, %cst_109 {dimension_numbers = #tpu.dot_dimension_numbers<[1], [0], [0], [1], [0, 0, 1, 1], [], []>} : vector<288x32xbf16>, vector<32x32xbf16>, vector<288x32xf32> -> vector<288x32xf32>
    %125 = arith.addf %120, %124 : vector<288x32xf32>
    %c37_110 = arith.constant 37 : index
    %c0_111 = arith.constant 0 : index
    %126 = vector.load %arg6[%c37_110, %c0_111] : memref<342x32xbf16, #tpu.memory_space<vmem>>, vector<288x32xbf16>
    %c7_112 = arith.constant 7 : index
    %c0_113 = arith.constant 0 : index
    %c0_114 = arith.constant 0 : index
    %127 = vector.load %arg3[%c7_112, %c0_113, %c0_114] : memref<9x32x32xbf16, #tpu.memory_space<vmem>>, vector<1x32x32xbf16>
    %128 = vector.shape_cast %127 : vector<1x32x32xbf16> to vector<32x32xbf16>
    %cst_115 = arith.constant dense<0.000000e+00> : vector<288x32xf32>
    %129 = tpu.matmul %126, %128, %cst_115 {dimension_numbers = #tpu.dot_dimension_numbers<[1], [0], [0], [1], [0, 0, 1, 1], [], []>} : vector<288x32xbf16>, vector<32x32xbf16>, vector<288x32xf32> -> vector<288x32xf32>
    %130 = arith.addf %125, %129 : vector<288x32xf32>
    %c38_116 = arith.constant 38 : index
    %c0_117 = arith.constant 0 : index
    %131 = vector.load %arg6[%c38_116, %c0_117] : memref<342x32xbf16, #tpu.memory_space<vmem>>, vector<288x32xbf16>
    %c8_118 = arith.constant 8 : index
    %c0_119 = arith.constant 0 : index
    %c0_120 = arith.constant 0 : index
    %132 = vector.load %arg3[%c8_118, %c0_119, %c0_120] : memref<9x32x32xbf16, #tpu.memory_space<vmem>>, vector<1x32x32xbf16>
    %133 = vector.shape_cast %132 : vector<1x32x32xbf16> to vector<32x32xbf16>
    %cst_121 = arith.constant dense<0.000000e+00> : vector<288x32xf32>
    %134 = tpu.matmul %131, %133, %cst_121 {dimension_numbers = #tpu.dot_dimension_numbers<[1], [0], [0], [1], [0, 0, 1, 1], [], []>} : vector<288x32xbf16>, vector<32x32xbf16>, vector<288x32xf32> -> vector<288x32xf32>
    %135 = arith.addf %130, %134 : vector<288x32xf32>
    %c0_122 = arith.constant 0 : index
    %c19_123 = arith.constant 19 : index
    %c0_124 = arith.constant 0 : index
    %136 = vector.load %arg1[%c0_122, %c19_123, %c0_124] : memref<1x342x32xf32, #tpu.memory_space<vmem>>, vector<1x288x32xf32>
    %137 = vector.shape_cast %136 : vector<1x288x32xf32> to vector<288x32xf32>
    %138 = vector.broadcast %2 : vector<1x32xf32> to vector<288x32xf32>
    %139 = arith.mulf %135, %138 : vector<288x32xf32>
    %140 = vector.broadcast %3 : vector<1x32xf32> to vector<288x32xf32>
    %141 = arith.addf %139, %140 : vector<288x32xf32>
    %142 = arith.addf %141, %137 : vector<288x32xf32>
    %cst_125 = arith.constant 0.000000e+00 : f32
    %143 = vector.broadcast %cst_125 : f32 to vector<288x32xf32>
    %144 = arith.maximumf %142, %143 : vector<288x32xf32>
    %c0_126 = arith.constant 0 : index
    %c0_127 = arith.constant 0 : index
    %c0_128 = arith.constant 0 : index
    %145 = vector.load %arg5[%c0_126, %c0_127, %c0_128] : memref<1x288x32xf32, #tpu.memory_space<vmem>>, vector<1x288x32xf32>
    %146 = vector.shape_cast %145 : vector<1x288x32xf32> to vector<288x32xf32>
    %147 = vector.shape_cast %144 : vector<288x32xf32> to vector<1x288x32xf32>
    tpu.vector_store %arg5[%c0_126, %c0_127, %c0_128], %147 {strides = array<i32>} : memref<1x288x32xf32, #tpu.memory_space<vmem>>, vector<1x288x32xf32>,
    return
  }
  func.func @transform_0(%arg0: i32) -> (i32, i32, i32) {
    %c0_i32 = arith.constant 0 : i32
    %c0_i32_0 = arith.constant 0 : i32
    %c0_i32_1 = arith.constant 0 : i32
    return %arg0, %c0_i32, %c0_i32_0 : i32, i32, i32
  }
  func.func @transform_1(%arg0: i32) -> (i32, i32, i32) {
    %c0_i32 = arith.constant 0 : i32
    %c0_i32_0 = arith.constant 0 : i32
    %c0_i32_1 = arith.constant 0 : i32
    %c0_i32_2 = arith.constant 0 : i32
    return %c0_i32, %c0_i32_0, %c0_i32_1 : i32, i32, i32
  }
  func.func @transform_2(%arg0: i32) -> (i32, i32, i32) {
    %c0_i32 = arith.constant 0 : i32
    %c0_i32_0 = arith.constant 0 : i32
    %c0_i32_1 = arith.constant 0 : i32
    %c0_i32_2 = arith.constant 0 : i32
    return %c0_i32, %c0_i32_0, %c0_i32_1 : i32, i32, i32
  }
  func.func @transform_3(%arg0: i32) -> (i32, i32) {
    %c0_i32 = arith.constant 0 : i32
    %c0_i32_0 = arith.constant 0 : i32
    %c0_i32_1 = arith.constant 0 : i32
    return %c0_i32, %c0_i32_0 : i32, i32
  }
  func.func @transform_4(%arg0: i32) -> (i32, i32, i32) {
    %c0_i32 = arith.constant 0 : i32
    %c0_i32_0 = arith.constant 0 : i32
    %c0_i32_1 = arith.constant 0 : i32
    return %arg0, %c0_i32, %c0_i32_0 : i32, i32, i32
  }
}

</mosaic_0001>

<llo_original>
// kernel: resblock_forward.1
$region0: #{resblock_forward.1}
  #allocation0 [shape = 'u32[]', space=smem, size = 0x4, offset = 0x4, fixed_abs, tag = 'smem constant byte address 0x4 - core index']
  #allocation1 [shape = 'u32[144,128]{1,0:T(1,128)}', space=vmem, size = 0x12000, scoped, tag = 'internal scratch']
  #allocation2 [shape = 'bf16[342,32]{1,0:T(8,128)(2,1)}', space=vmem, size = 0x15800, scoped, tag = 'scratch operand']
  %s0 = inlined_call_operand.vmem [shape: f32[2,342,32], index: 0, kind: input, shape index: {}]
  %s1 = inlined_call_operand.vmem [shape: bf16[9,32,32], index: 1, kind: input, shape index: {}]
  %s2 = inlined_call_operand.vmem [shape: bf16[9,32,32], index: 2, kind: input, shape index: {}]
  %s3 = inlined_call_operand.vmem [shape: f32[4,32], index: 3, kind: input, shape index: {}]
  %s4 = inlined_call_operand.vmem [shape: f32[2,288,32], index: 4, kind: output, shape index: {}]
  %s5 = sld [smem:[#allocation0]]
  $region49: #{resblock_forward.1} parent=0
    _
  %s7 = ssub.s32 1, %s5
  %s8 = scalar_select 0, %s7, %s5
  loop: start=0, step=1, limit=4
  $region2: #{resblock_forward.1} parent=0 // loop_pre_header
    _
  $region3: #{resblock_forward.1} parent=0 // loop_header
    %s10 = sphi 0, %s14
    %p11 = scmp.ge.s32.totalorder %s10, 4
    %s20 = sphi 0, %s22
    %s23 = sphi 0, %s20
    %s24 = sphi 0, %s23
    %s40 = sphi 0, %s24
    %s44 = sphi 0, %s44
    %s46 = sphi 0, %s44
    %s47 = sphi 0, %s46
    %s61 = sphi 0, %s47
    %s65 = sphi 0, %s65
    %s67 = sphi 0, %s65
    %s68 = sphi 0, %s67
    %s82 = sphi 0, %s68
    %s86 = sphi 0, %s86
    %s88 = sphi 0, %s86
    %s89 = sphi 0, %s88
    %s103 = sphi 0, %s89
    %s109 = sphi 0, %s111
    %s112 = sphi 0, %s109
    %s113 = sphi 0, %s112
    %s129 = sphi 0, %s113
  $region4: #{resblock_forward.1} parent=0 // loop_header_branch
    %13 = sbr.rel (%p11) target = $region8
  $region5: #{resblock_forward.1} parent=0 // loop_body
    %s15 = ssub.s32 %s10, 1
    %s16 = ssub.s32 %s10, 2
    %s17 = sadd.s32 %s10, 1
    %s18 = ssub.s32 %s10, %s17
    %p19 = scmp.eq.s32.totalorder %s18, 0
    %s21 = sadd.s32 %s20, 1
    %s22 = scalar_select %p19, %s20, %s21
    %p25 = pneg %p19
    %p26 = scmp.eq.s32.totalorder %s10, 1
    %p27 = por %p25, %p26
    %p28 = scmp.ne.s32.totalorder %s20, %s23
    %p29 = scmp.eq.s32.totalorder %s10, 0
    %p30 = por %p28, %p29
    %p31 = scmp.ne.s32.totalorder %s20, %s23
    %p32 = scmp.eq.s32.totalorder %s15, 1
    %p33 = por %p31, %p32
    %p34 = scmp.ne.s32.totalorder %s23, %s24
    %p35 = scmp.eq.s32.totalorder %s15, 0
    %p36 = por %p34, %p35
    %p37 = scmp.ne.s32.totalorder %s23, %s24
    %p38 = scmp.eq.s32.totalorder %s16, 1
    %p39 = por %p37, %p38
    %p41 = scmp.ne.s32.totalorder %s24, %s40
    %p42 = scmp.eq.s32.totalorder %s16, 0
    %p43 = por %p41, %p42
    %s45 = sadd.s32 %s44, 1
    %p48 = scmp.eq.s32.totalorder %s10, 1
    %p49 = scmp.ne.s32.totalorder %s44, %s46
    %p50 = scmp.eq.s32.totalorder %s10, 0
    %p51 = por %p49, %p50
    %p52 = scmp.ne.s32.totalorder %s44, %s46
    %p53 = scmp.eq.s32.totalorder %s15, 1
    %p54 = por %p52, %p53
    %p55 = scmp.ne.s32.totalorder %s46, %s47
    %p56 = scmp.eq.s32.totalorder %s15, 0
    %p57 = por %p55, %p56
    %p58 = scmp.ne.s32.totalorder %s46, %s47
    %p59 = scmp.eq.s32.totalorder %s16, 1
    %p60 = por %p58, %p59
    %p62 = scmp.ne.s32.totalorder %s47, %s61
    %p63 = scmp.eq.s32.totalorder %s16, 0
    %p64 = por %p62, %p63
    %s66 = sadd.s32 %s65, 1
    %p69 = scmp.eq.s32.totalorder %s10, 1
    %p70 = scmp.ne.s32.totalorder %s65, %s67
    %p71 = scmp.eq.s32.totalorder %s10, 0
    %p72 = por %p70, %p71
    %p73 = scmp.ne.s32.totalorder %s65, %s67
    %p74 = scmp.eq.s32.totalorder %s15, 1
    %p75 = por %p73, %p74
    %p76 = scmp.ne.s32.totalorder %s67, %s68
    %p77 = scmp.eq.s32.totalorder %s15, 0
    %p78 = por %p76, %p77
    %p79 = scmp.ne.s32.totalorder %s67, %s68
    %p80 = scmp.eq.s32.totalorder %s16, 1
    %p81 = por %p79, %p80
    %p83 = scmp.ne.s32.totalorder %s68, %s82
    %p84 = scmp.eq.s32.totalorder %s16, 0
    %p85 = por %p83, %p84
    %s87 = sadd.s32 %s86, 1
    %p90 = scmp.eq.s32.totalorder %s10, 1
    %p91 = scmp.ne.s32.totalorder %s86, %s88
    %p92 = scmp.eq.s32.totalorder %s10, 0
    %p93 = por %p91, %p92
    %p94 = scmp.ne.s32.totalorder %s86, %s88
    %p95 = scmp.eq.s32.totalorder %s15, 1
    %p96 = por %p94, %p95
    %p97 = scmp.ne.s32.totalorder %s88, %s89
    %p98 = scmp.eq.s32.totalorder %s15, 0
    %p99 = por %p97, %p98
    %p100 = scmp.ne.s32.totalorder %s88, %s89
    %p101 = scmp.eq.s32.totalorder %s16, 1
    %p102 = por %p100, %p101
    %p104 = scmp.ne.s32.totalorder %s89, %s103
    %p105 = scmp.eq.s32.totalorder %s16, 0
    %p106 = por %p104, %p105
    %s107 = ssub.s32 %s10, %s17
    %p108 = scmp.eq.s32.totalorder %s107, 0
    %s110 = sadd.s32 %s109, 1
    %s111 = scalar_select %p108, %s109, %s110
    %p114 = pneg %p108
    %p115 = scmp.eq.s32.totalorder %s10, 1
    %p116 = por %p114, %p115
    %p117 = scmp.ne.s32.totalorder %s109, %s112
    %p118 = scmp.eq.s32.totalorder %s10, 0
    %p119 = por %p117, %p118
    %p120 = scmp.ne.s32.totalorder %s109, %s112
    %p121 = scmp.eq.s32.totalorder %s15, 1
    %p122 = por %p120, %p121
    %p123 = scmp.ne.s32.totalorder %s112, %s113
    %p124 = scmp.eq.s32.totalorder %s15, 0
    %p125 = por %p123, %p124
    %p126 = scmp.ne.s32.totalorder %s112, %s113
    %p127 = scmp.eq.s32.totalorder %s16, 1
    %p128 = por %p126, %p127
    %p130 = scmp.ne.s32.totalorder %s113, %s129
    %p131 = scmp.eq.s32.totalorder %s16, 0
    %p132 = por %p130, %p131
    %p133 = scmp.le.s32.totalorder 1, %s10
    %p134 = scmp.lt.s32.totalorder %s10, 3
    %p135 = pnand %p133, %p134
    %p136 = pneg %p135
    // Predicated region
    $region9: #{resblock_forward.1} parent=5 // pred_check
      _
    $region10: #{resblock_forward.1} parent=5 // pred_check_branch
      %138 = sbr.rel (%p135) target = $region12
    $region11: #{resblock_forward.1} parent=5 // pred_region
      %s139 = ssub.s32 %s10, 1
      // Predicated region
      $region13: #{resblock_forward.1} parent=11 // pred_check
        %p140 = pneg %p57
      $region14: #{resblock_forward.1} parent=11 // pred_check_branch
        %142 = sbr.rel (%p140) target = $region16
      $region15: #{resblock_forward.1} parent=11 // pred_region
        _
      $region16: #{resblock_forward.1} parent=11 // pred_fallthru
        _
      // Predicated region
      $region17: #{resblock_forward.1} parent=11 // pred_check
        %p143 = pneg %p78
      $region18: #{resblock_forward.1} parent=11 // pred_check_branch
        %145 = sbr.rel (%p143) target = $region20
      $region19: #{resblock_forward.1} parent=11 // pred_region
        _
      $region20: #{resblock_forward.1} parent=11 // pred_fallthru
        _
      // Predicated region
      $region21: #{resblock_forward.1} parent=11 // pred_check
        %p146 = pneg %p99
      $region22: #{resblock_forward.1} parent=11 // pred_check_branch
        %148 = sbr.rel (%p146) target = $region24
      $region23: #{resblock_forward.1} parent=11 // pred_region
        _
      $region24: #{resblock_forward.1} parent=11 // pred_fallthru
        _
    $region12: #{resblock_forward.1} parent=5 // pred_fallthru
      _
    %p149 = scmp.lt.s32.totalorder %s10, 2
    // Predicated region
    $region25: #{resblock_forward.1} parent=5 // pred_check
      %p150 = pneg %p149
    $region26: #{resblock_forward.1} parent=5 // pred_check_branch
      %152 = sbr.rel (%p150) target = $region28
    $region27: #{resblock_forward.1} parent=5 // pred_region
      // Predicated region
      $region29: #{resblock_forward.1} parent=27 // pred_check
        %p153 = pneg %p30
      $region30: #{resblock_forward.1} parent=27 // pred_check_branch
        %155 = sbr.rel (%p153) target = $region32
      $region31: #{resblock_forward.1} parent=27 // pred_region
        %p156 = scmp.lt.s32.totalorder %s10, 1
        %s157 = scalar_select %p156, %s10, 1
        %s158 = smul.addr %s157, 43
        %s159 = smul.addr %s158, 8
        %s160 = scalar_lea.vmem %s0, %s159
      $region32: #{resblock_forward.1} parent=27 // pred_fallthru
        _
    $region28: #{resblock_forward.1} parent=5 // pred_fallthru
      _
    %p161 = scmp.le.s32.totalorder 1, %s10
    %p162 = scmp.lt.s32.totalorder %s10, 3
    %p163 = pnand %p161, %p162
    %p164 = pneg %p163
    // Predicated region
    $region33: #{resblock_forward.1} parent=5 // pred_check
      _
    $region34: #{resblock_forward.1} parent=5 // pred_check_branch
      %166 = sbr.rel (%p163) target = $region36
    $region35: #{resblock_forward.1} parent=5 // pred_region
      %s167 = ssub.s32 %s10, 1
      %p168 = scmp.lt.s32.totalorder %s15, 1
      %s169 = scalar_select %p168, %s15, 1
      %s170 = smul.addr %s169, 43
      %s171 = smul.addr %s170, 8
      %s172 = scalar_lea.vmem %s0, %s171
      %p173 = pneg %p36
      %p174 = pneg %p33
      %p175 = pneg %p57
      %p176 = pneg %p54
      %p177 = pneg %p78
      %p178 = pneg %p75
      %p179 = pneg %p99
      %p180 = pneg %p96
      %p181 = pneg %p125
      %p182 = pneg %p122
      %p183 = scmp.lt.s32.totalorder %s15, 1
      %s184 = scalar_select %p183, %s15, 1
      %s185 = smul.addr %s184, 36
      %s186 = smul.addr %s185, 8
      %s187 = scalar_lea.vmem %s4, %s186
      %p188 = scmp.lt.s32.totalorder %s15, 1
      %s189 = scalar_select %p188, %s15, 1
      %s190 = smul.addr %s189, 43
      %s191 = smul.addr %s190, 8
      %s192 = scalar_lea.vmem %s0, %s191
      %p193 = scmp.lt.s32.totalorder %s15, 1
      %s194 = scalar_select %p193, %s15, 1
      %s195 = smul.addr %s194, 36
      %s196 = smul.addr %s195, 8
      %s197 = scalar_lea.vmem %s4, %s196
      %v199 = vld [vmem:[%s3] sm:$0x1]
      %v200 = vld [vmem:[%s3 + $0x1] sm:$0x1]
      %v201 = vld [vmem:[%s3 + $0x2] sm:$0x1]
      %v202 = vld [vmem:[%s3 + $0x3] sm:$0x1]
      %v203 = vlaneseq
      %v204 = vshrl.u32 %v203, 7
      %v205 = vadd.s32 %v204, 8
      %v206 = vadd.s32 %v204, 16
      %v207 = vadd.s32 %v204, 24
      %v208 = vadd.s32 %v204, 32
      %v209 = vadd.s32 %v204, 40
      %v210 = vadd.s32 %v204, 48
      %v211 = vadd.s32 %v204, 56
      %v212 = vadd.s32 %v204, 64
      %v213 = vadd.s32 %v204, 72
      %v214 = vadd.s32 %v204, 80
      %v215 = vadd.s32 %v204, 88
      %v216 = vadd.s32 %v204, 96
      %v217 = vadd.s32 %v204, 104
      %v218 = vadd.s32 %v204, 112
      %v219 = vadd.s32 %v204, 120
      %v220 = vadd.s32 %v204, 128
      %v221 = vadd.s32 %v204, 136
      %v222 = vadd.s32 %v204, 144
      %v223 = vadd.s32 %v204, 152
      %v224 = vadd.s32 %v204, 160
      %v225 = vadd.s32 %v204, 168
      %v226 = vadd.s32 %v204, 176
      %v227 = vadd.s32 %v204, 184
      %v228 = vadd.s32 %v204, 192
      %v229 = vadd.s32 %v204, 200
      %v230 = vadd.s32 %v204, 208
      %v231 = vadd.s32 %v204, 216
      %v232 = vadd.s32 %v204, 224
      %v233 = vadd.s32 %v204, 232
      %v234 = vadd.s32 %v204, 240
      %v235 = vadd.s32 %v204, 248
      %v236 = vadd.s32 %v204, 256
      %v237 = vadd.s32 %v204, 264
      %v238 = vadd.s32 %v204, 272
      %v239 = vadd.s32 %v204, 280
      %v240 = vcvt.s32.f32 %v204
      %v241 = vcvt.s32.f32 %v205
      %v242 = vcvt.s32.f32 %v206
      %v243 = vcvt.s32.f32 %v207
      %v244 = vcvt.s32.f32 %v208
      %v245 = vcvt.s32.f32 %v209
      %v246 = vcvt.s32.f32 %v210
      %v247 = vcvt.s32.f32 %v211
      %v248 = vcvt.s32.f32 %v212
      %v249 = vcvt.s32.f32 %v213
      %v250 = vcvt.s32.f32 %v214
      %v251 = vcvt.s32.f32 %v215
      %v252 = vcvt.s32.f32 %v216
      %v253 = vcvt.s32.f32 %v217
      %v254 = vcvt.s32.f32 %v218
      %v255 = vcvt.s32.f32 %v219
      %v256 = vcvt.s32.f32 %v220
      %v257 = vcvt.s32.f32 %v221
      %v258 = vcvt.s32.f32 %v222
      %v259 = vcvt.s32.f32 %v223
      %v260 = vcvt.s32.f32 %v224
      %v261 = vcvt.s32.f32 %v225
      %v262 = vcvt.s32.f32 %v226
      %v263 = vcvt.s32.f32 %v227
      %v264 = vcvt.s32.f32 %v228
      %v265 = vcvt.s32.f32 %v229
      %v266 = vcvt.s32.f32 %v230
      %v267 = vcvt.s32.f32 %v231
      %v268 = vcvt.s32.f32 %v232
      %v269 = vcvt.s32.f32 %v233
      %v270 = vcvt.s32.f32 %v234
      %v271 = vcvt.s32.f32 %v235
      %v272 = vcvt.s32.f32 %v236
      %v273 = vcvt.s32.f32 %v237
      %v274 = vcvt.s32.f32 %v238
      %v275 = vcvt.s32.f32 %v239
      %v276 = vadd.f32 %v240, 0.5
      %v277 = vadd.f32 %v241, 0.5
      %v278 = vadd.f32 %v242, 0.5
      %v279 = vadd.f32 %v243, 0.5
      %v280 = vadd.f32 %v244, 0.5
      %v281 = vadd.f32 %v245, 0.5
      %v282 = vadd.f32 %v246, 0.5
      %v283 = vadd.f32 %v247, 0.5
      %v284 = vadd.f32 %v248, 0.5
      %v285 = vadd.f32 %v249, 0.5
      %v286 = vadd.f32 %v250, 0.5
      %v287 = vadd.f32 %v251, 0.5
      %v288 = vadd.f32 %v252, 0.5
      %v289 = vadd.f32 %v253, 0.5
      %v290 = vadd.f32 %v254, 0.5
      %v291 = vadd.f32 %v255, 0.5
      %v292 = vadd.f32 %v256, 0.5
      %v293 = vadd.f32 %v257, 0.5
      %v294 = vadd.f32 %v258, 0.5
      %v295 = vadd.f32 %v259, 0.5
      %v296 = vadd.f32 %v260, 0.5
      %v297 = vadd.f32 %v261, 0.5
      %v298 = vadd.f32 %v262, 0.5
      %v299 = vadd.f32 %v263, 0.5
      %v300 = vadd.f32 %v264, 0.5
      %v301 = vadd.f32 %v265, 0.5
      %v302 = vadd.f32 %v266, 0.5
      %v303 = vadd.f32 %v267, 0.5
      %v304 = vadd.f32 %v268, 0.5
      %v305 = vadd.f32 %v269, 0.5
      %v306 = vadd.f32 %v270, 0.5
      %v307 = vadd.f32 %v271, 0.5
      %v308 = vadd.f32 %v272, 0.5
      %v309 = vadd.f32 %v273, 0.5
      %v310 = vadd.f32 %v274, 0.5
      %v311 = vadd.f32 %v275, 0.5
      %v312 = vmul.f32 %v276, 0.055555556
      %v313 = vmul.f32 %v277, 0.055555556
      %v314 = vmul.f32 %v278, 0.055555556
      %v315 = vmul.f32 %v279, 0.055555556
      %v316 = vmul.f32 %v280, 0.055555556
      %v317 = vmul.f32 %v281, 0.055555556
      %v318 = vmul.f32 %v282, 0.055555556
      %v319 = vmul.f32 %v283, 0.055555556
      %v320 = vmul.f32 %v284, 0.055555556
      %v321 = vmul.f32 %v285, 0.055555556
      %v322 = vmul.f32 %v286, 0.055555556
      %v323 = vmul.f32 %v287, 0.055555556
      %v324 = vmul.f32 %v288, 0.055555556
      %v325 = vmul.f32 %v289, 0.055555556
      %v326 = vmul.f32 %v290, 0.055555556
      %v327 = vmul.f32 %v291, 0.055555556
      %v328 = vmul.f32 %v292, 0.055555556
      %v329 = vmul.f32 %v293, 0.055555556
      %v330 = vmul.f32 %v294, 0.055555556
      %v331 = vmul.f32 %v295, 0.055555556
      %v332 = vmul.f32 %v296, 0.055555556
      %v333 = vmul.f32 %v297, 0.055555556
      %v334 = vmul.f32 %v298, 0.055555556
      %v335 = vmul.f32 %v299, 0.055555556
      %v336 = vmul.f32 %v300, 0.055555556
      %v337 = vmul.f32 %v301, 0.055555556
      %v338 = vmul.f32 %v302, 0.055555556
      %v339 = vmul.f32 %v303, 0.055555556
      %v340 = vmul.f32 %v304, 0.055555556
      %v341 = vmul.f32 %v305, 0.055555556
      %v342 = vmul.f32 %v306, 0.055555556
      %v343 = vmul.f32 %v307, 0.055555556
      %v344 = vmul.f32 %v308, 0.055555556
      %v345 = vmul.f32 %v309, 0.055555556
      %v346 = vmul.f32 %v310, 0.055555556
      %v347 = vmul.f32 %v311, 0.055555556
      %v348 = vfloor.f32 %v312
      %v349 = vfloor.f32 %v313
      %v350 = vfloor.f32 %v314
      %v351 = vfloor.f32 %v315
      %v352 = vfloor.f32 %v316
      %v353 = vfloor.f32 %v317
      %v354 = vfloor.f32 %v318
      %v355 = vfloor.f32 %v319
      %v356 = vfloor.f32 %v320
      %v357 = vfloor.f32 %v321
      %v358 = vfloor.f32 %v322
      %v359 = vfloor.f32 %v323
      %v360 = vfloor.f32 %v324
      %v361 = vfloor.f32 %v325
      %v362 = vfloor.f32 %v326
      %v363 = vfloor.f32 %v327
      %v364 = vfloor.f32 %v328
      %v365 = vfloor.f32 %v329
      %v366 = vfloor.f32 %v330
      %v367 = vfloor.f32 %v331
      %v368 = vfloor.f32 %v332
      %v369 = vfloor.f32 %v333
      %v370 = vfloor.f32 %v334
      %v371 = vfloor.f32 %v335
      %v372 = vfloor.f32 %v336
      %v373 = vfloor.f32 %v337
      %v374 = vfloor.f32 %v338
      %v375 = vfloor.f32 %v339
      %v376 = vfloor.f32 %v340
      %v377 = vfloor.f32 %v341
      %v378 = vfloor.f32 %v342
      %v379 = vfloor.f32 %v343
      %v380 = vfloor.f32 %v344
      %v381 = vfloor.f32 %v345
      %v382 = vfloor.f32 %v346
      %v383 = vfloor.f32 %v347
      %v384 = vmul.f32 %v348, 18.0
      %v385 = vmul.f32 %v349, 18.0
      %v386 = vmul.f32 %v350, 18.0
      %v387 = vmul.f32 %v351, 18.0
      %v388 = vmul.f32 %v352, 18.0
      %v389 = vmul.f32 %v353, 18.0
      %v390 = vmul.f32 %v354, 18.0
      %v391 = vmul.f32 %v355, 18.0
      %v392 = vmul.f32 %v356, 18.0
      %v393 = vmul.f32 %v357, 18.0
      %v394 = vmul.f32 %v358, 18.0
      %v395 = vmul.f32 %v359, 18.0
      %v396 = vmul.f32 %v360, 18.0
      %v397 = vmul.f32 %v361, 18.0
      %v398 = vmul.f32 %v362, 18.0
      %v399 = vmul.f32 %v363, 18.0
      %v400 = vmul.f32 %v364, 18.0
      %v401 = vmul.f32 %v365, 18.0
      %v402 = vmul.f32 %v366, 18.0
      %v403 = vmul.f32 %v367, 18.0
      %v404 = vmul.f32 %v368, 18.0
      %v405 = vmul.f32 %v369, 18.0
      %v406 = vmul.f32 %v370, 18.0
      %v407 = vmul.f32 %v371, 18.0
      %v408 = vmul.f32 %v372, 18.0
      %v409 = vmul.f32 %v373, 18.0
      %v410 = vmul.f32 %v374, 18.0
      %v411 = vmul.f32 %v375, 18.0
      %v412 = vmul.f32 %v376, 18.0
      %v413 = vmul.f32 %v377, 18.0
      %v414 = vmul.f32 %v378, 18.0
      %v415 = vmul.f32 %v379, 18.0
      %v416 = vmul.f32 %v380, 18.0
      %v417 = vmul.f32 %v381, 18.0
      %v418 = vmul.f32 %v382, 18.0
      %v419 = vmul.f32 %v383, 18.0
      %v420 = vsub.f32 %v240, %v384
      %v421 = vsub.f32 %v241, %v385
      %v422 = vsub.f32 %v242, %v386
      %v423 = vsub.f32 %v243, %v387
      %v424 = vsub.f32 %v244, %v388
      %v425 = vsub.f32 %v245, %v389
      %v426 = vsub.f32 %v246, %v390
      %v427 = vsub.f32 %v247, %v391
      %v428 = vsub.f32 %v248, %v392
      %v429 = vsub.f32 %v249, %v393
      %v430 = vsub.f32 %v250, %v394
      %v431 = vsub.f32 %v251, %v395
      %v432 = vsub.f32 %v252, %v396
      %v433 = vsub.f32 %v253, %v397
      %v434 = vsub.f32 %v254, %v398
      %v435 = vsub.f32 %v255, %v399
      %v436 = vsub.f32 %v256, %v400
      %v437 = vsub.f32 %v257, %v401
      %v438 = vsub.f32 %v258, %v402
      %v439 = vsub.f32 %v259, %v403
      %v440 = vsub.f32 %v260, %v404
      %v441 = vsub.f32 %v261, %v405
      %v442 = vsub.f32 %v262, %v406
      %v443 = vsub.f32 %v263, %v407
      %v444 = vsub.f32 %v264, %v408
      %v445 = vsub.f32 %v265, %v409
      %v446 = vsub.f32 %v266, %v410
      %v447 = vsub.f32 %v267, %v411
      %v448 = vsub.f32 %v268, %v412
      %v449 = vsub.f32 %v269, %v413
      %v450 = vsub.f32 %v270, %v414
      %v451 = vsub.f32 %v271, %v415
      %v452 = vsub.f32 %v272, %v416
      %v453 = vsub.f32 %v273, %v417
      %v454 = vsub.f32 %v274, %v418
      %v455 = vsub.f32 %v275, %v419
      %vm456 = vcmp.lt.f32.partialorder %v420, 15.5
      %vm457 = vcmp.lt.f32.partialorder %v421, 15.5
      %vm458 = vcmp.lt.f32.partialorder %v422, 15.5
      %vm459 = vcmp.lt.f32.partialorder %v423, 15.5
      %vm460 = vcmp.lt.f32.partialorder %v424, 15.5
      %vm461 = vcmp.lt.f32.partialorder %v425, 15.5
      %vm462 = vcmp.lt.f32.partialorder %v426, 15.5
      %vm463 = vcmp.lt.f32.partialorder %v427, 15.5
      %vm464 = vcmp.lt.f32.partialorder %v428, 15.5
      %vm465 = vcmp.lt.f32.partialorder %v429, 15.5
      %vm466 = vcmp.lt.f32.partialorder %v430, 15.5
      %vm467 = vcmp.lt.f32.partialorder %v431, 15.5
      %vm468 = vcmp.lt.f32.partialorder %v432, 15.5
      %vm469 = vcmp.lt.f32.partialorder %v433, 15.5
      %vm470 = vcmp.lt.f32.partialorder %v434, 15.5
      %vm471 = vcmp.lt.f32.partialorder %v435, 15.5
      %vm472 = vcmp.lt.f32.partialorder %v436, 15.5
      %vm473 = vcmp.lt.f32.partialorder %v437, 15.5
      %vm474 = vcmp.lt.f32.partialorder %v438, 15.5
      %vm475 = vcmp.lt.f32.partialorder %v439, 15.5
      %vm476 = vcmp.lt.f32.partialorder %v440, 15.5
      %vm477 = vcmp.lt.f32.partialorder %v441, 15.5
      %vm478 = vcmp.lt.f32.partialorder %v442, 15.5
      %vm479 = vcmp.lt.f32.partialorder %v443, 15.5
      %vm480 = vcmp.lt.f32.partialorder %v444, 15.5
      %vm481 = vcmp.lt.f32.partialorder %v445, 15.5
      %vm482 = vcmp.lt.f32.partialorder %v446, 15.5
      %vm483 = vcmp.lt.f32.partialorder %v447, 15.5
      %vm484 = vcmp.lt.f32.partialorder %v448, 15.5
      %vm485 = vcmp.lt.f32.partialorder %v449, 15.5
      %vm486 = vcmp.lt.f32.partialorder %v450, 15.5
      %vm487 = vcmp.lt.f32.partialorder %v451, 15.5
      %vm488 = vcmp.lt.f32.partialorder %v452, 15.5
      %vm489 = vcmp.lt.f32.partialorder %v453, 15.5
      %vm490 = vcmp.lt.f32.partialorder %v454, 15.5
      %vm491 = vcmp.lt.f32.partialorder %v455, 15.5
      %vm492 = vcmask 257024
      %493 = vst.msk [vmem:[#allocation2] sm:$0xf] %vm492, 0
      %494 = vst.msk [vmem:[#allocation2 + $0x4] sm:$0xf] %vm492, 0
      %vm495 = vcmask 254976
      %vm496 = vsmask.f32 1280
      %vm497 = vmand %vm495, %vm496
      %v498 = vld [vmem:[#allocation2 + $0x8] sm:$0x3]
      %v499 = vsel %vm497, 0, %v498
      %500 = vst [vmem:[#allocation2 + $0x8] sm:$0x3] %v499
      %vm501 = vcmask 257025
      %vm502 = vsmask.f32 7942
      %vm503 = vmand %vm501, %vm502
      %v504 = vld [vmem:[#allocation2 + $0x98] sm:$0xe]
      %v505 = vsel %vm503, 0, %v504
      %506 = vst [vmem:[#allocation2 + $0x98] sm:$0xe] %v505
      %507 = vst.msk [vmem:[#allocation2 + $0x9c] sm:$0xf] %vm492, 0
      %508 = vst.msk [vmem:[#allocation2 + $0xa0] sm:$0xf] %vm492, 0
      %509 = vst.msk [vmem:[#allocation2 + $0xa4] sm:$0xf] %vm492, 0
      %vm510 = vcmask 256000
      %511 = vst.msk [vmem:[#allocation2 + $0xa8] sm:$0x7] %vm510, 0
      %v512 = vld [vmem:[%s192] sm:$0xff]
      %v513 = vld [vmem:[%s192 + $0x8] sm:$0xff]
      %v514 = vld [vmem:[%s192 + $0x10] sm:$0xff]
      %v515 = vld [vmem:[%s192 + $0x18] sm:$0xff]
      %v516 = vld [vmem:[%s192 + $0x20] sm:$0xff]
      %v517 = vld [vmem:[%s192 + $0x28] sm:$0xff]
      %v518 = vld [vmem:[%s192 + $0x30] sm:$0xff]
      %v519 = vld [vmem:[%s192 + $0x38] sm:$0xff]
      %v520 = vld [vmem:[%s192 + $0x40] sm:$0xff]
      %v521 = vld [vmem:[%s192 + $0x48] sm:$0xff]
      %v522 = vld [vmem:[%s192 + $0x50] sm:$0xff]
      %v523 = vld [vmem:[%s192 + $0x58] sm:$0xff]
      %v524 = vld [vmem:[%s192 + $0x60] sm:$0xff]
      %v525 = vld [vmem:[%s192 + $0x68] sm:$0xff]
      %v526 = vld [vmem:[%s192 + $0x70] sm:$0xff]
      %v527 = vld [vmem:[%s192 + $0x78] sm:$0xff]
      %v528 = vld [vmem:[%s192 + $0x80] sm:$0xff]
      %v529 = vld [vmem:[%s192 + $0x88] sm:$0xff]
      %v530 = vld [vmem:[%s192 + $0x90] sm:$0xff]
      %v531 = vld [vmem:[%s192 + $0x98] sm:$0xff]
      %v532 = vld [vmem:[%s192 + $0xa0] sm:$0xff]
      %v533 = vld [vmem:[%s192 + $0xa8] sm:$0xff]
      %v534 = vld [vmem:[%s192 + $0xb0] sm:$0xff]
      %v535 = vld [vmem:[%s192 + $0xb8] sm:$0xff]
      %v536 = vld [vmem:[%s192 + $0xc0] sm:$0xff]
      %v537 = vld [vmem:[%s192 + $0xc8] sm:$0xff]
      %v538 = vld [vmem:[%s192 + $0xd0] sm:$0xff]
      %v539 = vld [vmem:[%s192 + $0xd8] sm:$0xff]
      %v540 = vld [vmem:[%s192 + $0xe0] sm:$0xff]
      %v541 = vld [vmem:[%s192 + $0xe8] sm:$0xff]
      %v542 = vld [vmem:[%s192 + $0xf0] sm:$0xff]
      %v543 = vld [vmem:[%s192 + $0xf8] sm:$0xff]
      %v544 = vld [vmem:[%s192 + $0x100] sm:$0xff]
      %v545 = vld [vmem:[%s192 + $0x108] sm:$0xff]
      %v546 = vld [vmem:[%s192 + $0x110] sm:$0xff]
      %v547 = vld [vmem:[%s192 + $0x118] sm:$0xff]
      %v548 = vpack.c.bf16 %v513, %v512
      %v549 = vpack.c.bf16 %v515, %v514
      %v550 = vpack.c.bf16 %v517, %v516
      %v551 = vpack.c.bf16 %v519, %v518
      %v552 = vpack.c.bf16 %v521, %v520
      %v553 = vpack.c.bf16 %v523, %v522
      %v554 = vpack.c.bf16 %v525, %v524
      %v555 = vpack.c.bf16 %v527, %v526
      %v556 = vpack.c.bf16 %v529, %v528
      %v557 = vpack.c.bf16 %v531, %v530
      %v558 = vpack.c.bf16 %v533, %v532
      %v559 = vpack.c.bf16 %v535, %v534
      %v560 = vpack.c.bf16 %v537, %v536
      %v561 = vpack.c.bf16 %v539, %v538
      %v562 = vpack.c.bf16 %v541, %v540
      %v563 = vpack.c.bf16 %v543, %v542
      %v564 = vpack.c.bf16 %v545, %v544
      %v565 = vpack.c.bf16 %v547, %v546
      %v566 = vld [vmem:[%s1] sm:$0xf]
      %v567 = vld [vmem:[%s1 + $0x4] sm:$0xf]
      %v568 = vld [vmem:[%s1 + $0x8] sm:$0xf]
      %v569 = vld [vmem:[%s1 + $0xc] sm:$0xf]
      %v570 = vld [vmem:[%s192 + $0x1] sm:$0xff]
      %v571 = vld [vmem:[%s192 + $0x9] sm:$0xff]
      %v572 = vld [vmem:[%s192 + $0x11] sm:$0xff]
      %v573 = vld [vmem:[%s192 + $0x19] sm:$0xff]
      %v574 = vld [vmem:[%s192 + $0x21] sm:$0xff]
      %v575 = vld [vmem:[%s192 + $0x29] sm:$0xff]
      %v576 = vld [vmem:[%s192 + $0x31] sm:$0xff]
      %v577 = vld [vmem:[%s192 + $0x39] sm:$0xff]
      %v578 = vld [vmem:[%s192 + $0x41] sm:$0xff]
      %v579 = vld [vmem:[%s192 + $0x49] sm:$0xff]
      %v580 = vld [vmem:[%s192 + $0x51] sm:$0xff]
      %v581 = vld [vmem:[%s192 + $0x59] sm:$0xff]
      %v582 = vld [vmem:[%s192 + $0x61] sm:$0xff]
      %v583 = vld [vmem:[%s192 + $0x69] sm:$0xff]
      %v584 = vld [vmem:[%s192 + $0x71] sm:$0xff]
      %v585 = vld [vmem:[%s192 + $0x79] sm:$0xff]
      %v586 = vld [vmem:[%s192 + $0x81] sm:$0xff]
      %v587 = vld [vmem:[%s192 + $0x89] sm:$0xff]
      %v588 = vld [vmem:[%s192 + $0x91] sm:$0xff]
      %v589 = vld [vmem:[%s192 + $0x99] sm:$0xff]
      %v590 = vld [vmem:[%s192 + $0xa1] sm:$0xff]
      %v591 = vld [vmem:[%s192 + $0xa9] sm:$0xff]
      %v592 = vld [vmem:[%s192 + $0xb1] sm:$0xff]
      %v593 = vld [vmem:[%s192 + $0xb9] sm:$0xff]
      %v594 = vld [vmem:[%s192 + $0xc1] sm:$0xff]
      %v595 = vld [vmem:[%s192 + $0xc9] sm:$0xff]
      %v596 = vld [vmem:[%s192 + $0xd1] sm:$0xff]
      %v597 = vld [vmem:[%s192 + $0xd9] sm:$0xff]
      %v598 = vld [vmem:[%s192 + $0xe1] sm:$0xff]
      %v599 = vld [vmem:[%s192 + $0xe9] sm:$0xff]
      %v600 = vld [vmem:[%s192 + $0xf1] sm:$0xff]
      %v601 = vld [vmem:[%s192 + $0xf9] sm:$0xff]
      %v602 = vld [vmem:[%s192 + $0x101] sm:$0xff]
      %v603 = vld [vmem:[%s192 + $0x109] sm:$0xff]
      %v604 = vld [vmem:[%s192 + $0x111] sm:$0xff]
      %v605 = vld [vmem:[%s192 + $0x119] sm:$0xff]
      %v606 = vpack.c.bf16 %v571, %v570
      %v607 = vpack.c.bf16 %v573, %v572
      %v608 = vpack.c.bf16 %v575, %v574
      %v609 = vpack.c.bf16 %v577, %v576
      %v610 = vpack.c.bf16 %v579, %v578
      %v611 = vpack.c.bf16 %v581, %v580
      %v612 = vpack.c.bf16 %v583, %v582
      %v613 = vpack.c.bf16 %v585, %v584
      %v614 = vpack.c.bf16 %v587, %v586
      %v615 = vpack.c.bf16 %v589, %v588
      %v616 = vpack.c.bf16 %v591, %v590
      %v617 = vpack.c.bf16 %v593, %v592
      %v618 = vpack.c.bf16 %v595, %v594
      %v619 = vpack.c.bf16 %v597, %v596
      %v620 = vpack.c.bf16 %v599, %v598
      %v621 = vpack.c.bf16 %v601, %v600
      %v622 = vpack.c.bf16 %v603, %v602
      %v623 = vpack.c.bf16 %v605, %v604
      %s624 = scalar_lea.vmem %s1, 16
      %v625 = vld [vmem:[%s624] sm:$0xf]
      %v626 = vld [vmem:[%s624 + $0x4] sm:$0xf]
      %v627 = vld [vmem:[%s624 + $0x8] sm:$0xf]
      %v628 = vld [vmem:[%s624 + $0xc] sm:$0xf]
      %v633 = vunpack.c.l.b16 %v625
      %v634 = vunpack.c.l.b16 %v626
      %v635 = vunpack.c.l.b16 %v627
      %v636 = vunpack.c.l.b16 %v628
      %v637 = vpack.c.b16 %v634, %v633
      %v638 = vpack.c.b16 %v636, %v635
      %vm641 = vcmask 261120
      %v643 = vsel %vm641, %v606, 0
      %v646 = vsel %vm641, %v607, 0
      %v649 = vsel %vm641, %v608, 0
      %v652 = vsel %vm641, %v609, 0
      %v655 = vsel %vm641, %v610, 0
      %v658 = vsel %vm641, %v611, 0
      %v661 = vsel %vm641, %v612, 0
      %v664 = vsel %vm641, %v613, 0
      %v667 = vsel %vm641, %v614, 0
      %v670 = vsel %vm641, %v615, 0
      %v673 = vsel %vm641, %v616, 0
      %v676 = vsel %vm641, %v617, 0
      %v679 = vsel %vm641, %v618, 0
      %v682 = vsel %vm641, %v619, 0
      %v685 = vsel %vm641, %v620, 0
      %v688 = vsel %vm641, %v621, 0
      %v691 = vsel %vm641, %v622, 0
      %v694 = vsel %vm641, %v623, 0
      %696 = vmatprep.subr.bf16.mxu0 0
      %697 = vmatpush1.bf16.msra.mxu0 0
      %698 = vmatprep.subr.bf16.mxu0 0
      %699 = vmatpush1.bf16.msra.mxu0 0
      %700 = vmatprep.subr.bf16.mxu0 0
      %701 = vmatpush1.bf16.msra.mxu0 0
      %702 = vmatprep.subr.bf16.mxu0 0
      %703 = vmatpush1.bf16.msra.mxu0 0
      %704 = vmatprep.subr.bf16.mxu0 0
      %705 = vmatpush1.bf16.msra.mxu0 0
      %706 = vmatprep.subr.bf16.mxu0 0
      %707 = vmatpush1.bf16.msra.mxu0 0
      %708 = vmatprep.subr.bf16.mxu0 0
      %709 = vmatpush1.bf16.msra.mxu0 %v638
      %710 = vmatprep.subr.bf16.mxu0 0
      %711 = vmatpush1.bf16.msra.mxu0 %v637
      %712 = vmatprep.subr.bf16.mxu0 0
      %713 = vmatpush2.bf16.msra.mxu0 0
      %714 = vmatprep.subr.bf16.mxu0 0
      %715 = vmatpush2.bf16.msra.mxu0 0
      %716 = vmatprep.subr.bf16.mxu0 0
      %717 = vmatpush2.bf16.msra.mxu0 0
      %718 = vmatprep.subr.bf16.mxu0 0
      %719 = vmatpush2.bf16.msra.mxu0 0
      %720 = vmatprep.subr.bf16.mxu0 0
      %721 = vmatpush2.bf16.msra.mxu0 0
      %722 = vmatprep.subr.bf16.mxu0 0
      %723 = vmatpush2.bf16.msra.mxu0 0
      %724 = vmatprep.subr.bf16.mxu0 0
      %725 = vmatpush2.bf16.msra.mxu0 0
      %726 = vmatprep.subr.bf16.mxu0 0
      %727 = vmatpush2.bf16.msra.mxu0 0
      %728 = vmatprep.mubr.bf16.mxu0 0
      %729 = vmatmul.mubr.bf16.gmra.mxu0 %v643
      %v730 = vpop.f32.mrf.mxu0
      %v731 = vadd.f32 0.0, %v730
      %v732 = vpop.f32.mrf.mxu0
      %v733 = vpop.f32.mrf.mxu0
      %v734 = vadd.f32 0.0, %v733
      %v735 = vpop.f32.mrf.mxu0
      %736 = vmatprep.mubr.bf16.mxu0 0
      %737 = vmatmul.mubr.bf16.gmra.mxu0 %v646
      %v738 = vpop.f32.mrf.mxu0
      %v739 = vadd.f32 0.0, %v738
      %v740 = vpop.f32.mrf.mxu0
      %v741 = vpop.f32.mrf.mxu0
      %v742 = vadd.f32 0.0, %v741
      %v743 = vpop.f32.mrf.mxu0
      %744 = vmatprep.mubr.bf16.mxu0 0
      %745 = vmatmul.mubr.bf16.gmra.mxu0 %v649
      %v746 = vpop.f32.mrf.mxu0
      %v747 = vadd.f32 0.0, %v746
      %v748 = vpop.f32.mrf.mxu0
      %v749 = vpop.f32.mrf.mxu0
      %v750 = vadd.f32 0.0, %v749
      %v751 = vpop.f32.mrf.mxu0
      %752 = vmatprep.mubr.bf16.mxu0 0
      %753 = vmatmul.mubr.bf16.gmra.mxu0 %v652
      %v754 = vpop.f32.mrf.mxu0
      %v755 = vadd.f32 0.0, %v754
      %v756 = vpop.f32.mrf.mxu0
      %v757 = vpop.f32.mrf.mxu0
      %v758 = vadd.f32 0.0, %v757
      %v759 = vpop.f32.mrf.mxu0
      %760 = vmatprep.mubr.bf16.mxu0 0
      %761 = vmatmul.mubr.bf16.gmra.mxu0 %v655
      %v762 = vpop.f32.mrf.mxu0
      %v763 = vadd.f32 0.0, %v762
      %v764 = vpop.f32.mrf.mxu0
      %v765 = vpop.f32.mrf.mxu0
      %v766 = vadd.f32 0.0, %v765
      %v767 = vpop.f32.mrf.mxu0
      %768 = vmatprep.mubr.bf16.mxu0 0
      %769 = vmatmul.mubr.bf16.gmra.mxu0 %v658
      %v770 = vpop.f32.mrf.mxu0
      %v771 = vadd.f32 0.0, %v770
      %v772 = vpop.f32.mrf.mxu0
      %v773 = vpop.f32.mrf.mxu0
      %v774 = vadd.f32 0.0, %v773
      %v775 = vpop.f32.mrf.mxu0
      %776 = vmatprep.mubr.bf16.mxu0 0
      %777 = vmatmul.mubr.bf16.gmra.mxu0 %v661
      %v778 = vpop.f32.mrf.mxu0
      %v779 = vadd.f32 0.0, %v778
      %v780 = vpop.f32.mrf.mxu0
      %v781 = vpop.f32.mrf.mxu0
      %v782 = vadd.f32 0.0, %v781
      %v783 = vpop.f32.mrf.mxu0
      %784 = vmatprep.mubr.bf16.mxu0 0
      %785 = vmatmul.mubr.bf16.gmra.mxu0 %v664
      %v786 = vpop.f32.mrf.mxu0
      %v787 = vadd.f32 0.0, %v786
      %v788 = vpop.f32.mrf.mxu0
      %v789 = vpop.f32.mrf.mxu0
      %v790 = vadd.f32 0.0, %v789
      %v791 = vpop.f32.mrf.mxu0
      %792 = vmatprep.mubr.bf16.mxu0 0
      %793 = vmatmul.mubr.bf16.gmra.mxu0 %v667
      %v794 = vpop.f32.mrf.mxu0
      %v795 = vadd.f32 0.0, %v794
      %v796 = vpop.f32.mrf.mxu0
      %v797 = vpop.f32.mrf.mxu0
      %v798 = vadd.f32 0.0, %v797
      %v799 = vpop.f32.mrf.mxu0
      %800 = vmatprep.mubr.bf16.mxu0 0
      %801 = vmatmul.mubr.bf16.gmra.mxu0 %v670
      %v802 = vpop.f32.mrf.mxu0
      %v803 = vadd.f32 0.0, %v802
      %v804 = vpop.f32.mrf.mxu0
      %v805 = vpop.f32.mrf.mxu0
      %v806 = vadd.f32 0.0, %v805
      %v807 = vpop.f32.mrf.mxu0
      %808 = vmatprep.mubr.bf16.mxu0 0
      %809 = vmatmul.mubr.bf16.gmra.mxu0 %v673
      %v810 = vpop.f32.mrf.mxu0
      %v811 = vadd.f32 0.0, %v810
      %v812 = vpop.f32.mrf.mxu0
      %v813 = vpop.f32.mrf.mxu0
      %v814 = vadd.f32 0.0, %v813
      %v815 = vpop.f32.mrf.mxu0
      %816 = vmatprep.mubr.bf16.mxu0 0
      %817 = vmatmul.mubr.bf16.gmra.mxu0 %v676
      %v818 = vpop.f32.mrf.mxu0
      %v819 = vadd.f32 0.0, %v818
      %v820 = vpop.f32.mrf.mxu0
      %v821 = vpop.f32.mrf.mxu0
      %v822 = vadd.f32 0.0, %v821
      %v823 = vpop.f32.mrf.mxu0
      %824 = vmatprep.mubr.bf16.mxu0 0
      %825 = vmatmul.mubr.bf16.gmra.mxu0 %v679
      %v826 = vpop.f32.mrf.mxu0
      %v827 = vadd.f32 0.0, %v826
      %v828 = vpop.f32.mrf.mxu0
      %v829 = vpop.f32.mrf.mxu0
      %v830 = vadd.f32 0.0, %v829
      %v831 = vpop.f32.mrf.mxu0
      %832 = vmatprep.mubr.bf16.mxu0 0
      %833 = vmatmul.mubr.bf16.gmra.mxu0 %v682
      %v834 = vpop.f32.mrf.mxu0
      %v835 = vadd.f32 0.0, %v834
      %v836 = vpop.f32.mrf.mxu0
      %v837 = vpop.f32.mrf.mxu0
      %v838 = vadd.f32 0.0, %v837
      %v839 = vpop.f32.mrf.mxu0
      %840 = vmatprep.mubr.bf16.mxu0 0
      %841 = vmatmul.mubr.bf16.gmra.mxu0 %v685
      %v842 = vpop.f32.mrf.mxu0
      %v843 = vadd.f32 0.0, %v842
      %v844 = vpop.f32.mrf.mxu0
      %v845 = vpop.f32.mrf.mxu0
      %v846 = vadd.f32 0.0, %v845
      %v847 = vpop.f32.mrf.mxu0
      %848 = vmatprep.mubr.bf16.mxu0 0
      %849 = vmatmul.mubr.bf16.gmra.mxu0 %v688
      %v850 = vpop.f32.mrf.mxu0
      %v851 = vadd.f32 0.0, %v850
      %v852 = vpop.f32.mrf.mxu0
      %v853 = vpop.f32.mrf.mxu0
      %v854 = vadd.f32 0.0, %v853
      %v855 = vpop.f32.mrf.mxu0
      %856 = vmatprep.mubr.bf16.mxu0 0
      %857 = vmatmul.mubr.bf16.gmra.mxu0 %v691
      %v858 = vpop.f32.mrf.mxu0
      %v859 = vadd.f32 0.0, %v858
      %v860 = vpop.f32.mrf.mxu0
      %v861 = vpop.f32.mrf.mxu0
      %v862 = vadd.f32 0.0, %v861
      %v863 = vpop.f32.mrf.mxu0
      %864 = vmatprep.mubr.bf16.mxu0 0
      %865 = vmatmul.mubr.bf16.gmra.mxu0 %v694
      %v866 = vpop.f32.mrf.mxu0
      %v867 = vadd.f32 0.0, %v866
      %v868 = vpop.f32.mrf.mxu0
      %v869 = vpop.f32.mrf.mxu0
      %v870 = vadd.f32 0.0, %v869
      %v871 = vpop.f32.mrf.mxu0
      %872 = vdwg.mxu0
      %v877 = vunpack.c.l.b16 %v566
      %v878 = vunpack.c.l.b16 %v567
      %v879 = vunpack.c.l.b16 %v568
      %v880 = vunpack.c.l.b16 %v569
      %v881 = vpack.c.b16 %v878, %v877
      %v882 = vpack.c.b16 %v880, %v879
      %v886 = vsel %vm641, %v548, 0
      %v889 = vsel %vm641, %v549, 0
      %v892 = vsel %vm641, %v550, 0
      %v895 = vsel %vm641, %v551, 0
      %v898 = vsel %vm641, %v552, 0
      %v901 = vsel %vm641, %v553, 0
      %v904 = vsel %vm641, %v554, 0
      %v907 = vsel %vm641, %v555, 0
      %v910 = vsel %vm641, %v556, 0
      %v913 = vsel %vm641, %v557, 0
      %v916 = vsel %vm641, %v558, 0
      %v919 = vsel %vm641, %v559, 0
      %v922 = vsel %vm641, %v560, 0
      %v925 = vsel %vm641, %v561, 0
      %v928 = vsel %vm641, %v562, 0
      %v931 = vsel %vm641, %v563, 0
      %v934 = vsel %vm641, %v564, 0
      %v937 = vsel %vm641, %v565, 0
      %939 = vmatprep.subr.bf16.mxu0 0
      %940 = vmatpush1.bf16.msra.mxu0 0
      %941 = vmatprep.subr.bf16.mxu0 0
      %942 = vmatpush1.bf16.msra.mxu0 0
      %943 = vmatprep.subr.bf16.mxu0 0
      %944 = vmatpush1.bf16.msra.mxu0 0
      %945 = vmatprep.subr.bf16.mxu0 0
      %946 = vmatpush1.bf16.msra.mxu0 0
      %947 = vmatprep.subr.bf16.mxu0 0
      %948 = vmatpush1.bf16.msra.mxu0 0
      %949 = vmatprep.subr.bf16.mxu0 0
      %950 = vmatpush1.bf16.msra.mxu0 0
      %951 = vmatprep.subr.bf16.mxu0 0
      %952 = vmatpush1.bf16.msra.mxu0 %v882
      %953 = vmatprep.subr.bf16.mxu0 0
      %954 = vmatpush1.bf16.msra.mxu0 %v881
      %955 = vmatprep.subr.bf16.mxu0 0
      %956 = vmatpush2.bf16.msra.mxu0 0
      %957 = vmatprep.subr.bf16.mxu0 0
      %958 = vmatpush2.bf16.msra.mxu0 0
      %959 = vmatprep.subr.bf16.mxu0 0
      %960 = vmatpush2.bf16.msra.mxu0 0
      %961 = vmatprep.subr.bf16.mxu0 0
      %962 = vmatpush2.bf16.msra.mxu0 0
      %963 = vmatprep.subr.bf16.mxu0 0
      %964 = vmatpush2.bf16.msra.mxu0 0
      %965 = vmatprep.subr.bf16.mxu0 0
      %966 = vmatpush2.bf16.msra.mxu0 0
      %967 = vmatprep.subr.bf16.mxu0 0
      %968 = vmatpush2.bf16.msra.mxu0 0
      %969 = vmatprep.subr.bf16.mxu0 0
      %970 = vmatpush2.bf16.msra.mxu0 0
      %971 = vmatprep.mubr.bf16.mxu0 0
      %972 = vmatmul.mubr.bf16.gmra.mxu0 %v886
      %v973 = vpop.f32.mrf.mxu0
      %v974 = vadd.f32 %v731, %v973
      %v975 = vpop.f32.mrf.mxu0
      %v976 = vpop.f32.mrf.mxu0
      %v977 = vadd.f32 %v734, %v976
      %v978 = vpop.f32.mrf.mxu0
      %979 = vmatprep.mubr.bf16.mxu0 0
      %980 = vmatmul.mubr.bf16.gmra.mxu0 %v889
      %v981 = vpop.f32.mrf.mxu0
      %v982 = vadd.f32 %v739, %v981
      %v983 = vpop.f32.mrf.mxu0
      %v984 = vpop.f32.mrf.mxu0
      %v985 = vadd.f32 %v742, %v984
      %v986 = vpop.f32.mrf.mxu0
      %987 = vmatprep.mubr.bf16.mxu0 0
      %988 = vmatmul.mubr.bf16.gmra.mxu0 %v892
      %v989 = vpop.f32.mrf.mxu0
      %v990 = vadd.f32 %v747, %v989
      %v991 = vpop.f32.mrf.mxu0
      %v992 = vpop.f32.mrf.mxu0
      %v993 = vadd.f32 %v750, %v992
      %v994 = vpop.f32.mrf.mxu0
      %995 = vmatprep.mubr.bf16.mxu0 0
      %996 = vmatmul.mubr.bf16.gmra.mxu0 %v895
      %v997 = vpop.f32.mrf.mxu0
      %v998 = vadd.f32 %v755, %v997
      %v999 = vpop.f32.mrf.mxu0
      %v1000 = vpop.f32.mrf.mxu0
      %v1001 = vadd.f32 %v758, %v1000
      %v1002 = vpop.f32.mrf.mxu0
      %1003 = vmatprep.mubr.bf16.mxu0 0
      %1004 = vmatmul.mubr.bf16.gmra.mxu0 %v898
      %v1005 = vpop.f32.mrf.mxu0
      %v1006 = vadd.f32 %v763, %v1005
      %v1007 = vpop.f32.mrf.mxu0
      %v1008 = vpop.f32.mrf.mxu0
      %v1009 = vadd.f32 %v766, %v1008
      %v1010 = vpop.f32.mrf.mxu0
      %1011 = vmatprep.mubr.bf16.mxu0 0
      %1012 = vmatmul.mubr.bf16.gmra.mxu0 %v901
      %v1013 = vpop.f32.mrf.mxu0
      %v1014 = vadd.f32 %v771, %v1013
      %v1015 = vpop.f32.mrf.mxu0
      %v1016 = vpop.f32.mrf.mxu0
      %v1017 = vadd.f32 %v774, %v1016
      %v1018 = vpop.f32.mrf.mxu0
      %1019 = vmatprep.mubr.bf16.mxu0 0
      %1020 = vmatmul.mubr.bf16.gmra.mxu0 %v904
      %v1021 = vpop.f32.mrf.mxu0
      %v1022 = vadd.f32 %v779, %v1021
      %v1023 = vpop.f32.mrf.mxu0
      %v1024 = vpop.f32.mrf.mxu0
      %v1025 = vadd.f32 %v782, %v1024
      %v1026 = vpop.f32.mrf.mxu0
      %1027 = vmatprep.mubr.bf16.mxu0 0
      %1028 = vmatmul.mubr.bf16.gmra.mxu0 %v907
      %v1029 = vpop.f32.mrf.mxu0
      %v1030 = vadd.f32 %v787, %v1029
      %v1031 = vpop.f32.mrf.mxu0
      %v1032 = vpop.f32.mrf.mxu0
      %v1033 = vadd.f32 %v790, %v1032
      %v1034 = vpop.f32.mrf.mxu0
      %1035 = vmatprep.mubr.bf16.mxu0 0
      %1036 = vmatmul.mubr.bf16.gmra.mxu0 %v910
      %v1037 = vpop.f32.mrf.mxu0
      %v1038 = vadd.f32 %v795, %v1037
      %v1039 = vpop.f32.mrf.mxu0
      %v1040 = vpop.f32.mrf.mxu0
      %v1041 = vadd.f32 %v798, %v1040
      %v1042 = vpop.f32.mrf.mxu0
      %1043 = vmatprep.mubr.bf16.mxu0 0
      %1044 = vmatmul.mubr.bf16.gmra.mxu0 %v913
      %v1045 = vpop.f32.mrf.mxu0
      %v1046 = vadd.f32 %v803, %v1045
      %v1047 = vpop.f32.mrf.mxu0
      %v1048 = vpop.f32.mrf.mxu0
      %v1049 = vadd.f32 %v806, %v1048
      %v1050 = vpop.f32.mrf.mxu0
      %1051 = vmatprep.mubr.bf16.mxu0 0
      %1052 = vmatmul.mubr.bf16.gmra.mxu0 %v916
      %v1053 = vpop.f32.mrf.mxu0
      %v1054 = vadd.f32 %v811, %v1053
      %v1055 = vpop.f32.mrf.mxu0
      %v1056 = vpop.f32.mrf.mxu0
      %v1057 = vadd.f32 %v814, %v1056
      %v1058 = vpop.f32.mrf.mxu0
      %1059 = vmatprep.mubr.bf16.mxu0 0
      %1060 = vmatmul.mubr.bf16.gmra.mxu0 %v919
      %v1061 = vpop.f32.mrf.mxu0
      %v1062 = vadd.f32 %v819, %v1061
      %v1063 = vpop.f32.mrf.mxu0
      %v1064 = vpop.f32.mrf.mxu0
      %v1065 = vadd.f32 %v822, %v1064
      %v1066 = vpop.f32.mrf.mxu0
      %1067 = vmatprep.mubr.bf16.mxu0 0
      %1068 = vmatmul.mubr.bf16.gmra.mxu0 %v922
      %v1069 = vpop.f32.mrf.mxu0
      %v1070 = vadd.f32 %v827, %v1069
      %v1071 = vpop.f32.mrf.mxu0
      %v1072 = vpop.f32.mrf.mxu0
      %v1073 = vadd.f32 %v830, %v1072
      %v1074 = vpop.f32.mrf.mxu0
      %1075 = vmatprep.mubr.bf16.mxu0 0
      %1076 = vmatmul.mubr.bf16.gmra.mxu0 %v925
      %v1077 = vpop.f32.mrf.mxu0
      %v1078 = vadd.f32 %v835, %v1077
      %v1079 = vpop.f32.mrf.mxu0
      %v1080 = vpop.f32.mrf.mxu0
      %v1081 = vadd.f32 %v838, %v1080
      %v1082 = vpop.f32.mrf.mxu0
      %1083 = vmatprep.mubr.bf16.mxu0 0
      %1084 = vmatmul.mubr.bf16.gmra.mxu0 %v928
      %v1085 = vpop.f32.mrf.mxu0
      %v1086 = vadd.f32 %v843, %v1085
      %v1087 = vpop.f32.mrf.mxu0
      %v1088 = vpop.f32.mrf.mxu0
      %v1089 = vadd.f32 %v846, %v1088
      %v1090 = vpop.f32.mrf.mxu0
      %1091 = vmatprep.mubr.bf16.mxu0 0
      %1092 = vmatmul.mubr.bf16.gmra.mxu0 %v931
      %v1093 = vpop.f32.mrf.mxu0
      %v1094 = vadd.f32 %v851, %v1093
      %v1095 = vpop.f32.mrf.mxu0
      %v1096 = vpop.f32.mrf.mxu0
      %v1097 = vadd.f32 %v854, %v1096
      %v1098 = vpop.f32.mrf.mxu0
      %1099 = vmatprep.mubr.bf16.mxu0 0
      %1100 = vmatmul.mubr.bf16.gmra.mxu0 %v934
      %v1101 = vpop.f32.mrf.mxu0
      %v1102 = vadd.f32 %v859, %v1101
      %v1103 = vpop.f32.mrf.mxu0
      %v1104 = vpop.f32.mrf.mxu0
      %v1105 = vadd.f32 %v862, %v1104
      %v1106 = vpop.f32.mrf.mxu0
      %1107 = vmatprep.mubr.bf16.mxu0 0
      %1108 = vmatmul.mubr.bf16.gmra.mxu0 %v937
      %v1109 = vpop.f32.mrf.mxu0
      %v1110 = vadd.f32 %v867, %v1109
      %v1111 = vpop.f32.mrf.mxu0
      %v1112 = vpop.f32.mrf.mxu0
      %v1113 = vadd.f32 %v870, %v1112
      %v1114 = vpop.f32.mrf.mxu0
      %1115 = vdwg.mxu0
      %v1116 = vld [vmem:[%s192 + $0x2] sm:$0xff]
      %v1117 = vld [vmem:[%s192 + $0xa] sm:$0xff]
      %v1118 = vld [vmem:[%s192 + $0x12] sm:$0xff]
      %v1119 = vld [vmem:[%s192 + $0x1a] sm:$0xff]
      %v1120 = vld [vmem:[%s192 + $0x22] sm:$0xff]
      %v1121 = vld [vmem:[%s192 + $0x2a] sm:$0xff]
      %v1122 = vld [vmem:[%s192 + $0x32] sm:$0xff]
      %v1123 = vld [vmem:[%s192 + $0x3a] sm:$0xff]
      %v1124 = vld [vmem:[%s192 + $0x42] sm:$0xff]
      %v1125 = vld [vmem:[%s192 + $0x4a] sm:$0xff]
      %v1126 = vld [vmem:[%s192 + $0x52] sm:$0xff]
      %v1127 = vld [vmem:[%s192 + $0x5a] sm:$0xff]
      %v1128 = vld [vmem:[%s192 + $0x62] sm:$0xff]
      %v1129 = vld [vmem:[%s192 + $0x6a] sm:$0xff]
      %v1130 = vld [vmem:[%s192 + $0x72] sm:$0xff]
      %v1131 = vld [vmem:[%s192 + $0x7a] sm:$0xff]
      %v1132 = vld [vmem:[%s192 + $0x82] sm:$0xff]
      %v1133 = vld [vmem:[%s192 + $0x8a] sm:$0xff]
      %v1134 = vld [vmem:[%s192 + $0x92] sm:$0xff]
      %v1135 = vld [vmem:[%s192 + $0x9a] sm:$0xff]
      %v1136 = vld [vmem:[%s192 + $0xa2] sm:$0xff]
      %v1137 = vld [vmem:[%s192 + $0xaa] sm:$0xff]
      %v1138 = vld [vmem:[%s192 + $0xb2] sm:$0xff]
      %v1139 = vld [vmem:[%s192 + $0xba] sm:$0xff]
      %v1140 = vld [vmem:[%s192 + $0xc2] sm:$0xff]
      %v1141 = vld [vmem:[%s192 + $0xca] sm:$0xff]
      %v1142 = vld [vmem:[%s192 + $0xd2] sm:$0xff]
      %v1143 = vld [vmem:[%s192 + $0xda] sm:$0xff]
      %v1144 = vld [vmem:[%s192 + $0xe2] sm:$0xff]
      %v1145 = vld [vmem:[%s192 + $0xea] sm:$0xff]
      %v1146 = vld [vmem:[%s192 + $0xf2] sm:$0xff]
      %v1147 = vld [vmem:[%s192 + $0xfa] sm:$0xff]
      %v1148 = vld [vmem:[%s192 + $0x102] sm:$0xff]
      %v1149 = vld [vmem:[%s192 + $0x10a] sm:$0xff]
      %v1150 = vld [vmem:[%s192 + $0x112] sm:$0xff]
      %v1151 = vld [vmem:[%s192 + $0x11a] sm:$0xff]
      %v1152 = vpack.c.bf16 %v1117, %v1116
      %v1153 = vpack.c.bf16 %v1119, %v1118
      %v1154 = vpack.c.bf16 %v1121, %v1120
      %v1155 = vpack.c.bf16 %v1123, %v1122
      %v1156 = vpack.c.bf16 %v1125, %v1124
      %v1157 = vpack.c.bf16 %v1127, %v1126
      %v1158 = vpack.c.bf16 %v1129, %v1128
      %v1159 = vpack.c.bf16 %v1131, %v1130
      %v1160 = vpack.c.bf16 %v1133, %v1132
      %v1161 = vpack.c.bf16 %v1135, %v1134
      %v1162 = vpack.c.bf16 %v1137, %v1136
      %v1163 = vpack.c.bf16 %v1139, %v1138
      %v1164 = vpack.c.bf16 %v1141, %v1140
      %v1165 = vpack.c.bf16 %v1143, %v1142
      %v1166 = vpack.c.bf16 %v1145, %v1144
      %v1167 = vpack.c.bf16 %v1147, %v1146
      %v1168 = vpack.c.bf16 %v1149, %v1148
      %v1169 = vpack.c.bf16 %v1151, %v1150
      %s1170 = scalar_lea.vmem %s1, 32
      %v1171 = vld [vmem:[%s1170] sm:$0xf]
      %v1172 = vld [vmem:[%s1170 + $0x4] sm:$0xf]
      %v1173 = vld [vmem:[%s1170 + $0x8] sm:$0xf]
      %v1174 = vld [vmem:[%s1170 + $0xc] sm:$0xf]
      %v1179 = vunpack.c.l.b16 %v1171
      %v1180 = vunpack.c.l.b16 %v1172
      %v1181 = vunpack.c.l.b16 %v1173
      %v1182 = vunpack.c.l.b16 %v1174
      %v1183 = vpack.c.b16 %v1180, %v1179
      %v1184 = vpack.c.b16 %v1182, %v1181
      %v1188 = vsel %vm641, %v1152, 0
      %v1191 = vsel %vm641, %v1153, 0
      %v1194 = vsel %vm641, %v1154, 0
      %v1197 = vsel %vm641, %v1155, 0
      %v1200 = vsel %vm641, %v1156, 0
      %v1203 = vsel %vm641, %v1157, 0
      %v1206 = vsel %vm641, %v1158, 0
      %v1209 = vsel %vm641, %v1159, 0
      %v1212 = vsel %vm641, %v1160, 0
      %v1215 = vsel %vm641, %v1161, 0
      %v1218 = vsel %vm641, %v1162, 0
      %v1221 = vsel %vm641, %v1163, 0
      %v1224 = vsel %vm641, %v1164, 0
      %v1227 = vsel %vm641, %v1165, 0
      %v1230 = vsel %vm641, %v1166, 0
      %v1233 = vsel %vm641, %v1167, 0
      %v1236 = vsel %vm641, %v1168, 0
      %v1239 = vsel %vm641, %v1169, 0
      %1241 = vmatprep.subr.bf16.mxu0 0
      %1242 = vmatpush1.bf16.msra.mxu0 0
      %1243 = vmatprep.subr.bf16.mxu0 0
      %1244 = vmatpush1.bf16.msra.mxu0 0
      %1245 = vmatprep.subr.bf16.mxu0 0
      %1246 = vmatpush1.bf16.msra.mxu0 0
      %1247 = vmatprep.subr.bf16.mxu0 0
      %1248 = vmatpush1.bf16.msra.mxu0 0
      %1249 = vmatprep.subr.bf16.mxu0 0
      %1250 = vmatpush1.bf16.msra.mxu0 0
      %1251 = vmatprep.subr.bf16.mxu0 0
      %1252 = vmatpush1.bf16.msra.mxu0 0
      %1253 = vmatprep.subr.bf16.mxu0 0
      %1254 = vmatpush1.bf16.msra.mxu0 %v1184
      %1255 = vmatprep.subr.bf16.mxu0 0
      %1256 = vmatpush1.bf16.msra.mxu0 %v1183
      %1257 = vmatprep.subr.bf16.mxu0 0
      %1258 = vmatpush2.bf16.msra.mxu0 0
      %1259 = vmatprep.subr.bf16.mxu0 0
      %1260 = vmatpush2.bf16.msra.mxu0 0
      %1261 = vmatprep.subr.bf16.mxu0 0
      %1262 = vmatpush2.bf16.msra.mxu0 0
      %1263 = vmatprep.subr.bf16.mxu0 0
      %1264 = vmatpush2.bf16.msra.mxu0 0
      %1265 = vmatprep.subr.bf16.mxu0 0
      %1266 = vmatpush2.bf16.msra.mxu0 0
      %1267 = vmatprep.subr.bf16.mxu0 0
      %1268 = vmatpush2.bf16.msra.mxu0 0
      %1269 = vmatprep.subr.bf16.mxu0 0
      %1270 = vmatpush2.bf16.msra.mxu0 0
      %1271 = vmatprep.subr.bf16.mxu0 0
      %1272 = vmatpush2.bf16.msra.mxu0 0
      %1273 = vmatprep.mubr.bf16.mxu0 0
      %1274 = vmatmul.mubr.bf16.gmra.mxu0 %v1188
      %v1275 = vpop.f32.mrf.mxu0
      %v1276 = vadd.f32 0.0, %v1275
      %v1277 = vpop.f32.mrf.mxu0
      %v1278 = vpop.f32.mrf.mxu0
      %v1279 = vadd.f32 0.0, %v1278
      %v1280 = vpop.f32.mrf.mxu0
      %1281 = vmatprep.mubr.bf16.mxu0 0
      %1282 = vmatmul.mubr.bf16.gmra.mxu0 %v1191
      %v1283 = vpop.f32.mrf.mxu0
      %v1284 = vadd.f32 0.0, %v1283
      %v1285 = vpop.f32.mrf.mxu0
      %v1286 = vpop.f32.mrf.mxu0
      %v1287 = vadd.f32 0.0, %v1286
      %v1288 = vpop.f32.mrf.mxu0
      %1289 = vmatprep.mubr.bf16.mxu0 0
      %1290 = vmatmul.mubr.bf16.gmra.mxu0 %v1194
      %v1291 = vpop.f32.mrf.mxu0
      %v1292 = vadd.f32 0.0, %v1291
      %v1293 = vpop.f32.mrf.mxu0
      %v1294 = vpop.f32.mrf.mxu0
      %v1295 = vadd.f32 0.0, %v1294
      %v1296 = vpop.f32.mrf.mxu0
      %1297 = vmatprep.mubr.bf16.mxu0 0
      %1298 = vmatmul.mubr.bf16.gmra.mxu0 %v1197
      %v1299 = vpop.f32.mrf.mxu0
      %v1300 = vadd.f32 0.0, %v1299
      %v1301 = vpop.f32.mrf.mxu0
      %v1302 = vpop.f32.mrf.mxu0
      %v1303 = vadd.f32 0.0, %v1302
      %v1304 = vpop.f32.mrf.mxu0
      %1305 = vmatprep.mubr.bf16.mxu0 0
      %1306 = vmatmul.mubr.bf16.gmra.mxu0 %v1200
      %v1307 = vpop.f32.mrf.mxu0
      %v1308 = vadd.f32 0.0, %v1307
      %v1309 = vpop.f32.mrf.mxu0
      %v1310 = vpop.f32.mrf.mxu0
      %v1311 = vadd.f32 0.0, %v1310
      %v1312 = vpop.f32.mrf.mxu0
      %1313 = vmatprep.mubr.bf16.mxu0 0
      %1314 = vmatmul.mubr.bf16.gmra.mxu0 %v1203
      %v1315 = vpop.f32.mrf.mxu0
      %v1316 = vadd.f32 0.0, %v1315
      %v1317 = vpop.f32.mrf.mxu0
      %v1318 = vpop.f32.mrf.mxu0
      %v1319 = vadd.f32 0.0, %v1318
      %v1320 = vpop.f32.mrf.mxu0
      %1321 = vmatprep.mubr.bf16.mxu0 0
      %1322 = vmatmul.mubr.bf16.gmra.mxu0 %v1206
      %v1323 = vpop.f32.mrf.mxu0
      %v1324 = vadd.f32 0.0, %v1323
      %v1325 = vpop.f32.mrf.mxu0
      %v1326 = vpop.f32.mrf.mxu0
      %v1327 = vadd.f32 0.0, %v1326
      %v1328 = vpop.f32.mrf.mxu0
      %1329 = vmatprep.mubr.bf16.mxu0 0
      %1330 = vmatmul.mubr.bf16.gmra.mxu0 %v1209
      %v1331 = vpop.f32.mrf.mxu0
      %v1332 = vadd.f32 0.0, %v1331
      %v1333 = vpop.f32.mrf.mxu0
      %v1334 = vpop.f32.mrf.mxu0
      %v1335 = vadd.f32 0.0, %v1334
      %v1336 = vpop.f32.mrf.mxu0
      %1337 = vmatprep.mubr.bf16.mxu0 0
      %1338 = vmatmul.mubr.bf16.gmra.mxu0 %v1212
      %v1339 = vpop.f32.mrf.mxu0
      %v1340 = vadd.f32 0.0, %v1339
      %v1341 = vpop.f32.mrf.mxu0
      %v1342 = vpop.f32.mrf.mxu0
      %v1343 = vadd.f32 0.0, %v1342
      %v1344 = vpop.f32.mrf.mxu0
      %1345 = vmatprep.mubr.bf16.mxu0 0
      %1346 = vmatmul.mubr.bf16.gmra.mxu0 %v1215
      %v1347 = vpop.f32.mrf.mxu0
      %v1348 = vadd.f32 0.0, %v1347
      %v1349 = vpop.f32.mrf.mxu0
      %v1350 = vpop.f32.mrf.mxu0
      %v1351 = vadd.f32 0.0, %v1350
      %v1352 = vpop.f32.mrf.mxu0
      %1353 = vmatprep.mubr.bf16.mxu0 0
      %1354 = vmatmul.mubr.bf16.gmra.mxu0 %v1218
      %v1355 = vpop.f32.mrf.mxu0
      %v1356 = vadd.f32 0.0, %v1355
      %v1357 = vpop.f32.mrf.mxu0
      %v1358 = vpop.f32.mrf.mxu0
      %v1359 = vadd.f32 0.0, %v1358
      %v1360 = vpop.f32.mrf.mxu0
      %1361 = vmatprep.mubr.bf16.mxu0 0
      %1362 = vmatmul.mubr.bf16.gmra.mxu0 %v1221
      %v1363 = vpop.f32.mrf.mxu0
      %v1364 = vadd.f32 0.0, %v1363
      %v1365 = vpop.f32.mrf.mxu0
      %v1366 = vpop.f32.mrf.mxu0
      %v1367 = vadd.f32 0.0, %v1366
      %v1368 = vpop.f32.mrf.mxu0
      %1369 = vmatprep.mubr.bf16.mxu0 0
      %1370 = vmatmul.mubr.bf16.gmra.mxu0 %v1224
      %v1371 = vpop.f32.mrf.mxu0
      %v1372 = vadd.f32 0.0, %v1371
      %v1373 = vpop.f32.mrf.mxu0
      %v1374 = vpop.f32.mrf.mxu0
      %v1375 = vadd.f32 0.0, %v1374
      %v1376 = vpop.f32.mrf.mxu0
      %1377 = vmatprep.mubr.bf16.mxu0 0
      %1378 = vmatmul.mubr.bf16.gmra.mxu0 %v1227
      %v1379 = vpop.f32.mrf.mxu0
      %v1380 = vadd.f32 0.0, %v1379
      %v1381 = vpop.f32.mrf.mxu0
      %v1382 = vpop.f32.mrf.mxu0
      %v1383 = vadd.f32 0.0, %v1382
      %v1384 = vpop.f32.mrf.mxu0
      %1385 = vmatprep.mubr.bf16.mxu0 0
      %1386 = vmatmul.mubr.bf16.gmra.mxu0 %v1230
      %v1387 = vpop.f32.mrf.mxu0
      %v1388 = vadd.f32 0.0, %v1387
      %v1389 = vpop.f32.mrf.mxu0
      %v1390 = vpop.f32.mrf.mxu0
      %v1391 = vadd.f32 0.0, %v1390
      %v1392 = vpop.f32.mrf.mxu0
      %1393 = vmatprep.mubr.bf16.mxu0 0
      %1394 = vmatmul.mubr.bf16.gmra.mxu0 %v1233
      %v1395 = vpop.f32.mrf.mxu0
      %v1396 = vadd.f32 0.0, %v1395
      %v1397 = vpop.f32.mrf.mxu0
      %v1398 = vpop.f32.mrf.mxu0
      %v1399 = vadd.f32 0.0, %v1398
      %v1400 = vpop.f32.mrf.mxu0
      %1401 = vmatprep.mubr.bf16.mxu0 0
      %1402 = vmatmul.mubr.bf16.gmra.mxu0 %v1236
      %v1403 = vpop.f32.mrf.mxu0
      %v1404 = vadd.f32 0.0, %v1403
      %v1405 = vpop.f32.mrf.mxu0
      %v1406 = vpop.f32.mrf.mxu0
      %v1407 = vadd.f32 0.0, %v1406
      %v1408 = vpop.f32.mrf.mxu0
      %1409 = vmatprep.mubr.bf16.mxu0 0
      %1410 = vmatmul.mubr.bf16.gmra.mxu0 %v1239
      %v1411 = vpop.f32.mrf.mxu0
      %v1412 = vadd.f32 0.0, %v1411
      %v1413 = vpop.f32.mrf.mxu0
      %v1414 = vpop.f32.mrf.mxu0
      %v1415 = vadd.f32 0.0, %v1414
      %v1416 = vpop.f32.mrf.mxu0
      %1417 = vdwg.mxu0
      %v1418 = vadd.f32 %v974, %v1276
      %v1419 = vadd.f32 %v977, %v1279
      %v1420 = vadd.f32 %v982, %v1284
      %v1421 = vadd.f32 %v985, %v1287
      %v1422 = vadd.f32 %v990, %v1292
      %v1423 = vadd.f32 %v993, %v1295
      %v1424 = vadd.f32 %v998, %v1300
      %v1425 = vadd.f32 %v1001, %v1303
      %v1426 = vadd.f32 %v1006, %v1308
      %v1427 = vadd.f32 %v1009, %v1311
      %v1428 = vadd.f32 %v1014, %v1316
      %v1429 = vadd.f32 %v1017, %v1319
      %v1430 = vadd.f32 %v1022, %v1324
      %v1431 = vadd.f32 %v1025, %v1327
      %v1432 = vadd.f32 %v1030, %v1332
      %v1433 = vadd.f32 %v1033, %v1335
      %v1434 = vadd.f32 %v1038, %v1340
      %v1435 = vadd.f32 %v1041, %v1343
      %v1436 = vadd.f32 %v1046, %v1348
      %v1437 = vadd.f32 %v1049, %v1351
      %v1438 = vadd.f32 %v1054, %v1356
      %v1439 = vadd.f32 %v1057, %v1359
      %v1440 = vadd.f32 %v1062, %v1364
      %v1441 = vadd.f32 %v1065, %v1367
      %v1442 = vadd.f32 %v1070, %v1372
      %v1443 = vadd.f32 %v1073, %v1375
      %v1444 = vadd.f32 %v1078, %v1380
      %v1445 = vadd.f32 %v1081, %v1383
      %v1446 = vadd.f32 %v1086, %v1388
      %v1447 = vadd.f32 %v1089, %v1391
      %v1448 = vadd.f32 %v1094, %v1396
      %v1449 = vadd.f32 %v1097, %v1399
      %v1450 = vadd.f32 %v1102, %v1404
      %v1451 = vadd.f32 %v1105, %v1407
      %v1452 = vadd.f32 %v1110, %v1412
      %v1453 = vadd.f32 %v1113, %v1415
      %v1454 = vld [vmem:[%s192 + $0x12] sm:$0xff]
      %v1455 = vld [vmem:[%s192 + $0x1a] sm:$0xff]
      %v1456 = vld [vmem:[%s192 + $0x22] sm:$0xff]
      %v1457 = vld [vmem:[%s192 + $0x2a] sm:$0xff]
      %v1458 = vld [vmem:[%s192 + $0x32] sm:$0xff]
      %v1459 = vld [vmem:[%s192 + $0x3a] sm:$0xff]
      %v1460 = vld [vmem:[%s192 + $0x42] sm:$0xff]
      %v1461 = vld [vmem:[%s192 + $0x4a] sm:$0xff]
      %v1462 = vld [vmem:[%s192 + $0x52] sm:$0xff]
      %v1463 = vld [vmem:[%s192 + $0x5a] sm:$0xff]
      %v1464 = vld [vmem:[%s192 + $0x62] sm:$0xff]
      %v1465 = vld [vmem:[%s192 + $0x6a] sm:$0xff]
      %v1466 = vld [vmem:[%s192 + $0x72] sm:$0xff]
      %v1467 = vld [vmem:[%s192 + $0x7a] sm:$0xff]
      %v1468 = vld [vmem:[%s192 + $0x82] sm:$0xff]
      %v1469 = vld [vmem:[%s192 + $0x8a] sm:$0xff]
      %v1470 = vld [vmem:[%s192 + $0x92] sm:$0xff]
      %v1471 = vld [vmem:[%s192 + $0x9a] sm:$0xff]
      %v1472 = vld [vmem:[%s192 + $0xa2] sm:$0xff]
      %v1473 = vld [vmem:[%s192 + $0xaa] sm:$0xff]
      %v1474 = vld [vmem:[%s192 + $0xb2] sm:$0xff]
      %v1475 = vld [vmem:[%s192 + $0xba] sm:$0xff]
      %v1476 = vld [vmem:[%s192 + $0xc2] sm:$0xff]
      %v1477 = vld [vmem:[%s192 + $0xca] sm:$0xff]
      %v1478 = vld [vmem:[%s192 + $0xd2] sm:$0xff]
      %v1479 = vld [vmem:[%s192 + $0xda] sm:$0xff]
      %v1480 = vld [vmem:[%s192 + $0xe2] sm:$0xff]
      %v1481 = vld [vmem:[%s192 + $0xea] sm:$0xff]
      %v1482 = vld [vmem:[%s192 + $0xf2] sm:$0xff]
      %v1483 = vld [vmem:[%s192 + $0xfa] sm:$0xff]
      %v1484 = vld [vmem:[%s192 + $0x102] sm:$0xff]
      %v1485 = vld [vmem:[%s192 + $0x10a] sm:$0xff]
      %v1486 = vld [vmem:[%s192 + $0x112] sm:$0xff]
      %v1487 = vld [vmem:[%s192 + $0x11a] sm:$0xff]
      %v1488 = vld [vmem:[%s192 + $0x122] sm:$0xff]
      %v1489 = vld [vmem:[%s192 + $0x12a] sm:$0xff]
      %v1490 = vpack.c.bf16 %v1455, %v1454
      %v1491 = vpack.c.bf16 %v1457, %v1456
      %v1492 = vpack.c.bf16 %v1459, %v1458
      %v1493 = vpack.c.bf16 %v1461, %v1460
      %v1494 = vpack.c.bf16 %v1463, %v1462
      %v1495 = vpack.c.bf16 %v1465, %v1464
      %v1496 = vpack.c.bf16 %v1467, %v1466
      %v1497 = vpack.c.bf16 %v1469, %v1468
      %v1498 = vpack.c.bf16 %v1471, %v1470
      %v1499 = vpack.c.bf16 %v1473, %v1472
      %v1500 = vpack.c.bf16 %v1475, %v1474
      %v1501 = vpack.c.bf16 %v1477, %v1476
      %v1502 = vpack.c.bf16 %v1479, %v1478
      %v1503 = vpack.c.bf16 %v1481, %v1480
      %v1504 = vpack.c.bf16 %v1483, %v1482
      %v1505 = vpack.c.bf16 %v1485, %v1484
      %v1506 = vpack.c.bf16 %v1487, %v1486
      %v1507 = vpack.c.bf16 %v1489, %v1488
      %s1508 = scalar_lea.vmem %s1, 48
      %v1509 = vld [vmem:[%s1508] sm:$0xf]
      %v1510 = vld [vmem:[%s1508 + $0x4] sm:$0xf]
      %v1511 = vld [vmem:[%s1508 + $0x8] sm:$0xf]
      %v1512 = vld [vmem:[%s1508 + $0xc] sm:$0xf]
      %v1517 = vunpack.c.l.b16 %v1509
      %v1518 = vunpack.c.l.b16 %v1510
      %v1519 = vunpack.c.l.b16 %v1511
      %v1520 = vunpack.c.l.b16 %v1512
      %v1521 = vpack.c.b16 %v1518, %v1517
      %v1522 = vpack.c.b16 %v1520, %v1519
      %v1526 = vsel %vm641, %v1490, 0
      %v1529 = vsel %vm641, %v1491, 0
      %v1532 = vsel %vm641, %v1492, 0
      %v1535 = vsel %vm641, %v1493, 0
      %v1538 = vsel %vm641, %v1494, 0
      %v1541 = vsel %vm641, %v1495, 0
      %v1544 = vsel %vm641, %v1496, 0
      %v1547 = vsel %vm641, %v1497, 0
      %v1550 = vsel %vm641, %v1498, 0
      %v1553 = vsel %vm641, %v1499, 0
      %v1556 = vsel %vm641, %v1500, 0
      %v1559 = vsel %vm641, %v1501, 0
      %v1562 = vsel %vm641, %v1502, 0
      %v1565 = vsel %vm641, %v1503, 0
      %v1568 = vsel %vm641, %v1504, 0
      %v1571 = vsel %vm641, %v1505, 0
      %v1574 = vsel %vm641, %v1506, 0
      %v1577 = vsel %vm641, %v1507, 0
      %1579 = vmatprep.subr.bf16.mxu0 0
      %1580 = vmatpush1.bf16.msra.mxu0 0
      %1581 = vmatprep.subr.bf16.mxu0 0
      %1582 = vmatpush1.bf16.msra.mxu0 0
      %1583 = vmatprep.subr.bf16.mxu0 0
      %1584 = vmatpush1.bf16.msra.mxu0 0
      %1585 = vmatprep.subr.bf16.mxu0 0
      %1586 = vmatpush1.bf16.msra.mxu0 0
      %1587 = vmatprep.subr.bf16.mxu0 0
      %1588 = vmatpush1.bf16.msra.mxu0 0
      %1589 = vmatprep.subr.bf16.mxu0 0
      %1590 = vmatpush1.bf16.msra.mxu0 0
      %1591 = vmatprep.subr.bf16.mxu0 0
      %1592 = vmatpush1.bf16.msra.mxu0 %v1522
      %1593 = vmatprep.subr.bf16.mxu0 0
      %1594 = vmatpush1.bf16.msra.mxu0 %v1521
      %1595 = vmatprep.subr.bf16.mxu0 0
      %1596 = vmatpush2.bf16.msra.mxu0 0
      %1597 = vmatprep.subr.bf16.mxu0 0
      %1598 = vmatpush2.bf16.msra.mxu0 0
      %1599 = vmatprep.subr.bf16.mxu0 0
      %1600 = vmatpush2.bf16.msra.mxu0 0
      %1601 = vmatprep.subr.bf16.mxu0 0
      %1602 = vmatpush2.bf16.msra.mxu0 0
      %1603 = vmatprep.subr.bf16.mxu0 0
      %1604 = vmatpush2.bf16.msra.mxu0 0
      %1605 = vmatprep.subr.bf16.mxu0 0
      %1606 = vmatpush2.bf16.msra.mxu0 0
      %1607 = vmatprep.subr.bf16.mxu0 0
      %1608 = vmatpush2.bf16.msra.mxu0 0
      %1609 = vmatprep.subr.bf16.mxu0 0
      %1610 = vmatpush2.bf16.msra.mxu0 0
      %1611 = vmatprep.mubr.bf16.mxu0 0
      %1612 = vmatmul.mubr.bf16.gmra.mxu0 %v1526
      %v1613 = vpop.f32.mrf.mxu0
      %v1614 = vadd.f32 0.0, %v1613
      %v1615 = vpop.f32.mrf.mxu0
      %v1616 = vpop.f32.mrf.mxu0
      %v1617 = vadd.f32 0.0, %v1616
      %v1618 = vpop.f32.mrf.mxu0
      %1619 = vmatprep.mubr.bf16.mxu0 0
      %1620 = vmatmul.mubr.bf16.gmra.mxu0 %v1529
      %v1621 = vpop.f32.mrf.mxu0
      %v1622 = vadd.f32 0.0, %v1621
      %v1623 = vpop.f32.mrf.mxu0
      %v1624 = vpop.f32.mrf.mxu0
      %v1625 = vadd.f32 0.0, %v1624
      %v1626 = vpop.f32.mrf.mxu0
      %1627 = vmatprep.mubr.bf16.mxu0 0
      %1628 = vmatmul.mubr.bf16.gmra.mxu0 %v1532
      %v1629 = vpop.f32.mrf.mxu0
      %v1630 = vadd.f32 0.0, %v1629
      %v1631 = vpop.f32.mrf.mxu0
      %v1632 = vpop.f32.mrf.mxu0
      %v1633 = vadd.f32 0.0, %v1632
      %v1634 = vpop.f32.mrf.mxu0
      %1635 = vmatprep.mubr.bf16.mxu0 0
      %1636 = vmatmul.mubr.bf16.gmra.mxu0 %v1535
      %v1637 = vpop.f32.mrf.mxu0
      %v1638 = vadd.f32 0.0, %v1637
      %v1639 = vpop.f32.mrf.mxu0
      %v1640 = vpop.f32.mrf.mxu0
      %v1641 = vadd.f32 0.0, %v1640
      %v1642 = vpop.f32.mrf.mxu0
      %1643 = vmatprep.mubr.bf16.mxu0 0
      %1644 = vmatmul.mubr.bf16.gmra.mxu0 %v1538
      %v1645 = vpop.f32.mrf.mxu0
      %v1646 = vadd.f32 0.0, %v1645
      %v1647 = vpop.f32.mrf.mxu0
      %v1648 = vpop.f32.mrf.mxu0
      %v1649 = vadd.f32 0.0, %v1648
      %v1650 = vpop.f32.mrf.mxu0
      %1651 = vmatprep.mubr.bf16.mxu0 0
      %1652 = vmatmul.mubr.bf16.gmra.mxu0 %v1541
      %v1653 = vpop.f32.mrf.mxu0
      %v1654 = vadd.f32 0.0, %v1653
      %v1655 = vpop.f32.mrf.mxu0
      %v1656 = vpop.f32.mrf.mxu0
      %v1657 = vadd.f32 0.0, %v1656
      %v1658 = vpop.f32.mrf.mxu0
      %1659 = vmatprep.mubr.bf16.mxu0 0
      %1660 = vmatmul.mubr.bf16.gmra.mxu0 %v1544
      %v1661 = vpop.f32.mrf.mxu0
      %v1662 = vadd.f32 0.0, %v1661
      %v1663 = vpop.f32.mrf.mxu0
      %v1664 = vpop.f32.mrf.mxu0
      %v1665 = vadd.f32 0.0, %v1664
      %v1666 = vpop.f32.mrf.mxu0
      %1667 = vmatprep.mubr.bf16.mxu0 0
      %1668 = vmatmul.mubr.bf16.gmra.mxu0 %v1547
      %v1669 = vpop.f32.mrf.mxu0
      %v1670 = vadd.f32 0.0, %v1669
      %v1671 = vpop.f32.mrf.mxu0
      %v1672 = vpop.f32.mrf.mxu0
      %v1673 = vadd.f32 0.0, %v1672
      %v1674 = vpop.f32.mrf.mxu0
      %1675 = vmatprep.mubr.bf16.mxu0 0
      %1676 = vmatmul.mubr.bf16.gmra.mxu0 %v1550
      %v1677 = vpop.f32.mrf.mxu0
      %v1678 = vadd.f32 0.0, %v1677
      %v1679 = vpop.f32.mrf.mxu0
      %v1680 = vpop.f32.mrf.mxu0
      %v1681 = vadd.f32 0.0, %v1680
      %v1682 = vpop.f32.mrf.mxu0
      %1683 = vmatprep.mubr.bf16.mxu0 0
      %1684 = vmatmul.mubr.bf16.gmra.mxu0 %v1553
      %v1685 = vpop.f32.mrf.mxu0
      %v1686 = vadd.f32 0.0, %v1685
      %v1687 = vpop.f32.mrf.mxu0
      %v1688 = vpop.f32.mrf.mxu0
      %v1689 = vadd.f32 0.0, %v1688
      %v1690 = vpop.f32.mrf.mxu0
      %1691 = vmatprep.mubr.bf16.mxu0 0
      %1692 = vmatmul.mubr.bf16.gmra.mxu0 %v1556
      %v1693 = vpop.f32.mrf.mxu0
      %v1694 = vadd.f32 0.0, %v1693
      %v1695 = vpop.f32.mrf.mxu0
      %v1696 = vpop.f32.mrf.mxu0
      %v1697 = vadd.f32 0.0, %v1696
      %v1698 = vpop.f32.mrf.mxu0
      %1699 = vmatprep.mubr.bf16.mxu0 0
      %1700 = vmatmul.mubr.bf16.gmra.mxu0 %v1559
      %v1701 = vpop.f32.mrf.mxu0
      %v1702 = vadd.f32 0.0, %v1701
      %v1703 = vpop.f32.mrf.mxu0
      %v1704 = vpop.f32.mrf.mxu0
      %v1705 = vadd.f32 0.0, %v1704
      %v1706 = vpop.f32.mrf.mxu0
      %1707 = vmatprep.mubr.bf16.mxu0 0
      %1708 = vmatmul.mubr.bf16.gmra.mxu0 %v1562
      %v1709 = vpop.f32.mrf.mxu0
      %v1710 = vadd.f32 0.0, %v1709
      %v1711 = vpop.f32.mrf.mxu0
      %v1712 = vpop.f32.mrf.mxu0
      %v1713 = vadd.f32 0.0, %v1712
      %v1714 = vpop.f32.mrf.mxu0
      %1715 = vmatprep.mubr.bf16.mxu0 0
      %1716 = vmatmul.mubr.bf16.gmra.mxu0 %v1565
      %v1717 = vpop.f32.mrf.mxu0
      %v1718 = vadd.f32 0.0, %v1717
      %v1719 = vpop.f32.mrf.mxu0
      %v1720 = vpop.f32.mrf.mxu0
      %v1721 = vadd.f32 0.0, %v1720
      %v1722 = vpop.f32.mrf.mxu0
      %1723 = vmatprep.mubr.bf16.mxu0 0
      %1724 = vmatmul.mubr.bf16.gmra.mxu0 %v1568
      %v1725 = vpop.f32.mrf.mxu0
      %v1726 = vadd.f32 0.0, %v1725
      %v1727 = vpop.f32.mrf.mxu0
      %v1728 = vpop.f32.mrf.mxu0
      %v1729 = vadd.f32 0.0, %v1728
      %v1730 = vpop.f32.mrf.mxu0
      %1731 = vmatprep.mubr.bf16.mxu0 0
      %1732 = vmatmul.mubr.bf16.gmra.mxu0 %v1571
      %v1733 = vpop.f32.mrf.mxu0
      %v1734 = vadd.f32 0.0, %v1733
      %v1735 = vpop.f32.mrf.mxu0
      %v1736 = vpop.f32.mrf.mxu0
      %v1737 = vadd.f32 0.0, %v1736
      %v1738 = vpop.f32.mrf.mxu0
      %1739 = vmatprep.mubr.bf16.mxu0 0
      %1740 = vmatmul.mubr.bf16.gmra.mxu0 %v1574
      %v1741 = vpop.f32.mrf.mxu0
      %v1742 = vadd.f32 0.0, %v1741
      %v1743 = vpop.f32.mrf.mxu0
      %v1744 = vpop.f32.mrf.mxu0
      %v1745 = vadd.f32 0.0, %v1744
      %v1746 = vpop.f32.mrf.mxu0
      %1747 = vmatprep.mubr.bf16.mxu0 0
      %1748 = vmatmul.mubr.bf16.gmra.mxu0 %v1577
      %v1749 = vpop.f32.mrf.mxu0
      %v1750 = vadd.f32 0.0, %v1749
      %v1751 = vpop.f32.mrf.mxu0
      %v1752 = vpop.f32.mrf.mxu0
      %v1753 = vadd.f32 0.0, %v1752
      %v1754 = vpop.f32.mrf.mxu0
      %1755 = vdwg.mxu0
      %v1756 = vadd.f32 %v1418, %v1614
      %v1757 = vadd.f32 %v1419, %v1617
      %v1758 = vadd.f32 %v1420, %v1622
      %v1759 = vadd.f32 %v1421, %v1625
      %v1760 = vadd.f32 %v1422, %v1630
      %v1761 = vadd.f32 %v1423, %v1633
      %v1762 = vadd.f32 %v1424, %v1638
      %v1763 = vadd.f32 %v1425, %v1641
      %v1764 = vadd.f32 %v1426, %v1646
      %v1765 = vadd.f32 %v1427, %v1649
      %v1766 = vadd.f32 %v1428, %v1654
      %v1767 = vadd.f32 %v1429, %v1657
      %v1768 = vadd.f32 %v1430, %v1662
      %v1769 = vadd.f32 %v1431, %v1665
      %v1770 = vadd.f32 %v1432, %v1670
      %v1771 = vadd.f32 %v1433, %v1673
      %v1772 = vadd.f32 %v1434, %v1678
      %v1773 = vadd.f32 %v1435, %v1681
      %v1774 = vadd.f32 %v1436, %v1686
      %v1775 = vadd.f32 %v1437, %v1689
      %v1776 = vadd.f32 %v1438, %v1694
      %v1777 = vadd.f32 %v1439, %v1697
      %v1778 = vadd.f32 %v1440, %v1702
      %v1779 = vadd.f32 %v1441, %v1705
      %v1780 = vadd.f32 %v1442, %v1710
      %v1781 = vadd.f32 %v1443, %v1713
      %v1782 = vadd.f32 %v1444, %v1718
      %v1783 = vadd.f32 %v1445, %v1721
      %v1784 = vadd.f32 %v1446, %v1726
      %v1785 = vadd.f32 %v1447, %v1729
      %v1786 = vadd.f32 %v1448, %v1734
      %v1787 = vadd.f32 %v1449, %v1737
      %v1788 = vadd.f32 %v1450, %v1742
      %v1789 = vadd.f32 %v1451, %v1745
      %v1790 = vadd.f32 %v1452, %v1750
      %v1791 = vadd.f32 %v1453, %v1753
      %v1792 = vld [vmem:[%s192 + $0x13] sm:$0xff]
      %v1793 = vld [vmem:[%s192 + $0x1b] sm:$0xff]
      %v1794 = vld [vmem:[%s192 + $0x23] sm:$0xff]
      %v1795 = vld [vmem:[%s192 + $0x2b] sm:$0xff]
      %v1796 = vld [vmem:[%s192 + $0x33] sm:$0xff]
      %v1797 = vld [vmem:[%s192 + $0x3b] sm:$0xff]
      %v1798 = vld [vmem:[%s192 + $0x43] sm:$0xff]
      %v1799 = vld [vmem:[%s192 + $0x4b] sm:$0xff]
      %v1800 = vld [vmem:[%s192 + $0x53] sm:$0xff]
      %v1801 = vld [vmem:[%s192 + $0x5b] sm:$0xff]
      %v1802 = vld [vmem:[%s192 + $0x63] sm:$0xff]
      %v1803 = vld [vmem:[%s192 + $0x6b] sm:$0xff]
      %v1804 = vld [vmem:[%s192 + $0x73] sm:$0xff]
      %v1805 = vld [vmem:[%s192 + $0x7b] sm:$0xff]
      %v1806 = vld [vmem:[%s192 + $0x83] sm:$0xff]
      %v1807 = vld [vmem:[%s192 + $0x8b] sm:$0xff]
      %v1808 = vld [vmem:[%s192 + $0x93] sm:$0xff]
      %v1809 = vld [vmem:[%s192 + $0x9b] sm:$0xff]
      %v1810 = vld [vmem:[%s192 + $0xa3] sm:$0xff]
      %v1811 = vld [vmem:[%s192 + $0xab] sm:$0xff]
      %v1812 = vld [vmem:[%s192 + $0xb3] sm:$0xff]
      %v1813 = vld [vmem:[%s192 + $0xbb] sm:$0xff]
      %v1814 = vld [vmem:[%s192 + $0xc3] sm:$0xff]
      %v1815 = vld [vmem:[%s192 + $0xcb] sm:$0xff]
      %v1816 = vld [vmem:[%s192 + $0xd3] sm:$0xff]
      %v1817 = vld [vmem:[%s192 + $0xdb] sm:$0xff]
      %v1818 = vld [vmem:[%s192 + $0xe3] sm:$0xff]
      %v1819 = vld [vmem:[%s192 + $0xeb] sm:$0xff]
      %v1820 = vld [vmem:[%s192 + $0xf3] sm:$0xff]
      %v1821 = vld [vmem:[%s192 + $0xfb] sm:$0xff]
      %v1822 = vld [vmem:[%s192 + $0x103] sm:$0xff]
      %v1823 = vld [vmem:[%s192 + $0x10b] sm:$0xff]
      %v1824 = vld [vmem:[%s192 + $0x113] sm:$0xff]
      %v1825 = vld [vmem:[%s192 + $0x11b] sm:$0xff]
      %v1826 = vld [vmem:[%s192 + $0x123] sm:$0xff]
      %v1827 = vld [vmem:[%s192 + $0x12b] sm:$0xff]
      %v1828 = vpack.c.bf16 %v1793, %v1792
      %v1829 = vpack.c.bf16 %v1795, %v1794
      %v1830 = vpack.c.bf16 %v1797, %v1796
      %v1831 = vpack.c.bf16 %v1799, %v1798
      %v1832 = vpack.c.bf16 %v1801, %v1800
      %v1833 = vpack.c.bf16 %v1803, %v1802
      %v1834 = vpack.c.bf16 %v1805, %v1804
      %v1835 = vpack.c.bf16 %v1807, %v1806
      %v1836 = vpack.c.bf16 %v1809, %v1808
      %v1837 = vpack.c.bf16 %v1811, %v1810
      %v1838 = vpack.c.bf16 %v1813, %v1812
      %v1839 = vpack.c.bf16 %v1815, %v1814
      %v1840 = vpack.c.bf16 %v1817, %v1816
      %v1841 = vpack.c.bf16 %v1819, %v1818
      %v1842 = vpack.c.bf16 %v1821, %v1820
      %v1843 = vpack.c.bf16 %v1823, %v1822
      %v1844 = vpack.c.bf16 %v1825, %v1824
      %v1845 = vpack.c.bf16 %v1827, %v1826
      %s1846 = scalar_lea.vmem %s1, 64
      %v1847 = vld [vmem:[%s1846] sm:$0xf]
      %v1848 = vld [vmem:[%s1846 + $0x4] sm:$0xf]
      %v1849 = vld [vmem:[%s1846 + $0x8] sm:$0xf]
      %v1850 = vld [vmem:[%s1846 + $0xc] sm:$0xf]
      %v1855 = vunpack.c.l.b16 %v1847
      %v1856 = vunpack.c.l.b16 %v1848
      %v1857 = vunpack.c.l.b16 %v1849
      %v1858 = vunpack.c.l.b16 %v1850
      %v1859 = vpack.c.b16 %v1856, %v1855
      %v1860 = vpack.c.b16 %v1858, %v1857
      %v1864 = vsel %vm641, %v1828, 0
      %v1867 = vsel %vm641, %v1829, 0
      %v1870 = vsel %vm641, %v1830, 0
      %v1873 = vsel %vm641, %v1831, 0
      %v1876 = vsel %vm641, %v1832, 0
      %v1879 = vsel %vm641, %v1833, 0
      %v1882 = vsel %vm641, %v1834, 0
      %v1885 = vsel %vm641, %v1835, 0
      %v1888 = vsel %vm641, %v1836, 0
      %v1891 = vsel %vm641, %v1837, 0
      %v1894 = vsel %vm641, %v1838, 0
      %v1897 = vsel %vm641, %v1839, 0
      %v1900 = vsel %vm641, %v1840, 0
      %v1903 = vsel %vm641, %v1841, 0
      %v1906 = vsel %vm641, %v1842, 0
      %v1909 = vsel %vm641, %v1843, 0
      %v1912 = vsel %vm641, %v1844, 0
      %v1915 = vsel %vm641, %v1845, 0
      %1917 = vmatprep.subr.bf16.mxu0 0
      %1918 = vmatpush1.bf16.msra.mxu0 0
      %1919 = vmatprep.subr.bf16.mxu0 0
      %1920 = vmatpush1.bf16.msra.mxu0 0
      %1921 = vmatprep.subr.bf16.mxu0 0
      %1922 = vmatpush1.bf16.msra.mxu0 0
      %1923 = vmatprep.subr.bf16.mxu0 0
      %1924 = vmatpush1.bf16.msra.mxu0 0
      %1925 = vmatprep.subr.bf16.mxu0 0
      %1926 = vmatpush1.bf16.msra.mxu0 0
      %1927 = vmatprep.subr.bf16.mxu0 0
      %1928 = vmatpush1.bf16.msra.mxu0 0
      %1929 = vmatprep.subr.bf16.mxu0 0
      %1930 = vmatpush1.bf16.msra.mxu0 %v1860
      %1931 = vmatprep.subr.bf16.mxu0 0
      %1932 = vmatpush1.bf16.msra.mxu0 %v1859
      %1933 = vmatprep.subr.bf16.mxu0 0
      %1934 = vmatpush2.bf16.msra.mxu0 0
      %1935 = vmatprep.subr.bf16.mxu0 0
      %1936 = vmatpush2.bf16.msra.mxu0 0
      %1937 = vmatprep.subr.bf16.mxu0 0
      %1938 = vmatpush2.bf16.msra.mxu0 0
      %1939 = vmatprep.subr.bf16.mxu0 0
      %1940 = vmatpush2.bf16.msra.mxu0 0
      %1941 = vmatprep.subr.bf16.mxu0 0
      %1942 = vmatpush2.bf16.msra.mxu0 0
      %1943 = vmatprep.subr.bf16.mxu0 0
      %1944 = vmatpush2.bf16.msra.mxu0 0
      %1945 = vmatprep.subr.bf16.mxu0 0
      %1946 = vmatpush2.bf16.msra.mxu0 0
      %1947 = vmatprep.subr.bf16.mxu0 0
      %1948 = vmatpush2.bf16.msra.mxu0 0
      %1949 = vmatprep.mubr.bf16.mxu0 0
      %1950 = vmatmul.mubr.bf16.gmra.mxu0 %v1864
      %v1951 = vpop.f32.mrf.mxu0
      %v1952 = vadd.f32 0.0, %v1951
      %v1953 = vpop.f32.mrf.mxu0
      %v1954 = vpop.f32.mrf.mxu0
      %v1955 = vadd.f32 0.0, %v1954
      %v1956 = vpop.f32.mrf.mxu0
      %1957 = vmatprep.mubr.bf16.mxu0 0
      %1958 = vmatmul.mubr.bf16.gmra.mxu0 %v1867
      %v1959 = vpop.f32.mrf.mxu0
      %v1960 = vadd.f32 0.0, %v1959
      %v1961 = vpop.f32.mrf.mxu0
      %v1962 = vpop.f32.mrf.mxu0
      %v1963 = vadd.f32 0.0, %v1962
      %v1964 = vpop.f32.mrf.mxu0
      %1965 = vmatprep.mubr.bf16.mxu0 0
      %1966 = vmatmul.mubr.bf16.gmra.mxu0 %v1870
      %v1967 = vpop.f32.mrf.mxu0
      %v1968 = vadd.f32 0.0, %v1967
      %v1969 = vpop.f32.mrf.mxu0
      %v1970 = vpop.f32.mrf.mxu0
      %v1971 = vadd.f32 0.0, %v1970
      %v1972 = vpop.f32.mrf.mxu0
      %1973 = vmatprep.mubr.bf16.mxu0 0
      %1974 = vmatmul.mubr.bf16.gmra.mxu0 %v1873
      %v1975 = vpop.f32.mrf.mxu0
      %v1976 = vadd.f32 0.0, %v1975
      %v1977 = vpop.f32.mrf.mxu0
      %v1978 = vpop.f32.mrf.mxu0
      %v1979 = vadd.f32 0.0, %v1978
      %v1980 = vpop.f32.mrf.mxu0
      %1981 = vmatprep.mubr.bf16.mxu0 0
      %1982 = vmatmul.mubr.bf16.gmra.mxu0 %v1876
      %v1983 = vpop.f32.mrf.mxu0
      %v1984 = vadd.f32 0.0, %v1983
      %v1985 = vpop.f32.mrf.mxu0
      %v1986 = vpop.f32.mrf.mxu0
      %v1987 = vadd.f32 0.0, %v1986
      %v1988 = vpop.f32.mrf.mxu0
      %1989 = vmatprep.mubr.bf16.mxu0 0
      %1990 = vmatmul.mubr.bf16.gmra.mxu0 %v1879
      %v1991 = vpop.f32.mrf.mxu0
      %v1992 = vadd.f32 0.0, %v1991
      %v1993 = vpop.f32.mrf.mxu0
      %v1994 = vpop.f32.mrf.mxu0
      %v1995 = vadd.f32 0.0, %v1994
      %v1996 = vpop.f32.mrf.mxu0
      %1997 = vmatprep.mubr.bf16.mxu0 0
      %1998 = vmatmul.mubr.bf16.gmra.mxu0 %v1882
      %v1999 = vpop.f32.mrf.mxu0
      %v2000 = vadd.f32 0.0, %v1999
      %v2001 = vpop.f32.mrf.mxu0
      %v2002 = vpop.f32.mrf.mxu0
      %v2003 = vadd.f32 0.0, %v2002
      %v2004 = vpop.f32.mrf.mxu0
      %2005 = vmatprep.mubr.bf16.mxu0 0
      %2006 = vmatmul.mubr.bf16.gmra.mxu0 %v1885
      %v2007 = vpop.f32.mrf.mxu0
      %v2008 = vadd.f32 0.0, %v2007
      %v2009 = vpop.f32.mrf.mxu0
      %v2010 = vpop.f32.mrf.mxu0
      %v2011 = vadd.f32 0.0, %v2010
      %v2012 = vpop.f32.mrf.mxu0
      %2013 = vmatprep.mubr.bf16.mxu0 0
      %2014 = vmatmul.mubr.bf16.gmra.mxu0 %v1888
      %v2015 = vpop.f32.mrf.mxu0
      %v2016 = vadd.f32 0.0, %v2015
      %v2017 = vpop.f32.mrf.mxu0
      %v2018 = vpop.f32.mrf.mxu0
      %v2019 = vadd.f32 0.0, %v2018
      %v2020 = vpop.f32.mrf.mxu0
      %2021 = vmatprep.mubr.bf16.mxu0 0
      %2022 = vmatmul.mubr.bf16.gmra.mxu0 %v1891
      %v2023 = vpop.f32.mrf.mxu0
      %v2024 = vadd.f32 0.0, %v2023
      %v2025 = vpop.f32.mrf.mxu0
      %v2026 = vpop.f32.mrf.mxu0
      %v2027 = vadd.f32 0.0, %v2026
      %v2028 = vpop.f32.mrf.mxu0
      %2029 = vmatprep.mubr.bf16.mxu0 0
      %2030 = vmatmul.mubr.bf16.gmra.mxu0 %v1894
      %v2031 = vpop.f32.mrf.mxu0
      %v2032 = vadd.f32 0.0, %v2031
      %v2033 = vpop.f32.mrf.mxu0
      %v2034 = vpop.f32.mrf.mxu0
      %v2035 = vadd.f32 0.0, %v2034
      %v2036 = vpop.f32.mrf.mxu0
      %2037 = vmatprep.mubr.bf16.mxu0 0
      %2038 = vmatmul.mubr.bf16.gmra.mxu0 %v1897
      %v2039 = vpop.f32.mrf.mxu0
      %v2040 = vadd.f32 0.0, %v2039
      %v2041 = vpop.f32.mrf.mxu0
      %v2042 = vpop.f32.mrf.mxu0
      %v2043 = vadd.f32 0.0, %v2042
      %v2044 = vpop.f32.mrf.mxu0
      %2045 = vmatprep.mubr.bf16.mxu0 0
      %2046 = vmatmul.mubr.bf16.gmra.mxu0 %v1900
      %v2047 = vpop.f32.mrf.mxu0
      %v2048 = vadd.f32 0.0, %v2047
      %v2049 = vpop.f32.mrf.mxu0
      %v2050 = vpop.f32.mrf.mxu0
      %v2051 = vadd.f32 0.0, %v2050
      %v2052 = vpop.f32.mrf.mxu0
      %2053 = vmatprep.mubr.bf16.mxu0 0
      %2054 = vmatmul.mubr.bf16.gmra.mxu0 %v1903
      %v2055 = vpop.f32.mrf.mxu0
      %v2056 = vadd.f32 0.0, %v2055
      %v2057 = vpop.f32.mrf.mxu0
      %v2058 = vpop.f32.mrf.mxu0
      %v2059 = vadd.f32 0.0, %v2058
      %v2060 = vpop.f32.mrf.mxu0
      %2061 = vmatprep.mubr.bf16.mxu0 0
      %2062 = vmatmul.mubr.bf16.gmra.mxu0 %v1906
      %v2063 = vpop.f32.mrf.mxu0
      %v2064 = vadd.f32 0.0, %v2063
      %v2065 = vpop.f32.mrf.mxu0
      %v2066 = vpop.f32.mrf.mxu0
      %v2067 = vadd.f32 0.0, %v2066
      %v2068 = vpop.f32.mrf.mxu0
      %2069 = vmatprep.mubr.bf16.mxu0 0
      %2070 = vmatmul.mubr.bf16.gmra.mxu0 %v1909
      %v2071 = vpop.f32.mrf.mxu0
      %v2072 = vadd.f32 0.0, %v2071
      %v2073 = vpop.f32.mrf.mxu0
      %v2074 = vpop.f32.mrf.mxu0
      %v2075 = vadd.f32 0.0, %v2074
      %v2076 = vpop.f32.mrf.mxu0
      %2077 = vmatprep.mubr.bf16.mxu0 0
      %2078 = vmatmul.mubr.bf16.gmra.mxu0 %v1912
      %v2079 = vpop.f32.mrf.mxu0
      %v2080 = vadd.f32 0.0, %v2079
      %v2081 = vpop.f32.mrf.mxu0
      %v2082 = vpop.f32.mrf.mxu0
      %v2083 = vadd.f32 0.0, %v2082
      %v2084 = vpop.f32.mrf.mxu0
      %2085 = vmatprep.mubr.bf16.mxu0 0
      %2086 = vmatmul.mubr.bf16.gmra.mxu0 %v1915
      %v2087 = vpop.f32.mrf.mxu0
      %v2088 = vadd.f32 0.0, %v2087
      %v2089 = vpop.f32.mrf.mxu0
      %v2090 = vpop.f32.mrf.mxu0
      %v2091 = vadd.f32 0.0, %v2090
      %v2092 = vpop.f32.mrf.mxu0
      %2093 = vdwg.mxu0
      %v2094 = vadd.f32 %v1756, %v1952
      %v2095 = vadd.f32 %v1757, %v1955
      %v2096 = vadd.f32 %v1758, %v1960
      %v2097 = vadd.f32 %v1759, %v1963
      %v2098 = vadd.f32 %v1760, %v1968
      %v2099 = vadd.f32 %v1761, %v1971
      %v2100 = vadd.f32 %v1762, %v1976
      %v2101 = vadd.f32 %v1763, %v1979
      %v2102 = vadd.f32 %v1764, %v1984
      %v2103 = vadd.f32 %v1765, %v1987
      %v2104 = vadd.f32 %v1766, %v1992
      %v2105 = vadd.f32 %v1767, %v1995
      %v2106 = vadd.f32 %v1768, %v2000
      %v2107 = vadd.f32 %v1769, %v2003
      %v2108 = vadd.f32 %v1770, %v2008
      %v2109 = vadd.f32 %v1771, %v2011
      %v2110 = vadd.f32 %v1772, %v2016
      %v2111 = vadd.f32 %v1773, %v2019
      %v2112 = vadd.f32 %v1774, %v2024
      %v2113 = vadd.f32 %v1775, %v2027
      %v2114 = vadd.f32 %v1776, %v2032
      %v2115 = vadd.f32 %v1777, %v2035
      %v2116 = vadd.f32 %v1778, %v2040
      %v2117 = vadd.f32 %v1779, %v2043
      %v2118 = vadd.f32 %v1780, %v2048
      %v2119 = vadd.f32 %v1781, %v2051
      %v2120 = vadd.f32 %v1782, %v2056
      %v2121 = vadd.f32 %v1783, %v2059
      %v2122 = vadd.f32 %v1784, %v2064
      %v2123 = vadd.f32 %v1785, %v2067
      %v2124 = vadd.f32 %v1786, %v2072
      %v2125 = vadd.f32 %v1787, %v2075
      %v2126 = vadd.f32 %v1788, %v2080
      %v2127 = vadd.f32 %v1789, %v2083
      %v2128 = vadd.f32 %v1790, %v2088
      %v2129 = vadd.f32 %v1791, %v2091
      %v2130 = vld [vmem:[%s192 + $0x14] sm:$0xff]
      %v2131 = vld [vmem:[%s192 + $0x1c] sm:$0xff]
      %v2132 = vld [vmem:[%s192 + $0x24] sm:$0xff]
      %v2133 = vld [vmem:[%s192 + $0x2c] sm:$0xff]
      %v2134 = vld [vmem:[%s192 + $0x34] sm:$0xff]
      %v2135 = vld [vmem:[%s192 + $0x3c] sm:$0xff]
      %v2136 = vld [vmem:[%s192 + $0x44] sm:$0xff]
      %v2137 = vld [vmem:[%s192 + $0x4c] sm:$0xff]
      %v2138 = vld [vmem:[%s192 + $0x54] sm:$0xff]
      %v2139 = vld [vmem:[%s192 + $0x5c] sm:$0xff]
      %v2140 = vld [vmem:[%s192 + $0x64] sm:$0xff]
      %v2141 = vld [vmem:[%s192 + $0x6c] sm:$0xff]
      %v2142 = vld [vmem:[%s192 + $0x74] sm:$0xff]
      %v2143 = vld [vmem:[%s192 + $0x7c] sm:$0xff]
      %v2144 = vld [vmem:[%s192 + $0x84] sm:$0xff]
      %v2145 = vld [vmem:[%s192 + $0x8c] sm:$0xff]
      %v2146 = vld [vmem:[%s192 + $0x94] sm:$0xff]
      %v2147 = vld [vmem:[%s192 + $0x9c] sm:$0xff]
      %v2148 = vld [vmem:[%s192 + $0xa4] sm:$0xff]
      %v2149 = vld [vmem:[%s192 + $0xac] sm:$0xff]
      %v2150 = vld [vmem:[%s192 + $0xb4] sm:$0xff]
      %v2151 = vld [vmem:[%s192 + $0xbc] sm:$0xff]
      %v2152 = vld [vmem:[%s192 + $0xc4] sm:$0xff]
      %v2153 = vld [vmem:[%s192 + $0xcc] sm:$0xff]
      %v2154 = vld [vmem:[%s192 + $0xd4] sm:$0xff]
      %v2155 = vld [vmem:[%s192 + $0xdc] sm:$0xff]
      %v2156 = vld [vmem:[%s192 + $0xe4] sm:$0xff]
      %v2157 = vld [vmem:[%s192 + $0xec] sm:$0xff]
      %v2158 = vld [vmem:[%s192 + $0xf4] sm:$0xff]
      %v2159 = vld [vmem:[%s192 + $0xfc] sm:$0xff]
      %v2160 = vld [vmem:[%s192 + $0x104] sm:$0xff]
      %v2161 = vld [vmem:[%s192 + $0x10c] sm:$0xff]
      %v2162 = vld [vmem:[%s192 + $0x114] sm:$0xff]
      %v2163 = vld [vmem:[%s192 + $0x11c] sm:$0xff]
      %v2164 = vld [vmem:[%s192 + $0x124] sm:$0xff]
      %v2165 = vld [vmem:[%s192 + $0x12c] sm:$0xff]
      %v2166 = vpack.c.bf16 %v2131, %v2130
      %v2167 = vpack.c.bf16 %v2133, %v2132
      %v2168 = vpack.c.bf16 %v2135, %v2134
      %v2169 = vpack.c.bf16 %v2137, %v2136
      %v2170 = vpack.c.bf16 %v2139, %v2138
      %v2171 = vpack.c.bf16 %v2141, %v2140
      %v2172 = vpack.c.bf16 %v2143, %v2142
      %v2173 = vpack.c.bf16 %v2145, %v2144
      %v2174 = vpack.c.bf16 %v2147, %v2146
      %v2175 = vpack.c.bf16 %v2149, %v2148
      %v2176 = vpack.c.bf16 %v2151, %v2150
      %v2177 = vpack.c.bf16 %v2153, %v2152
      %v2178 = vpack.c.bf16 %v2155, %v2154
      %v2179 = vpack.c.bf16 %v2157, %v2156
      %v2180 = vpack.c.bf16 %v2159, %v2158
      %v2181 = vpack.c.bf16 %v2161, %v2160
      %v2182 = vpack.c.bf16 %v2163, %v2162
      %v2183 = vpack.c.bf16 %v2165, %v2164
      %s2184 = scalar_lea.vmem %s1, 80
      %v2185 = vld [vmem:[%s2184] sm:$0xf]
      %v2186 = vld [vmem:[%s2184 + $0x4] sm:$0xf]
      %v2187 = vld [vmem:[%s2184 + $0x8] sm:$0xf]
      %v2188 = vld [vmem:[%s2184 + $0xc] sm:$0xf]
      %v2193 = vunpack.c.l.b16 %v2185
      %v2194 = vunpack.c.l.b16 %v2186
      %v2195 = vunpack.c.l.b16 %v2187
      %v2196 = vunpack.c.l.b16 %v2188
      %v2197 = vpack.c.b16 %v2194, %v2193
      %v2198 = vpack.c.b16 %v2196, %v2195
      %v2202 = vsel %vm641, %v2166, 0
      %v2205 = vsel %vm641, %v2167, 0
      %v2208 = vsel %vm641, %v2168, 0
      %v2211 = vsel %vm641, %v2169, 0
      %v2214 = vsel %vm641, %v2170, 0
      %v2217 = vsel %vm641, %v2171, 0
      %v2220 = vsel %vm641, %v2172, 0
      %v2223 = vsel %vm641, %v2173, 0
      %v2226 = vsel %vm641, %v2174, 0
      %v2229 = vsel %vm641, %v2175, 0
      %v2232 = vsel %vm641, %v2176, 0
      %v2235 = vsel %vm641, %v2177, 0
      %v2238 = vsel %vm641, %v2178, 0
      %v2241 = vsel %vm641, %v2179, 0
      %v2244 = vsel %vm641, %v2180, 0
      %v2247 = vsel %vm641, %v2181, 0
      %v2250 = vsel %vm641, %v2182, 0
      %v2253 = vsel %vm641, %v2183, 0
      %2255 = vmatprep.subr.bf16.mxu0 0
      %2256 = vmatpush1.bf16.msra.mxu0 0
      %2257 = vmatprep.subr.bf16.mxu0 0
      %2258 = vmatpush1.bf16.msra.mxu0 0
      %2259 = vmatprep.subr.bf16.mxu0 0
      %2260 = vmatpush1.bf16.msra.mxu0 0
      %2261 = vmatprep.subr.bf16.mxu0 0
      %2262 = vmatpush1.bf16.msra.mxu0 0
      %2263 = vmatprep.subr.bf16.mxu0 0
      %2264 = vmatpush1.bf16.msra.mxu0 0
      %2265 = vmatprep.subr.bf16.mxu0 0
      %2266 = vmatpush1.bf16.msra.mxu0 0
      %2267 = vmatprep.subr.bf16.mxu0 0
      %2268 = vmatpush1.bf16.msra.mxu0 %v2198
      %2269 = vmatprep.subr.bf16.mxu0 0
      %2270 = vmatpush1.bf16.msra.mxu0 %v2197
      %2271 = vmatprep.subr.bf16.mxu0 0
      %2272 = vmatpush2.bf16.msra.mxu0 0
      %2273 = vmatprep.subr.bf16.mxu0 0
      %2274 = vmatpush2.bf16.msra.mxu0 0
      %2275 = vmatprep.subr.bf16.mxu0 0
      %2276 = vmatpush2.bf16.msra.mxu0 0
      %2277 = vmatprep.subr.bf16.mxu0 0
      %2278 = vmatpush2.bf16.msra.mxu0 0
      %2279 = vmatprep.subr.bf16.mxu0 0
      %2280 = vmatpush2.bf16.msra.mxu0 0
      %2281 = vmatprep.subr.bf16.mxu0 0
      %2282 = vmatpush2.bf16.msra.mxu0 0
      %2283 = vmatprep.subr.bf16.mxu0 0
      %2284 = vmatpush2.bf16.msra.mxu0 0
      %2285 = vmatprep.subr.bf16.mxu0 0
      %2286 = vmatpush2.bf16.msra.mxu0 0
      %2287 = vmatprep.mubr.bf16.mxu0 0
      %2288 = vmatmul.mubr.bf16.gmra.mxu0 %v2202
      %v2289 = vpop.f32.mrf.mxu0
      %v2290 = vadd.f32 0.0, %v2289
      %v2291 = vpop.f32.mrf.mxu0
      %v2292 = vpop.f32.mrf.mxu0
      %v2293 = vadd.f32 0.0, %v2292
      %v2294 = vpop.f32.mrf.mxu0
      %2295 = vmatprep.mubr.bf16.mxu0 0
      %2296 = vmatmul.mubr.bf16.gmra.mxu0 %v2205
      %v2297 = vpop.f32.mrf.mxu0
      %v2298 = vadd.f32 0.0, %v2297
      %v2299 = vpop.f32.mrf.mxu0
      %v2300 = vpop.f32.mrf.mxu0
      %v2301 = vadd.f32 0.0, %v2300
      %v2302 = vpop.f32.mrf.mxu0
      %2303 = vmatprep.mubr.bf16.mxu0 0
      %2304 = vmatmul.mubr.bf16.gmra.mxu0 %v2208
      %v2305 = vpop.f32.mrf.mxu0
      %v2306 = vadd.f32 0.0, %v2305
      %v2307 = vpop.f32.mrf.mxu0
      %v2308 = vpop.f32.mrf.mxu0
      %v2309 = vadd.f32 0.0, %v2308
      %v2310 = vpop.f32.mrf.mxu0
      %2311 = vmatprep.mubr.bf16.mxu0 0
      %2312 = vmatmul.mubr.bf16.gmra.mxu0 %v2211
      %v2313 = vpop.f32.mrf.mxu0
      %v2314 = vadd.f32 0.0, %v2313
      %v2315 = vpop.f32.mrf.mxu0
      %v2316 = vpop.f32.mrf.mxu0
      %v2317 = vadd.f32 0.0, %v2316
      %v2318 = vpop.f32.mrf.mxu0
      %2319 = vmatprep.mubr.bf16.mxu0 0
      %2320 = vmatmul.mubr.bf16.gmra.mxu0 %v2214
      %v2321 = vpop.f32.mrf.mxu0
      %v2322 = vadd.f32 0.0, %v2321
      %v2323 = vpop.f32.mrf.mxu0
      %v2324 = vpop.f32.mrf.mxu0
      %v2325 = vadd.f32 0.0, %v2324
      %v2326 = vpop.f32.mrf.mxu0
      %2327 = vmatprep.mubr.bf16.mxu0 0
      %2328 = vmatmul.mubr.bf16.gmra.mxu0 %v2217
      %v2329 = vpop.f32.mrf.mxu0
      %v2330 = vadd.f32 0.0, %v2329
      %v2331 = vpop.f32.mrf.mxu0
      %v2332 = vpop.f32.mrf.mxu0
      %v2333 = vadd.f32 0.0, %v2332
      %v2334 = vpop.f32.mrf.mxu0
      %2335 = vmatprep.mubr.bf16.mxu0 0
      %2336 = vmatmul.mubr.bf16.gmra.mxu0 %v2220
      %v2337 = vpop.f32.mrf.mxu0
      %v2338 = vadd.f32 0.0, %v2337
      %v2339 = vpop.f32.mrf.mxu0
      %v2340 = vpop.f32.mrf.mxu0
      %v2341 = vadd.f32 0.0, %v2340
      %v2342 = vpop.f32.mrf.mxu0
      %2343 = vmatprep.mubr.bf16.mxu0 0
      %2344 = vmatmul.mubr.bf16.gmra.mxu0 %v2223
      %v2345 = vpop.f32.mrf.mxu0
      %v2346 = vadd.f32 0.0, %v2345
      %v2347 = vpop.f32.mrf.mxu0
      %v2348 = vpop.f32.mrf.mxu0
      %v2349 = vadd.f32 0.0, %v2348
      %v2350 = vpop.f32.mrf.mxu0
      %2351 = vmatprep.mubr.bf16.mxu0 0
      %2352 = vmatmul.mubr.bf16.gmra.mxu0 %v2226
      %v2353 = vpop.f32.mrf.mxu0
      %v2354 = vadd.f32 0.0, %v2353
      %v2355 = vpop.f32.mrf.mxu0
      %v2356 = vpop.f32.mrf.mxu0
      %v2357 = vadd.f32 0.0, %v2356
      %v2358 = vpop.f32.mrf.mxu0
      %2359 = vmatprep.mubr.bf16.mxu0 0
      %2360 = vmatmul.mubr.bf16.gmra.mxu0 %v2229
      %v2361 = vpop.f32.mrf.mxu0
      %v2362 = vadd.f32 0.0, %v2361
      %v2363 = vpop.f32.mrf.mxu0
      %v2364 = vpop.f32.mrf.mxu0
      %v2365 = vadd.f32 0.0, %v2364
      %v2366 = vpop.f32.mrf.mxu0
      %2367 = vmatprep.mubr.bf16.mxu0 0
      %2368 = vmatmul.mubr.bf16.gmra.mxu0 %v2232
      %v2369 = vpop.f32.mrf.mxu0
      %v2370 = vadd.f32 0.0, %v2369
      %v2371 = vpop.f32.mrf.mxu0
      %v2372 = vpop.f32.mrf.mxu0
      %v2373 = vadd.f32 0.0, %v2372
      %v2374 = vpop.f32.mrf.mxu0
      %2375 = vmatprep.mubr.bf16.mxu0 0
      %2376 = vmatmul.mubr.bf16.gmra.mxu0 %v2235
      %v2377 = vpop.f32.mrf.mxu0
      %v2378 = vadd.f32 0.0, %v2377
      %v2379 = vpop.f32.mrf.mxu0
      %v2380 = vpop.f32.mrf.mxu0
      %v2381 = vadd.f32 0.0, %v2380
      %v2382 = vpop.f32.mrf.mxu0
      %2383 = vmatprep.mubr.bf16.mxu0 0
      %2384 = vmatmul.mubr.bf16.gmra.mxu0 %v2238
      %v2385 = vpop.f32.mrf.mxu0
      %v2386 = vadd.f32 0.0, %v2385
      %v2387 = vpop.f32.mrf.mxu0
      %v2388 = vpop.f32.mrf.mxu0
      %v2389 = vadd.f32 0.0, %v2388
      %v2390 = vpop.f32.mrf.mxu0
      %2391 = vmatprep.mubr.bf16.mxu0 0
      %2392 = vmatmul.mubr.bf16.gmra.mxu0 %v2241
      %v2393 = vpop.f32.mrf.mxu0
      %v2394 = vadd.f32 0.0, %v2393
      %v2395 = vpop.f32.mrf.mxu0
      %v2396 = vpop.f32.mrf.mxu0
      %v2397 = vadd.f32 0.0, %v2396
      %v2398 = vpop.f32.mrf.mxu0
      %2399 = vmatprep.mubr.bf16.mxu0 0
      %2400 = vmatmul.mubr.bf16.gmra.mxu0 %v2244
      %v2401 = vpop.f32.mrf.mxu0
      %v2402 = vadd.f32 0.0, %v2401
      %v2403 = vpop.f32.mrf.mxu0
      %v2404 = vpop.f32.mrf.mxu0
      %v2405 = vadd.f32 0.0, %v2404
      %v2406 = vpop.f32.mrf.mxu0
      %2407 = vmatprep.mubr.bf16.mxu0 0
      %2408 = vmatmul.mubr.bf16.gmra.mxu0 %v2247
      %v2409 = vpop.f32.mrf.mxu0
      %v2410 = vadd.f32 0.0, %v2409
      %v2411 = vpop.f32.mrf.mxu0
      %v2412 = vpop.f32.mrf.mxu0
      %v2413 = vadd.f32 0.0, %v2412
      %v2414 = vpop.f32.mrf.mxu0
      %2415 = vmatprep.mubr.bf16.mxu0 0
      %2416 = vmatmul.mubr.bf16.gmra.mxu0 %v2250
      %v2417 = vpop.f32.mrf.mxu0
      %v2418 = vadd.f32 0.0, %v2417
      %v2419 = vpop.f32.mrf.mxu0
      %v2420 = vpop.f32.mrf.mxu0
      %v2421 = vadd.f32 0.0, %v2420
      %v2422 = vpop.f32.mrf.mxu0
      %2423 = vmatprep.mubr.bf16.mxu0 0
      %2424 = vmatmul.mubr.bf16.gmra.mxu0 %v2253
      %v2425 = vpop.f32.mrf.mxu0
      %v2426 = vadd.f32 0.0, %v2425
      %v2427 = vpop.f32.mrf.mxu0
      %v2428 = vpop.f32.mrf.mxu0
      %v2429 = vadd.f32 0.0, %v2428
      %v2430 = vpop.f32.mrf.mxu0
      %2431 = vdwg.mxu0
      %v2432 = vadd.f32 %v2094, %v2290
      %v2433 = vadd.f32 %v2095, %v2293
      %v2434 = vadd.f32 %v2096, %v2298
      %v2435 = vadd.f32 %v2097, %v2301
      %v2436 = vadd.f32 %v2098, %v2306
      %v2437 = vadd.f32 %v2099, %v2309
      %v2438 = vadd.f32 %v2100, %v2314
      %v2439 = vadd.f32 %v2101, %v2317
      %v2440 = vadd.f32 %v2102, %v2322
      %v2441 = vadd.f32 %v2103, %v2325
      %v2442 = vadd.f32 %v2104, %v2330
      %v2443 = vadd.f32 %v2105, %v2333
      %v2444 = vadd.f32 %v2106, %v2338
      %v2445 = vadd.f32 %v2107, %v2341
      %v2446 = vadd.f32 %v2108, %v2346
      %v2447 = vadd.f32 %v2109, %v2349
      %v2448 = vadd.f32 %v2110, %v2354
      %v2449 = vadd.f32 %v2111, %v2357
      %v2450 = vadd.f32 %v2112, %v2362
      %v2451 = vadd.f32 %v2113, %v2365
      %v2452 = vadd.f32 %v2114, %v2370
      %v2453 = vadd.f32 %v2115, %v2373
      %v2454 = vadd.f32 %v2116, %v2378
      %v2455 = vadd.f32 %v2117, %v2381
      %v2456 = vadd.f32 %v2118, %v2386
      %v2457 = vadd.f32 %v2119, %v2389
      %v2458 = vadd.f32 %v2120, %v2394
      %v2459 = vadd.f32 %v2121, %v2397
      %v2460 = vadd.f32 %v2122, %v2402
      %v2461 = vadd.f32 %v2123, %v2405
      %v2462 = vadd.f32 %v2124, %v2410
      %v2463 = vadd.f32 %v2125, %v2413
      %v2464 = vadd.f32 %v2126, %v2418
      %v2465 = vadd.f32 %v2127, %v2421
      %v2466 = vadd.f32 %v2128, %v2426
      %v2467 = vadd.f32 %v2129, %v2429
      %v2468 = vld [vmem:[%s192 + $0x24] sm:$0xff]
      %v2469 = vld [vmem:[%s192 + $0x2c] sm:$0xff]
      %v2470 = vld [vmem:[%s192 + $0x34] sm:$0xff]
      %v2471 = vld [vmem:[%s192 + $0x3c] sm:$0xff]
      %v2472 = vld [vmem:[%s192 + $0x44] sm:$0xff]
      %v2473 = vld [vmem:[%s192 + $0x4c] sm:$0xff]
      %v2474 = vld [vmem:[%s192 + $0x54] sm:$0xff]
      %v2475 = vld [vmem:[%s192 + $0x5c] sm:$0xff]
      %v2476 = vld [vmem:[%s192 + $0x64] sm:$0xff]
      %v2477 = vld [vmem:[%s192 + $0x6c] sm:$0xff]
      %v2478 = vld [vmem:[%s192 + $0x74] sm:$0xff]
      %v2479 = vld [vmem:[%s192 + $0x7c] sm:$0xff]
      %v2480 = vld [vmem:[%s192 + $0x84] sm:$0xff]
      %v2481 = vld [vmem:[%s192 + $0x8c] sm:$0xff]
      %v2482 = vld [vmem:[%s192 + $0x94] sm:$0xff]
      %v2483 = vld [vmem:[%s192 + $0x9c] sm:$0xff]
      %v2484 = vld [vmem:[%s192 + $0xa4] sm:$0xff]
      %v2485 = vld [vmem:[%s192 + $0xac] sm:$0xff]
      %v2486 = vld [vmem:[%s192 + $0xb4] sm:$0xff]
      %v2487 = vld [vmem:[%s192 + $0xbc] sm:$0xff]
      %v2488 = vld [vmem:[%s192 + $0xc4] sm:$0xff]
      %v2489 = vld [vmem:[%s192 + $0xcc] sm:$0xff]
      %v2490 = vld [vmem:[%s192 + $0xd4] sm:$0xff]
      %v2491 = vld [vmem:[%s192 + $0xdc] sm:$0xff]
      %v2492 = vld [vmem:[%s192 + $0xe4] sm:$0xff]
      %v2493 = vld [vmem:[%s192 + $0xec] sm:$0xff]
      %v2494 = vld [vmem:[%s192 + $0xf4] sm:$0xff]
      %v2495 = vld [vmem:[%s192 + $0xfc] sm:$0xff]
      %v2496 = vld [vmem:[%s192 + $0x104] sm:$0xff]
      %v2497 = vld [vmem:[%s192 + $0x10c] sm:$0xff]
      %v2498 = vld [vmem:[%s192 + $0x114] sm:$0xff]
      %v2499 = vld [vmem:[%s192 + $0x11c] sm:$0xff]
      %v2500 = vld [vmem:[%s192 + $0x124] sm:$0xff]
      %v2501 = vld [vmem:[%s192 + $0x12c] sm:$0xff]
      %v2502 = vld [vmem:[%s192 + $0x134] sm:$0xff]
      %v2503 = vld [vmem:[%s192 + $0x13c] sm:$0xff]
      %v2504 = vpack.c.bf16 %v2469, %v2468
      %v2505 = vpack.c.bf16 %v2471, %v2470
      %v2506 = vpack.c.bf16 %v2473, %v2472
      %v2507 = vpack.c.bf16 %v2475, %v2474
      %v2508 = vpack.c.bf16 %v2477, %v2476
      %v2509 = vpack.c.bf16 %v2479, %v2478
      %v2510 = vpack.c.bf16 %v2481, %v2480
      %v2511 = vpack.c.bf16 %v2483, %v2482
      %v2512 = vpack.c.bf16 %v2485, %v2484
      %v2513 = vpack.c.bf16 %v2487, %v2486
      %v2514 = vpack.c.bf16 %v2489, %v2488
      %v2515 = vpack.c.bf16 %v2491, %v2490
      %v2516 = vpack.c.bf16 %v2493, %v2492
      %v2517 = vpack.c.bf16 %v2495, %v2494
      %v2518 = vpack.c.bf16 %v2497, %v2496
      %v2519 = vpack.c.bf16 %v2499, %v2498
      %v2520 = vpack.c.bf16 %v2501, %v2500
      %v2521 = vpack.c.bf16 %v2503, %v2502
      %s2522 = scalar_lea.vmem %s1, 96
      %v2523 = vld [vmem:[%s2522] sm:$0xf]
      %v2524 = vld [vmem:[%s2522 + $0x4] sm:$0xf]
      %v2525 = vld [vmem:[%s2522 + $0x8] sm:$0xf]
      %v2526 = vld [vmem:[%s2522 + $0xc] sm:$0xf]
      %v2531 = vunpack.c.l.b16 %v2523
      %v2532 = vunpack.c.l.b16 %v2524
      %v2533 = vunpack.c.l.b16 %v2525
      %v2534 = vunpack.c.l.b16 %v2526
      %v2535 = vpack.c.b16 %v2532, %v2531
      %v2536 = vpack.c.b16 %v2534, %v2533
      %v2540 = vsel %vm641, %v2504, 0
      %v2543 = vsel %vm641, %v2505, 0
      %v2546 = vsel %vm641, %v2506, 0
      %v2549 = vsel %vm641, %v2507, 0
      %v2552 = vsel %vm641, %v2508, 0
      %v2555 = vsel %vm641, %v2509, 0
      %v2558 = vsel %vm641, %v2510, 0
      %v2561 = vsel %vm641, %v2511, 0
      %v2564 = vsel %vm641, %v2512, 0
      %v2567 = vsel %vm641, %v2513, 0
      %v2570 = vsel %vm641, %v2514, 0
      %v2573 = vsel %vm641, %v2515, 0
      %v2576 = vsel %vm641, %v2516, 0
      %v2579 = vsel %vm641, %v2517, 0
      %v2582 = vsel %vm641, %v2518, 0
      %v2585 = vsel %vm641, %v2519, 0
      %v2588 = vsel %vm641, %v2520, 0
      %v2591 = vsel %vm641, %v2521, 0
      %2593 = vmatprep.subr.bf16.mxu0 0
      %2594 = vmatpush1.bf16.msra.mxu0 0
      %2595 = vmatprep.subr.bf16.mxu0 0
      %2596 = vmatpush1.bf16.msra.mxu0 0
      %2597 = vmatprep.subr.bf16.mxu0 0
      %2598 = vmatpush1.bf16.msra.mxu0 0
      %2599 = vmatprep.subr.bf16.mxu0 0
      %2600 = vmatpush1.bf16.msra.mxu0 0
      %2601 = vmatprep.subr.bf16.mxu0 0
      %2602 = vmatpush1.bf16.msra.mxu0 0
      %2603 = vmatprep.subr.bf16.mxu0 0
      %2604 = vmatpush1.bf16.msra.mxu0 0
      %2605 = vmatprep.subr.bf16.mxu0 0
      %2606 = vmatpush1.bf16.msra.mxu0 %v2536
      %2607 = vmatprep.subr.bf16.mxu0 0
      %2608 = vmatpush1.bf16.msra.mxu0 %v2535
      %2609 = vmatprep.subr.bf16.mxu0 0
      %2610 = vmatpush2.bf16.msra.mxu0 0
      %2611 = vmatprep.subr.bf16.mxu0 0
      %2612 = vmatpush2.bf16.msra.mxu0 0
      %2613 = vmatprep.subr.bf16.mxu0 0
      %2614 = vmatpush2.bf16.msra.mxu0 0
      %2615 = vmatprep.subr.bf16.mxu0 0
      %2616 = vmatpush2.bf16.msra.mxu0 0
      %2617 = vmatprep.subr.bf16.mxu0 0
      %2618 = vmatpush2.bf16.msra.mxu0 0
      %2619 = vmatprep.subr.bf16.mxu0 0
      %2620 = vmatpush2.bf16.msra.mxu0 0
      %2621 = vmatprep.subr.bf16.mxu0 0
      %2622 = vmatpush2.bf16.msra.mxu0 0
      %2623 = vmatprep.subr.bf16.mxu0 0
      %2624 = vmatpush2.bf16.msra.mxu0 0
      %2625 = vmatprep.mubr.bf16.mxu0 0
      %2626 = vmatmul.mubr.bf16.gmra.mxu0 %v2540
      %v2627 = vpop.f32.mrf.mxu0
      %v2628 = vadd.f32 0.0, %v2627
      %v2629 = vpop.f32.mrf.mxu0
      %v2630 = vpop.f32.mrf.mxu0
      %v2631 = vadd.f32 0.0, %v2630
      %v2632 = vpop.f32.mrf.mxu0
      %2633 = vmatprep.mubr.bf16.mxu0 0
      %2634 = vmatmul.mubr.bf16.gmra.mxu0 %v2543
      %v2635 = vpop.f32.mrf.mxu0
      %v2636 = vadd.f32 0.0, %v2635
      %v2637 = vpop.f32.mrf.mxu0
      %v2638 = vpop.f32.mrf.mxu0
      %v2639 = vadd.f32 0.0, %v2638
      %v2640 = vpop.f32.mrf.mxu0
      %2641 = vmatprep.mubr.bf16.mxu0 0
      %2642 = vmatmul.mubr.bf16.gmra.mxu0 %v2546
      %v2643 = vpop.f32.mrf.mxu0
      %v2644 = vadd.f32 0.0, %v2643
      %v2645 = vpop.f32.mrf.mxu0
      %v2646 = vpop.f32.mrf.mxu0
      %v2647 = vadd.f32 0.0, %v2646
      %v2648 = vpop.f32.mrf.mxu0
      %2649 = vmatprep.mubr.bf16.mxu0 0
      %2650 = vmatmul.mubr.bf16.gmra.mxu0 %v2549
      %v2651 = vpop.f32.mrf.mxu0
      %v2652 = vadd.f32 0.0, %v2651
      %v2653 = vpop.f32.mrf.mxu0
      %v2654 = vpop.f32.mrf.mxu0
      %v2655 = vadd.f32 0.0, %v2654
      %v2656 = vpop.f32.mrf.mxu0
      %2657 = vmatprep.mubr.bf16.mxu0 0
      %2658 = vmatmul.mubr.bf16.gmra.mxu0 %v2552
      %v2659 = vpop.f32.mrf.mxu0
      %v2660 = vadd.f32 0.0, %v2659
      %v2661 = vpop.f32.mrf.mxu0
      %v2662 = vpop.f32.mrf.mxu0
      %v2663 = vadd.f32 0.0, %v2662
      %v2664 = vpop.f32.mrf.mxu0
      %2665 = vmatprep.mubr.bf16.mxu0 0
      %2666 = vmatmul.mubr.bf16.gmra.mxu0 %v2555
      %v2667 = vpop.f32.mrf.mxu0
      %v2668 = vadd.f32 0.0, %v2667
      %v2669 = vpop.f32.mrf.mxu0
      %v2670 = vpop.f32.mrf.mxu0
      %v2671 = vadd.f32 0.0, %v2670
      %v2672 = vpop.f32.mrf.mxu0
      %2673 = vmatprep.mubr.bf16.mxu0 0
      %2674 = vmatmul.mubr.bf16.gmra.mxu0 %v2558
      %v2675 = vpop.f32.mrf.mxu0
      %v2676 = vadd.f32 0.0, %v2675
      %v2677 = vpop.f32.mrf.mxu0
      %v2678 = vpop.f32.mrf.mxu0
      %v2679 = vadd.f32 0.0, %v2678
      %v2680 = vpop.f32.mrf.mxu0
      %2681 = vmatprep.mubr.bf16.mxu0 0
      %2682 = vmatmul.mubr.bf16.gmra.mxu0 %v2561
      %v2683 = vpop.f32.mrf.mxu0
      %v2684 = vadd.f32 0.0, %v2683
      %v2685 = vpop.f32.mrf.mxu0
      %v2686 = vpop.f32.mrf.mxu0
      %v2687 = vadd.f32 0.0, %v2686
      %v2688 = vpop.f32.mrf.mxu0
      %2689 = vmatprep.mubr.bf16.mxu0 0
      %2690 = vmatmul.mubr.bf16.gmra.mxu0 %v2564
      %v2691 = vpop.f32.mrf.mxu0
      %v2692 = vadd.f32 0.0, %v2691
      %v2693 = vpop.f32.mrf.mxu0
      %v2694 = vpop.f32.mrf.mxu0
      %v2695 = vadd.f32 0.0, %v2694
      %v2696 = vpop.f32.mrf.mxu0
      %2697 = vmatprep.mubr.bf16.mxu0 0
      %2698 = vmatmul.mubr.bf16.gmra.mxu0 %v2567
      %v2699 = vpop.f32.mrf.mxu0
      %v2700 = vadd.f32 0.0, %v2699
      %v2701 = vpop.f32.mrf.mxu0
      %v2702 = vpop.f32.mrf.mxu0
      %v2703 = vadd.f32 0.0, %v2702
      %v2704 = vpop.f32.mrf.mxu0
      %2705 = vmatprep.mubr.bf16.mxu0 0
      %2706 = vmatmul.mubr.bf16.gmra.mxu0 %v2570
      %v2707 = vpop.f32.mrf.mxu0
      %v2708 = vadd.f32 0.0, %v2707
      %v2709 = vpop.f32.mrf.mxu0
      %v2710 = vpop.f32.mrf.mxu0
      %v2711 = vadd.f32 0.0, %v2710
      %v2712 = vpop.f32.mrf.mxu0
      %2713 = vmatprep.mubr.bf16.mxu0 0
      %2714 = vmatmul.mubr.bf16.gmra.mxu0 %v2573
      %v2715 = vpop.f32.mrf.mxu0
      %v2716 = vadd.f32 0.0, %v2715
      %v2717 = vpop.f32.mrf.mxu0
      %v2718 = vpop.f32.mrf.mxu0
      %v2719 = vadd.f32 0.0, %v2718
      %v2720 = vpop.f32.mrf.mxu0
      %2721 = vmatprep.mubr.bf16.mxu0 0
      %2722 = vmatmul.mubr.bf16.gmra.mxu0 %v2576
      %v2723 = vpop.f32.mrf.mxu0
      %v2724 = vadd.f32 0.0, %v2723
      %v2725 = vpop.f32.mrf.mxu0
      %v2726 = vpop.f32.mrf.mxu0
      %v2727 = vadd.f32 0.0, %v2726
      %v2728 = vpop.f32.mrf.mxu0
      %2729 = vmatprep.mubr.bf16.mxu0 0
      %2730 = vmatmul.mubr.bf16.gmra.mxu0 %v2579
      %v2731 = vpop.f32.mrf.mxu0
      %v2732 = vadd.f32 0.0, %v2731
      %v2733 = vpop.f32.mrf.mxu0
      %v2734 = vpop.f32.mrf.mxu0
      %v2735 = vadd.f32 0.0, %v2734
      %v2736 = vpop.f32.mrf.mxu0
      %2737 = vmatprep.mubr.bf16.mxu0 0
      %2738 = vmatmul.mubr.bf16.gmra.mxu0 %v2582
      %v2739 = vpop.f32.mrf.mxu0
      %v2740 = vadd.f32 0.0, %v2739
      %v2741 = vpop.f32.mrf.mxu0
      %v2742 = vpop.f32.mrf.mxu0
      %v2743 = vadd.f32 0.0, %v2742
      %v2744 = vpop.f32.mrf.mxu0
      %2745 = vmatprep.mubr.bf16.mxu0 0
      %2746 = vmatmul.mubr.bf16.gmra.mxu0 %v2585
      %v2747 = vpop.f32.mrf.mxu0
      %v2748 = vadd.f32 0.0, %v2747
      %v2749 = vpop.f32.mrf.mxu0
      %v2750 = vpop.f32.mrf.mxu0
      %v2751 = vadd.f32 0.0, %v2750
      %v2752 = vpop.f32.mrf.mxu0
      %2753 = vmatprep.mubr.bf16.mxu0 0
      %2754 = vmatmul.mubr.bf16.gmra.mxu0 %v2588
      %v2755 = vpop.f32.mrf.mxu0
      %v2756 = vadd.f32 0.0, %v2755
      %v2757 = vpop.f32.mrf.mxu0
      %v2758 = vpop.f32.mrf.mxu0
      %v2759 = vadd.f32 0.0, %v2758
      %v2760 = vpop.f32.mrf.mxu0
      %2761 = vmatprep.mubr.bf16.mxu0 0
      %2762 = vmatmul.mubr.bf16.gmra.mxu0 %v2591
      %v2763 = vpop.f32.mrf.mxu0
      %v2764 = vadd.f32 0.0, %v2763
      %v2765 = vpop.f32.mrf.mxu0
      %v2766 = vpop.f32.mrf.mxu0
      %v2767 = vadd.f32 0.0, %v2766
      %v2768 = vpop.f32.mrf.mxu0
      %2769 = vdwg.mxu0
      %v2770 = vadd.f32 %v2432, %v2628
      %v2771 = vadd.f32 %v2433, %v2631
      %v2772 = vadd.f32 %v2434, %v2636
      %v2773 = vadd.f32 %v2435, %v2639
      %v2774 = vadd.f32 %v2436, %v2644
      %v2775 = vadd.f32 %v2437, %v2647
      %v2776 = vadd.f32 %v2438, %v2652
      %v2777 = vadd.f32 %v2439, %v2655
      %v2778 = vadd.f32 %v2440, %v2660
      %v2779 = vadd.f32 %v2441, %v2663
      %v2780 = vadd.f32 %v2442, %v2668
      %v2781 = vadd.f32 %v2443, %v2671
      %v2782 = vadd.f32 %v2444, %v2676
      %v2783 = vadd.f32 %v2445, %v2679
      %v2784 = vadd.f32 %v2446, %v2684
      %v2785 = vadd.f32 %v2447, %v2687
      %v2786 = vadd.f32 %v2448, %v2692
      %v2787 = vadd.f32 %v2449, %v2695
      %v2788 = vadd.f32 %v2450, %v2700
      %v2789 = vadd.f32 %v2451, %v2703
      %v2790 = vadd.f32 %v2452, %v2708
      %v2791 = vadd.f32 %v2453, %v2711
      %v2792 = vadd.f32 %v2454, %v2716
      %v2793 = vadd.f32 %v2455, %v2719
      %v2794 = vadd.f32 %v2456, %v2724
      %v2795 = vadd.f32 %v2457, %v2727
      %v2796 = vadd.f32 %v2458, %v2732
      %v2797 = vadd.f32 %v2459, %v2735
      %v2798 = vadd.f32 %v2460, %v2740
      %v2799 = vadd.f32 %v2461, %v2743
      %v2800 = vadd.f32 %v2462, %v2748
      %v2801 = vadd.f32 %v2463, %v2751
      %v2802 = vadd.f32 %v2464, %v2756
      %v2803 = vadd.f32 %v2465, %v2759
      %v2804 = vadd.f32 %v2466, %v2764
      %v2805 = vadd.f32 %v2467, %v2767
      %v2806 = vld [vmem:[%s192 + $0x25] sm:$0xff]
      %v2807 = vld [vmem:[%s192 + $0x2d] sm:$0xff]
      %v2808 = vld [vmem:[%s192 + $0x35] sm:$0xff]
      %v2809 = vld [vmem:[%s192 + $0x3d] sm:$0xff]
      %v2810 = vld [vmem:[%s192 + $0x45] sm:$0xff]
      %v2811 = vld [vmem:[%s192 + $0x4d] sm:$0xff]
      %v2812 = vld [vmem:[%s192 + $0x55] sm:$0xff]
      %v2813 = vld [vmem:[%s192 + $0x5d] sm:$0xff]
      %v2814 = vld [vmem:[%s192 + $0x65] sm:$0xff]
      %v2815 = vld [vmem:[%s192 + $0x6d] sm:$0xff]
      %v2816 = vld [vmem:[%s192 + $0x75] sm:$0xff]
      %v2817 = vld [vmem:[%s192 + $0x7d] sm:$0xff]
      %v2818 = vld [vmem:[%s192 + $0x85] sm:$0xff]
      %v2819 = vld [vmem:[%s192 + $0x8d] sm:$0xff]
      %v2820 = vld [vmem:[%s192 + $0x95] sm:$0xff]
      %v2821 = vld [vmem:[%s192 + $0x9d] sm:$0xff]
      %v2822 = vld [vmem:[%s192 + $0xa5] sm:$0xff]
      %v2823 = vld [vmem:[%s192 + $0xad] sm:$0xff]
      %v2824 = vld [vmem:[%s192 + $0xb5] sm:$0xff]
      %v2825 = vld [vmem:[%s192 + $0xbd] sm:$0xff]
      %v2826 = vld [vmem:[%s192 + $0xc5] sm:$0xff]
      %v2827 = vld [vmem:[%s192 + $0xcd] sm:$0xff]
      %v2828 = vld [vmem:[%s192 + $0xd5] sm:$0xff]
      %v2829 = vld [vmem:[%s192 + $0xdd] sm:$0xff]
      %v2830 = vld [vmem:[%s192 + $0xe5] sm:$0xff]
      %v2831 = vld [vmem:[%s192 + $0xed] sm:$0xff]
      %v2832 = vld [vmem:[%s192 + $0xf5] sm:$0xff]
      %v2833 = vld [vmem:[%s192 + $0xfd] sm:$0xff]
      %v2834 = vld [vmem:[%s192 + $0x105] sm:$0xff]
      %v2835 = vld [vmem:[%s192 + $0x10d] sm:$0xff]
      %v2836 = vld [vmem:[%s192 + $0x115] sm:$0xff]
      %v2837 = vld [vmem:[%s192 + $0x11d] sm:$0xff]
      %v2838 = vld [vmem:[%s192 + $0x125] sm:$0xff]
      %v2839 = vld [vmem:[%s192 + $0x12d] sm:$0xff]
      %v2840 = vld [vmem:[%s192 + $0x135] sm:$0xff]
      %v2841 = vld [vmem:[%s192 + $0x13d] sm:$0xff]
      %v2842 = vpack.c.bf16 %v2807, %v2806
      %v2843 = vpack.c.bf16 %v2809, %v2808
      %v2844 = vpack.c.bf16 %v2811, %v2810
      %v2845 = vpack.c.bf16 %v2813, %v2812
      %v2846 = vpack.c.bf16 %v2815, %v2814
      %v2847 = vpack.c.bf16 %v2817, %v2816
      %v2848 = vpack.c.bf16 %v2819, %v2818
      %v2849 = vpack.c.bf16 %v2821, %v2820
      %v2850 = vpack.c.bf16 %v2823, %v2822
      %v2851 = vpack.c.bf16 %v2825, %v2824
      %v2852 = vpack.c.bf16 %v2827, %v2826
      %v2853 = vpack.c.bf16 %v2829, %v2828
      %v2854 = vpack.c.bf16 %v2831, %v2830
      %v2855 = vpack.c.bf16 %v2833, %v2832
      %v2856 = vpack.c.bf16 %v2835, %v2834
      %v2857 = vpack.c.bf16 %v2837, %v2836
      %v2858 = vpack.c.bf16 %v2839, %v2838
      %v2859 = vpack.c.bf16 %v2841, %v2840
      %s2860 = scalar_lea.vmem %s1, 112
      %v2861 = vld [vmem:[%s2860] sm:$0xf]
      %v2862 = vld [vmem:[%s2860 + $0x4] sm:$0xf]
      %v2863 = vld [vmem:[%s2860 + $0x8] sm:$0xf]
      %v2864 = vld [vmem:[%s2860 + $0xc] sm:$0xf]
      %v2869 = vunpack.c.l.b16 %v2861
      %v2870 = vunpack.c.l.b16 %v2862
      %v2871 = vunpack.c.l.b16 %v2863
      %v2872 = vunpack.c.l.b16 %v2864
      %v2873 = vpack.c.b16 %v2870, %v2869
      %v2874 = vpack.c.b16 %v2872, %v2871
      %v2878 = vsel %vm641, %v2842, 0
      %v2881 = vsel %vm641, %v2843, 0
      %v2884 = vsel %vm641, %v2844, 0
      %v2887 = vsel %vm641, %v2845, 0
      %v2890 = vsel %vm641, %v2846, 0
      %v2893 = vsel %vm641, %v2847, 0
      %v2896 = vsel %vm641, %v2848, 0
      %v2899 = vsel %vm641, %v2849, 0
      %v2902 = vsel %vm641, %v2850, 0
      %v2905 = vsel %vm641, %v2851, 0
      %v2908 = vsel %vm641, %v2852, 0
      %v2911 = vsel %vm641, %v2853, 0
      %v2914 = vsel %vm641, %v2854, 0
      %v2917 = vsel %vm641, %v2855, 0
      %v2920 = vsel %vm641, %v2856, 0
      %v2923 = vsel %vm641, %v2857, 0
      %v2926 = vsel %vm641, %v2858, 0
      %v2929 = vsel %vm641, %v2859, 0
      %2931 = vmatprep.subr.bf16.mxu0 0
      %2932 = vmatpush1.bf16.msra.mxu0 0
      %2933 = vmatprep.subr.bf16.mxu0 0
      %2934 = vmatpush1.bf16.msra.mxu0 0
      %2935 = vmatprep.subr.bf16.mxu0 0
      %2936 = vmatpush1.bf16.msra.mxu0 0
      %2937 = vmatprep.subr.bf16.mxu0 0
      %2938 = vmatpush1.bf16.msra.mxu0 0
      %2939 = vmatprep.subr.bf16.mxu0 0
      %2940 = vmatpush1.bf16.msra.mxu0 0
      %2941 = vmatprep.subr.bf16.mxu0 0
      %2942 = vmatpush1.bf16.msra.mxu0 0
      %2943 = vmatprep.subr.bf16.mxu0 0
      %2944 = vmatpush1.bf16.msra.mxu0 %v2874
      %2945 = vmatprep.subr.bf16.mxu0 0
      %2946 = vmatpush1.bf16.msra.mxu0 %v2873
      %2947 = vmatprep.subr.bf16.mxu0 0
      %2948 = vmatpush2.bf16.msra.mxu0 0
      %2949 = vmatprep.subr.bf16.mxu0 0
      %2950 = vmatpush2.bf16.msra.mxu0 0
      %2951 = vmatprep.subr.bf16.mxu0 0
      %2952 = vmatpush2.bf16.msra.mxu0 0
      %2953 = vmatprep.subr.bf16.mxu0 0
      %2954 = vmatpush2.bf16.msra.mxu0 0
      %2955 = vmatprep.subr.bf16.mxu0 0
      %2956 = vmatpush2.bf16.msra.mxu0 0
      %2957 = vmatprep.subr.bf16.mxu0 0
      %2958 = vmatpush2.bf16.msra.mxu0 0
      %2959 = vmatprep.subr.bf16.mxu0 0
      %2960 = vmatpush2.bf16.msra.mxu0 0
      %2961 = vmatprep.subr.bf16.mxu0 0
      %2962 = vmatpush2.bf16.msra.mxu0 0
      %2963 = vmatprep.mubr.bf16.mxu0 0
      %2964 = vmatmul.mubr.bf16.gmra.mxu0 %v2878
      %v2965 = vpop.f32.mrf.mxu0
      %v2966 = vadd.f32 0.0, %v2965
      %v2967 = vpop.f32.mrf.mxu0
      %v2968 = vpop.f32.mrf.mxu0
      %v2969 = vadd.f32 0.0, %v2968
      %v2970 = vpop.f32.mrf.mxu0
      %2971 = vmatprep.mubr.bf16.mxu0 0
      %2972 = vmatmul.mubr.bf16.gmra.mxu0 %v2881
      %v2973 = vpop.f32.mrf.mxu0
      %v2974 = vadd.f32 0.0, %v2973
      %v2975 = vpop.f32.mrf.mxu0
      %v2976 = vpop.f32.mrf.mxu0
      %v2977 = vadd.f32 0.0, %v2976
      %v2978 = vpop.f32.mrf.mxu0
      %2979 = vmatprep.mubr.bf16.mxu0 0
      %2980 = vmatmul.mubr.bf16.gmra.mxu0 %v2884
      %v2981 = vpop.f32.mrf.mxu0
      %v2982 = vadd.f32 0.0, %v2981
      %v2983 = vpop.f32.mrf.mxu0
      %v2984 = vpop.f32.mrf.mxu0
      %v2985 = vadd.f32 0.0, %v2984
      %v2986 = vpop.f32.mrf.mxu0
      %2987 = vmatprep.mubr.bf16.mxu0 0
      %2988 = vmatmul.mubr.bf16.gmra.mxu0 %v2887
      %v2989 = vpop.f32.mrf.mxu0
      %v2990 = vadd.f32 0.0, %v2989
      %v2991 = vpop.f32.mrf.mxu0
      %v2992 = vpop.f32.mrf.mxu0
      %v2993 = vadd.f32 0.0, %v2992
      %v2994 = vpop.f32.mrf.mxu0
      %2995 = vmatprep.mubr.bf16.mxu0 0
      %2996 = vmatmul.mubr.bf16.gmra.mxu0 %v2890
      %v2997 = vpop.f32.mrf.mxu0
      %v2998 = vadd.f32 0.0, %v2997
      %v2999 = vpop.f32.mrf.mxu0
      %v3000 = vpop.f32.mrf.mxu0
      %v3001 = vadd.f32 0.0, %v3000
      %v3002 = vpop.f32.mrf.mxu0
      %3003 = vmatprep.mubr.bf16.mxu0 0
      %3004 = vmatmul.mubr.bf16.gmra.mxu0 %v2893
      %v3005 = vpop.f32.mrf.mxu0
      %v3006 = vadd.f32 0.0, %v3005
      %v3007 = vpop.f32.mrf.mxu0
      %v3008 = vpop.f32.mrf.mxu0
      %v3009 = vadd.f32 0.0, %v3008
      %v3010 = vpop.f32.mrf.mxu0
      %3011 = vmatprep.mubr.bf16.mxu0 0
      %3012 = vmatmul.mubr.bf16.gmra.mxu0 %v2896
      %v3013 = vpop.f32.mrf.mxu0
      %v3014 = vadd.f32 0.0, %v3013
      %v3015 = vpop.f32.mrf.mxu0
      %v3016 = vpop.f32.mrf.mxu0
      %v3017 = vadd.f32 0.0, %v3016
      %v3018 = vpop.f32.mrf.mxu0
      %3019 = vmatprep.mubr.bf16.mxu0 0
      %3020 = vmatmul.mubr.bf16.gmra.mxu0 %v2899
      %v3021 = vpop.f32.mrf.mxu0
      %v3022 = vadd.f32 0.0, %v3021
      %v3023 = vpop.f32.mrf.mxu0
      %v3024 = vpop.f32.mrf.mxu0
      %v3025 = vadd.f32 0.0, %v3024
      %v3026 = vpop.f32.mrf.mxu0
      %3027 = vmatprep.mubr.bf16.mxu0 0
      %3028 = vmatmul.mubr.bf16.gmra.mxu0 %v2902
      %v3029 = vpop.f32.mrf.mxu0
      %v3030 = vadd.f32 0.0, %v3029
      %v3031 = vpop.f32.mrf.mxu0
      %v3032 = vpop.f32.mrf.mxu0
      %v3033 = vadd.f32 0.0, %v3032
      %v3034 = vpop.f32.mrf.mxu0
      %3035 = vmatprep.mubr.bf16.mxu0 0
      %3036 = vmatmul.mubr.bf16.gmra.mxu0 %v2905
      %v3037 = vpop.f32.mrf.mxu0
      %v3038 = vadd.f32 0.0, %v3037
      %v3039 = vpop.f32.mrf.mxu0
      %v3040 = vpop.f32.mrf.mxu0
      %v3041 = vadd.f32 0.0, %v3040
      %v3042 = vpop.f32.mrf.mxu0
      %3043 = vmatprep.mubr.bf16.mxu0 0
      %3044 = vmatmul.mubr.bf16.gmra.mxu0 %v2908
      %v3045 = vpop.f32.mrf.mxu0
      %v3046 = vadd.f32 0.0, %v3045
      %v3047 = vpop.f32.mrf.mxu0
      %v3048 = vpop.f32.mrf.mxu0
      %v3049 = vadd.f32 0.0, %v3048
      %v3050 = vpop.f32.mrf.mxu0
      %3051 = vmatprep.mubr.bf16.mxu0 0
      %3052 = vmatmul.mubr.bf16.gmra.mxu0 %v2911
      %v3053 = vpop.f32.mrf.mxu0
      %v3054 = vadd.f32 0.0, %v3053
      %v3055 = vpop.f32.mrf.mxu0
      %v3056 = vpop.f32.mrf.mxu0
      %v3057 = vadd.f32 0.0, %v3056
      %v3058 = vpop.f32.mrf.mxu0
      %3059 = vmatprep.mubr.bf16.mxu0 0
      %3060 = vmatmul.mubr.bf16.gmra.mxu0 %v2914
      %v3061 = vpop.f32.mrf.mxu0
      %v3062 = vadd.f32 0.0, %v3061
      %v3063 = vpop.f32.mrf.mxu0
      %v3064 = vpop.f32.mrf.mxu0
      %v3065 = vadd.f32 0.0, %v3064
      %v3066 = vpop.f32.mrf.mxu0
      %3067 = vmatprep.mubr.bf16.mxu0 0
      %3068 = vmatmul.mubr.bf16.gmra.mxu0 %v2917
      %v3069 = vpop.f32.mrf.mxu0
      %v3070 = vadd.f32 0.0, %v3069
      %v3071 = vpop.f32.mrf.mxu0
      %v3072 = vpop.f32.mrf.mxu0
      %v3073 = vadd.f32 0.0, %v3072
      %v3074 = vpop.f32.mrf.mxu0
      %3075 = vmatprep.mubr.bf16.mxu0 0
      %3076 = vmatmul.mubr.bf16.gmra.mxu0 %v2920
      %v3077 = vpop.f32.mrf.mxu0
      %v3078 = vadd.f32 0.0, %v3077
      %v3079 = vpop.f32.mrf.mxu0
      %v3080 = vpop.f32.mrf.mxu0
      %v3081 = vadd.f32 0.0, %v3080
      %v3082 = vpop.f32.mrf.mxu0
      %3083 = vmatprep.mubr.bf16.mxu0 0
      %3084 = vmatmul.mubr.bf16.gmra.mxu0 %v2923
      %v3085 = vpop.f32.mrf.mxu0
      %v3086 = vadd.f32 0.0, %v3085
      %v3087 = vpop.f32.mrf.mxu0
      %v3088 = vpop.f32.mrf.mxu0
      %v3089 = vadd.f32 0.0, %v3088
      %v3090 = vpop.f32.mrf.mxu0
      %3091 = vmatprep.mubr.bf16.mxu0 0
      %3092 = vmatmul.mubr.bf16.gmra.mxu0 %v2926
      %v3093 = vpop.f32.mrf.mxu0
      %v3094 = vadd.f32 0.0, %v3093
      %v3095 = vpop.f32.mrf.mxu0
      %v3096 = vpop.f32.mrf.mxu0
      %v3097 = vadd.f32 0.0, %v3096
      %v3098 = vpop.f32.mrf.mxu0
      %3099 = vmatprep.mubr.bf16.mxu0 0
      %3100 = vmatmul.mubr.bf16.gmra.mxu0 %v2929
      %v3101 = vpop.f32.mrf.mxu0
      %v3102 = vadd.f32 0.0, %v3101
      %v3103 = vpop.f32.mrf.mxu0
      %v3104 = vpop.f32.mrf.mxu0
      %v3105 = vadd.f32 0.0, %v3104
      %v3106 = vpop.f32.mrf.mxu0
      %3107 = vdwg.mxu0
      %v3108 = vadd.f32 %v2770, %v2966
      %v3109 = vadd.f32 %v2771, %v2969
      %v3110 = vadd.f32 %v2772, %v2974
      %v3111 = vadd.f32 %v2773, %v2977
      %v3112 = vadd.f32 %v2774, %v2982
      %v3113 = vadd.f32 %v2775, %v2985
      %v3114 = vadd.f32 %v2776, %v2990
      %v3115 = vadd.f32 %v2777, %v2993
      %v3116 = vadd.f32 %v2778, %v2998
      %v3117 = vadd.f32 %v2779, %v3001
      %v3118 = vadd.f32 %v2780, %v3006
      %v3119 = vadd.f32 %v2781, %v3009
      %v3120 = vadd.f32 %v2782, %v3014
      %v3121 = vadd.f32 %v2783, %v3017
      %v3122 = vadd.f32 %v2784, %v3022
      %v3123 = vadd.f32 %v2785, %v3025
      %v3124 = vadd.f32 %v2786, %v3030
      %v3125 = vadd.f32 %v2787, %v3033
      %v3126 = vadd.f32 %v2788, %v3038
      %v3127 = vadd.f32 %v2789, %v3041
      %v3128 = vadd.f32 %v2790, %v3046
      %v3129 = vadd.f32 %v2791, %v3049
      %v3130 = vadd.f32 %v2792, %v3054
      %v3131 = vadd.f32 %v2793, %v3057
      %v3132 = vadd.f32 %v2794, %v3062
      %v3133 = vadd.f32 %v2795, %v3065
      %v3134 = vadd.f32 %v2796, %v3070
      %v3135 = vadd.f32 %v2797, %v3073
      %v3136 = vadd.f32 %v2798, %v3078
      %v3137 = vadd.f32 %v2799, %v3081
      %v3138 = vadd.f32 %v2800, %v3086
      %v3139 = vadd.f32 %v2801, %v3089
      %v3140 = vadd.f32 %v2802, %v3094
      %v3141 = vadd.f32 %v2803, %v3097
      %v3142 = vadd.f32 %v2804, %v3102
      %v3143 = vadd.f32 %v2805, %v3105
      %v3144 = vld [vmem:[%s192 + $0x26] sm:$0xff]
      %v3145 = vld [vmem:[%s192 + $0x2e] sm:$0xff]
      %v3146 = vld [vmem:[%s192 + $0x36] sm:$0xff]
      %v3147 = vld [vmem:[%s192 + $0x3e] sm:$0xff]
      %v3148 = vld [vmem:[%s192 + $0x46] sm:$0xff]
      %v3149 = vld [vmem:[%s192 + $0x4e] sm:$0xff]
      %v3150 = vld [vmem:[%s192 + $0x56] sm:$0xff]
      %v3151 = vld [vmem:[%s192 + $0x5e] sm:$0xff]
      %v3152 = vld [vmem:[%s192 + $0x66] sm:$0xff]
      %v3153 = vld [vmem:[%s192 + $0x6e] sm:$0xff]
      %v3154 = vld [vmem:[%s192 + $0x76] sm:$0xff]
      %v3155 = vld [vmem:[%s192 + $0x7e] sm:$0xff]
      %v3156 = vld [vmem:[%s192 + $0x86] sm:$0xff]
      %v3157 = vld [vmem:[%s192 + $0x8e] sm:$0xff]
      %v3158 = vld [vmem:[%s192 + $0x96] sm:$0xff]
      %v3159 = vld [vmem:[%s192 + $0x9e] sm:$0xff]
      %v3160 = vld [vmem:[%s192 + $0xa6] sm:$0xff]
      %v3161 = vld [vmem:[%s192 + $0xae] sm:$0xff]
      %v3162 = vld [vmem:[%s192 + $0xb6] sm:$0xff]
      %v3163 = vld [vmem:[%s192 + $0xbe] sm:$0xff]
      %v3164 = vld [vmem:[%s192 + $0xc6] sm:$0xff]
      %v3165 = vld [vmem:[%s192 + $0xce] sm:$0xff]
      %v3166 = vld [vmem:[%s192 + $0xd6] sm:$0xff]
      %v3167 = vld [vmem:[%s192 + $0xde] sm:$0xff]
      %v3168 = vld [vmem:[%s192 + $0xe6] sm:$0xff]
      %v3169 = vld [vmem:[%s192 + $0xee] sm:$0xff]
      %v3170 = vld [vmem:[%s192 + $0xf6] sm:$0xff]
      %v3171 = vld [vmem:[%s192 + $0xfe] sm:$0xff]
      %v3172 = vld [vmem:[%s192 + $0x106] sm:$0xff]
      %v3173 = vld [vmem:[%s192 + $0x10e] sm:$0xff]
      %v3174 = vld [vmem:[%s192 + $0x116] sm:$0xff]
      %v3175 = vld [vmem:[%s192 + $0x11e] sm:$0xff]
      %v3176 = vld [vmem:[%s192 + $0x126] sm:$0xff]
      %v3177 = vld [vmem:[%s192 + $0x12e] sm:$0xff]
      %v3178 = vld [vmem:[%s192 + $0x136] sm:$0xff]
      %v3179 = vld [vmem:[%s192 + $0x13e] sm:$0xff]
      %v3180 = vpack.c.bf16 %v3145, %v3144
      %v3181 = vpack.c.bf16 %v3147, %v3146
      %v3182 = vpack.c.bf16 %v3149, %v3148
      %v3183 = vpack.c.bf16 %v3151, %v3150
      %v3184 = vpack.c.bf16 %v3153, %v3152
      %v3185 = vpack.c.bf16 %v3155, %v3154
      %v3186 = vpack.c.bf16 %v3157, %v3156
      %v3187 = vpack.c.bf16 %v3159, %v3158
      %v3188 = vpack.c.bf16 %v3161, %v3160
      %v3189 = vpack.c.bf16 %v3163, %v3162
      %v3190 = vpack.c.bf16 %v3165, %v3164
      %v3191 = vpack.c.bf16 %v3167, %v3166
      %v3192 = vpack.c.bf16 %v3169, %v3168
      %v3193 = vpack.c.bf16 %v3171, %v3170
      %v3194 = vpack.c.bf16 %v3173, %v3172
      %v3195 = vpack.c.bf16 %v3175, %v3174
      %v3196 = vpack.c.bf16 %v3177, %v3176
      %v3197 = vpack.c.bf16 %v3179, %v3178
      %s3198 = scalar_lea.vmem %s1, 128
      %v3199 = vld [vmem:[%s3198] sm:$0xf]
      %v3200 = vld [vmem:[%s3198 + $0x4] sm:$0xf]
      %v3201 = vld [vmem:[%s3198 + $0x8] sm:$0xf]
      %v3202 = vld [vmem:[%s3198 + $0xc] sm:$0xf]
      %v3207 = vunpack.c.l.b16 %v3199
      %v3208 = vunpack.c.l.b16 %v3200
      %v3209 = vunpack.c.l.b16 %v3201
      %v3210 = vunpack.c.l.b16 %v3202
      %v3211 = vpack.c.b16 %v3208, %v3207
      %v3212 = vpack.c.b16 %v3210, %v3209
      %v3216 = vsel %vm641, %v3180, 0
      %v3219 = vsel %vm641, %v3181, 0
      %v3222 = vsel %vm641, %v3182, 0
      %v3225 = vsel %vm641, %v3183, 0
      %v3228 = vsel %vm641, %v3184, 0
      %v3231 = vsel %vm641, %v3185, 0
      %v3234 = vsel %vm641, %v3186, 0
      %v3237 = vsel %vm641, %v3187, 0
      %v3240 = vsel %vm641, %v3188, 0
      %v3243 = vsel %vm641, %v3189, 0
      %v3246 = vsel %vm641, %v3190, 0
      %v3249 = vsel %vm641, %v3191, 0
      %v3252 = vsel %vm641, %v3192, 0
      %v3255 = vsel %vm641, %v3193, 0
      %v3258 = vsel %vm641, %v3194, 0
      %v3261 = vsel %vm641, %v3195, 0
      %v3264 = vsel %vm641, %v3196, 0
      %v3267 = vsel %vm641, %v3197, 0
      %3269 = vmatprep.subr.bf16.mxu0 0
      %3270 = vmatpush1.bf16.msra.mxu0 0
      %3271 = vmatprep.subr.bf16.mxu0 0
      %3272 = vmatpush1.bf16.msra.mxu0 0
      %3273 = vmatprep.subr.bf16.mxu0 0
      %3274 = vmatpush1.bf16.msra.mxu0 0
      %3275 = vmatprep.subr.bf16.mxu0 0
      %3276 = vmatpush1.bf16.msra.mxu0 0
      %3277 = vmatprep.subr.bf16.mxu0 0
      %3278 = vmatpush1.bf16.msra.mxu0 0
      %3279 = vmatprep.subr.bf16.mxu0 0
      %3280 = vmatpush1.bf16.msra.mxu0 0
      %3281 = vmatprep.subr.bf16.mxu0 0
      %3282 = vmatpush1.bf16.msra.mxu0 %v3212
      %3283 = vmatprep.subr.bf16.mxu0 0
      %3284 = vmatpush1.bf16.msra.mxu0 %v3211
      %3285 = vmatprep.subr.bf16.mxu0 0
      %3286 = vmatpush2.bf16.msra.mxu0 0
      %3287 = vmatprep.subr.bf16.mxu0 0
      %3288 = vmatpush2.bf16.msra.mxu0 0
      %3289 = vmatprep.subr.bf16.mxu0 0
      %3290 = vmatpush2.bf16.msra.mxu0 0
      %3291 = vmatprep.subr.bf16.mxu0 0
      %3292 = vmatpush2.bf16.msra.mxu0 0
      %3293 = vmatprep.subr.bf16.mxu0 0
      %3294 = vmatpush2.bf16.msra.mxu0 0
      %3295 = vmatprep.subr.bf16.mxu0 0
      %3296 = vmatpush2.bf16.msra.mxu0 0
      %3297 = vmatprep.subr.bf16.mxu0 0
      %3298 = vmatpush2.bf16.msra.mxu0 0
      %3299 = vmatprep.subr.bf16.mxu0 0
      %3300 = vmatpush2.bf16.msra.mxu0 0
      %3301 = vmatprep.mubr.bf16.mxu0 0
      %3302 = vmatmul.mubr.bf16.gmra.mxu0 %v3216
      %v3303 = vpop.f32.mrf.mxu0
      %v3304 = vadd.f32 0.0, %v3303
      %v3305 = vpop.f32.mrf.mxu0
      %v3306 = vpop.f32.mrf.mxu0
      %v3307 = vadd.f32 0.0, %v3306
      %v3308 = vpop.f32.mrf.mxu0
      %3309 = vmatprep.mubr.bf16.mxu0 0
      %3310 = vmatmul.mubr.bf16.gmra.mxu0 %v3219
      %v3311 = vpop.f32.mrf.mxu0
      %v3312 = vadd.f32 0.0, %v3311
      %v3313 = vpop.f32.mrf.mxu0
      %v3314 = vpop.f32.mrf.mxu0
      %v3315 = vadd.f32 0.0, %v3314
      %v3316 = vpop.f32.mrf.mxu0
      %3317 = vmatprep.mubr.bf16.mxu0 0
      %3318 = vmatmul.mubr.bf16.gmra.mxu0 %v3222
      %v3319 = vpop.f32.mrf.mxu0
      %v3320 = vadd.f32 0.0, %v3319
      %v3321 = vpop.f32.mrf.mxu0
      %v3322 = vpop.f32.mrf.mxu0
      %v3323 = vadd.f32 0.0, %v3322
      %v3324 = vpop.f32.mrf.mxu0
      %3325 = vmatprep.mubr.bf16.mxu0 0
      %3326 = vmatmul.mubr.bf16.gmra.mxu0 %v3225
      %v3327 = vpop.f32.mrf.mxu0
      %v3328 = vadd.f32 0.0, %v3327
      %v3329 = vpop.f32.mrf.mxu0
      %v3330 = vpop.f32.mrf.mxu0
      %v3331 = vadd.f32 0.0, %v3330
      %v3332 = vpop.f32.mrf.mxu0
      %3333 = vmatprep.mubr.bf16.mxu0 0
      %3334 = vmatmul.mubr.bf16.gmra.mxu0 %v3228
      %v3335 = vpop.f32.mrf.mxu0
      %v3336 = vadd.f32 0.0, %v3335
      %v3337 = vpop.f32.mrf.mxu0
      %v3338 = vpop.f32.mrf.mxu0
      %v3339 = vadd.f32 0.0, %v3338
      %v3340 = vpop.f32.mrf.mxu0
      %3341 = vmatprep.mubr.bf16.mxu0 0
      %3342 = vmatmul.mubr.bf16.gmra.mxu0 %v3231
      %v3343 = vpop.f32.mrf.mxu0
      %v3344 = vadd.f32 0.0, %v3343
      %v3345 = vpop.f32.mrf.mxu0
      %v3346 = vpop.f32.mrf.mxu0
      %v3347 = vadd.f32 0.0, %v3346
      %v3348 = vpop.f32.mrf.mxu0
      %3349 = vmatprep.mubr.bf16.mxu0 0
      %3350 = vmatmul.mubr.bf16.gmra.mxu0 %v3234
      %v3351 = vpop.f32.mrf.mxu0
      %v3352 = vadd.f32 0.0, %v3351
      %v3353 = vpop.f32.mrf.mxu0
      %v3354 = vpop.f32.mrf.mxu0
      %v3355 = vadd.f32 0.0, %v3354
      %v3356 = vpop.f32.mrf.mxu0
      %3357 = vmatprep.mubr.bf16.mxu0 0
      %3358 = vmatmul.mubr.bf16.gmra.mxu0 %v3237
      %v3359 = vpop.f32.mrf.mxu0
      %v3360 = vadd.f32 0.0, %v3359
      %v3361 = vpop.f32.mrf.mxu0
      %v3362 = vpop.f32.mrf.mxu0
      %v3363 = vadd.f32 0.0, %v3362
      %v3364 = vpop.f32.mrf.mxu0
      %3365 = vmatprep.mubr.bf16.mxu0 0
      %3366 = vmatmul.mubr.bf16.gmra.mxu0 %v3240
      %v3367 = vpop.f32.mrf.mxu0
      %v3368 = vadd.f32 0.0, %v3367
      %v3369 = vpop.f32.mrf.mxu0
      %v3370 = vpop.f32.mrf.mxu0
      %v3371 = vadd.f32 0.0, %v3370
      %v3372 = vpop.f32.mrf.mxu0
      %3373 = vmatprep.mubr.bf16.mxu0 0
      %3374 = vmatmul.mubr.bf16.gmra.mxu0 %v3243
      %v3375 = vpop.f32.mrf.mxu0
      %v3376 = vadd.f32 0.0, %v3375
      %v3377 = vpop.f32.mrf.mxu0
      %v3378 = vpop.f32.mrf.mxu0
      %v3379 = vadd.f32 0.0, %v3378
      %v3380 = vpop.f32.mrf.mxu0
      %3381 = vmatprep.mubr.bf16.mxu0 0
      %3382 = vmatmul.mubr.bf16.gmra.mxu0 %v3246
      %v3383 = vpop.f32.mrf.mxu0
      %v3384 = vadd.f32 0.0, %v3383
      %v3385 = vpop.f32.mrf.mxu0
      %v3386 = vpop.f32.mrf.mxu0
      %v3387 = vadd.f32 0.0, %v3386
      %v3388 = vpop.f32.mrf.mxu0
      %3389 = vmatprep.mubr.bf16.mxu0 0
      %3390 = vmatmul.mubr.bf16.gmra.mxu0 %v3249
      %v3391 = vpop.f32.mrf.mxu0
      %v3392 = vadd.f32 0.0, %v3391
      %v3393 = vpop.f32.mrf.mxu0
      %v3394 = vpop.f32.mrf.mxu0
      %v3395 = vadd.f32 0.0, %v3394
      %v3396 = vpop.f32.mrf.mxu0
      %3397 = vmatprep.mubr.bf16.mxu0 0
      %3398 = vmatmul.mubr.bf16.gmra.mxu0 %v3252
      %v3399 = vpop.f32.mrf.mxu0
      %v3400 = vadd.f32 0.0, %v3399
      %v3401 = vpop.f32.mrf.mxu0
      %v3402 = vpop.f32.mrf.mxu0
      %v3403 = vadd.f32 0.0, %v3402
      %v3404 = vpop.f32.mrf.mxu0
      %3405 = vmatprep.mubr.bf16.mxu0 0
      %3406 = vmatmul.mubr.bf16.gmra.mxu0 %v3255
      %v3407 = vpop.f32.mrf.mxu0
      %v3408 = vadd.f32 0.0, %v3407
      %v3409 = vpop.f32.mrf.mxu0
      %v3410 = vpop.f32.mrf.mxu0
      %v3411 = vadd.f32 0.0, %v3410
      %v3412 = vpop.f32.mrf.mxu0
      %3413 = vmatprep.mubr.bf16.mxu0 0
      %3414 = vmatmul.mubr.bf16.gmra.mxu0 %v3258
      %v3415 = vpop.f32.mrf.mxu0
      %v3416 = vadd.f32 0.0, %v3415
      %v3417 = vpop.f32.mrf.mxu0
      %v3418 = vpop.f32.mrf.mxu0
      %v3419 = vadd.f32 0.0, %v3418
      %v3420 = vpop.f32.mrf.mxu0
      %3421 = vmatprep.mubr.bf16.mxu0 0
      %3422 = vmatmul.mubr.bf16.gmra.mxu0 %v3261
      %v3423 = vpop.f32.mrf.mxu0
      %v3424 = vadd.f32 0.0, %v3423
      %v3425 = vpop.f32.mrf.mxu0
      %v3426 = vpop.f32.mrf.mxu0
      %v3427 = vadd.f32 0.0, %v3426
      %v3428 = vpop.f32.mrf.mxu0
      %3429 = vmatprep.mubr.bf16.mxu0 0
      %3430 = vmatmul.mubr.bf16.gmra.mxu0 %v3264
      %v3431 = vpop.f32.mrf.mxu0
      %v3432 = vadd.f32 0.0, %v3431
      %v3433 = vpop.f32.mrf.mxu0
      %v3434 = vpop.f32.mrf.mxu0
      %v3435 = vadd.f32 0.0, %v3434
      %v3436 = vpop.f32.mrf.mxu0
      %3437 = vmatprep.mubr.bf16.mxu0 0
      %3438 = vmatmul.mubr.bf16.gmra.mxu0 %v3267
      %v3439 = vpop.f32.mrf.mxu0
      %v3440 = vadd.f32 0.0, %v3439
      %v3441 = vpop.f32.mrf.mxu0
      %v3442 = vpop.f32.mrf.mxu0
      %v3443 = vadd.f32 0.0, %v3442
      %v3444 = vpop.f32.mrf.mxu0
      %3445 = vdwg.mxu0
      %v3446 = vadd.f32 %v3108, %v3304
      %v3447 = vadd.f32 %v3109, %v3307
      %v3448 = vadd.f32 %v3110, %v3312
      %v3449 = vadd.f32 %v3111, %v3315
      %v3450 = vadd.f32 %v3112, %v3320
      %v3451 = vadd.f32 %v3113, %v3323
      %v3452 = vadd.f32 %v3114, %v3328
      %v3453 = vadd.f32 %v3115, %v3331
      %v3454 = vadd.f32 %v3116, %v3336
      %v3455 = vadd.f32 %v3117, %v3339
      %v3456 = vadd.f32 %v3118, %v3344
      %v3457 = vadd.f32 %v3119, %v3347
      %v3458 = vadd.f32 %v3120, %v3352
      %v3459 = vadd.f32 %v3121, %v3355
      %v3460 = vadd.f32 %v3122, %v3360
      %v3461 = vadd.f32 %v3123, %v3363
      %v3462 = vadd.f32 %v3124, %v3368
      %v3463 = vadd.f32 %v3125, %v3371
      %v3464 = vadd.f32 %v3126, %v3376
      %v3465 = vadd.f32 %v3127, %v3379
      %v3466 = vadd.f32 %v3128, %v3384
      %v3467 = vadd.f32 %v3129, %v3387
      %v3468 = vadd.f32 %v3130, %v3392
      %v3469 = vadd.f32 %v3131, %v3395
      %v3470 = vadd.f32 %v3132, %v3400
      %v3471 = vadd.f32 %v3133, %v3403
      %v3472 = vadd.f32 %v3134, %v3408
      %v3473 = vadd.f32 %v3135, %v3411
      %v3474 = vadd.f32 %v3136, %v3416
      %v3475 = vadd.f32 %v3137, %v3419
      %v3476 = vadd.f32 %v3138, %v3424
      %v3477 = vadd.f32 %v3139, %v3427
      %v3478 = vadd.f32 %v3140, %v3432
      %v3479 = vadd.f32 %v3141, %v3435
      %v3480 = vadd.f32 %v3142, %v3440
      %v3481 = vadd.f32 %v3143, %v3443
      %v3482 = vlaneseq
      %v3483 = vshrl.u32 %v3482, 7
      %v3484 = vsub.s32 0, %v3483
      %v3485 = vrot.slane %v199, %v3484
      %v3486 = vmul.f32 %v3446, %v3485
      %v3487 = vmul.f32 %v3447, %v3485
      %v3488 = vmul.f32 %v3448, %v3485
      %v3489 = vmul.f32 %v3449, %v3485
      %v3490 = vmul.f32 %v3450, %v3485
      %v3491 = vmul.f32 %v3451, %v3485
      %v3492 = vmul.f32 %v3452, %v3485
      %v3493 = vmul.f32 %v3453, %v3485
      %v3494 = vmul.f32 %v3454, %v3485
      %v3495 = vmul.f32 %v3455, %v3485
      %v3496 = vmul.f32 %v3456, %v3485
      %v3497 = vmul.f32 %v3457, %v3485
      %v3498 = vmul.f32 %v3458, %v3485
      %v3499 = vmul.f32 %v3459, %v3485
      %v3500 = vmul.f32 %v3460, %v3485
      %v3501 = vmul.f32 %v3461, %v3485
      %v3502 = vmul.f32 %v3462, %v3485
      %v3503 = vmul.f32 %v3463, %v3485
      %v3504 = vmul.f32 %v3464, %v3485
      %v3505 = vmul.f32 %v3465, %v3485
      %v3506 = vmul.f32 %v3466, %v3485
      %v3507 = vmul.f32 %v3467, %v3485
      %v3508 = vmul.f32 %v3468, %v3485
      %v3509 = vmul.f32 %v3469, %v3485
      %v3510 = vmul.f32 %v3470, %v3485
      %v3511 = vmul.f32 %v3471, %v3485
      %v3512 = vmul.f32 %v3472, %v3485
      %v3513 = vmul.f32 %v3473, %v3485
      %v3514 = vmul.f32 %v3474, %v3485
      %v3515 = vmul.f32 %v3475, %v3485
      %v3516 = vmul.f32 %v3476, %v3485
      %v3517 = vmul.f32 %v3477, %v3485
      %v3518 = vmul.f32 %v3478, %v3485
      %v3519 = vmul.f32 %v3479, %v3485
      %v3520 = vmul.f32 %v3480, %v3485
      %v3521 = vmul.f32 %v3481, %v3485
      %v3522 = vlaneseq
      %v3523 = vshrl.u32 %v3522, 7
      %v3524 = vsub.s32 0, %v3523
      %v3525 = vrot.slane %v200, %v3524
      %v3526 = vadd.f32 %v3486, %v3525
      %v3527 = vadd.f32 %v3487, %v3525
      %v3528 = vadd.f32 %v3488, %v3525
      %v3529 = vadd.f32 %v3489, %v3525
      %v3530 = vadd.f32 %v3490, %v3525
      %v3531 = vadd.f32 %v3491, %v3525
      %v3532 = vadd.f32 %v3492, %v3525
      %v3533 = vadd.f32 %v3493, %v3525
      %v3534 = vadd.f32 %v3494, %v3525
      %v3535 = vadd.f32 %v3495, %v3525
      %v3536 = vadd.f32 %v3496, %v3525
      %v3537 = vadd.f32 %v3497, %v3525
      %v3538 = vadd.f32 %v3498, %v3525
      %v3539 = vadd.f32 %v3499, %v3525
      %v3540 = vadd.f32 %v3500, %v3525
      %v3541 = vadd.f32 %v3501, %v3525
      %v3542 = vadd.f32 %v3502, %v3525
      %v3543 = vadd.f32 %v3503, %v3525
      %v3544 = vadd.f32 %v3504, %v3525
      %v3545 = vadd.f32 %v3505, %v3525
      %v3546 = vadd.f32 %v3506, %v3525
      %v3547 = vadd.f32 %v3507, %v3525
      %v3548 = vadd.f32 %v3508, %v3525
      %v3549 = vadd.f32 %v3509, %v3525
      %v3550 = vadd.f32 %v3510, %v3525
      %v3551 = vadd.f32 %v3511, %v3525
      %v3552 = vadd.f32 %v3512, %v3525
      %v3553 = vadd.f32 %v3513, %v3525
      %v3554 = vadd.f32 %v3514, %v3525
      %v3555 = vadd.f32 %v3515, %v3525
      %v3556 = vadd.f32 %v3516, %v3525
      %v3557 = vadd.f32 %v3517, %v3525
      %v3558 = vadd.f32 %v3518, %v3525
      %v3559 = vadd.f32 %v3519, %v3525
      %v3560 = vadd.f32 %v3520, %v3525
      %v3561 = vadd.f32 %v3521, %v3525
      %v3562 = vmax.f32 %v3526, 0.0
      %v3563 = vmax.f32 %v3527, 0.0
      %v3564 = vmax.f32 %v3528, 0.0
      %v3565 = vmax.f32 %v3529, 0.0
      %v3566 = vmax.f32 %v3530, 0.0
      %v3567 = vmax.f32 %v3531, 0.0
      %v3568 = vmax.f32 %v3532, 0.0
      %v3569 = vmax.f32 %v3533, 0.0
      %v3570 = vmax.f32 %v3534, 0.0
      %v3571 = vmax.f32 %v3535, 0.0
      %v3572 = vmax.f32 %v3536, 0.0
      %v3573 = vmax.f32 %v3537, 0.0
      %v3574 = vmax.f32 %v3538, 0.0
      %v3575 = vmax.f32 %v3539, 0.0
      %v3576 = vmax.f32 %v3540, 0.0
      %v3577 = vmax.f32 %v3541, 0.0
      %v3578 = vmax.f32 %v3542, 0.0
      %v3579 = vmax.f32 %v3543, 0.0
      %v3580 = vmax.f32 %v3544, 0.0
      %v3581 = vmax.f32 %v3545, 0.0
      %v3582 = vmax.f32 %v3546, 0.0
      %v3583 = vmax.f32 %v3547, 0.0
      %v3584 = vmax.f32 %v3548, 0.0
      %v3585 = vmax.f32 %v3549, 0.0
      %v3586 = vmax.f32 %v3550, 0.0
      %v3587 = vmax.f32 %v3551, 0.0
      %v3588 = vmax.f32 %v3552, 0.0
      %v3589 = vmax.f32 %v3553, 0.0
      %v3590 = vmax.f32 %v3554, 0.0
      %v3591 = vmax.f32 %v3555, 0.0
      %v3592 = vmax.f32 %v3556, 0.0
      %v3593 = vmax.f32 %v3557, 0.0
      %v3594 = vmax.f32 %v3558, 0.0
      %v3595 = vmax.f32 %v3559, 0.0
      %v3596 = vmax.f32 %v3560, 0.0
      %v3597 = vmax.f32 %v3561, 0.0
      %v3598 = vsel %vm456, %v3562, 0.0
      %v3599 = vsel %vm457, %v3563, 0.0
      %v3600 = vsel %vm458, %v3564, 0.0
      %v3601 = vsel %vm459, %v3565, 0.0
      %v3602 = vsel %vm460, %v3566, 0.0
      %v3603 = vsel %vm461, %v3567, 0.0
      %v3604 = vsel %vm462, %v3568, 0.0
      %v3605 = vsel %vm463, %v3569, 0.0
      %v3606 = vsel %vm464, %v3570, 0.0
      %v3607 = vsel %vm465, %v3571, 0.0
      %v3608 = vsel %vm466, %v3572, 0.0
      %v3609 = vsel %vm467, %v3573, 0.0
      %v3610 = vsel %vm468, %v3574, 0.0
      %v3611 = vsel %vm469, %v3575, 0.0
      %v3612 = vsel %vm470, %v3576, 0.0
      %v3613 = vsel %vm471, %v3577, 0.0
      %v3614 = vsel %vm472, %v3578, 0.0
      %v3615 = vsel %vm473, %v3579, 0.0
      %v3616 = vsel %vm474, %v3580, 0.0
      %v3617 = vsel %vm475, %v3581, 0.0
      %v3618 = vsel %vm476, %v3582, 0.0
      %v3619 = vsel %vm477, %v3583, 0.0
      %v3620 = vsel %vm478, %v3584, 0.0
      %v3621 = vsel %vm479, %v3585, 0.0
      %v3622 = vsel %vm480, %v3586, 0.0
      %v3623 = vsel %vm481, %v3587, 0.0
      %v3624 = vsel %vm482, %v3588, 0.0
      %v3625 = vsel %vm483, %v3589, 0.0
      %v3626 = vsel %vm484, %v3590, 0.0
      %v3627 = vsel %vm485, %v3591, 0.0
      %v3628 = vsel %vm486, %v3592, 0.0
      %v3629 = vsel %vm487, %v3593, 0.0
      %v3630 = vsel %vm488, %v3594, 0.0
      %v3631 = vsel %vm489, %v3595, 0.0
      %v3632 = vsel %vm490, %v3596, 0.0
      %v3633 = vsel %vm491, %v3597, 0.0
      %v3634 = vpack.c.bf16 %v3599, %v3598
      %v3635 = vpack.c.bf16 %v3601, %v3600
      %v3636 = vpack.c.bf16 %v3603, %v3602
      %v3637 = vpack.c.bf16 %v3605, %v3604
      %v3638 = vpack.c.bf16 %v3607, %v3606
      %v3639 = vpack.c.bf16 %v3609, %v3608
      %v3640 = vpack.c.bf16 %v3611, %v3610
      %v3641 = vpack.c.bf16 %v3613, %v3612
      %v3642 = vpack.c.bf16 %v3615, %v3614
      %v3643 = vpack.c.bf16 %v3617, %v3616
      %v3644 = vpack.c.bf16 %v3619, %v3618
      %v3645 = vpack.c.bf16 %v3621, %v3620
      %v3646 = vpack.c.bf16 %v3623, %v3622
      %v3647 = vpack.c.bf16 %v3625, %v3624
      %v3648 = vpack.c.bf16 %v3627, %v3626
      %v3649 = vpack.c.bf16 %v3629, %v3628
      %v3650 = vpack.c.bf16 %v3631, %v3630
      %v3651 = vpack.c.bf16 %v3633, %v3632
      %v3670 = vunpack.c.l.b16 %v3634
      %v3671 = vunpack.c.h.b16 %v3634
      %v3672 = vunpack.c.l.b16 %v3635
      %v3673 = vunpack.c.h.b16 %v3635
      %v3674 = vunpack.c.l.b16 %v3636
      %v3675 = vunpack.c.h.b16 %v3636
      %v3676 = vunpack.c.l.b16 %v3637
      %v3677 = vunpack.c.h.b16 %v3637
      %v3678 = vunpack.c.l.b16 %v3638
      %v3679 = vunpack.c.h.b16 %v3638
      %v3680 = vunpack.c.l.b16 %v3639
      %v3681 = vunpack.c.h.b16 %v3639
      %v3682 = vunpack.c.l.b16 %v3640
      %v3683 = vunpack.c.h.b16 %v3640
      %v3684 = vunpack.c.l.b16 %v3641
      %v3685 = vunpack.c.h.b16 %v3641
      %v3686 = vunpack.c.l.b16 %v3642
      %v3687 = vunpack.c.h.b16 %v3642
      %v3688 = vunpack.c.l.b16 %v3643
      %v3689 = vunpack.c.h.b16 %v3643
      %v3690 = vunpack.c.l.b16 %v3644
      %v3691 = vunpack.c.h.b16 %v3644
      %v3692 = vunpack.c.l.b16 %v3645
      %v3693 = vunpack.c.h.b16 %v3645
      %v3694 = vunpack.c.l.b16 %v3646
      %v3695 = vunpack.c.h.b16 %v3646
      %v3696 = vunpack.c.l.b16 %v3647
      %v3697 = vunpack.c.h.b16 %v3647
      %v3698 = vunpack.c.l.b16 %v3648
      %v3699 = vunpack.c.h.b16 %v3648
      %v3700 = vunpack.c.l.b16 %v3649
      %v3701 = vunpack.c.h.b16 %v3649
      %v3702 = vunpack.c.l.b16 %v3650
      %v3703 = vunpack.c.h.b16 %v3650
      %v3704 = vunpack.c.l.b16 %v3651
      %v3705 = vunpack.c.h.b16 %v3651
      %v3706 = vpack.c.b16 %v3670, %v3670
      %v3707 = vpack.c.b16 %v3671, %v3671
      %v3708 = vpack.c.b16 %v3672, %v3672
      %v3709 = vpack.c.b16 %v3673, %v3673
      %v3710 = vpack.c.b16 %v3674, %v3674
      %v3711 = vpack.c.b16 %v3675, %v3675
      %v3712 = vpack.c.b16 %v3676, %v3676
      %v3713 = vpack.c.b16 %v3677, %v3677
      %v3714 = vpack.c.b16 %v3678, %v3678
      %v3715 = vpack.c.b16 %v3679, %v3679
      %v3716 = vpack.c.b16 %v3680, %v3680
      %v3717 = vpack.c.b16 %v3681, %v3681
      %v3718 = vpack.c.b16 %v3682, %v3682
      %v3719 = vpack.c.b16 %v3683, %v3683
      %v3720 = vpack.c.b16 %v3684, %v3684
      %v3721 = vpack.c.b16 %v3685, %v3685
      %v3722 = vpack.c.b16 %v3686, %v3686
      %v3723 = vpack.c.b16 %v3687, %v3687
      %v3724 = vpack.c.b16 %v3688, %v3688
      %v3725 = vpack.c.b16 %v3689, %v3689
      %v3726 = vpack.c.b16 %v3690, %v3690
      %v3727 = vpack.c.b16 %v3691, %v3691
      %v3728 = vpack.c.b16 %v3692, %v3692
      %v3729 = vpack.c.b16 %v3693, %v3693
      %v3730 = vpack.c.b16 %v3694, %v3694
      %v3731 = vpack.c.b16 %v3695, %v3695
      %v3732 = vpack.c.b16 %v3696, %v3696
      %v3733 = vpack.c.b16 %v3697, %v3697
      %v3734 = vpack.c.b16 %v3698, %v3698
      %v3735 = vpack.c.b16 %v3699, %v3699
      %v3736 = vpack.c.b16 %v3700, %v3700
      %v3737 = vpack.c.b16 %v3701, %v3701
      %v3738 = vpack.c.b16 %v3702, %v3702
      %v3739 = vpack.c.b16 %v3703, %v3703
      %v3740 = vpack.c.b16 %v3704, %v3704
      %v3741 = vpack.c.b16 %v3705, %v3705
      %vm3742 = vsmask.f32 5392
      %vm3743 = vmor %vm496, %vm3742
      %v3745 = vshrl.u32 %v3706, 16
      %v3747 = vrot.slane %v3745, 6
      %v3748 = vshll.u32 %v3706, 16
      %v3750 = vrot.slane %v3748, 7
      %v3751 = vor.u32 %v3747, %v3750
      %v3752 = vrot.slane %v3751, 4
      %v3754 = vshrl.u32 %v3707, 16
      %v3756 = vrot.slane %v3754, 6
      %v3757 = vshll.u32 %v3707, 16
      %v3759 = vrot.slane %v3757, 7
      %v3760 = vor.u32 %v3756, %v3759
      %v3761 = vsel %vm3743, %v3752, %v3760
      %v3762 = vrot.slane %v3760, 4
      %v3764 = vshrl.u32 %v3708, 16
      %v3766 = vrot.slane %v3764, 6
      %v3767 = vshll.u32 %v3708, 16
      %v3769 = vrot.slane %v3767, 7
      %v3770 = vor.u32 %v3766, %v3769
      %v3771 = vsel %vm3743, %v3762, %v3770
      %v3772 = vrot.slane %v3770, 4
      %v3774 = vshrl.u32 %v3709, 16
      %v3776 = vrot.slane %v3774, 6
      %v3777 = vshll.u32 %v3709, 16
      %v3779 = vrot.slane %v3777, 7
      %v3780 = vor.u32 %v3776, %v3779
      %v3781 = vsel %vm3743, %v3772, %v3780
      %v3782 = vrot.slane %v3780, 4
      %v3784 = vshrl.u32 %v3710, 16
      %v3786 = vrot.slane %v3784, 6
      %v3787 = vshll.u32 %v3710, 16
      %v3789 = vrot.slane %v3787, 7
      %v3790 = vor.u32 %v3786, %v3789
      %v3791 = vsel %vm3743, %v3782, %v3790
      %v3792 = vrot.slane %v3790, 4
      %v3794 = vshrl.u32 %v3711, 16
      %v3796 = vrot.slane %v3794, 6
      %v3797 = vshll.u32 %v3711, 16
      %v3799 = vrot.slane %v3797, 7
      %v3800 = vor.u32 %v3796, %v3799
      %v3801 = vsel %vm3743, %v3792, %v3800
      %v3802 = vrot.slane %v3800, 4
      %v3804 = vshrl.u32 %v3712, 16
      %v3806 = vrot.slane %v3804, 6
      %v3807 = vshll.u32 %v3712, 16
      %v3809 = vrot.slane %v3807, 7
      %v3810 = vor.u32 %v3806, %v3809
      %v3811 = vsel %vm3743, %v3802, %v3810
      %v3812 = vrot.slane %v3810, 4
      %v3814 = vshrl.u32 %v3713, 16
      %v3816 = vrot.slane %v3814, 6
      %v3817 = vshll.u32 %v3713, 16
      %v3819 = vrot.slane %v3817, 7
      %v3820 = vor.u32 %v3816, %v3819
      %v3821 = vsel %vm3743, %v3812, %v3820
      %v3822 = vrot.slane %v3820, 4
      %v3824 = vshrl.u32 %v3714, 16
      %v3826 = vrot.slane %v3824, 6
      %v3827 = vshll.u32 %v3714, 16
      %v3829 = vrot.slane %v3827, 7
      %v3830 = vor.u32 %v3826, %v3829
      %v3831 = vsel %vm3743, %v3822, %v3830
      %v3832 = vrot.slane %v3830, 4
      %v3834 = vshrl.u32 %v3715, 16
      %v3836 = vrot.slane %v3834, 6
      %v3837 = vshll.u32 %v3715, 16
      %v3839 = vrot.slane %v3837, 7
      %v3840 = vor.u32 %v3836, %v3839
      %v3841 = vsel %vm3743, %v3832, %v3840
      %v3842 = vrot.slane %v3840, 4
      %v3844 = vshrl.u32 %v3716, 16
      %v3846 = vrot.slane %v3844, 6
      %v3847 = vshll.u32 %v3716, 16
      %v3849 = vrot.slane %v3847, 7
      %v3850 = vor.u32 %v3846, %v3849
      %v3851 = vsel %vm3743, %v3842, %v3850
      %v3852 = vrot.slane %v3850, 4
      %v3854 = vshrl.u32 %v3717, 16
      %v3856 = vrot.slane %v3854, 6
      %v3857 = vshll.u32 %v3717, 16
      %v3859 = vrot.slane %v3857, 7
      %v3860 = vor.u32 %v3856, %v3859
      %v3861 = vsel %vm3743, %v3852, %v3860
      %v3862 = vrot.slane %v3860, 4
      %v3864 = vshrl.u32 %v3718, 16
      %v3866 = vrot.slane %v3864, 6
      %v3867 = vshll.u32 %v3718, 16
      %v3869 = vrot.slane %v3867, 7
      %v3870 = vor.u32 %v3866, %v3869
      %v3871 = vsel %vm3743, %v3862, %v3870
      %v3872 = vrot.slane %v3870, 4
      %v3874 = vshrl.u32 %v3719, 16
      %v3876 = vrot.slane %v3874, 6
      %v3877 = vshll.u32 %v3719, 16
      %v3879 = vrot.slane %v3877, 7
      %v3880 = vor.u32 %v3876, %v3879
      %v3881 = vsel %vm3743, %v3872, %v3880
      %v3882 = vrot.slane %v3880, 4
      %v3884 = vshrl.u32 %v3720, 16
      %v3886 = vrot.slane %v3884, 6
      %v3887 = vshll.u32 %v3720, 16
      %v3889 = vrot.slane %v3887, 7
      %v3890 = vor.u32 %v3886, %v3889
      %v3891 = vsel %vm3743, %v3882, %v3890
      %v3892 = vrot.slane %v3890, 4
      %v3894 = vshrl.u32 %v3721, 16
      %v3896 = vrot.slane %v3894, 6
      %v3897 = vshll.u32 %v3721, 16
      %v3899 = vrot.slane %v3897, 7
      %v3900 = vor.u32 %v3896, %v3899
      %v3901 = vsel %vm3743, %v3892, %v3900
      %v3902 = vrot.slane %v3900, 4
      %v3904 = vshrl.u32 %v3722, 16
      %v3906 = vrot.slane %v3904, 6
      %v3907 = vshll.u32 %v3722, 16
      %v3909 = vrot.slane %v3907, 7
      %v3910 = vor.u32 %v3906, %v3909
      %v3911 = vsel %vm3743, %v3902, %v3910
      %v3912 = vrot.slane %v3910, 4
      %v3914 = vshrl.u32 %v3723, 16
      %v3916 = vrot.slane %v3914, 6
      %v3917 = vshll.u32 %v3723, 16
      %v3919 = vrot.slane %v3917, 7
      %v3920 = vor.u32 %v3916, %v3919
      %v3921 = vsel %vm3743, %v3912, %v3920
      %v3922 = vrot.slane %v3920, 4
      %v3924 = vshrl.u32 %v3724, 16
      %v3926 = vrot.slane %v3924, 6
      %v3927 = vshll.u32 %v3724, 16
      %v3929 = vrot.slane %v3927, 7
      %v3930 = vor.u32 %v3926, %v3929
      %v3931 = vsel %vm3743, %v3922, %v3930
      %v3932 = vrot.slane %v3930, 4
      %v3934 = vshrl.u32 %v3725, 16
      %v3936 = vrot.slane %v3934, 6
      %v3937 = vshll.u32 %v3725, 16
      %v3939 = vrot.slane %v3937, 7
      %v3940 = vor.u32 %v3936, %v3939
      %v3941 = vsel %vm3743, %v3932, %v3940
      %v3942 = vrot.slane %v3940, 4
      %v3944 = vshrl.u32 %v3726, 16
      %v3946 = vrot.slane %v3944, 6
      %v3947 = vshll.u32 %v3726, 16
      %v3949 = vrot.slane %v3947, 7
      %v3950 = vor.u32 %v3946, %v3949
      %v3951 = vsel %vm3743, %v3942, %v3950
      %v3952 = vrot.slane %v3950, 4
      %v3954 = vshrl.u32 %v3727, 16
      %v3956 = vrot.slane %v3954, 6
      %v3957 = vshll.u32 %v3727, 16
      %v3959 = vrot.slane %v3957, 7
      %v3960 = vor.u32 %v3956, %v3959
      %v3961 = vsel %vm3743, %v3952, %v3960
      %v3962 = vrot.slane %v3960, 4
      %v3964 = vshrl.u32 %v3728, 16
      %v3966 = vrot.slane %v3964, 6
      %v3967 = vshll.u32 %v3728, 16
      %v3969 = vrot.slane %v3967, 7
      %v3970 = vor.u32 %v3966, %v3969
      %v3971 = vsel %vm3743, %v3962, %v3970
      %v3972 = vrot.slane %v3970, 4
      %v3974 = vshrl.u32 %v3729, 16
      %v3976 = vrot.slane %v3974, 6
      %v3977 = vshll.u32 %v3729, 16
      %v3979 = vrot.slane %v3977, 7
      %v3980 = vor.u32 %v3976, %v3979
      %v3981 = vsel %vm3743, %v3972, %v3980
      %v3982 = vrot.slane %v3980, 4
      %v3984 = vshrl.u32 %v3730, 16
      %v3986 = vrot.slane %v3984, 6
      %v3987 = vshll.u32 %v3730, 16
      %v3989 = vrot.slane %v3987, 7
      %v3990 = vor.u32 %v3986, %v3989
      %v3991 = vsel %vm3743, %v3982, %v3990
      %v3992 = vrot.slane %v3990, 4
      %v3994 = vshrl.u32 %v3731, 16
      %v3996 = vrot.slane %v3994, 6
      %v3997 = vshll.u32 %v3731, 16
      %v3999 = vrot.slane %v3997, 7
      %v4000 = vor.u32 %v3996, %v3999
      %v4001 = vsel %vm3743, %v3992, %v4000
      %v4002 = vrot.slane %v4000, 4
      %v4004 = vshrl.u32 %v3732, 16
      %v4006 = vrot.slane %v4004, 6
      %v4007 = vshll.u32 %v3732, 16
      %v4009 = vrot.slane %v4007, 7
      %v4010 = vor.u32 %v4006, %v4009
      %v4011 = vsel %vm3743, %v4002, %v4010
      %v4012 = vrot.slane %v4010, 4
      %v4014 = vshrl.u32 %v3733, 16
      %v4016 = vrot.slane %v4014, 6
      %v4017 = vshll.u32 %v3733, 16
      %v4019 = vrot.slane %v4017, 7
      %v4020 = vor.u32 %v4016, %v4019
      %v4021 = vsel %vm3743, %v4012, %v4020
      %v4022 = vrot.slane %v4020, 4
      %v4024 = vshrl.u32 %v3734, 16
      %v4026 = vrot.slane %v4024, 6
      %v4027 = vshll.u32 %v3734, 16
      %v4029 = vrot.slane %v4027, 7
      %v4030 = vor.u32 %v4026, %v4029
      %v4031 = vsel %vm3743, %v4022, %v4030
      %v4032 = vrot.slane %v4030, 4
      %v4034 = vshrl.u32 %v3735, 16
      %v4036 = vrot.slane %v4034, 6
      %v4037 = vshll.u32 %v3735, 16
      %v4039 = vrot.slane %v4037, 7
      %v4040 = vor.u32 %v4036, %v4039
      %v4041 = vsel %vm3743, %v4032, %v4040
      %v4042 = vrot.slane %v4040, 4
      %v4044 = vshrl.u32 %v3736, 16
      %v4046 = vrot.slane %v4044, 6
      %v4047 = vshll.u32 %v3736, 16
      %v4049 = vrot.slane %v4047, 7
      %v4050 = vor.u32 %v4046, %v4049
      %v4051 = vsel %vm3743, %v4042, %v4050
      %v4052 = vrot.slane %v4050, 4
      %v4054 = vshrl.u32 %v3737, 16
      %v4056 = vrot.slane %v4054, 6
      %v4057 = vshll.u32 %v3737, 16
      %v4059 = vrot.slane %v4057, 7
      %v4060 = vor.u32 %v4056, %v4059
      %v4061 = vsel %vm3743, %v4052, %v4060
      %v4062 = vrot.slane %v4060, 4
      %v4064 = vshrl.u32 %v3738, 16
      %v4066 = vrot.slane %v4064, 6
      %v4067 = vshll.u32 %v3738, 16
      %v4069 = vrot.slane %v4067, 7
      %v4070 = vor.u32 %v4066, %v4069
      %v4071 = vsel %vm3743, %v4062, %v4070
      %v4072 = vrot.slane %v4070, 4
      %v4074 = vshrl.u32 %v3739, 16
      %v4076 = vrot.slane %v4074, 6
      %v4077 = vshll.u32 %v3739, 16
      %v4079 = vrot.slane %v4077, 7
      %v4080 = vor.u32 %v4076, %v4079
      %v4081 = vsel %vm3743, %v4072, %v4080
      %v4082 = vrot.slane %v4080, 4
      %v4084 = vshrl.u32 %v3740, 16
      %v4086 = vrot.slane %v4084, 6
      %v4087 = vshll.u32 %v3740, 16
      %v4089 = vrot.slane %v4087, 7
      %v4090 = vor.u32 %v4086, %v4089
      %v4091 = vsel %vm3743, %v4082, %v4090
      %v4092 = vrot.slane %v4090, 4
      %v4094 = vshrl.u32 %v3741, 16
      %v4096 = vrot.slane %v4094, 6
      %v4097 = vshll.u32 %v3741, 16
      %v4099 = vrot.slane %v4097, 7
      %v4100 = vor.u32 %v4096, %v4099
      %v4101 = vsel %vm3743, %v4092, %v4100
      %v4102 = vrot.slane %v4100, 4
      %v4140 = vld [vmem:[#allocation2 + $0x8] sm:$0xe]
      %v4141 = vsel %vm503, %v3751, %v4140
      %4142 = vst [vmem:[#allocation2 + $0x8] sm:$0xe] %v4141
      %4143 = vst.msk [vmem:[#allocation2 + $0xc] sm:$0xf] %vm492, %v3761
      %4144 = vst.msk [vmem:[#allocation2 + $0x10] sm:$0xf] %vm492, %v3771
      %4145 = vst.msk [vmem:[#allocation2 + $0x14] sm:$0xf] %vm492, %v3781
      %4146 = vst.msk [vmem:[#allocation2 + $0x18] sm:$0xf] %vm492, %v3791
      %4147 = vst.msk [vmem:[#allocation2 + $0x1c] sm:$0xf] %vm492, %v3801
      %4148 = vst.msk [vmem:[#allocation2 + $0x20] sm:$0xf] %vm492, %v3811
      %4149 = vst.msk [vmem:[#allocation2 + $0x24] sm:$0xf] %vm492, %v3821
      %4150 = vst.msk [vmem:[#allocation2 + $0x28] sm:$0xf] %vm492, %v3831
      %4151 = vst.msk [vmem:[#allocation2 + $0x2c] sm:$0xf] %vm492, %v3841
      %4152 = vst.msk [vmem:[#allocation2 + $0x30] sm:$0xf] %vm492, %v3851
      %4153 = vst.msk [vmem:[#allocation2 + $0x34] sm:$0xf] %vm492, %v3861
      %4154 = vst.msk [vmem:[#allocation2 + $0x38] sm:$0xf] %vm492, %v3871
      %4155 = vst.msk [vmem:[#allocation2 + $0x3c] sm:$0xf] %vm492, %v3881
      %4156 = vst.msk [vmem:[#allocation2 + $0x40] sm:$0xf] %vm492, %v3891
      %4157 = vst.msk [vmem:[#allocation2 + $0x44] sm:$0xf] %vm492, %v3901
      %4158 = vst.msk [vmem:[#allocation2 + $0x48] sm:$0xf] %vm492, %v3911
      %4159 = vst.msk [vmem:[#allocation2 + $0x4c] sm:$0xf] %vm492, %v3921
      %4160 = vst.msk [vmem:[#allocation2 + $0x50] sm:$0xf] %vm492, %v3931
      %4161 = vst.msk [vmem:[#allocation2 + $0x54] sm:$0xf] %vm492, %v3941
      %4162 = vst.msk [vmem:[#allocation2 + $0x58] sm:$0xf] %vm492, %v3951
      %4163 = vst.msk [vmem:[#allocation2 + $0x5c] sm:$0xf] %vm492, %v3961
      %4164 = vst.msk [vmem:[#allocation2 + $0x60] sm:$0xf] %vm492, %v3971
      %4165 = vst.msk [vmem:[#allocation2 + $0x64] sm:$0xf] %vm492, %v3981
      %4166 = vst.msk [vmem:[#allocation2 + $0x68] sm:$0xf] %vm492, %v3991
      %4167 = vst.msk [vmem:[#allocation2 + $0x6c] sm:$0xf] %vm492, %v4001
      %4168 = vst.msk [vmem:[#allocation2 + $0x70] sm:$0xf] %vm492, %v4011
      %4169 = vst.msk [vmem:[#allocation2 + $0x74] sm:$0xf] %vm492, %v4021
      %4170 = vst.msk [vmem:[#allocation2 + $0x78] sm:$0xf] %vm492, %v4031
      %4171 = vst.msk [vmem:[#allocation2 + $0x7c] sm:$0xf] %vm492, %v4041
      %4172 = vst.msk [vmem:[#allocation2 + $0x80] sm:$0xf] %vm492, %v4051
      %4173 = vst.msk [vmem:[#allocation2 + $0x84] sm:$0xf] %vm492, %v4061
      %4174 = vst.msk [vmem:[#allocation2 + $0x88] sm:$0xf] %vm492, %v4071
      %4175 = vst.msk [vmem:[#allocation2 + $0x8c] sm:$0xf] %vm492, %v4081
      %4176 = vst.msk [vmem:[#allocation2 + $0x90] sm:$0xf] %vm492, %v4091
      %4177 = vst.msk [vmem:[#allocation2 + $0x94] sm:$0xf] %vm492, %v4101
      %v4178 = vld [vmem:[#allocation2 + $0x98] sm:$0x3]
      %v4179 = vsel %vm497, %v4102, %v4178
      %4180 = vst [vmem:[#allocation2 + $0x98] sm:$0x3] %v4179
      %v4181 = vld [vmem:[#allocation2] sm:$0xf]
      %v4182 = vld [vmem:[#allocation2 + $0x4] sm:$0xf]
      %v4183 = vld [vmem:[#allocation2 + $0x8] sm:$0xf]
      %v4184 = vld [vmem:[#allocation2 + $0xc] sm:$0xf]
      %v4185 = vld [vmem:[#allocation2 + $0x10] sm:$0xf]
      %v4186 = vld [vmem:[#allocation2 + $0x14] sm:$0xf]
      %v4187 = vld [vmem:[#allocation2 + $0x18] sm:$0xf]
      %v4188 = vld [vmem:[#allocation2 + $0x1c] sm:$0xf]
      %v4189 = vld [vmem:[#allocation2 + $0x20] sm:$0xf]
      %v4190 = vld [vmem:[#allocation2 + $0x24] sm:$0xf]
      %v4191 = vld [vmem:[#allocation2 + $0x28] sm:$0xf]
      %v4192 = vld [vmem:[#allocation2 + $0x2c] sm:$0xf]
      %v4193 = vld [vmem:[#allocation2 + $0x30] sm:$0xf]
      %v4194 = vld [vmem:[#allocation2 + $0x34] sm:$0xf]
      %v4195 = vld [vmem:[#allocation2 + $0x38] sm:$0xf]
      %v4196 = vld [vmem:[#allocation2 + $0x3c] sm:$0xf]
      %v4197 = vld [vmem:[#allocation2 + $0x40] sm:$0xf]
      %v4198 = vld [vmem:[#allocation2 + $0x44] sm:$0xf]
      %v4199 = vld [vmem:[#allocation2 + $0x48] sm:$0xf]
      %v4200 = vld [vmem:[#allocation2 + $0x4c] sm:$0xf]
      %v4201 = vld [vmem:[#allocation2 + $0x50] sm:$0xf]
      %v4202 = vld [vmem:[#allocation2 + $0x54] sm:$0xf]
      %v4203 = vld [vmem:[#allocation2 + $0x58] sm:$0xf]
      %v4204 = vld [vmem:[#allocation2 + $0x5c] sm:$0xf]
      %v4205 = vld [vmem:[#allocation2 + $0x60] sm:$0xf]
      %v4206 = vld [vmem:[#allocation2 + $0x64] sm:$0xf]
      %v4207 = vld [vmem:[#allocation2 + $0x68] sm:$0xf]
      %v4208 = vld [vmem:[#allocation2 + $0x6c] sm:$0xf]
      %v4209 = vld [vmem:[#allocation2 + $0x70] sm:$0xf]
      %v4210 = vld [vmem:[#allocation2 + $0x74] sm:$0xf]
      %v4211 = vld [vmem:[#allocation2 + $0x78] sm:$0xf]
      %v4212 = vld [vmem:[#allocation2 + $0x7c] sm:$0xf]
      %v4213 = vld [vmem:[#allocation2 + $0x80] sm:$0xf]
      %v4214 = vld [vmem:[#allocation2 + $0x84] sm:$0xf]
      %v4215 = vld [vmem:[#allocation2 + $0x88] sm:$0xf]
      %v4216 = vld [vmem:[#allocation2 + $0x8c] sm:$0xf]
      %v4217 = vld [vmem:[%s2] sm:$0xf]
      %v4218 = vld [vmem:[%s2 + $0x4] sm:$0xf]
      %v4219 = vld [vmem:[%s2 + $0x8] sm:$0xf]
      %v4220 = vld [vmem:[%s2 + $0xc] sm:$0xf]
      %v4221 = vld [vmem:[#allocation2 + $0x90] sm:$0x1]
      %s4222 = scalar_lea.vmem %s2, 16
      %v4223 = vld [vmem:[%s4222] sm:$0xf]
      %v4224 = vld [vmem:[%s4222 + $0x4] sm:$0xf]
      %v4225 = vld [vmem:[%s4222 + $0x8] sm:$0xf]
      %v4226 = vld [vmem:[%s4222 + $0xc] sm:$0xf]
      %v4264 = vunpack.c.l.b16 %v4181
      %v4265 = vunpack.c.l.b16 %v4182
      %v4266 = vunpack.c.l.b16 %v4183
      %v4267 = vunpack.c.l.b16 %v4184
      %v4268 = vunpack.c.l.b16 %v4185
      %v4269 = vunpack.c.l.b16 %v4186
      %v4270 = vunpack.c.l.b16 %v4187
      %v4271 = vunpack.c.l.b16 %v4188
      %v4272 = vunpack.c.l.b16 %v4189
      %v4273 = vunpack.c.l.b16 %v4190
      %v4274 = vunpack.c.l.b16 %v4191
      %v4275 = vunpack.c.l.b16 %v4192
      %v4276 = vunpack.c.l.b16 %v4193
      %v4277 = vunpack.c.l.b16 %v4194
      %v4278 = vunpack.c.l.b16 %v4195
      %v4279 = vunpack.c.l.b16 %v4196
      %v4280 = vunpack.c.l.b16 %v4197
      %v4281 = vunpack.c.l.b16 %v4198
      %v4282 = vunpack.c.l.b16 %v4199
      %v4283 = vunpack.c.l.b16 %v4200
      %v4284 = vunpack.c.l.b16 %v4201
      %v4285 = vunpack.c.l.b16 %v4202
      %v4286 = vunpack.c.l.b16 %v4203
      %v4287 = vunpack.c.l.b16 %v4204
      %v4288 = vunpack.c.l.b16 %v4205
      %v4289 = vunpack.c.l.b16 %v4206
      %v4290 = vunpack.c.l.b16 %v4207
      %v4291 = vunpack.c.l.b16 %v4208
      %v4292 = vunpack.c.l.b16 %v4209
      %v4293 = vunpack.c.l.b16 %v4210
      %v4294 = vunpack.c.l.b16 %v4211
      %v4295 = vunpack.c.l.b16 %v4212
      %v4296 = vunpack.c.l.b16 %v4213
      %v4297 = vunpack.c.l.b16 %v4214
      %v4298 = vunpack.c.l.b16 %v4215
      %v4299 = vunpack.c.l.b16 %v4216
      %v4300 = vunpack.c.l.b16 %v4221
      %v4301 = vpack.c.b16 %v4265, %v4264
      %v4302 = vpack.c.b16 %v4267, %v4266
      %v4303 = vpack.c.b16 %v4269, %v4268
      %v4304 = vpack.c.b16 %v4271, %v4270
      %v4305 = vpack.c.b16 %v4273, %v4272
      %v4306 = vpack.c.b16 %v4275, %v4274
      %v4307 = vpack.c.b16 %v4277, %v4276
      %v4308 = vpack.c.b16 %v4279, %v4278
      %v4309 = vpack.c.b16 %v4281, %v4280
      %v4310 = vpack.c.b16 %v4283, %v4282
      %v4311 = vpack.c.b16 %v4285, %v4284
      %v4312 = vpack.c.b16 %v4287, %v4286
      %v4313 = vpack.c.b16 %v4289, %v4288
      %v4314 = vpack.c.b16 %v4291, %v4290
      %v4315 = vpack.c.b16 %v4293, %v4292
      %v4316 = vpack.c.b16 %v4295, %v4294
      %v4317 = vpack.c.b16 %v4297, %v4296
      %v4318 = vpack.c.b16 %v4299, %v4298
      %v4319 = vpack.c.b16 %v4300, %v4300
      %vm4320 = vsmask.f32 7424
      %v4322 = vshrl.u32 %v4301, 16
      %v4324 = vshll.u32 %v4301, 16
      %v4326 = vrot.slane %v4324, 1
      %v4327 = vor.u32 %v4322, %v4326
      %v4329 = vshll.u32 %v4302, 16
      %v4331 = vrot.slane %v4329, 1
      %v4332 = vsel %vm4320, %v4327, %v4331
      %v4333 = vshrl.u32 %v4302, 16
      %v4335 = vor.u32 %v4333, %v4331
      %v4337 = vshll.u32 %v4303, 16
      %v4339 = vrot.slane %v4337, 1
      %v4340 = vsel %vm4320, %v4335, %v4339
      %v4341 = vshrl.u32 %v4303, 16
      %v4343 = vor.u32 %v4341, %v4339
      %v4345 = vshll.u32 %v4304, 16
      %v4347 = vrot.slane %v4345, 1
      %v4348 = vsel %vm4320, %v4343, %v4347
      %v4349 = vshrl.u32 %v4304, 16
      %v4351 = vor.u32 %v4349, %v4347
      %v4353 = vshll.u32 %v4305, 16
      %v4355 = vrot.slane %v4353, 1
      %v4356 = vsel %vm4320, %v4351, %v4355
      %v4357 = vshrl.u32 %v4305, 16
      %v4359 = vor.u32 %v4357, %v4355
      %v4361 = vshll.u32 %v4306, 16
      %v4363 = vrot.slane %v4361, 1
      %v4364 = vsel %vm4320, %v4359, %v4363
      %v4365 = vshrl.u32 %v4306, 16
      %v4367 = vor.u32 %v4365, %v4363
      %v4369 = vshll.u32 %v4307, 16
      %v4371 = vrot.slane %v4369, 1
      %v4372 = vsel %vm4320, %v4367, %v4371
      %v4373 = vshrl.u32 %v4307, 16
      %v4375 = vor.u32 %v4373, %v4371
      %v4377 = vshll.u32 %v4308, 16
      %v4379 = vrot.slane %v4377, 1
      %v4380 = vsel %vm4320, %v4375, %v4379
      %v4381 = vshrl.u32 %v4308, 16
      %v4383 = vor.u32 %v4381, %v4379
      %v4385 = vshll.u32 %v4309, 16
      %v4387 = vrot.slane %v4385, 1
      %v4388 = vsel %vm4320, %v4383, %v4387
      %v4389 = vshrl.u32 %v4309, 16
      %v4391 = vor.u32 %v4389, %v4387
      %v4393 = vshll.u32 %v4310, 16
      %v4395 = vrot.slane %v4393, 1
      %v4396 = vsel %vm4320, %v4391, %v4395
      %v4397 = vshrl.u32 %v4310, 16
      %v4399 = vor.u32 %v4397, %v4395
      %v4401 = vshll.u32 %v4311, 16
      %v4403 = vrot.slane %v4401, 1
      %v4404 = vsel %vm4320, %v4399, %v4403
      %v4405 = vshrl.u32 %v4311, 16
      %v4407 = vor.u32 %v4405, %v4403
      %v4409 = vshll.u32 %v4312, 16
      %v4411 = vrot.slane %v4409, 1
      %v4412 = vsel %vm4320, %v4407, %v4411
      %v4413 = vshrl.u32 %v4312, 16
      %v4415 = vor.u32 %v4413, %v4411
      %v4417 = vshll.u32 %v4313, 16
      %v4419 = vrot.slane %v4417, 1
      %v4420 = vsel %vm4320, %v4415, %v4419
      %v4421 = vshrl.u32 %v4313, 16
      %v4423 = vor.u32 %v4421, %v4419
      %v4425 = vshll.u32 %v4314, 16
      %v4427 = vrot.slane %v4425, 1
      %v4428 = vsel %vm4320, %v4423, %v4427
      %v4429 = vshrl.u32 %v4314, 16
      %v4431 = vor.u32 %v4429, %v4427
      %v4433 = vshll.u32 %v4315, 16
      %v4435 = vrot.slane %v4433, 1
      %v4436 = vsel %vm4320, %v4431, %v4435
      %v4437 = vshrl.u32 %v4315, 16
      %v4439 = vor.u32 %v4437, %v4435
      %v4441 = vshll.u32 %v4316, 16
      %v4443 = vrot.slane %v4441, 1
      %v4444 = vsel %vm4320, %v4439, %v4443
      %v4445 = vshrl.u32 %v4316, 16
      %v4447 = vor.u32 %v4445, %v4443
      %v4449 = vshll.u32 %v4317, 16
      %v4451 = vrot.slane %v4449, 1
      %v4452 = vsel %vm4320, %v4447, %v4451
      %v4453 = vshrl.u32 %v4317, 16
      %v4455 = vor.u32 %v4453, %v4451
      %v4457 = vshll.u32 %v4318, 16
      %v4459 = vrot.slane %v4457, 1
      %v4460 = vsel %vm4320, %v4455, %v4459
      %v4461 = vshrl.u32 %v4318, 16
      %v4463 = vor.u32 %v4461, %v4459
      %v4465 = vshll.u32 %v4319, 16
      %v4467 = vrot.slane %v4465, 1
      %v4468 = vsel %vm4320, %v4463, %v4467
      %v4473 = vunpack.c.l.b16 %v4223
      %v4474 = vunpack.c.l.b16 %v4224
      %v4475 = vunpack.c.l.b16 %v4225
      %v4476 = vunpack.c.l.b16 %v4226
      %v4477 = vpack.c.b16 %v4474, %v4473
      %v4478 = vpack.c.b16 %v4476, %v4475
      %v4482 = vsel %vm641, %v4332, 0
      %v4485 = vsel %vm641, %v4340, 0
      %v4488 = vsel %vm641, %v4348, 0
      %v4491 = vsel %vm641, %v4356, 0
      %v4494 = vsel %vm641, %v4364, 0
      %v4497 = vsel %vm641, %v4372, 0
      %v4500 = vsel %vm641, %v4380, 0
      %v4503 = vsel %vm641, %v4388, 0
      %v4506 = vsel %vm641, %v4396, 0
      %v4509 = vsel %vm641, %v4404, 0
      %v4512 = vsel %vm641, %v4412, 0
      %v4515 = vsel %vm641, %v4420, 0
      %v4518 = vsel %vm641, %v4428, 0
      %v4521 = vsel %vm641, %v4436, 0
      %v4524 = vsel %vm641, %v4444, 0
      %v4527 = vsel %vm641, %v4452, 0
      %v4530 = vsel %vm641, %v4460, 0
      %v4533 = vsel %vm641, %v4468, 0
      %4535 = vmatprep.subr.bf16.mxu0 0
      %4536 = vmatpush1.bf16.msra.mxu0 0
      %4537 = vmatprep.subr.bf16.mxu0 0
      %4538 = vmatpush1.bf16.msra.mxu0 0
      %4539 = vmatprep.subr.bf16.mxu0 0
      %4540 = vmatpush1.bf16.msra.mxu0 0
      %4541 = vmatprep.subr.bf16.mxu0 0
      %4542 = vmatpush1.bf16.msra.mxu0 0
      %4543 = vmatprep.subr.bf16.mxu0 0
      %4544 = vmatpush1.bf16.msra.mxu0 0
      %4545 = vmatprep.subr.bf16.mxu0 0
      %4546 = vmatpush1.bf16.msra.mxu0 0
      %4547 = vmatprep.subr.bf16.mxu0 0
      %4548 = vmatpush1.bf16.msra.mxu0 %v4478
      %4549 = vmatprep.subr.bf16.mxu0 0
      %4550 = vmatpush1.bf16.msra.mxu0 %v4477
      %4551 = vmatprep.subr.bf16.mxu0 0
      %4552 = vmatpush2.bf16.msra.mxu0 0
      %4553 = vmatprep.subr.bf16.mxu0 0
      %4554 = vmatpush2.bf16.msra.mxu0 0
      %4555 = vmatprep.subr.bf16.mxu0 0
      %4556 = vmatpush2.bf16.msra.mxu0 0
      %4557 = vmatprep.subr.bf16.mxu0 0
      %4558 = vmatpush2.bf16.msra.mxu0 0
      %4559 = vmatprep.subr.bf16.mxu0 0
      %4560 = vmatpush2.bf16.msra.mxu0 0
      %4561 = vmatprep.subr.bf16.mxu0 0
      %4562 = vmatpush2.bf16.msra.mxu0 0
      %4563 = vmatprep.subr.bf16.mxu0 0
      %4564 = vmatpush2.bf16.msra.mxu0 0
      %4565 = vmatprep.subr.bf16.mxu0 0
      %4566 = vmatpush2.bf16.msra.mxu0 0
      %4567 = vmatprep.mubr.bf16.mxu0 0
      %4568 = vmatmul.mubr.bf16.gmra.mxu0 %v4482
      %v4569 = vpop.f32.mrf.mxu0
      %v4570 = vadd.f32 0.0, %v4569
      %v4571 = vpop.f32.mrf.mxu0
      %v4572 = vpop.f32.mrf.mxu0
      %v4573 = vadd.f32 0.0, %v4572
      %v4574 = vpop.f32.mrf.mxu0
      %4575 = vmatprep.mubr.bf16.mxu0 0
      %4576 = vmatmul.mubr.bf16.gmra.mxu0 %v4485
      %v4577 = vpop.f32.mrf.mxu0
      %v4578 = vadd.f32 0.0, %v4577
      %v4579 = vpop.f32.mrf.mxu0
      %v4580 = vpop.f32.mrf.mxu0
      %v4581 = vadd.f32 0.0, %v4580
      %v4582 = vpop.f32.mrf.mxu0
      %4583 = vmatprep.mubr.bf16.mxu0 0
      %4584 = vmatmul.mubr.bf16.gmra.mxu0 %v4488
      %v4585 = vpop.f32.mrf.mxu0
      %v4586 = vadd.f32 0.0, %v4585
      %v4587 = vpop.f32.mrf.mxu0
      %v4588 = vpop.f32.mrf.mxu0
      %v4589 = vadd.f32 0.0, %v4588
      %v4590 = vpop.f32.mrf.mxu0
      %4591 = vmatprep.mubr.bf16.mxu0 0
      %4592 = vmatmul.mubr.bf16.gmra.mxu0 %v4491
      %v4593 = vpop.f32.mrf.mxu0
      %v4594 = vadd.f32 0.0, %v4593
      %v4595 = vpop.f32.mrf.mxu0
      %v4596 = vpop.f32.mrf.mxu0
      %v4597 = vadd.f32 0.0, %v4596
      %v4598 = vpop.f32.mrf.mxu0
      %4599 = vmatprep.mubr.bf16.mxu0 0
      %4600 = vmatmul.mubr.bf16.gmra.mxu0 %v4494
      %v4601 = vpop.f32.mrf.mxu0
      %v4602 = vadd.f32 0.0, %v4601
      %v4603 = vpop.f32.mrf.mxu0
      %v4604 = vpop.f32.mrf.mxu0
      %v4605 = vadd.f32 0.0, %v4604
      %v4606 = vpop.f32.mrf.mxu0
      %4607 = vmatprep.mubr.bf16.mxu0 0
      %4608 = vmatmul.mubr.bf16.gmra.mxu0 %v4497
      %v4609 = vpop.f32.mrf.mxu0
      %v4610 = vadd.f32 0.0, %v4609
      %v4611 = vpop.f32.mrf.mxu0
      %v4612 = vpop.f32.mrf.mxu0
      %v4613 = vadd.f32 0.0, %v4612
      %v4614 = vpop.f32.mrf.mxu0
      %4615 = vmatprep.mubr.bf16.mxu0 0
      %4616 = vmatmul.mubr.bf16.gmra.mxu0 %v4500
      %v4617 = vpop.f32.mrf.mxu0
      %v4618 = vadd.f32 0.0, %v4617
      %v4619 = vpop.f32.mrf.mxu0
      %v4620 = vpop.f32.mrf.mxu0
      %v4621 = vadd.f32 0.0, %v4620
      %v4622 = vpop.f32.mrf.mxu0
      %4623 = vmatprep.mubr.bf16.mxu0 0
      %4624 = vmatmul.mubr.bf16.gmra.mxu0 %v4503
      %v4625 = vpop.f32.mrf.mxu0
      %v4626 = vadd.f32 0.0, %v4625
      %v4627 = vpop.f32.mrf.mxu0
      %v4628 = vpop.f32.mrf.mxu0
      %v4629 = vadd.f32 0.0, %v4628
      %v4630 = vpop.f32.mrf.mxu0
      %4631 = vmatprep.mubr.bf16.mxu0 0
      %4632 = vmatmul.mubr.bf16.gmra.mxu0 %v4506
      %v4633 = vpop.f32.mrf.mxu0
      %v4634 = vadd.f32 0.0, %v4633
      %v4635 = vpop.f32.mrf.mxu0
      %v4636 = vpop.f32.mrf.mxu0
      %v4637 = vadd.f32 0.0, %v4636
      %v4638 = vpop.f32.mrf.mxu0
      %4639 = vmatprep.mubr.bf16.mxu0 0
      %4640 = vmatmul.mubr.bf16.gmra.mxu0 %v4509
      %v4641 = vpop.f32.mrf.mxu0
      %v4642 = vadd.f32 0.0, %v4641
      %v4643 = vpop.f32.mrf.mxu0
      %v4644 = vpop.f32.mrf.mxu0
      %v4645 = vadd.f32 0.0, %v4644
      %v4646 = vpop.f32.mrf.mxu0
      %4647 = vmatprep.mubr.bf16.mxu0 0
      %4648 = vmatmul.mubr.bf16.gmra.mxu0 %v4512
      %v4649 = vpop.f32.mrf.mxu0
      %v4650 = vadd.f32 0.0, %v4649
      %v4651 = vpop.f32.mrf.mxu0
      %v4652 = vpop.f32.mrf.mxu0
      %v4653 = vadd.f32 0.0, %v4652
      %v4654 = vpop.f32.mrf.mxu0
      %4655 = vmatprep.mubr.bf16.mxu0 0
      %4656 = vmatmul.mubr.bf16.gmra.mxu0 %v4515
      %v4657 = vpop.f32.mrf.mxu0
      %v4658 = vadd.f32 0.0, %v4657
      %v4659 = vpop.f32.mrf.mxu0
      %v4660 = vpop.f32.mrf.mxu0
      %v4661 = vadd.f32 0.0, %v4660
      %v4662 = vpop.f32.mrf.mxu0
      %4663 = vmatprep.mubr.bf16.mxu0 0
      %4664 = vmatmul.mubr.bf16.gmra.mxu0 %v4518
      %v4665 = vpop.f32.mrf.mxu0
      %v4666 = vadd.f32 0.0, %v4665
      %v4667 = vpop.f32.mrf.mxu0
      %v4668 = vpop.f32.mrf.mxu0
      %v4669 = vadd.f32 0.0, %v4668
      %v4670 = vpop.f32.mrf.mxu0
      %4671 = vmatprep.mubr.bf16.mxu0 0
      %4672 = vmatmul.mubr.bf16.gmra.mxu0 %v4521
      %v4673 = vpop.f32.mrf.mxu0
      %v4674 = vadd.f32 0.0, %v4673
      %v4675 = vpop.f32.mrf.mxu0
      %v4676 = vpop.f32.mrf.mxu0
      %v4677 = vadd.f32 0.0, %v4676
      %v4678 = vpop.f32.mrf.mxu0
      %4679 = vmatprep.mubr.bf16.mxu0 0
      %4680 = vmatmul.mubr.bf16.gmra.mxu0 %v4524
      %v4681 = vpop.f32.mrf.mxu0
      %v4682 = vadd.f32 0.0, %v4681
      %v4683 = vpop.f32.mrf.mxu0
      %v4684 = vpop.f32.mrf.mxu0
      %v4685 = vadd.f32 0.0, %v4684
      %v4686 = vpop.f32.mrf.mxu0
      %4687 = vmatprep.mubr.bf16.mxu0 0
      %4688 = vmatmul.mubr.bf16.gmra.mxu0 %v4527
      %v4689 = vpop.f32.mrf.mxu0
      %v4690 = vadd.f32 0.0, %v4689
      %v4691 = vpop.f32.mrf.mxu0
      %v4692 = vpop.f32.mrf.mxu0
      %v4693 = vadd.f32 0.0, %v4692
      %v4694 = vpop.f32.mrf.mxu0
      %4695 = vmatprep.mubr.bf16.mxu0 0
      %4696 = vmatmul.mubr.bf16.gmra.mxu0 %v4530
      %v4697 = vpop.f32.mrf.mxu0
      %v4698 = vadd.f32 0.0, %v4697
      %v4699 = vpop.f32.mrf.mxu0
      %v4700 = vpop.f32.mrf.mxu0
      %v4701 = vadd.f32 0.0, %v4700
      %v4702 = vpop.f32.mrf.mxu0
      %4703 = vmatprep.mubr.bf16.mxu0 0
      %4704 = vmatmul.mubr.bf16.gmra.mxu0 %v4533
      %v4705 = vpop.f32.mrf.mxu0
      %v4706 = vadd.f32 0.0, %v4705
      %v4707 = vpop.f32.mrf.mxu0
      %v4708 = vpop.f32.mrf.mxu0
      %v4709 = vadd.f32 0.0, %v4708
      %v4710 = vpop.f32.mrf.mxu0
      %4711 = vdwg.mxu0
      %v4716 = vunpack.c.l.b16 %v4217
      %v4717 = vunpack.c.l.b16 %v4218
      %v4718 = vunpack.c.l.b16 %v4219
      %v4719 = vunpack.c.l.b16 %v4220
      %v4720 = vpack.c.b16 %v4717, %v4716
      %v4721 = vpack.c.b16 %v4719, %v4718
      %v4724 = vsel %vm641, %v4301, 0
      %v4726 = vsel %vm641, %v4302, 0
      %v4728 = vsel %vm641, %v4303, 0
      %v4730 = vsel %vm641, %v4304, 0
      %v4732 = vsel %vm641, %v4305, 0
      %v4734 = vsel %vm641, %v4306, 0
      %v4736 = vsel %vm641, %v4307, 0
      %v4738 = vsel %vm641, %v4308, 0
      %v4740 = vsel %vm641, %v4309, 0
      %v4742 = vsel %vm641, %v4310, 0
      %v4744 = vsel %vm641, %v4311, 0
      %v4746 = vsel %vm641, %v4312, 0
      %v4748 = vsel %vm641, %v4313, 0
      %v4750 = vsel %vm641, %v4314, 0
      %v4752 = vsel %vm641, %v4315, 0
      %v4754 = vsel %vm641, %v4316, 0
      %v4756 = vsel %vm641, %v4317, 0
      %v4758 = vsel %vm641, %v4318, 0
      %4760 = vmatprep.subr.bf16.mxu0 0
      %4761 = vmatpush1.bf16.msra.mxu0 0
      %4762 = vmatprep.subr.bf16.mxu0 0
      %4763 = vmatpush1.bf16.msra.mxu0 0
      %4764 = vmatprep.subr.bf16.mxu0 0
      %4765 = vmatpush1.bf16.msra.mxu0 0
      %4766 = vmatprep.subr.bf16.mxu0 0
      %4767 = vmatpush1.bf16.msra.mxu0 0
      %4768 = vmatprep.subr.bf16.mxu0 0
      %4769 = vmatpush1.bf16.msra.mxu0 0
      %4770 = vmatprep.subr.bf16.mxu0 0
      %4771 = vmatpush1.bf16.msra.mxu0 0
      %4772 = vmatprep.subr.bf16.mxu0 0
      %4773 = vmatpush1.bf16.msra.mxu0 %v4721
      %4774 = vmatprep.subr.bf16.mxu0 0
      %4775 = vmatpush1.bf16.msra.mxu0 %v4720
      %4776 = vmatprep.subr.bf16.mxu0 0
      %4777 = vmatpush2.bf16.msra.mxu0 0
      %4778 = vmatprep.subr.bf16.mxu0 0
      %4779 = vmatpush2.bf16.msra.mxu0 0
      %4780 = vmatprep.subr.bf16.mxu0 0
      %4781 = vmatpush2.bf16.msra.mxu0 0
      %4782 = vmatprep.subr.bf16.mxu0 0
      %4783 = vmatpush2.bf16.msra.mxu0 0
      %4784 = vmatprep.subr.bf16.mxu0 0
      %4785 = vmatpush2.bf16.msra.mxu0 0
      %4786 = vmatprep.subr.bf16.mxu0 0
      %4787 = vmatpush2.bf16.msra.mxu0 0
      %4788 = vmatprep.subr.bf16.mxu0 0
      %4789 = vmatpush2.bf16.msra.mxu0 0
      %4790 = vmatprep.subr.bf16.mxu0 0
      %4791 = vmatpush2.bf16.msra.mxu0 0
      %4792 = vmatprep.mubr.bf16.mxu0 0
      %4793 = vmatmul.mubr.bf16.gmra.mxu0 %v4724
      %v4794 = vpop.f32.mrf.mxu0
      %v4795 = vadd.f32 %v4570, %v4794
      %v4796 = vpop.f32.mrf.mxu0
      %v4797 = vpop.f32.mrf.mxu0
      %v4798 = vadd.f32 %v4573, %v4797
      %v4799 = vpop.f32.mrf.mxu0
      %4800 = vmatprep.mubr.bf16.mxu0 0
      %4801 = vmatmul.mubr.bf16.gmra.mxu0 %v4726
      %v4802 = vpop.f32.mrf.mxu0
      %v4803 = vadd.f32 %v4578, %v4802
      %v4804 = vpop.f32.mrf.mxu0
      %v4805 = vpop.f32.mrf.mxu0
      %v4806 = vadd.f32 %v4581, %v4805
      %v4807 = vpop.f32.mrf.mxu0
      %4808 = vmatprep.mubr.bf16.mxu0 0
      %4809 = vmatmul.mubr.bf16.gmra.mxu0 %v4728
      %v4810 = vpop.f32.mrf.mxu0
      %v4811 = vadd.f32 %v4586, %v4810
      %v4812 = vpop.f32.mrf.mxu0
      %v4813 = vpop.f32.mrf.mxu0
      %v4814 = vadd.f32 %v4589, %v4813
      %v4815 = vpop.f32.mrf.mxu0
      %4816 = vmatprep.mubr.bf16.mxu0 0
      %4817 = vmatmul.mubr.bf16.gmra.mxu0 %v4730
      %v4818 = vpop.f32.mrf.mxu0
      %v4819 = vadd.f32 %v4594, %v4818
      %v4820 = vpop.f32.mrf.mxu0
      %v4821 = vpop.f32.mrf.mxu0
      %v4822 = vadd.f32 %v4597, %v4821
      %v4823 = vpop.f32.mrf.mxu0
      %4824 = vmatprep.mubr.bf16.mxu0 0
      %4825 = vmatmul.mubr.bf16.gmra.mxu0 %v4732
      %v4826 = vpop.f32.mrf.mxu0
      %v4827 = vadd.f32 %v4602, %v4826
      %v4828 = vpop.f32.mrf.mxu0
      %v4829 = vpop.f32.mrf.mxu0
      %v4830 = vadd.f32 %v4605, %v4829
      %v4831 = vpop.f32.mrf.mxu0
      %4832 = vmatprep.mubr.bf16.mxu0 0
      %4833 = vmatmul.mubr.bf16.gmra.mxu0 %v4734
      %v4834 = vpop.f32.mrf.mxu0
      %v4835 = vadd.f32 %v4610, %v4834
      %v4836 = vpop.f32.mrf.mxu0
      %v4837 = vpop.f32.mrf.mxu0
      %v4838 = vadd.f32 %v4613, %v4837
      %v4839 = vpop.f32.mrf.mxu0
      %4840 = vmatprep.mubr.bf16.mxu0 0
      %4841 = vmatmul.mubr.bf16.gmra.mxu0 %v4736
      %v4842 = vpop.f32.mrf.mxu0
      %v4843 = vadd.f32 %v4618, %v4842
      %v4844 = vpop.f32.mrf.mxu0
      %v4845 = vpop.f32.mrf.mxu0
      %v4846 = vadd.f32 %v4621, %v4845
      %v4847 = vpop.f32.mrf.mxu0
      %4848 = vmatprep.mubr.bf16.mxu0 0
      %4849 = vmatmul.mubr.bf16.gmra.mxu0 %v4738
      %v4850 = vpop.f32.mrf.mxu0
      %v4851 = vadd.f32 %v4626, %v4850
      %v4852 = vpop.f32.mrf.mxu0
      %v4853 = vpop.f32.mrf.mxu0
      %v4854 = vadd.f32 %v4629, %v4853
      %v4855 = vpop.f32.mrf.mxu0
      %4856 = vmatprep.mubr.bf16.mxu0 0
      %4857 = vmatmul.mubr.bf16.gmra.mxu0 %v4740
      %v4858 = vpop.f32.mrf.mxu0
      %v4859 = vadd.f32 %v4634, %v4858
      %v4860 = vpop.f32.mrf.mxu0
      %v4861 = vpop.f32.mrf.mxu0
      %v4862 = vadd.f32 %v4637, %v4861
      %v4863 = vpop.f32.mrf.mxu0
      %4864 = vmatprep.mubr.bf16.mxu0 0
      %4865 = vmatmul.mubr.bf16.gmra.mxu0 %v4742
      %v4866 = vpop.f32.mrf.mxu0
      %v4867 = vadd.f32 %v4642, %v4866
      %v4868 = vpop.f32.mrf.mxu0
      %v4869 = vpop.f32.mrf.mxu0
      %v4870 = vadd.f32 %v4645, %v4869
      %v4871 = vpop.f32.mrf.mxu0
      %4872 = vmatprep.mubr.bf16.mxu0 0
      %4873 = vmatmul.mubr.bf16.gmra.mxu0 %v4744
      %v4874 = vpop.f32.mrf.mxu0
      %v4875 = vadd.f32 %v4650, %v4874
      %v4876 = vpop.f32.mrf.mxu0
      %v4877 = vpop.f32.mrf.mxu0
      %v4878 = vadd.f32 %v4653, %v4877
      %v4879 = vpop.f32.mrf.mxu0
      %4880 = vmatprep.mubr.bf16.mxu0 0
      %4881 = vmatmul.mubr.bf16.gmra.mxu0 %v4746
      %v4882 = vpop.f32.mrf.mxu0
      %v4883 = vadd.f32 %v4658, %v4882
      %v4884 = vpop.f32.mrf.mxu0
      %v4885 = vpop.f32.mrf.mxu0
      %v4886 = vadd.f32 %v4661, %v4885
      %v4887 = vpop.f32.mrf.mxu0
      %4888 = vmatprep.mubr.bf16.mxu0 0
      %4889 = vmatmul.mubr.bf16.gmra.mxu0 %v4748
      %v4890 = vpop.f32.mrf.mxu0
      %v4891 = vadd.f32 %v4666, %v4890
      %v4892 = vpop.f32.mrf.mxu0
      %v4893 = vpop.f32.mrf.mxu0
      %v4894 = vadd.f32 %v4669, %v4893
      %v4895 = vpop.f32.mrf.mxu0
      %4896 = vmatprep.mubr.bf16.mxu0 0
      %4897 = vmatmul.mubr.bf16.gmra.mxu0 %v4750
      %v4898 = vpop.f32.mrf.mxu0
      %v4899 = vadd.f32 %v4674, %v4898
      %v4900 = vpop.f32.mrf.mxu0
      %v4901 = vpop.f32.mrf.mxu0
      %v4902 = vadd.f32 %v4677, %v4901
      %v4903 = vpop.f32.mrf.mxu0
      %4904 = vmatprep.mubr.bf16.mxu0 0
      %4905 = vmatmul.mubr.bf16.gmra.mxu0 %v4752
      %v4906 = vpop.f32.mrf.mxu0
      %v4907 = vadd.f32 %v4682, %v4906
      %v4908 = vpop.f32.mrf.mxu0
      %v4909 = vpop.f32.mrf.mxu0
      %v4910 = vadd.f32 %v4685, %v4909
      %v4911 = vpop.f32.mrf.mxu0
      %4912 = vmatprep.mubr.bf16.mxu0 0
      %4913 = vmatmul.mubr.bf16.gmra.mxu0 %v4754
      %v4914 = vpop.f32.mrf.mxu0
      %v4915 = vadd.f32 %v4690, %v4914
      %v4916 = vpop.f32.mrf.mxu0
      %v4917 = vpop.f32.mrf.mxu0
      %v4918 = vadd.f32 %v4693, %v4917
      %v4919 = vpop.f32.mrf.mxu0
      %4920 = vmatprep.mubr.bf16.mxu0 0
      %4921 = vmatmul.mubr.bf16.gmra.mxu0 %v4756
      %v4922 = vpop.f32.mrf.mxu0
      %v4923 = vadd.f32 %v4698, %v4922
      %v4924 = vpop.f32.mrf.mxu0
      %v4925 = vpop.f32.mrf.mxu0
      %v4926 = vadd.f32 %v4701, %v4925
      %v4927 = vpop.f32.mrf.mxu0
      %4928 = vmatprep.mubr.bf16.mxu0 0
      %4929 = vmatmul.mubr.bf16.gmra.mxu0 %v4758
      %v4930 = vpop.f32.mrf.mxu0
      %v4931 = vadd.f32 %v4706, %v4930
      %v4932 = vpop.f32.mrf.mxu0
      %v4933 = vpop.f32.mrf.mxu0
      %v4934 = vadd.f32 %v4709, %v4933
      %v4935 = vpop.f32.mrf.mxu0
      %4936 = vdwg.mxu0
      %v4937 = vld [vmem:[#allocation2] sm:$0xe]
      %s4938 = scalar_lea.vmem %s2, 32
      %v4939 = vld [vmem:[%s4938] sm:$0xf]
      %v4940 = vld [vmem:[%s4938 + $0x4] sm:$0xf]
      %v4941 = vld [vmem:[%s4938 + $0x8] sm:$0xf]
      %v4942 = vld [vmem:[%s4938 + $0xc] sm:$0xf]
      %v4944 = vunpack.c.l.b16 %v4937
      %v4945 = vpack.c.b16 %v4265, %v4944
      %vm4946 = vcmask 1046528
      %v4947 = vrot.slane %v4945, 1
      %v4948 = vrot.slane %v4302, 1
      %v4949 = vsel %vm4946, %v4947, %v4948
      %v4950 = vrot.slane %v4303, 1
      %v4951 = vsel %vm4946, %v4948, %v4950
      %v4952 = vrot.slane %v4304, 1
      %v4953 = vsel %vm4946, %v4950, %v4952
      %v4954 = vrot.slane %v4305, 1
      %v4955 = vsel %vm4946, %v4952, %v4954
      %v4956 = vrot.slane %v4306, 1
      %v4957 = vsel %vm4946, %v4954, %v4956
      %v4958 = vrot.slane %v4307, 1
      %v4959 = vsel %vm4946, %v4956, %v4958
      %v4960 = vrot.slane %v4308, 1
      %v4961 = vsel %vm4946, %v4958, %v4960
      %v4962 = vrot.slane %v4309, 1
      %v4963 = vsel %vm4946, %v4960, %v4962
      %v4964 = vrot.slane %v4310, 1
      %v4965 = vsel %vm4946, %v4962, %v4964
      %v4966 = vrot.slane %v4311, 1
      %v4967 = vsel %vm4946, %v4964, %v4966
      %v4968 = vrot.slane %v4312, 1
      %v4969 = vsel %vm4946, %v4966, %v4968
      %v4970 = vrot.slane %v4313, 1
      %v4971 = vsel %vm4946, %v4968, %v4970
      %v4972 = vrot.slane %v4314, 1
      %v4973 = vsel %vm4946, %v4970, %v4972
      %v4974 = vrot.slane %v4315, 1
      %v4975 = vsel %vm4946, %v4972, %v4974
      %v4976 = vrot.slane %v4316, 1
      %v4977 = vsel %vm4946, %v4974, %v4976
      %v4978 = vrot.slane %v4317, 1
      %v4979 = vsel %vm4946, %v4976, %v4978
      %v4980 = vrot.slane %v4318, 1
      %v4981 = vsel %vm4946, %v4978, %v4980
      %v4982 = vrot.slane %v4319, 1
      %v4983 = vsel %vm4946, %v4980, %v4982
      %v4988 = vunpack.c.l.b16 %v4939
      %v4989 = vunpack.c.l.b16 %v4940
      %v4990 = vunpack.c.l.b16 %v4941
      %v4991 = vunpack.c.l.b16 %v4942
      %v4992 = vpack.c.b16 %v4989, %v4988
      %v4993 = vpack.c.b16 %v4991, %v4990
      %v4997 = vsel %vm641, %v4949, 0
      %v5000 = vsel %vm641, %v4951, 0
      %v5003 = vsel %vm641, %v4953, 0
      %v5006 = vsel %vm641, %v4955, 0
      %v5009 = vsel %vm641, %v4957, 0
      %v5012 = vsel %vm641, %v4959, 0
      %v5015 = vsel %vm641, %v4961, 0
      %v5018 = vsel %vm641, %v4963, 0
      %v5021 = vsel %vm641, %v4965, 0
      %v5024 = vsel %vm641, %v4967, 0
      %v5027 = vsel %vm641, %v4969, 0
      %v5030 = vsel %vm641, %v4971, 0
      %v5033 = vsel %vm641, %v4973, 0
      %v5036 = vsel %vm641, %v4975, 0
      %v5039 = vsel %vm641, %v4977, 0
      %v5042 = vsel %vm641, %v4979, 0
      %v5045 = vsel %vm641, %v4981, 0
      %v5048 = vsel %vm641, %v4983, 0
      %5050 = vmatprep.subr.bf16.mxu0 0
      %5051 = vmatpush1.bf16.msra.mxu0 0
      %5052 = vmatprep.subr.bf16.mxu0 0
      %5053 = vmatpush1.bf16.msra.mxu0 0
      %5054 = vmatprep.subr.bf16.mxu0 0
      %5055 = vmatpush1.bf16.msra.mxu0 0
      %5056 = vmatprep.subr.bf16.mxu0 0
      %5057 = vmatpush1.bf16.msra.mxu0 0
      %5058 = vmatprep.subr.bf16.mxu0 0
      %5059 = vmatpush1.bf16.msra.mxu0 0
      %5060 = vmatprep.subr.bf16.mxu0 0
      %5061 = vmatpush1.bf16.msra.mxu0 0
      %5062 = vmatprep.subr.bf16.mxu0 0
      %5063 = vmatpush1.bf16.msra.mxu0 %v4993
      %5064 = vmatprep.subr.bf16.mxu0 0
      %5065 = vmatpush1.bf16.msra.mxu0 %v4992
      %5066 = vmatprep.subr.bf16.mxu0 0
      %5067 = vmatpush2.bf16.msra.mxu0 0
      %5068 = vmatprep.subr.bf16.mxu0 0
      %5069 = vmatpush2.bf16.msra.mxu0 0
      %5070 = vmatprep.subr.bf16.mxu0 0
      %5071 = vmatpush2.bf16.msra.mxu0 0
      %5072 = vmatprep.subr.bf16.mxu0 0
      %5073 = vmatpush2.bf16.msra.mxu0 0
      %5074 = vmatprep.subr.bf16.mxu0 0
      %5075 = vmatpush2.bf16.msra.mxu0 0
      %5076 = vmatprep.subr.bf16.mxu0 0
      %5077 = vmatpush2.bf16.msra.mxu0 0
      %5078 = vmatprep.subr.bf16.mxu0 0
      %5079 = vmatpush2.bf16.msra.mxu0 0
      %5080 = vmatprep.subr.bf16.mxu0 0
      %5081 = vmatpush2.bf16.msra.mxu0 0
      %5082 = vmatprep.mubr.bf16.mxu0 0
      %5083 = vmatmul.mubr.bf16.gmra.mxu0 %v4997
      %v5084 = vpop.f32.mrf.mxu0
      %v5085 = vadd.f32 0.0, %v5084
      %v5086 = vpop.f32.mrf.mxu0
      %v5087 = vpop.f32.mrf.mxu0
      %v5088 = vadd.f32 0.0, %v5087
      %v5089 = vpop.f32.mrf.mxu0
      %5090 = vmatprep.mubr.bf16.mxu0 0
      %5091 = vmatmul.mubr.bf16.gmra.mxu0 %v5000
      %v5092 = vpop.f32.mrf.mxu0
      %v5093 = vadd.f32 0.0, %v5092
      %v5094 = vpop.f32.mrf.mxu0
      %v5095 = vpop.f32.mrf.mxu0
      %v5096 = vadd.f32 0.0, %v5095
      %v5097 = vpop.f32.mrf.mxu0
      %5098 = vmatprep.mubr.bf16.mxu0 0
      %5099 = vmatmul.mubr.bf16.gmra.mxu0 %v5003
      %v5100 = vpop.f32.mrf.mxu0
      %v5101 = vadd.f32 0.0, %v5100
      %v5102 = vpop.f32.mrf.mxu0
      %v5103 = vpop.f32.mrf.mxu0
      %v5104 = vadd.f32 0.0, %v5103
      %v5105 = vpop.f32.mrf.mxu0
      %5106 = vmatprep.mubr.bf16.mxu0 0
      %5107 = vmatmul.mubr.bf16.gmra.mxu0 %v5006
      %v5108 = vpop.f32.mrf.mxu0
      %v5109 = vadd.f32 0.0, %v5108
      %v5110 = vpop.f32.mrf.mxu0
      %v5111 = vpop.f32.mrf.mxu0
      %v5112 = vadd.f32 0.0, %v5111
      %v5113 = vpop.f32.mrf.mxu0
      %5114 = vmatprep.mubr.bf16.mxu0 0
      %5115 = vmatmul.mubr.bf16.gmra.mxu0 %v5009
      %v5116 = vpop.f32.mrf.mxu0
      %v5117 = vadd.f32 0.0, %v5116
      %v5118 = vpop.f32.mrf.mxu0
      %v5119 = vpop.f32.mrf.mxu0
      %v5120 = vadd.f32 0.0, %v5119
      %v5121 = vpop.f32.mrf.mxu0
      %5122 = vmatprep.mubr.bf16.mxu0 0
      %5123 = vmatmul.mubr.bf16.gmra.mxu0 %v5012
      %v5124 = vpop.f32.mrf.mxu0
      %v5125 = vadd.f32 0.0, %v5124
      %v5126 = vpop.f32.mrf.mxu0
      %v5127 = vpop.f32.mrf.mxu0
      %v5128 = vadd.f32 0.0, %v5127
      %v5129 = vpop.f32.mrf.mxu0
      %5130 = vmatprep.mubr.bf16.mxu0 0
      %5131 = vmatmul.mubr.bf16.gmra.mxu0 %v5015
      %v5132 = vpop.f32.mrf.mxu0
      %v5133 = vadd.f32 0.0, %v5132
      %v5134 = vpop.f32.mrf.mxu0
      %v5135 = vpop.f32.mrf.mxu0
      %v5136 = vadd.f32 0.0, %v5135
      %v5137 = vpop.f32.mrf.mxu0
      %5138 = vmatprep.mubr.bf16.mxu0 0
      %5139 = vmatmul.mubr.bf16.gmra.mxu0 %v5018
      %v5140 = vpop.f32.mrf.mxu0
      %v5141 = vadd.f32 0.0, %v5140
      %v5142 = vpop.f32.mrf.mxu0
      %v5143 = vpop.f32.mrf.mxu0
      %v5144 = vadd.f32 0.0, %v5143
      %v5145 = vpop.f32.mrf.mxu0
      %5146 = vmatprep.mubr.bf16.mxu0 0
      %5147 = vmatmul.mubr.bf16.gmra.mxu0 %v5021
      %v5148 = vpop.f32.mrf.mxu0
      %v5149 = vadd.f32 0.0, %v5148
      %v5150 = vpop.f32.mrf.mxu0
      %v5151 = vpop.f32.mrf.mxu0
      %v5152 = vadd.f32 0.0, %v5151
      %v5153 = vpop.f32.mrf.mxu0
      %5154 = vmatprep.mubr.bf16.mxu0 0
      %5155 = vmatmul.mubr.bf16.gmra.mxu0 %v5024
      %v5156 = vpop.f32.mrf.mxu0
      %v5157 = vadd.f32 0.0, %v5156
      %v5158 = vpop.f32.mrf.mxu0
      %v5159 = vpop.f32.mrf.mxu0
      %v5160 = vadd.f32 0.0, %v5159
      %v5161 = vpop.f32.mrf.mxu0
      %5162 = vmatprep.mubr.bf16.mxu0 0
      %5163 = vmatmul.mubr.bf16.gmra.mxu0 %v5027
      %v5164 = vpop.f32.mrf.mxu0
      %v5165 = vadd.f32 0.0, %v5164
      %v5166 = vpop.f32.mrf.mxu0
      %v5167 = vpop.f32.mrf.mxu0
      %v5168 = vadd.f32 0.0, %v5167
      %v5169 = vpop.f32.mrf.mxu0
      %5170 = vmatprep.mubr.bf16.mxu0 0
      %5171 = vmatmul.mubr.bf16.gmra.mxu0 %v5030
      %v5172 = vpop.f32.mrf.mxu0
      %v5173 = vadd.f32 0.0, %v5172
      %v5174 = vpop.f32.mrf.mxu0
      %v5175 = vpop.f32.mrf.mxu0
      %v5176 = vadd.f32 0.0, %v5175
      %v5177 = vpop.f32.mrf.mxu0
      %5178 = vmatprep.mubr.bf16.mxu0 0
      %5179 = vmatmul.mubr.bf16.gmra.mxu0 %v5033
      %v5180 = vpop.f32.mrf.mxu0
      %v5181 = vadd.f32 0.0, %v5180
      %v5182 = vpop.f32.mrf.mxu0
      %v5183 = vpop.f32.mrf.mxu0
      %v5184 = vadd.f32 0.0, %v5183
      %v5185 = vpop.f32.mrf.mxu0
      %5186 = vmatprep.mubr.bf16.mxu0 0
      %5187 = vmatmul.mubr.bf16.gmra.mxu0 %v5036
      %v5188 = vpop.f32.mrf.mxu0
      %v5189 = vadd.f32 0.0, %v5188
      %v5190 = vpop.f32.mrf.mxu0
      %v5191 = vpop.f32.mrf.mxu0
      %v5192 = vadd.f32 0.0, %v5191
      %v5193 = vpop.f32.mrf.mxu0
      %5194 = vmatprep.mubr.bf16.mxu0 0
      %5195 = vmatmul.mubr.bf16.gmra.mxu0 %v5039
      %v5196 = vpop.f32.mrf.mxu0
      %v5197 = vadd.f32 0.0, %v5196
      %v5198 = vpop.f32.mrf.mxu0
      %v5199 = vpop.f32.mrf.mxu0
      %v5200 = vadd.f32 0.0, %v5199
      %v5201 = vpop.f32.mrf.mxu0
      %5202 = vmatprep.mubr.bf16.mxu0 0
      %5203 = vmatmul.mubr.bf16.gmra.mxu0 %v5042
      %v5204 = vpop.f32.mrf.mxu0
      %v5205 = vadd.f32 0.0, %v5204
      %v5206 = vpop.f32.mrf.mxu0
      %v5207 = vpop.f32.mrf.mxu0
      %v5208 = vadd.f32 0.0, %v5207
      %v5209 = vpop.f32.mrf.mxu0
      %5210 = vmatprep.mubr.bf16.mxu0 0
      %5211 = vmatmul.mubr.bf16.gmra.mxu0 %v5045
      %v5212 = vpop.f32.mrf.mxu0
      %v5213 = vadd.f32 0.0, %v5212
      %v5214 = vpop.f32.mrf.mxu0
      %v5215 = vpop.f32.mrf.mxu0
      %v5216 = vadd.f32 0.0, %v5215
      %v5217 = vpop.f32.mrf.mxu0
      %5218 = vmatprep.mubr.bf16.mxu0 0
      %5219 = vmatmul.mubr.bf16.gmra.mxu0 %v5048
      %v5220 = vpop.f32.mrf.mxu0
      %v5221 = vadd.f32 0.0, %v5220
      %v5222 = vpop.f32.mrf.mxu0
      %v5223 = vpop.f32.mrf.mxu0
      %v5224 = vadd.f32 0.0, %v5223
      %v5225 = vpop.f32.mrf.mxu0
      %5226 = vdwg.mxu0
      %v5227 = vadd.f32 %v4795, %v5085
      %v5228 = vadd.f32 %v4798, %v5088
      %v5229 = vadd.f32 %v4803, %v5093
      %v5230 = vadd.f32 %v4806, %v5096
      %v5231 = vadd.f32 %v4811, %v5101
      %v5232 = vadd.f32 %v4814, %v5104
      %v5233 = vadd.f32 %v4819, %v5109
      %v5234 = vadd.f32 %v4822, %v5112
      %v5235 = vadd.f32 %v4827, %v5117
      %v5236 = vadd.f32 %v4830, %v5120
      %v5237 = vadd.f32 %v4835, %v5125
      %v5238 = vadd.f32 %v4838, %v5128
      %v5239 = vadd.f32 %v4843, %v5133
      %v5240 = vadd.f32 %v4846, %v5136
      %v5241 = vadd.f32 %v4851, %v5141
      %v5242 = vadd.f32 %v4854, %v5144
      %v5243 = vadd.f32 %v4859, %v5149
      %v5244 = vadd.f32 %v4862, %v5152
      %v5245 = vadd.f32 %v4867, %v5157
      %v5246 = vadd.f32 %v4870, %v5160
      %v5247 = vadd.f32 %v4875, %v5165
      %v5248 = vadd.f32 %v4878, %v5168
      %v5249 = vadd.f32 %v4883, %v5173
      %v5250 = vadd.f32 %v4886, %v5176
      %v5251 = vadd.f32 %v4891, %v5181
      %v5252 = vadd.f32 %v4894, %v5184
      %v5253 = vadd.f32 %v4899, %v5189
      %v5254 = vadd.f32 %v4902, %v5192
      %v5255 = vadd.f32 %v4907, %v5197
      %v5256 = vadd.f32 %v4910, %v5200
      %v5257 = vadd.f32 %v4915, %v5205
      %v5258 = vadd.f32 %v4918, %v5208
      %v5259 = vadd.f32 %v4923, %v5213
      %v5260 = vadd.f32 %v4926, %v5216
      %v5261 = vadd.f32 %v4931, %v5221
      %v5262 = vadd.f32 %v4934, %v5224
      %v5263 = vld [vmem:[#allocation2 + $0x8] sm:$0xe]
      %v5264 = vld [vmem:[#allocation2 + $0xc] sm:$0xf]
      %v5265 = vld [vmem:[#allocation2 + $0x10] sm:$0xf]
      %v5266 = vld [vmem:[#allocation2 + $0x14] sm:$0xf]
      %v5267 = vld [vmem:[#allocation2 + $0x18] sm:$0xf]
      %v5268 = vld [vmem:[#allocation2 + $0x1c] sm:$0xf]
      %v5269 = vld [vmem:[#allocation2 + $0x20] sm:$0xf]
      %v5270 = vld [vmem:[#allocation2 + $0x24] sm:$0xf]
      %v5271 = vld [vmem:[#allocation2 + $0x28] sm:$0xf]
      %v5272 = vld [vmem:[#allocation2 + $0x2c] sm:$0xf]
      %v5273 = vld [vmem:[#allocation2 + $0x30] sm:$0xf]
      %v5274 = vld [vmem:[#allocation2 + $0x34] sm:$0xf]
      %v5275 = vld [vmem:[#allocation2 + $0x38] sm:$0xf]
      %v5276 = vld [vmem:[#allocation2 + $0x3c] sm:$0xf]
      %v5277 = vld [vmem:[#allocation2 + $0x40] sm:$0xf]
      %v5278 = vld [vmem:[#allocation2 + $0x44] sm:$0xf]
      %v5279 = vld [vmem:[#allocation2 + $0x48] sm:$0xf]
      %v5280 = vld [vmem:[#allocation2 + $0x4c] sm:$0xf]
      %v5281 = vld [vmem:[#allocation2 + $0x50] sm:$0xf]
      %v5282 = vld [vmem:[#allocation2 + $0x54] sm:$0xf]
      %v5283 = vld [vmem:[#allocation2 + $0x58] sm:$0xf]
      %v5284 = vld [vmem:[#allocation2 + $0x5c] sm:$0xf]
      %v5285 = vld [vmem:[#allocation2 + $0x60] sm:$0xf]
      %v5286 = vld [vmem:[#allocation2 + $0x64] sm:$0xf]
      %v5287 = vld [vmem:[#allocation2 + $0x68] sm:$0xf]
      %v5288 = vld [vmem:[#allocation2 + $0x6c] sm:$0xf]
      %v5289 = vld [vmem:[#allocation2 + $0x70] sm:$0xf]
      %v5290 = vld [vmem:[#allocation2 + $0x74] sm:$0xf]
      %v5291 = vld [vmem:[#allocation2 + $0x78] sm:$0xf]
      %v5292 = vld [vmem:[#allocation2 + $0x7c] sm:$0xf]
      %v5293 = vld [vmem:[#allocation2 + $0x80] sm:$0xf]
      %v5294 = vld [vmem:[#allocation2 + $0x84] sm:$0xf]
      %v5295 = vld [vmem:[#allocation2 + $0x88] sm:$0xf]
      %v5296 = vld [vmem:[#allocation2 + $0x8c] sm:$0xf]
      %v5297 = vld [vmem:[#allocation2 + $0x90] sm:$0xf]
      %v5298 = vld [vmem:[#allocation2 + $0x94] sm:$0xf]
      %v5299 = vld [vmem:[#allocation2 + $0x98] sm:$0x1]
      %s5300 = scalar_lea.vmem %s2, 48
      %v5301 = vld [vmem:[%s5300] sm:$0xf]
      %v5302 = vld [vmem:[%s5300 + $0x4] sm:$0xf]
      %v5303 = vld [vmem:[%s5300 + $0x8] sm:$0xf]
      %v5304 = vld [vmem:[%s5300 + $0xc] sm:$0xf]
      %v5342 = vunpack.c.l.b16 %v5263
      %v5343 = vunpack.c.l.b16 %v5264
      %v5344 = vunpack.c.l.b16 %v5265
      %v5345 = vunpack.c.l.b16 %v5266
      %v5346 = vunpack.c.l.b16 %v5267
      %v5347 = vunpack.c.l.b16 %v5268
      %v5348 = vunpack.c.l.b16 %v5269
      %v5349 = vunpack.c.l.b16 %v5270
      %v5350 = vunpack.c.l.b16 %v5271
      %v5351 = vunpack.c.l.b16 %v5272
      %v5352 = vunpack.c.l.b16 %v5273
      %v5353 = vunpack.c.l.b16 %v5274
      %v5354 = vunpack.c.l.b16 %v5275
      %v5355 = vunpack.c.l.b16 %v5276
      %v5356 = vunpack.c.l.b16 %v5277
      %v5357 = vunpack.c.l.b16 %v5278
      %v5358 = vunpack.c.l.b16 %v5279
      %v5359 = vunpack.c.l.b16 %v5280
      %v5360 = vunpack.c.l.b16 %v5281
      %v5361 = vunpack.c.l.b16 %v5282
      %v5362 = vunpack.c.l.b16 %v5283
      %v5363 = vunpack.c.l.b16 %v5284
      %v5364 = vunpack.c.l.b16 %v5285
      %v5365 = vunpack.c.l.b16 %v5286
      %v5366 = vunpack.c.l.b16 %v5287
      %v5367 = vunpack.c.l.b16 %v5288
      %v5368 = vunpack.c.l.b16 %v5289
      %v5369 = vunpack.c.l.b16 %v5290
      %v5370 = vunpack.c.l.b16 %v5291
      %v5371 = vunpack.c.l.b16 %v5292
      %v5372 = vunpack.c.l.b16 %v5293
      %v5373 = vunpack.c.l.b16 %v5294
      %v5374 = vunpack.c.l.b16 %v5295
      %v5375 = vunpack.c.l.b16 %v5296
      %v5376 = vunpack.c.l.b16 %v5297
      %v5377 = vunpack.c.l.b16 %v5298
      %v5378 = vunpack.c.l.b16 %v5299
      %v5379 = vpack.c.b16 %v5343, %v5342
      %v5380 = vpack.c.b16 %v5345, %v5344
      %v5381 = vpack.c.b16 %v5347, %v5346
      %v5382 = vpack.c.b16 %v5349, %v5348
      %v5383 = vpack.c.b16 %v5351, %v5350
      %v5384 = vpack.c.b16 %v5353, %v5352
      %v5385 = vpack.c.b16 %v5355, %v5354
      %v5386 = vpack.c.b16 %v5357, %v5356
      %v5387 = vpack.c.b16 %v5359, %v5358
      %v5388 = vpack.c.b16 %v5361, %v5360
      %v5389 = vpack.c.b16 %v5363, %v5362
      %v5390 = vpack.c.b16 %v5365, %v5364
      %v5391 = vpack.c.b16 %v5367, %v5366
      %v5392 = vpack.c.b16 %v5369, %v5368
      %v5393 = vpack.c.b16 %v5371, %v5370
      %v5394 = vpack.c.b16 %v5373, %v5372
      %v5395 = vpack.c.b16 %v5375, %v5374
      %v5396 = vpack.c.b16 %v5377, %v5376
      %v5397 = vpack.c.b16 %v5378, %v5378
      %v5398 = vrot.slane %v5379, 1
      %v5399 = vrot.slane %v5380, 1
      %v5400 = vsel %vm4946, %v5398, %v5399
      %v5401 = vrot.slane %v5381, 1
      %v5402 = vsel %vm4946, %v5399, %v5401
      %v5403 = vrot.slane %v5382, 1
      %v5404 = vsel %vm4946, %v5401, %v5403
      %v5405 = vrot.slane %v5383, 1
      %v5406 = vsel %vm4946, %v5403, %v5405
      %v5407 = vrot.slane %v5384, 1
      %v5408 = vsel %vm4946, %v5405, %v5407
      %v5409 = vrot.slane %v5385, 1
      %v5410 = vsel %vm4946, %v5407, %v5409
      %v5411 = vrot.slane %v5386, 1
      %v5412 = vsel %vm4946, %v5409, %v5411
      %v5413 = vrot.slane %v5387, 1
      %v5414 = vsel %vm4946, %v5411, %v5413
      %v5415 = vrot.slane %v5388, 1
      %v5416 = vsel %vm4946, %v5413, %v5415
      %v5417 = vrot.slane %v5389, 1
      %v5418 = vsel %vm4946, %v5415, %v5417
      %v5419 = vrot.slane %v5390, 1
      %v5420 = vsel %vm4946, %v5417, %v5419
      %v5421 = vrot.slane %v5391, 1
      %v5422 = vsel %vm4946, %v5419, %v5421
      %v5423 = vrot.slane %v5392, 1
      %v5424 = vsel %vm4946, %v5421, %v5423
      %v5425 = vrot.slane %v5393, 1
      %v5426 = vsel %vm4946, %v5423, %v5425
      %v5427 = vrot.slane %v5394, 1
      %v5428 = vsel %vm4946, %v5425, %v5427
      %v5429 = vrot.slane %v5395, 1
      %v5430 = vsel %vm4946, %v5427, %v5429
      %v5431 = vrot.slane %v5396, 1
      %v5432 = vsel %vm4946, %v5429, %v5431
      %v5433 = vrot.slane %v5397, 1
      %v5434 = vsel %vm4946, %v5431, %v5433
      %v5439 = vunpack.c.l.b16 %v5301
      %v5440 = vunpack.c.l.b16 %v5302
      %v5441 = vunpack.c.l.b16 %v5303
      %v5442 = vunpack.c.l.b16 %v5304
      %v5443 = vpack.c.b16 %v5440, %v5439
      %v5444 = vpack.c.b16 %v5442, %v5441
      %v5448 = vsel %vm641, %v5400, 0
      %v5451 = vsel %vm641, %v5402, 0
      %v5454 = vsel %vm641, %v5404, 0
      %v5457 = vsel %vm641, %v5406, 0
      %v5460 = vsel %vm641, %v5408, 0
      %v5463 = vsel %vm641, %v5410, 0
      %v5466 = vsel %vm641, %v5412, 0
      %v5469 = vsel %vm641, %v5414, 0
      %v5472 = vsel %vm641, %v5416, 0
      %v5475 = vsel %vm641, %v5418, 0
      %v5478 = vsel %vm641, %v5420, 0
      %v5481 = vsel %vm641, %v5422, 0
      %v5484 = vsel %vm641, %v5424, 0
      %v5487 = vsel %vm641, %v5426, 0
      %v5490 = vsel %vm641, %v5428, 0
      %v5493 = vsel %vm641, %v5430, 0
      %v5496 = vsel %vm641, %v5432, 0
      %v5499 = vsel %vm641, %v5434, 0
      %5501 = vmatprep.subr.bf16.mxu0 0
      %5502 = vmatpush1.bf16.msra.mxu0 0
      %5503 = vmatprep.subr.bf16.mxu0 0
      %5504 = vmatpush1.bf16.msra.mxu0 0
      %5505 = vmatprep.subr.bf16.mxu0 0
      %5506 = vmatpush1.bf16.msra.mxu0 0
      %5507 = vmatprep.subr.bf16.mxu0 0
      %5508 = vmatpush1.bf16.msra.mxu0 0
      %5509 = vmatprep.subr.bf16.mxu0 0
      %5510 = vmatpush1.bf16.msra.mxu0 0
      %5511 = vmatprep.subr.bf16.mxu0 0
      %5512 = vmatpush1.bf16.msra.mxu0 0
      %5513 = vmatprep.subr.bf16.mxu0 0
      %5514 = vmatpush1.bf16.msra.mxu0 %v5444
      %5515 = vmatprep.subr.bf16.mxu0 0
      %5516 = vmatpush1.bf16.msra.mxu0 %v5443
      %5517 = vmatprep.subr.bf16.mxu0 0
      %5518 = vmatpush2.bf16.msra.mxu0 0
      %5519 = vmatprep.subr.bf16.mxu0 0
      %5520 = vmatpush2.bf16.msra.mxu0 0
      %5521 = vmatprep.subr.bf16.mxu0 0
      %5522 = vmatpush2.bf16.msra.mxu0 0
      %5523 = vmatprep.subr.bf16.mxu0 0
      %5524 = vmatpush2.bf16.msra.mxu0 0
      %5525 = vmatprep.subr.bf16.mxu0 0
      %5526 = vmatpush2.bf16.msra.mxu0 0
      %5527 = vmatprep.subr.bf16.mxu0 0
      %5528 = vmatpush2.bf16.msra.mxu0 0
      %5529 = vmatprep.subr.bf16.mxu0 0
      %5530 = vmatpush2.bf16.msra.mxu0 0
      %5531 = vmatprep.subr.bf16.mxu0 0
      %5532 = vmatpush2.bf16.msra.mxu0 0
      %5533 = vmatprep.mubr.bf16.mxu0 0
      %5534 = vmatmul.mubr.bf16.gmra.mxu0 %v5448
      %v5535 = vpop.f32.mrf.mxu0
      %v5536 = vadd.f32 0.0, %v5535
      %v5537 = vpop.f32.mrf.mxu0
      %v5538 = vpop.f32.mrf.mxu0
      %v5539 = vadd.f32 0.0, %v5538
      %v5540 = vpop.f32.mrf.mxu0
      %5541 = vmatprep.mubr.bf16.mxu0 0
      %5542 = vmatmul.mubr.bf16.gmra.mxu0 %v5451
      %v5543 = vpop.f32.mrf.mxu0
      %v5544 = vadd.f32 0.0, %v5543
      %v5545 = vpop.f32.mrf.mxu0
      %v5546 = vpop.f32.mrf.mxu0
      %v5547 = vadd.f32 0.0, %v5546
      %v5548 = vpop.f32.mrf.mxu0
      %5549 = vmatprep.mubr.bf16.mxu0 0
      %5550 = vmatmul.mubr.bf16.gmra.mxu0 %v5454
      %v5551 = vpop.f32.mrf.mxu0
      %v5552 = vadd.f32 0.0, %v5551
      %v5553 = vpop.f32.mrf.mxu0
      %v5554 = vpop.f32.mrf.mxu0
      %v5555 = vadd.f32 0.0, %v5554
      %v5556 = vpop.f32.mrf.mxu0
      %5557 = vmatprep.mubr.bf16.mxu0 0
      %5558 = vmatmul.mubr.bf16.gmra.mxu0 %v5457
      %v5559 = vpop.f32.mrf.mxu0
      %v5560 = vadd.f32 0.0, %v5559
      %v5561 = vpop.f32.mrf.mxu0
      %v5562 = vpop.f32.mrf.mxu0
      %v5563 = vadd.f32 0.0, %v5562
      %v5564 = vpop.f32.mrf.mxu0
      %5565 = vmatprep.mubr.bf16.mxu0 0
      %5566 = vmatmul.mubr.bf16.gmra.mxu0 %v5460
      %v5567 = vpop.f32.mrf.mxu0
      %v5568 = vadd.f32 0.0, %v5567
      %v5569 = vpop.f32.mrf.mxu0
      %v5570 = vpop.f32.mrf.mxu0
      %v5571 = vadd.f32 0.0, %v5570
      %v5572 = vpop.f32.mrf.mxu0
      %5573 = vmatprep.mubr.bf16.mxu0 0
      %5574 = vmatmul.mubr.bf16.gmra.mxu0 %v5463
      %v5575 = vpop.f32.mrf.mxu0
      %v5576 = vadd.f32 0.0, %v5575
      %v5577 = vpop.f32.mrf.mxu0
      %v5578 = vpop.f32.mrf.mxu0
      %v5579 = vadd.f32 0.0, %v5578
      %v5580 = vpop.f32.mrf.mxu0
      %5581 = vmatprep.mubr.bf16.mxu0 0
      %5582 = vmatmul.mubr.bf16.gmra.mxu0 %v5466
      %v5583 = vpop.f32.mrf.mxu0
      %v5584 = vadd.f32 0.0, %v5583
      %v5585 = vpop.f32.mrf.mxu0
      %v5586 = vpop.f32.mrf.mxu0
      %v5587 = vadd.f32 0.0, %v5586
      %v5588 = vpop.f32.mrf.mxu0
      %5589 = vmatprep.mubr.bf16.mxu0 0
      %5590 = vmatmul.mubr.bf16.gmra.mxu0 %v5469
      %v5591 = vpop.f32.mrf.mxu0
      %v5592 = vadd.f32 0.0, %v5591
      %v5593 = vpop.f32.mrf.mxu0
      %v5594 = vpop.f32.mrf.mxu0
      %v5595 = vadd.f32 0.0, %v5594
      %v5596 = vpop.f32.mrf.mxu0
      %5597 = vmatprep.mubr.bf16.mxu0 0
      %5598 = vmatmul.mubr.bf16.gmra.mxu0 %v5472
      %v5599 = vpop.f32.mrf.mxu0
      %v5600 = vadd.f32 0.0, %v5599
      %v5601 = vpop.f32.mrf.mxu0
      %v5602 = vpop.f32.mrf.mxu0
      %v5603 = vadd.f32 0.0, %v5602
      %v5604 = vpop.f32.mrf.mxu0
      %5605 = vmatprep.mubr.bf16.mxu0 0
      %5606 = vmatmul.mubr.bf16.gmra.mxu0 %v5475
      %v5607 = vpop.f32.mrf.mxu0
      %v5608 = vadd.f32 0.0, %v5607
      %v5609 = vpop.f32.mrf.mxu0
      %v5610 = vpop.f32.mrf.mxu0
      %v5611 = vadd.f32 0.0, %v5610
      %v5612 = vpop.f32.mrf.mxu0
      %5613 = vmatprep.mubr.bf16.mxu0 0
      %5614 = vmatmul.mubr.bf16.gmra.mxu0 %v5478
      %v5615 = vpop.f32.mrf.mxu0
      %v5616 = vadd.f32 0.0, %v5615
      %v5617 = vpop.f32.mrf.mxu0
      %v5618 = vpop.f32.mrf.mxu0
      %v5619 = vadd.f32 0.0, %v5618
      %v5620 = vpop.f32.mrf.mxu0
      %5621 = vmatprep.mubr.bf16.mxu0 0
      %5622 = vmatmul.mubr.bf16.gmra.mxu0 %v5481
      %v5623 = vpop.f32.mrf.mxu0
      %v5624 = vadd.f32 0.0, %v5623
      %v5625 = vpop.f32.mrf.mxu0
      %v5626 = vpop.f32.mrf.mxu0
      %v5627 = vadd.f32 0.0, %v5626
      %v5628 = vpop.f32.mrf.mxu0
      %5629 = vmatprep.mubr.bf16.mxu0 0
      %5630 = vmatmul.mubr.bf16.gmra.mxu0 %v5484
      %v5631 = vpop.f32.mrf.mxu0
      %v5632 = vadd.f32 0.0, %v5631
      %v5633 = vpop.f32.mrf.mxu0
      %v5634 = vpop.f32.mrf.mxu0
      %v5635 = vadd.f32 0.0, %v5634
      %v5636 = vpop.f32.mrf.mxu0
      %5637 = vmatprep.mubr.bf16.mxu0 0
      %5638 = vmatmul.mubr.bf16.gmra.mxu0 %v5487
      %v5639 = vpop.f32.mrf.mxu0
      %v5640 = vadd.f32 0.0, %v5639
      %v5641 = vpop.f32.mrf.mxu0
      %v5642 = vpop.f32.mrf.mxu0
      %v5643 = vadd.f32 0.0, %v5642
      %v5644 = vpop.f32.mrf.mxu0
      %5645 = vmatprep.mubr.bf16.mxu0 0
      %5646 = vmatmul.mubr.bf16.gmra.mxu0 %v5490
      %v5647 = vpop.f32.mrf.mxu0
      %v5648 = vadd.f32 0.0, %v5647
      %v5649 = vpop.f32.mrf.mxu0
      %v5650 = vpop.f32.mrf.mxu0
      %v5651 = vadd.f32 0.0, %v5650
      %v5652 = vpop.f32.mrf.mxu0
      %5653 = vmatprep.mubr.bf16.mxu0 0
      %5654 = vmatmul.mubr.bf16.gmra.mxu0 %v5493
      %v5655 = vpop.f32.mrf.mxu0
      %v5656 = vadd.f32 0.0, %v5655
      %v5657 = vpop.f32.mrf.mxu0
      %v5658 = vpop.f32.mrf.mxu0
      %v5659 = vadd.f32 0.0, %v5658
      %v5660 = vpop.f32.mrf.mxu0
      %5661 = vmatprep.mubr.bf16.mxu0 0
      %5662 = vmatmul.mubr.bf16.gmra.mxu0 %v5496
      %v5663 = vpop.f32.mrf.mxu0
      %v5664 = vadd.f32 0.0, %v5663
      %v5665 = vpop.f32.mrf.mxu0
      %v5666 = vpop.f32.mrf.mxu0
      %v5667 = vadd.f32 0.0, %v5666
      %v5668 = vpop.f32.mrf.mxu0
      %5669 = vmatprep.mubr.bf16.mxu0 0
      %5670 = vmatmul.mubr.bf16.gmra.mxu0 %v5499
      %v5671 = vpop.f32.mrf.mxu0
      %v5672 = vadd.f32 0.0, %v5671
      %v5673 = vpop.f32.mrf.mxu0
      %v5674 = vpop.f32.mrf.mxu0
      %v5675 = vadd.f32 0.0, %v5674
      %v5676 = vpop.f32.mrf.mxu0
      %5677 = vdwg.mxu0
      %v5678 = vadd.f32 %v5227, %v5536
      %v5679 = vadd.f32 %v5228, %v5539
      %v5680 = vadd.f32 %v5229, %v5544
      %v5681 = vadd.f32 %v5230, %v5547
      %v5682 = vadd.f32 %v5231, %v5552
      %v5683 = vadd.f32 %v5232, %v5555
      %v5684 = vadd.f32 %v5233, %v5560
      %v5685 = vadd.f32 %v5234, %v5563
      %v5686 = vadd.f32 %v5235, %v5568
      %v5687 = vadd.f32 %v5236, %v5571
      %v5688 = vadd.f32 %v5237, %v5576
      %v5689 = vadd.f32 %v5238, %v5579
      %v5690 = vadd.f32 %v5239, %v5584
      %v5691 = vadd.f32 %v5240, %v5587
      %v5692 = vadd.f32 %v5241, %v5592
      %v5693 = vadd.f32 %v5242, %v5595
      %v5694 = vadd.f32 %v5243, %v5600
      %v5695 = vadd.f32 %v5244, %v5603
      %v5696 = vadd.f32 %v5245, %v5608
      %v5697 = vadd.f32 %v5246, %v5611
      %v5698 = vadd.f32 %v5247, %v5616
      %v5699 = vadd.f32 %v5248, %v5619
      %v5700 = vadd.f32 %v5249, %v5624
      %v5701 = vadd.f32 %v5250, %v5627
      %v5702 = vadd.f32 %v5251, %v5632
      %v5703 = vadd.f32 %v5252, %v5635
      %v5704 = vadd.f32 %v5253, %v5640
      %v5705 = vadd.f32 %v5254, %v5643
      %v5706 = vadd.f32 %v5255, %v5648
      %v5707 = vadd.f32 %v5256, %v5651
      %v5708 = vadd.f32 %v5257, %v5656
      %v5709 = vadd.f32 %v5258, %v5659
      %v5710 = vadd.f32 %v5259, %v5664
      %v5711 = vadd.f32 %v5260, %v5667
      %v5712 = vadd.f32 %v5261, %v5672
      %v5713 = vadd.f32 %v5262, %v5675
      %v5714 = vld [vmem:[#allocation2 + $0x98] sm:$0x3]
      %s5715 = scalar_lea.vmem %s2, 64
      %v5716 = vld [vmem:[%s5715] sm:$0xf]
      %v5717 = vld [vmem:[%s5715 + $0x4] sm:$0xf]
      %v5718 = vld [vmem:[%s5715 + $0x8] sm:$0xf]
      %v5719 = vld [vmem:[%s5715 + $0xc] sm:$0xf]
      %v5721 = vunpack.c.l.b16 %v5714
      %v5722 = vpack.c.b16 %v5721, %v5721
      %vm5723 = vsmask.f32 6400
      %v5725 = vshrl.u32 %v5379, 16
      %v5727 = vrot.slane %v5725, 1
      %v5728 = vshll.u32 %v5379, 16
      %v5730 = vrot.slane %v5728, 2
      %v5731 = vor.u32 %v5727, %v5730
      %v5733 = vshrl.u32 %v5380, 16
      %v5735 = vrot.slane %v5733, 1
      %v5736 = vshll.u32 %v5380, 16
      %v5738 = vrot.slane %v5736, 2
      %v5739 = vor.u32 %v5735, %v5738
      %v5740 = vsel %vm5723, %v5731, %v5739
      %v5742 = vshrl.u32 %v5381, 16
      %v5744 = vrot.slane %v5742, 1
      %v5745 = vshll.u32 %v5381, 16
      %v5747 = vrot.slane %v5745, 2
      %v5748 = vor.u32 %v5744, %v5747
      %v5749 = vsel %vm5723, %v5739, %v5748
      %v5751 = vshrl.u32 %v5382, 16
      %v5753 = vrot.slane %v5751, 1
      %v5754 = vshll.u32 %v5382, 16
      %v5756 = vrot.slane %v5754, 2
      %v5757 = vor.u32 %v5753, %v5756
      %v5758 = vsel %vm5723, %v5748, %v5757
      %v5760 = vshrl.u32 %v5383, 16
      %v5762 = vrot.slane %v5760, 1
      %v5763 = vshll.u32 %v5383, 16
      %v5765 = vrot.slane %v5763, 2
      %v5766 = vor.u32 %v5762, %v5765
      %v5767 = vsel %vm5723, %v5757, %v5766
      %v5769 = vshrl.u32 %v5384, 16
      %v5771 = vrot.slane %v5769, 1
      %v5772 = vshll.u32 %v5384, 16
      %v5774 = vrot.slane %v5772, 2
      %v5775 = vor.u32 %v5771, %v5774
      %v5776 = vsel %vm5723, %v5766, %v5775
      %v5778 = vshrl.u32 %v5385, 16
      %v5780 = vrot.slane %v5778, 1
      %v5781 = vshll.u32 %v5385, 16
      %v5783 = vrot.slane %v5781, 2
      %v5784 = vor.u32 %v5780, %v5783
      %v5785 = vsel %vm5723, %v5775, %v5784
      %v5787 = vshrl.u32 %v5386, 16
      %v5789 = vrot.slane %v5787, 1
      %v5790 = vshll.u32 %v5386, 16
      %v5792 = vrot.slane %v5790, 2
      %v5793 = vor.u32 %v5789, %v5792
      %v5794 = vsel %vm5723, %v5784, %v5793
      %v5796 = vshrl.u32 %v5387, 16
      %v5798 = vrot.slane %v5796, 1
      %v5799 = vshll.u32 %v5387, 16
      %v5801 = vrot.slane %v5799, 2
      %v5802 = vor.u32 %v5798, %v5801
      %v5803 = vsel %vm5723, %v5793, %v5802
      %v5805 = vshrl.u32 %v5388, 16
      %v5807 = vrot.slane %v5805, 1
      %v5808 = vshll.u32 %v5388, 16
      %v5810 = vrot.slane %v5808, 2
      %v5811 = vor.u32 %v5807, %v5810
      %v5812 = vsel %vm5723, %v5802, %v5811
      %v5814 = vshrl.u32 %v5389, 16
      %v5816 = vrot.slane %v5814, 1
      %v5817 = vshll.u32 %v5389, 16
      %v5819 = vrot.slane %v5817, 2
      %v5820 = vor.u32 %v5816, %v5819
      %v5821 = vsel %vm5723, %v5811, %v5820
      %v5823 = vshrl.u32 %v5390, 16
      %v5825 = vrot.slane %v5823, 1
      %v5826 = vshll.u32 %v5390, 16
      %v5828 = vrot.slane %v5826, 2
      %v5829 = vor.u32 %v5825, %v5828
      %v5830 = vsel %vm5723, %v5820, %v5829
      %v5832 = vshrl.u32 %v5391, 16
      %v5834 = vrot.slane %v5832, 1
      %v5835 = vshll.u32 %v5391, 16
      %v5837 = vrot.slane %v5835, 2
      %v5838 = vor.u32 %v5834, %v5837
      %v5839 = vsel %vm5723, %v5829, %v5838
      %v5841 = vshrl.u32 %v5392, 16
      %v5843 = vrot.slane %v5841, 1
      %v5844 = vshll.u32 %v5392, 16
      %v5846 = vrot.slane %v5844, 2
      %v5847 = vor.u32 %v5843, %v5846
      %v5848 = vsel %vm5723, %v5838, %v5847
      %v5850 = vshrl.u32 %v5393, 16
      %v5852 = vrot.slane %v5850, 1
      %v5853 = vshll.u32 %v5393, 16
      %v5855 = vrot.slane %v5853, 2
      %v5856 = vor.u32 %v5852, %v5855
      %v5857 = vsel %vm5723, %v5847, %v5856
      %v5859 = vshrl.u32 %v5394, 16
      %v5861 = vrot.slane %v5859, 1
      %v5862 = vshll.u32 %v5394, 16
      %v5864 = vrot.slane %v5862, 2
      %v5865 = vor.u32 %v5861, %v5864
      %v5866 = vsel %vm5723, %v5856, %v5865
      %v5868 = vshrl.u32 %v5395, 16
      %v5870 = vrot.slane %v5868, 1
      %v5871 = vshll.u32 %v5395, 16
      %v5873 = vrot.slane %v5871, 2
      %v5874 = vor.u32 %v5870, %v5873
      %v5875 = vsel %vm5723, %v5865, %v5874
      %v5877 = vshrl.u32 %v5396, 16
      %v5879 = vrot.slane %v5877, 1
      %v5880 = vshll.u32 %v5396, 16
      %v5882 = vrot.slane %v5880, 2
      %v5883 = vor.u32 %v5879, %v5882
      %v5884 = vsel %vm5723, %v5874, %v5883
      %v5886 = vshrl.u32 %v5722, 16
      %v5888 = vrot.slane %v5886, 1
      %v5889 = vshll.u32 %v5722, 16
      %v5891 = vrot.slane %v5889, 2
      %v5892 = vor.u32 %v5888, %v5891
      %v5893 = vsel %vm5723, %v5883, %v5892
      %v5898 = vunpack.c.l.b16 %v5716
      %v5899 = vunpack.c.l.b16 %v5717
      %v5900 = vunpack.c.l.b16 %v5718
      %v5901 = vunpack.c.l.b16 %v5719
      %v5902 = vpack.c.b16 %v5899, %v5898
      %v5903 = vpack.c.b16 %v5901, %v5900
      %v5907 = vsel %vm641, %v5740, 0
      %v5910 = vsel %vm641, %v5749, 0
      %v5913 = vsel %vm641, %v5758, 0
      %v5916 = vsel %vm641, %v5767, 0
      %v5919 = vsel %vm641, %v5776, 0
      %v5922 = vsel %vm641, %v5785, 0
      %v5925 = vsel %vm641, %v5794, 0
      %v5928 = vsel %vm641, %v5803, 0
      %v5931 = vsel %vm641, %v5812, 0
      %v5934 = vsel %vm641, %v5821, 0
      %v5937 = vsel %vm641, %v5830, 0
      %v5940 = vsel %vm641, %v5839, 0
      %v5943 = vsel %vm641, %v5848, 0
      %v5946 = vsel %vm641, %v5857, 0
      %v5949 = vsel %vm641, %v5866, 0
      %v5952 = vsel %vm641, %v5875, 0
      %v5955 = vsel %vm641, %v5884, 0
      %v5958 = vsel %vm641, %v5893, 0
      %5960 = vmatprep.subr.bf16.mxu0 0
      %5961 = vmatpush1.bf16.msra.mxu0 0
      %5962 = vmatprep.subr.bf16.mxu0 0
      %5963 = vmatpush1.bf16.msra.mxu0 0
      %5964 = vmatprep.subr.bf16.mxu0 0
      %5965 = vmatpush1.bf16.msra.mxu0 0
      %5966 = vmatprep.subr.bf16.mxu0 0
      %5967 = vmatpush1.bf16.msra.mxu0 0
      %5968 = vmatprep.subr.bf16.mxu0 0
      %5969 = vmatpush1.bf16.msra.mxu0 0
      %5970 = vmatprep.subr.bf16.mxu0 0
      %5971 = vmatpush1.bf16.msra.mxu0 0
      %5972 = vmatprep.subr.bf16.mxu0 0
      %5973 = vmatpush1.bf16.msra.mxu0 %v5903
      %5974 = vmatprep.subr.bf16.mxu0 0
      %5975 = vmatpush1.bf16.msra.mxu0 %v5902
      %5976 = vmatprep.subr.bf16.mxu0 0
      %5977 = vmatpush2.bf16.msra.mxu0 0
      %5978 = vmatprep.subr.bf16.mxu0 0
      %5979 = vmatpush2.bf16.msra.mxu0 0
      %5980 = vmatprep.subr.bf16.mxu0 0
      %5981 = vmatpush2.bf16.msra.mxu0 0
      %5982 = vmatprep.subr.bf16.mxu0 0
      %5983 = vmatpush2.bf16.msra.mxu0 0
      %5984 = vmatprep.subr.bf16.mxu0 0
      %5985 = vmatpush2.bf16.msra.mxu0 0
      %5986 = vmatprep.subr.bf16.mxu0 0
      %5987 = vmatpush2.bf16.msra.mxu0 0
      %5988 = vmatprep.subr.bf16.mxu0 0
      %5989 = vmatpush2.bf16.msra.mxu0 0
      %5990 = vmatprep.subr.bf16.mxu0 0
      %5991 = vmatpush2.bf16.msra.mxu0 0
      %5992 = vmatprep.mubr.bf16.mxu0 0
      %5993 = vmatmul.mubr.bf16.gmra.mxu0 %v5907
      %v5994 = vpop.f32.mrf.mxu0
      %v5995 = vadd.f32 0.0, %v5994
      %v5996 = vpop.f32.mrf.mxu0
      %v5997 = vpop.f32.mrf.mxu0
      %v5998 = vadd.f32 0.0, %v5997
      %v5999 = vpop.f32.mrf.mxu0
      %6000 = vmatprep.mubr.bf16.mxu0 0
      %6001 = vmatmul.mubr.bf16.gmra.mxu0 %v5910
      %v6002 = vpop.f32.mrf.mxu0
      %v6003 = vadd.f32 0.0, %v6002
      %v6004 = vpop.f32.mrf.mxu0
      %v6005 = vpop.f32.mrf.mxu0
      %v6006 = vadd.f32 0.0, %v6005
      %v6007 = vpop.f32.mrf.mxu0
      %6008 = vmatprep.mubr.bf16.mxu0 0
      %6009 = vmatmul.mubr.bf16.gmra.mxu0 %v5913
      %v6010 = vpop.f32.mrf.mxu0
      %v6011 = vadd.f32 0.0, %v6010
      %v6012 = vpop.f32.mrf.mxu0
      %v6013 = vpop.f32.mrf.mxu0
      %v6014 = vadd.f32 0.0, %v6013
      %v6015 = vpop.f32.mrf.mxu0
      %6016 = vmatprep.mubr.bf16.mxu0 0
      %6017 = vmatmul.mubr.bf16.gmra.mxu0 %v5916
      %v6018 = vpop.f32.mrf.mxu0
      %v6019 = vadd.f32 0.0, %v6018
      %v6020 = vpop.f32.mrf.mxu0
      %v6021 = vpop.f32.mrf.mxu0
      %v6022 = vadd.f32 0.0, %v6021
      %v6023 = vpop.f32.mrf.mxu0
      %6024 = vmatprep.mubr.bf16.mxu0 0
      %6025 = vmatmul.mubr.bf16.gmra.mxu0 %v5919
      %v6026 = vpop.f32.mrf.mxu0
      %v6027 = vadd.f32 0.0, %v6026
      %v6028 = vpop.f32.mrf.mxu0
      %v6029 = vpop.f32.mrf.mxu0
      %v6030 = vadd.f32 0.0, %v6029
      %v6031 = vpop.f32.mrf.mxu0
      %6032 = vmatprep.mubr.bf16.mxu0 0
      %6033 = vmatmul.mubr.bf16.gmra.mxu0 %v5922
      %v6034 = vpop.f32.mrf.mxu0
      %v6035 = vadd.f32 0.0, %v6034
      %v6036 = vpop.f32.mrf.mxu0
      %v6037 = vpop.f32.mrf.mxu0
      %v6038 = vadd.f32 0.0, %v6037
      %v6039 = vpop.f32.mrf.mxu0
      %6040 = vmatprep.mubr.bf16.mxu0 0
      %6041 = vmatmul.mubr.bf16.gmra.mxu0 %v5925
      %v6042 = vpop.f32.mrf.mxu0
      %v6043 = vadd.f32 0.0, %v6042
      %v6044 = vpop.f32.mrf.mxu0
      %v6045 = vpop.f32.mrf.mxu0
      %v6046 = vadd.f32 0.0, %v6045
      %v6047 = vpop.f32.mrf.mxu0
      %6048 = vmatprep.mubr.bf16.mxu0 0
      %6049 = vmatmul.mubr.bf16.gmra.mxu0 %v5928
      %v6050 = vpop.f32.mrf.mxu0
      %v6051 = vadd.f32 0.0, %v6050
      %v6052 = vpop.f32.mrf.mxu0
      %v6053 = vpop.f32.mrf.mxu0
      %v6054 = vadd.f32 0.0, %v6053
      %v6055 = vpop.f32.mrf.mxu0
      %6056 = vmatprep.mubr.bf16.mxu0 0
      %6057 = vmatmul.mubr.bf16.gmra.mxu0 %v5931
      %v6058 = vpop.f32.mrf.mxu0
      %v6059 = vadd.f32 0.0, %v6058
      %v6060 = vpop.f32.mrf.mxu0
      %v6061 = vpop.f32.mrf.mxu0
      %v6062 = vadd.f32 0.0, %v6061
      %v6063 = vpop.f32.mrf.mxu0
      %6064 = vmatprep.mubr.bf16.mxu0 0
      %6065 = vmatmul.mubr.bf16.gmra.mxu0 %v5934
      %v6066 = vpop.f32.mrf.mxu0
      %v6067 = vadd.f32 0.0, %v6066
      %v6068 = vpop.f32.mrf.mxu0
      %v6069 = vpop.f32.mrf.mxu0
      %v6070 = vadd.f32 0.0, %v6069
      %v6071 = vpop.f32.mrf.mxu0
      %6072 = vmatprep.mubr.bf16.mxu0 0
      %6073 = vmatmul.mubr.bf16.gmra.mxu0 %v5937
      %v6074 = vpop.f32.mrf.mxu0
      %v6075 = vadd.f32 0.0, %v6074
      %v6076 = vpop.f32.mrf.mxu0
      %v6077 = vpop.f32.mrf.mxu0
      %v6078 = vadd.f32 0.0, %v6077
      %v6079 = vpop.f32.mrf.mxu0
      %6080 = vmatprep.mubr.bf16.mxu0 0
      %6081 = vmatmul.mubr.bf16.gmra.mxu0 %v5940
      %v6082 = vpop.f32.mrf.mxu0
      %v6083 = vadd.f32 0.0, %v6082
      %v6084 = vpop.f32.mrf.mxu0
      %v6085 = vpop.f32.mrf.mxu0
      %v6086 = vadd.f32 0.0, %v6085
      %v6087 = vpop.f32.mrf.mxu0
      %6088 = vmatprep.mubr.bf16.mxu0 0
      %6089 = vmatmul.mubr.bf16.gmra.mxu0 %v5943
      %v6090 = vpop.f32.mrf.mxu0
      %v6091 = vadd.f32 0.0, %v6090
      %v6092 = vpop.f32.mrf.mxu0
      %v6093 = vpop.f32.mrf.mxu0
      %v6094 = vadd.f32 0.0, %v6093
      %v6095 = vpop.f32.mrf.mxu0
      %6096 = vmatprep.mubr.bf16.mxu0 0
      %6097 = vmatmul.mubr.bf16.gmra.mxu0 %v5946
      %v6098 = vpop.f32.mrf.mxu0
      %v6099 = vadd.f32 0.0, %v6098
      %v6100 = vpop.f32.mrf.mxu0
      %v6101 = vpop.f32.mrf.mxu0
      %v6102 = vadd.f32 0.0, %v6101
      %v6103 = vpop.f32.mrf.mxu0
      %6104 = vmatprep.mubr.bf16.mxu0 0
      %6105 = vmatmul.mubr.bf16.gmra.mxu0 %v5949
      %v6106 = vpop.f32.mrf.mxu0
      %v6107 = vadd.f32 0.0, %v6106
      %v6108 = vpop.f32.mrf.mxu0
      %v6109 = vpop.f32.mrf.mxu0
      %v6110 = vadd.f32 0.0, %v6109
      %v6111 = vpop.f32.mrf.mxu0
      %6112 = vmatprep.mubr.bf16.mxu0 0
      %6113 = vmatmul.mubr.bf16.gmra.mxu0 %v5952
      %v6114 = vpop.f32.mrf.mxu0
      %v6115 = vadd.f32 0.0, %v6114
      %v6116 = vpop.f32.mrf.mxu0
      %v6117 = vpop.f32.mrf.mxu0
      %v6118 = vadd.f32 0.0, %v6117
      %v6119 = vpop.f32.mrf.mxu0
      %6120 = vmatprep.mubr.bf16.mxu0 0
      %6121 = vmatmul.mubr.bf16.gmra.mxu0 %v5955
      %v6122 = vpop.f32.mrf.mxu0
      %v6123 = vadd.f32 0.0, %v6122
      %v6124 = vpop.f32.mrf.mxu0
      %v6125 = vpop.f32.mrf.mxu0
      %v6126 = vadd.f32 0.0, %v6125
      %v6127 = vpop.f32.mrf.mxu0
      %6128 = vmatprep.mubr.bf16.mxu0 0
      %6129 = vmatmul.mubr.bf16.gmra.mxu0 %v5958
      %v6130 = vpop.f32.mrf.mxu0
      %v6131 = vadd.f32 0.0, %v6130
      %v6132 = vpop.f32.mrf.mxu0
      %v6133 = vpop.f32.mrf.mxu0
      %v6134 = vadd.f32 0.0, %v6133
      %v6135 = vpop.f32.mrf.mxu0
      %6136 = vdwg.mxu0
      %v6137 = vadd.f32 %v5678, %v5995
      %v6138 = vadd.f32 %v5679, %v5998
      %v6139 = vadd.f32 %v5680, %v6003
      %v6140 = vadd.f32 %v5681, %v6006
      %v6141 = vadd.f32 %v5682, %v6011
      %v6142 = vadd.f32 %v5683, %v6014
      %v6143 = vadd.f32 %v5684, %v6019
      %v6144 = vadd.f32 %v5685, %v6022
      %v6145 = vadd.f32 %v5686, %v6027
      %v6146 = vadd.f32 %v5687, %v6030
      %v6147 = vadd.f32 %v5688, %v6035
      %v6148 = vadd.f32 %v5689, %v6038
      %v6149 = vadd.f32 %v5690, %v6043
      %v6150 = vadd.f32 %v5691, %v6046
      %v6151 = vadd.f32 %v5692, %v6051
      %v6152 = vadd.f32 %v5693, %v6054
      %v6153 = vadd.f32 %v5694, %v6059
      %v6154 = vadd.f32 %v5695, %v6062
      %v6155 = vadd.f32 %v5696, %v6067
      %v6156 = vadd.f32 %v5697, %v6070
      %v6157 = vadd.f32 %v5698, %v6075
      %v6158 = vadd.f32 %v5699, %v6078
      %v6159 = vadd.f32 %v5700, %v6083
      %v6160 = vadd.f32 %v5701, %v6086
      %v6161 = vadd.f32 %v5702, %v6091
      %v6162 = vadd.f32 %v5703, %v6094
      %v6163 = vadd.f32 %v5704, %v6099
      %v6164 = vadd.f32 %v5705, %v6102
      %v6165 = vadd.f32 %v5706, %v6107
      %v6166 = vadd.f32 %v5707, %v6110
      %v6167 = vadd.f32 %v5708, %v6115
      %v6168 = vadd.f32 %v5709, %v6118
      %v6169 = vadd.f32 %v5710, %v6123
      %v6170 = vadd.f32 %v5711, %v6126
      %v6171 = vadd.f32 %v5712, %v6131
      %v6172 = vadd.f32 %v5713, %v6134
      %v6173 = vld [vmem:[#allocation2 + $0x8] sm:$0xc]
      %s6174 = scalar_lea.vmem %s2, 80
      %v6175 = vld [vmem:[%s6174] sm:$0xf]
      %v6176 = vld [vmem:[%s6174 + $0x4] sm:$0xf]
      %v6177 = vld [vmem:[%s6174 + $0x8] sm:$0xf]
      %v6178 = vld [vmem:[%s6174 + $0xc] sm:$0xf]
      %v6180 = vunpack.c.l.b16 %v6173
      %v6181 = vpack.c.b16 %v5343, %v6180
      %vm6182 = vcmask 1045504
      %v6183 = vrot.slane %v6181, 2
      %v6184 = vrot.slane %v5380, 2
      %v6185 = vsel %vm6182, %v6183, %v6184
      %v6186 = vrot.slane %v5381, 2
      %v6187 = vsel %vm6182, %v6184, %v6186
      %v6188 = vrot.slane %v5382, 2
      %v6189 = vsel %vm6182, %v6186, %v6188
      %v6190 = vrot.slane %v5383, 2
      %v6191 = vsel %vm6182, %v6188, %v6190
      %v6192 = vrot.slane %v5384, 2
      %v6193 = vsel %vm6182, %v6190, %v6192
      %v6194 = vrot.slane %v5385, 2
      %v6195 = vsel %vm6182, %v6192, %v6194
      %v6196 = vrot.slane %v5386, 2
      %v6197 = vsel %vm6182, %v6194, %v6196
      %v6198 = vrot.slane %v5387, 2
      %v6199 = vsel %vm6182, %v6196, %v6198
      %v6200 = vrot.slane %v5388, 2
      %v6201 = vsel %vm6182, %v6198, %v6200
      %v6202 = vrot.slane %v5389, 2
      %v6203 = vsel %vm6182, %v6200, %v6202
      %v6204 = vrot.slane %v5390, 2
      %v6205 = vsel %vm6182, %v6202, %v6204
      %v6206 = vrot.slane %v5391, 2
      %v6207 = vsel %vm6182, %v6204, %v6206
      %v6208 = vrot.slane %v5392, 2
      %v6209 = vsel %vm6182, %v6206, %v6208
      %v6210 = vrot.slane %v5393, 2
      %v6211 = vsel %vm6182, %v6208, %v6210
      %v6212 = vrot.slane %v5394, 2
      %v6213 = vsel %vm6182, %v6210, %v6212
      %v6214 = vrot.slane %v5395, 2
      %v6215 = vsel %vm6182, %v6212, %v6214
      %v6216 = vrot.slane %v5396, 2
      %v6217 = vsel %vm6182, %v6214, %v6216
      %v6218 = vrot.slane %v5722, 2
      %v6219 = vsel %vm6182, %v6216, %v6218
      %v6224 = vunpack.c.l.b16 %v6175
      %v6225 = vunpack.c.l.b16 %v6176
      %v6226 = vunpack.c.l.b16 %v6177
      %v6227 = vunpack.c.l.b16 %v6178
      %v6228 = vpack.c.b16 %v6225, %v6224
      %v6229 = vpack.c.b16 %v6227, %v6226
      %v6233 = vsel %vm641, %v6185, 0
      %v6236 = vsel %vm641, %v6187, 0
      %v6239 = vsel %vm641, %v6189, 0
      %v6242 = vsel %vm641, %v6191, 0
      %v6245 = vsel %vm641, %v6193, 0
      %v6248 = vsel %vm641, %v6195, 0
      %v6251 = vsel %vm641, %v6197, 0
      %v6254 = vsel %vm641, %v6199, 0
      %v6257 = vsel %vm641, %v6201, 0
      %v6260 = vsel %vm641, %v6203, 0
      %v6263 = vsel %vm641, %v6205, 0
      %v6266 = vsel %vm641, %v6207, 0
      %v6269 = vsel %vm641, %v6209, 0
      %v6272 = vsel %vm641, %v6211, 0
      %v6275 = vsel %vm641, %v6213, 0
      %v6278 = vsel %vm641, %v6215, 0
      %v6281 = vsel %vm641, %v6217, 0
      %v6284 = vsel %vm641, %v6219, 0
      %6286 = vmatprep.subr.bf16.mxu0 0
      %6287 = vmatpush1.bf16.msra.mxu0 0
      %6288 = vmatprep.subr.bf16.mxu0 0
      %6289 = vmatpush1.bf16.msra.mxu0 0
      %6290 = vmatprep.subr.bf16.mxu0 0
      %6291 = vmatpush1.bf16.msra.mxu0 0
      %6292 = vmatprep.subr.bf16.mxu0 0
      %6293 = vmatpush1.bf16.msra.mxu0 0
      %6294 = vmatprep.subr.bf16.mxu0 0
      %6295 = vmatpush1.bf16.msra.mxu0 0
      %6296 = vmatprep.subr.bf16.mxu0 0
      %6297 = vmatpush1.bf16.msra.mxu0 0
      %6298 = vmatprep.subr.bf16.mxu0 0
      %6299 = vmatpush1.bf16.msra.mxu0 %v6229
      %6300 = vmatprep.subr.bf16.mxu0 0
      %6301 = vmatpush1.bf16.msra.mxu0 %v6228
      %6302 = vmatprep.subr.bf16.mxu0 0
      %6303 = vmatpush2.bf16.msra.mxu0 0
      %6304 = vmatprep.subr.bf16.mxu0 0
      %6305 = vmatpush2.bf16.msra.mxu0 0
      %6306 = vmatprep.subr.bf16.mxu0 0
      %6307 = vmatpush2.bf16.msra.mxu0 0
      %6308 = vmatprep.subr.bf16.mxu0 0
      %6309 = vmatpush2.bf16.msra.mxu0 0
      %6310 = vmatprep.subr.bf16.mxu0 0
      %6311 = vmatpush2.bf16.msra.mxu0 0
      %6312 = vmatprep.subr.bf16.mxu0 0
      %6313 = vmatpush2.bf16.msra.mxu0 0
      %6314 = vmatprep.subr.bf16.mxu0 0
      %6315 = vmatpush2.bf16.msra.mxu0 0
      %6316 = vmatprep.subr.bf16.mxu0 0
      %6317 = vmatpush2.bf16.msra.mxu0 0
      %6318 = vmatprep.mubr.bf16.mxu0 0
      %6319 = vmatmul.mubr.bf16.gmra.mxu0 %v6233
      %v6320 = vpop.f32.mrf.mxu0
      %v6321 = vadd.f32 0.0, %v6320
      %v6322 = vpop.f32.mrf.mxu0
      %v6323 = vpop.f32.mrf.mxu0
      %v6324 = vadd.f32 0.0, %v6323
      %v6325 = vpop.f32.mrf.mxu0
      %6326 = vmatprep.mubr.bf16.mxu0 0
      %6327 = vmatmul.mubr.bf16.gmra.mxu0 %v6236
      %v6328 = vpop.f32.mrf.mxu0
      %v6329 = vadd.f32 0.0, %v6328
      %v6330 = vpop.f32.mrf.mxu0
      %v6331 = vpop.f32.mrf.mxu0
      %v6332 = vadd.f32 0.0, %v6331
      %v6333 = vpop.f32.mrf.mxu0
      %6334 = vmatprep.mubr.bf16.mxu0 0
      %6335 = vmatmul.mubr.bf16.gmra.mxu0 %v6239
      %v6336 = vpop.f32.mrf.mxu0
      %v6337 = vadd.f32 0.0, %v6336
      %v6338 = vpop.f32.mrf.mxu0
      %v6339 = vpop.f32.mrf.mxu0
      %v6340 = vadd.f32 0.0, %v6339
      %v6341 = vpop.f32.mrf.mxu0
      %6342 = vmatprep.mubr.bf16.mxu0 0
      %6343 = vmatmul.mubr.bf16.gmra.mxu0 %v6242
      %v6344 = vpop.f32.mrf.mxu0
      %v6345 = vadd.f32 0.0, %v6344
      %v6346 = vpop.f32.mrf.mxu0
      %v6347 = vpop.f32.mrf.mxu0
      %v6348 = vadd.f32 0.0, %v6347
      %v6349 = vpop.f32.mrf.mxu0
      %6350 = vmatprep.mubr.bf16.mxu0 0
      %6351 = vmatmul.mubr.bf16.gmra.mxu0 %v6245
      %v6352 = vpop.f32.mrf.mxu0
      %v6353 = vadd.f32 0.0, %v6352
      %v6354 = vpop.f32.mrf.mxu0
      %v6355 = vpop.f32.mrf.mxu0
      %v6356 = vadd.f32 0.0, %v6355
      %v6357 = vpop.f32.mrf.mxu0
      %6358 = vmatprep.mubr.bf16.mxu0 0
      %6359 = vmatmul.mubr.bf16.gmra.mxu0 %v6248
      %v6360 = vpop.f32.mrf.mxu0
      %v6361 = vadd.f32 0.0, %v6360
      %v6362 = vpop.f32.mrf.mxu0
      %v6363 = vpop.f32.mrf.mxu0
      %v6364 = vadd.f32 0.0, %v6363
      %v6365 = vpop.f32.mrf.mxu0
      %6366 = vmatprep.mubr.bf16.mxu0 0
      %6367 = vmatmul.mubr.bf16.gmra.mxu0 %v6251
      %v6368 = vpop.f32.mrf.mxu0
      %v6369 = vadd.f32 0.0, %v6368
      %v6370 = vpop.f32.mrf.mxu0
      %v6371 = vpop.f32.mrf.mxu0
      %v6372 = vadd.f32 0.0, %v6371
      %v6373 = vpop.f32.mrf.mxu0
      %6374 = vmatprep.mubr.bf16.mxu0 0
      %6375 = vmatmul.mubr.bf16.gmra.mxu0 %v6254
      %v6376 = vpop.f32.mrf.mxu0
      %v6377 = vadd.f32 0.0, %v6376
      %v6378 = vpop.f32.mrf.mxu0
      %v6379 = vpop.f32.mrf.mxu0
      %v6380 = vadd.f32 0.0, %v6379
      %v6381 = vpop.f32.mrf.mxu0
      %6382 = vmatprep.mubr.bf16.mxu0 0
      %6383 = vmatmul.mubr.bf16.gmra.mxu0 %v6257
      %v6384 = vpop.f32.mrf.mxu0
      %v6385 = vadd.f32 0.0, %v6384
      %v6386 = vpop.f32.mrf.mxu0
      %v6387 = vpop.f32.mrf.mxu0
      %v6388 = vadd.f32 0.0, %v6387
      %v6389 = vpop.f32.mrf.mxu0
      %6390 = vmatprep.mubr.bf16.mxu0 0
      %6391 = vmatmul.mubr.bf16.gmra.mxu0 %v6260
      %v6392 = vpop.f32.mrf.mxu0
      %v6393 = vadd.f32 0.0, %v6392
      %v6394 = vpop.f32.mrf.mxu0
      %v6395 = vpop.f32.mrf.mxu0
      %v6396 = vadd.f32 0.0, %v6395
      %v6397 = vpop.f32.mrf.mxu0
      %6398 = vmatprep.mubr.bf16.mxu0 0
      %6399 = vmatmul.mubr.bf16.gmra.mxu0 %v6263
      %v6400 = vpop.f32.mrf.mxu0
      %v6401 = vadd.f32 0.0, %v6400
      %v6402 = vpop.f32.mrf.mxu0
      %v6403 = vpop.f32.mrf.mxu0
      %v6404 = vadd.f32 0.0, %v6403
      %v6405 = vpop.f32.mrf.mxu0
      %6406 = vmatprep.mubr.bf16.mxu0 0
      %6407 = vmatmul.mubr.bf16.gmra.mxu0 %v6266
      %v6408 = vpop.f32.mrf.mxu0
      %v6409 = vadd.f32 0.0, %v6408
      %v6410 = vpop.f32.mrf.mxu0
      %v6411 = vpop.f32.mrf.mxu0
      %v6412 = vadd.f32 0.0, %v6411
      %v6413 = vpop.f32.mrf.mxu0
      %6414 = vmatprep.mubr.bf16.mxu0 0
      %6415 = vmatmul.mubr.bf16.gmra.mxu0 %v6269
      %v6416 = vpop.f32.mrf.mxu0
      %v6417 = vadd.f32 0.0, %v6416
      %v6418 = vpop.f32.mrf.mxu0
      %v6419 = vpop.f32.mrf.mxu0
      %v6420 = vadd.f32 0.0, %v6419
      %v6421 = vpop.f32.mrf.mxu0
      %6422 = vmatprep.mubr.bf16.mxu0 0
      %6423 = vmatmul.mubr.bf16.gmra.mxu0 %v6272
      %v6424 = vpop.f32.mrf.mxu0
      %v6425 = vadd.f32 0.0, %v6424
      %v6426 = vpop.f32.mrf.mxu0
      %v6427 = vpop.f32.mrf.mxu0
      %v6428 = vadd.f32 0.0, %v6427
      %v6429 = vpop.f32.mrf.mxu0
      %6430 = vmatprep.mubr.bf16.mxu0 0
      %6431 = vmatmul.mubr.bf16.gmra.mxu0 %v6275
      %v6432 = vpop.f32.mrf.mxu0
      %v6433 = vadd.f32 0.0, %v6432
      %v6434 = vpop.f32.mrf.mxu0
      %v6435 = vpop.f32.mrf.mxu0
      %v6436 = vadd.f32 0.0, %v6435
      %v6437 = vpop.f32.mrf.mxu0
      %6438 = vmatprep.mubr.bf16.mxu0 0
      %6439 = vmatmul.mubr.bf16.gmra.mxu0 %v6278
      %v6440 = vpop.f32.mrf.mxu0
      %v6441 = vadd.f32 0.0, %v6440
      %v6442 = vpop.f32.mrf.mxu0
      %v6443 = vpop.f32.mrf.mxu0
      %v6444 = vadd.f32 0.0, %v6443
      %v6445 = vpop.f32.mrf.mxu0
      %6446 = vmatprep.mubr.bf16.mxu0 0
      %6447 = vmatmul.mubr.bf16.gmra.mxu0 %v6281
      %v6448 = vpop.f32.mrf.mxu0
      %v6449 = vadd.f32 0.0, %v6448
      %v6450 = vpop.f32.mrf.mxu0
      %v6451 = vpop.f32.mrf.mxu0
      %v6452 = vadd.f32 0.0, %v6451
      %v6453 = vpop.f32.mrf.mxu0
      %6454 = vmatprep.mubr.bf16.mxu0 0
      %6455 = vmatmul.mubr.bf16.gmra.mxu0 %v6284
      %v6456 = vpop.f32.mrf.mxu0
      %v6457 = vadd.f32 0.0, %v6456
      %v6458 = vpop.f32.mrf.mxu0
      %v6459 = vpop.f32.mrf.mxu0
      %v6460 = vadd.f32 0.0, %v6459
      %v6461 = vpop.f32.mrf.mxu0
      %6462 = vdwg.mxu0
      %v6463 = vadd.f32 %v6137, %v6321
      %v6464 = vadd.f32 %v6138, %v6324
      %v6465 = vadd.f32 %v6139, %v6329
      %v6466 = vadd.f32 %v6140, %v6332
      %v6467 = vadd.f32 %v6141, %v6337
      %v6468 = vadd.f32 %v6142, %v6340
      %v6469 = vadd.f32 %v6143, %v6345
      %v6470 = vadd.f32 %v6144, %v6348
      %v6471 = vadd.f32 %v6145, %v6353
      %v6472 = vadd.f32 %v6146, %v6356
      %v6473 = vadd.f32 %v6147, %v6361
      %v6474 = vadd.f32 %v6148, %v6364
      %v6475 = vadd.f32 %v6149, %v6369
      %v6476 = vadd.f32 %v6150, %v6372
      %v6477 = vadd.f32 %v6151, %v6377
      %v6478 = vadd.f32 %v6152, %v6380
      %v6479 = vadd.f32 %v6153, %v6385
      %v6480 = vadd.f32 %v6154, %v6388
      %v6481 = vadd.f32 %v6155, %v6393
      %v6482 = vadd.f32 %v6156, %v6396
      %v6483 = vadd.f32 %v6157, %v6401
      %v6484 = vadd.f32 %v6158, %v6404
      %v6485 = vadd.f32 %v6159, %v6409
      %v6486 = vadd.f32 %v6160, %v6412
      %v6487 = vadd.f32 %v6161, %v6417
      %v6488 = vadd.f32 %v6162, %v6420
      %v6489 = vadd.f32 %v6163, %v6425
      %v6490 = vadd.f32 %v6164, %v6428
      %v6491 = vadd.f32 %v6165, %v6433
      %v6492 = vadd.f32 %v6166, %v6436
      %v6493 = vadd.f32 %v6167, %v6441
      %v6494 = vadd.f32 %v6168, %v6444
      %v6495 = vadd.f32 %v6169, %v6449
      %v6496 = vadd.f32 %v6170, %v6452
      %v6497 = vadd.f32 %v6171, %v6457
      %v6498 = vadd.f32 %v6172, %v6460
      %v6499 = vld [vmem:[#allocation2 + $0x10] sm:$0xc]
      %v6500 = vld [vmem:[#allocation2 + $0x14] sm:$0xf]
      %v6501 = vld [vmem:[#allocation2 + $0x18] sm:$0xf]
      %v6502 = vld [vmem:[#allocation2 + $0x1c] sm:$0xf]
      %v6503 = vld [vmem:[#allocation2 + $0x20] sm:$0xf]
      %v6504 = vld [vmem:[#allocation2 + $0x24] sm:$0xf]
      %v6505 = vld [vmem:[#allocation2 + $0x28] sm:$0xf]
      %v6506 = vld [vmem:[#allocation2 + $0x2c] sm:$0xf]
      %v6507 = vld [vmem:[#allocation2 + $0x30] sm:$0xf]
      %v6508 = vld [vmem:[#allocation2 + $0x34] sm:$0xf]
      %v6509 = vld [vmem:[#allocation2 + $0x38] sm:$0xf]
      %v6510 = vld [vmem:[#allocation2 + $0x3c] sm:$0xf]
      %v6511 = vld [vmem:[#allocation2 + $0x40] sm:$0xf]
      %v6512 = vld [vmem:[#allocation2 + $0x44] sm:$0xf]
      %v6513 = vld [vmem:[#allocation2 + $0x48] sm:$0xf]
      %v6514 = vld [vmem:[#allocation2 + $0x4c] sm:$0xf]
      %v6515 = vld [vmem:[#allocation2 + $0x50] sm:$0xf]
      %v6516 = vld [vmem:[#allocation2 + $0x54] sm:$0xf]
      %v6517 = vld [vmem:[#allocation2 + $0x58] sm:$0xf]
      %v6518 = vld [vmem:[#allocation2 + $0x5c] sm:$0xf]
      %v6519 = vld [vmem:[#allocation2 + $0x60] sm:$0xf]
      %v6520 = vld [vmem:[#allocation2 + $0x64] sm:$0xf]
      %v6521 = vld [vmem:[#allocation2 + $0x68] sm:$0xf]
      %v6522 = vld [vmem:[#allocation2 + $0x6c] sm:$0xf]
      %v6523 = vld [vmem:[#allocation2 + $0x70] sm:$0xf]
      %v6524 = vld [vmem:[#allocation2 + $0x74] sm:$0xf]
      %v6525 = vld [vmem:[#allocation2 + $0x78] sm:$0xf]
      %v6526 = vld [vmem:[#allocation2 + $0x7c] sm:$0xf]
      %v6527 = vld [vmem:[#allocation2 + $0x80] sm:$0xf]
      %v6528 = vld [vmem:[#allocation2 + $0x84] sm:$0xf]
      %v6529 = vld [vmem:[#allocation2 + $0x88] sm:$0xf]
      %v6530 = vld [vmem:[#allocation2 + $0x8c] sm:$0xf]
      %v6531 = vld [vmem:[#allocation2 + $0x90] sm:$0xf]
      %v6532 = vld [vmem:[#allocation2 + $0x94] sm:$0xf]
      %v6533 = vld [vmem:[#allocation2 + $0x98] sm:$0xf]
      %v6534 = vld [vmem:[#allocation2 + $0x9c] sm:$0xf]
      %v6535 = vld [vmem:[#allocation2 + $0xa0] sm:$0x3]
      %s6536 = scalar_lea.vmem %s2, 96
      %v6537 = vld [vmem:[%s6536] sm:$0xf]
      %v6538 = vld [vmem:[%s6536 + $0x4] sm:$0xf]
      %v6539 = vld [vmem:[%s6536 + $0x8] sm:$0xf]
      %v6540 = vld [vmem:[%s6536 + $0xc] sm:$0xf]
      %v6578 = vunpack.c.l.b16 %v6499
      %v6579 = vunpack.c.l.b16 %v6500
      %v6580 = vunpack.c.l.b16 %v6501
      %v6581 = vunpack.c.l.b16 %v6502
      %v6582 = vunpack.c.l.b16 %v6503
      %v6583 = vunpack.c.l.b16 %v6504
      %v6584 = vunpack.c.l.b16 %v6505
      %v6585 = vunpack.c.l.b16 %v6506
      %v6586 = vunpack.c.l.b16 %v6507
      %v6587 = vunpack.c.l.b16 %v6508
      %v6588 = vunpack.c.l.b16 %v6509
      %v6589 = vunpack.c.l.b16 %v6510
      %v6590 = vunpack.c.l.b16 %v6511
      %v6591 = vunpack.c.l.b16 %v6512
      %v6592 = vunpack.c.l.b16 %v6513
      %v6593 = vunpack.c.l.b16 %v6514
      %v6594 = vunpack.c.l.b16 %v6515
      %v6595 = vunpack.c.l.b16 %v6516
      %v6596 = vunpack.c.l.b16 %v6517
      %v6597 = vunpack.c.l.b16 %v6518
      %v6598 = vunpack.c.l.b16 %v6519
      %v6599 = vunpack.c.l.b16 %v6520
      %v6600 = vunpack.c.l.b16 %v6521
      %v6601 = vunpack.c.l.b16 %v6522
      %v6602 = vunpack.c.l.b16 %v6523
      %v6603 = vunpack.c.l.b16 %v6524
      %v6604 = vunpack.c.l.b16 %v6525
      %v6605 = vunpack.c.l.b16 %v6526
      %v6606 = vunpack.c.l.b16 %v6527
      %v6607 = vunpack.c.l.b16 %v6528
      %v6608 = vunpack.c.l.b16 %v6529
      %v6609 = vunpack.c.l.b16 %v6530
      %v6610 = vunpack.c.l.b16 %v6531
      %v6611 = vunpack.c.l.b16 %v6532
      %v6612 = vunpack.c.l.b16 %v6533
      %v6613 = vunpack.c.l.b16 %v6534
      %v6614 = vunpack.c.l.b16 %v6535
      %v6615 = vpack.c.b16 %v6579, %v6578
      %v6616 = vpack.c.b16 %v6581, %v6580
      %v6617 = vpack.c.b16 %v6583, %v6582
      %v6618 = vpack.c.b16 %v6585, %v6584
      %v6619 = vpack.c.b16 %v6587, %v6586
      %v6620 = vpack.c.b16 %v6589, %v6588
      %v6621 = vpack.c.b16 %v6591, %v6590
      %v6622 = vpack.c.b16 %v6593, %v6592
      %v6623 = vpack.c.b16 %v6595, %v6594
      %v6624 = vpack.c.b16 %v6597, %v6596
      %v6625 = vpack.c.b16 %v6599, %v6598
      %v6626 = vpack.c.b16 %v6601, %v6600
      %v6627 = vpack.c.b16 %v6603, %v6602
      %v6628 = vpack.c.b16 %v6605, %v6604
      %v6629 = vpack.c.b16 %v6607, %v6606
      %v6630 = vpack.c.b16 %v6609, %v6608
      %v6631 = vpack.c.b16 %v6611, %v6610
      %v6632 = vpack.c.b16 %v6613, %v6612
      %v6633 = vpack.c.b16 %v6614, %v6614
      %v6634 = vrot.slane %v6615, 2
      %v6635 = vrot.slane %v6616, 2
      %v6636 = vsel %vm6182, %v6634, %v6635
      %v6637 = vrot.slane %v6617, 2
      %v6638 = vsel %vm6182, %v6635, %v6637
      %v6639 = vrot.slane %v6618, 2
      %v6640 = vsel %vm6182, %v6637, %v6639
      %v6641 = vrot.slane %v6619, 2
      %v6642 = vsel %vm6182, %v6639, %v6641
      %v6643 = vrot.slane %v6620, 2
      %v6644 = vsel %vm6182, %v6641, %v6643
      %v6645 = vrot.slane %v6621, 2
      %v6646 = vsel %vm6182, %v6643, %v6645
      %v6647 = vrot.slane %v6622, 2
      %v6648 = vsel %vm6182, %v6645, %v6647
      %v6649 = vrot.slane %v6623, 2
      %v6650 = vsel %vm6182, %v6647, %v6649
      %v6651 = vrot.slane %v6624, 2
      %v6652 = vsel %vm6182, %v6649, %v6651
      %v6653 = vrot.slane %v6625, 2
      %v6654 = vsel %vm6182, %v6651, %v6653
      %v6655 = vrot.slane %v6626, 2
      %v6656 = vsel %vm6182, %v6653, %v6655
      %v6657 = vrot.slane %v6627, 2
      %v6658 = vsel %vm6182, %v6655, %v6657
      %v6659 = vrot.slane %v6628, 2
      %v6660 = vsel %vm6182, %v6657, %v6659
      %v6661 = vrot.slane %v6629, 2
      %v6662 = vsel %vm6182, %v6659, %v6661
      %v6663 = vrot.slane %v6630, 2
      %v6664 = vsel %vm6182, %v6661, %v6663
      %v6665 = vrot.slane %v6631, 2
      %v6666 = vsel %vm6182, %v6663, %v6665
      %v6667 = vrot.slane %v6632, 2
      %v6668 = vsel %vm6182, %v6665, %v6667
      %v6669 = vrot.slane %v6633, 2
      %v6670 = vsel %vm6182, %v6667, %v6669
      %v6675 = vunpack.c.l.b16 %v6537
      %v6676 = vunpack.c.l.b16 %v6538
      %v6677 = vunpack.c.l.b16 %v6539
      %v6678 = vunpack.c.l.b16 %v6540
      %v6679 = vpack.c.b16 %v6676, %v6675
      %v6680 = vpack.c.b16 %v6678, %v6677
      %v6684 = vsel %vm641, %v6636, 0
      %v6687 = vsel %vm641, %v6638, 0
      %v6690 = vsel %vm641, %v6640, 0
      %v6693 = vsel %vm641, %v6642, 0
      %v6696 = vsel %vm641, %v6644, 0
      %v6699 = vsel %vm641, %v6646, 0
      %v6702 = vsel %vm641, %v6648, 0
      %v6705 = vsel %vm641, %v6650, 0
      %v6708 = vsel %vm641, %v6652, 0
      %v6711 = vsel %vm641, %v6654, 0
      %v6714 = vsel %vm641, %v6656, 0
      %v6717 = vsel %vm641, %v6658, 0
      %v6720 = vsel %vm641, %v6660, 0
      %v6723 = vsel %vm641, %v6662, 0
      %v6726 = vsel %vm641, %v6664, 0
      %v6729 = vsel %vm641, %v6666, 0
      %v6732 = vsel %vm641, %v6668, 0
      %v6735 = vsel %vm641, %v6670, 0
      %6737 = vmatprep.subr.bf16.mxu0 0
      %6738 = vmatpush1.bf16.msra.mxu0 0
      %6739 = vmatprep.subr.bf16.mxu0 0
      %6740 = vmatpush1.bf16.msra.mxu0 0
      %6741 = vmatprep.subr.bf16.mxu0 0
      %6742 = vmatpush1.bf16.msra.mxu0 0
      %6743 = vmatprep.subr.bf16.mxu0 0
      %6744 = vmatpush1.bf16.msra.mxu0 0
      %6745 = vmatprep.subr.bf16.mxu0 0
      %6746 = vmatpush1.bf16.msra.mxu0 0
      %6747 = vmatprep.subr.bf16.mxu0 0
      %6748 = vmatpush1.bf16.msra.mxu0 0
      %6749 = vmatprep.subr.bf16.mxu0 0
      %6750 = vmatpush1.bf16.msra.mxu0 %v6680
      %6751 = vmatprep.subr.bf16.mxu0 0
      %6752 = vmatpush1.bf16.msra.mxu0 %v6679
      %6753 = vmatprep.subr.bf16.mxu0 0
      %6754 = vmatpush2.bf16.msra.mxu0 0
      %6755 = vmatprep.subr.bf16.mxu0 0
      %6756 = vmatpush2.bf16.msra.mxu0 0
      %6757 = vmatprep.subr.bf16.mxu0 0
      %6758 = vmatpush2.bf16.msra.mxu0 0
      %6759 = vmatprep.subr.bf16.mxu0 0
      %6760 = vmatpush2.bf16.msra.mxu0 0
      %6761 = vmatprep.subr.bf16.mxu0 0
      %6762 = vmatpush2.bf16.msra.mxu0 0
      %6763 = vmatprep.subr.bf16.mxu0 0
      %6764 = vmatpush2.bf16.msra.mxu0 0
      %6765 = vmatprep.subr.bf16.mxu0 0
      %6766 = vmatpush2.bf16.msra.mxu0 0
      %6767 = vmatprep.subr.bf16.mxu0 0
      %6768 = vmatpush2.bf16.msra.mxu0 0
      %6769 = vmatprep.mubr.bf16.mxu0 0
      %6770 = vmatmul.mubr.bf16.gmra.mxu0 %v6684
      %v6771 = vpop.f32.mrf.mxu0
      %v6772 = vadd.f32 0.0, %v6771
      %v6773 = vpop.f32.mrf.mxu0
      %v6774 = vpop.f32.mrf.mxu0
      %v6775 = vadd.f32 0.0, %v6774
      %v6776 = vpop.f32.mrf.mxu0
      %6777 = vmatprep.mubr.bf16.mxu0 0
      %6778 = vmatmul.mubr.bf16.gmra.mxu0 %v6687
      %v6779 = vpop.f32.mrf.mxu0
      %v6780 = vadd.f32 0.0, %v6779
      %v6781 = vpop.f32.mrf.mxu0
      %v6782 = vpop.f32.mrf.mxu0
      %v6783 = vadd.f32 0.0, %v6782
      %v6784 = vpop.f32.mrf.mxu0
      %6785 = vmatprep.mubr.bf16.mxu0 0
      %6786 = vmatmul.mubr.bf16.gmra.mxu0 %v6690
      %v6787 = vpop.f32.mrf.mxu0
      %v6788 = vadd.f32 0.0, %v6787
      %v6789 = vpop.f32.mrf.mxu0
      %v6790 = vpop.f32.mrf.mxu0
      %v6791 = vadd.f32 0.0, %v6790
      %v6792 = vpop.f32.mrf.mxu0
      %6793 = vmatprep.mubr.bf16.mxu0 0
      %6794 = vmatmul.mubr.bf16.gmra.mxu0 %v6693
      %v6795 = vpop.f32.mrf.mxu0
      %v6796 = vadd.f32 0.0, %v6795
      %v6797 = vpop.f32.mrf.mxu0
      %v6798 = vpop.f32.mrf.mxu0
      %v6799 = vadd.f32 0.0, %v6798
      %v6800 = vpop.f32.mrf.mxu0
      %6801 = vmatprep.mubr.bf16.mxu0 0
      %6802 = vmatmul.mubr.bf16.gmra.mxu0 %v6696
      %v6803 = vpop.f32.mrf.mxu0
      %v6804 = vadd.f32 0.0, %v6803
      %v6805 = vpop.f32.mrf.mxu0
      %v6806 = vpop.f32.mrf.mxu0
      %v6807 = vadd.f32 0.0, %v6806
      %v6808 = vpop.f32.mrf.mxu0
      %6809 = vmatprep.mubr.bf16.mxu0 0
      %6810 = vmatmul.mubr.bf16.gmra.mxu0 %v6699
      %v6811 = vpop.f32.mrf.mxu0
      %v6812 = vadd.f32 0.0, %v6811
      %v6813 = vpop.f32.mrf.mxu0
      %v6814 = vpop.f32.mrf.mxu0
      %v6815 = vadd.f32 0.0, %v6814
      %v6816 = vpop.f32.mrf.mxu0
      %6817 = vmatprep.mubr.bf16.mxu0 0
      %6818 = vmatmul.mubr.bf16.gmra.mxu0 %v6702
      %v6819 = vpop.f32.mrf.mxu0
      %v6820 = vadd.f32 0.0, %v6819
      %v6821 = vpop.f32.mrf.mxu0
      %v6822 = vpop.f32.mrf.mxu0
      %v6823 = vadd.f32 0.0, %v6822
      %v6824 = vpop.f32.mrf.mxu0
      %6825 = vmatprep.mubr.bf16.mxu0 0
      %6826 = vmatmul.mubr.bf16.gmra.mxu0 %v6705
      %v6827 = vpop.f32.mrf.mxu0
      %v6828 = vadd.f32 0.0, %v6827
      %v6829 = vpop.f32.mrf.mxu0
      %v6830 = vpop.f32.mrf.mxu0
      %v6831 = vadd.f32 0.0, %v6830
      %v6832 = vpop.f32.mrf.mxu0
      %6833 = vmatprep.mubr.bf16.mxu0 0
      %6834 = vmatmul.mubr.bf16.gmra.mxu0 %v6708
      %v6835 = vpop.f32.mrf.mxu0
      %v6836 = vadd.f32 0.0, %v6835
      %v6837 = vpop.f32.mrf.mxu0
      %v6838 = vpop.f32.mrf.mxu0
      %v6839 = vadd.f32 0.0, %v6838
      %v6840 = vpop.f32.mrf.mxu0
      %6841 = vmatprep.mubr.bf16.mxu0 0
      %6842 = vmatmul.mubr.bf16.gmra.mxu0 %v6711
      %v6843 = vpop.f32.mrf.mxu0
      %v6844 = vadd.f32 0.0, %v6843
      %v6845 = vpop.f32.mrf.mxu0
      %v6846 = vpop.f32.mrf.mxu0
      %v6847 = vadd.f32 0.0, %v6846
      %v6848 = vpop.f32.mrf.mxu0
      %6849 = vmatprep.mubr.bf16.mxu0 0
      %6850 = vmatmul.mubr.bf16.gmra.mxu0 %v6714
      %v6851 = vpop.f32.mrf.mxu0
      %v6852 = vadd.f32 0.0, %v6851
      %v6853 = vpop.f32.mrf.mxu0
      %v6854 = vpop.f32.mrf.mxu0
      %v6855 = vadd.f32 0.0, %v6854
      %v6856 = vpop.f32.mrf.mxu0
      %6857 = vmatprep.mubr.bf16.mxu0 0
      %6858 = vmatmul.mubr.bf16.gmra.mxu0 %v6717
      %v6859 = vpop.f32.mrf.mxu0
      %v6860 = vadd.f32 0.0, %v6859
      %v6861 = vpop.f32.mrf.mxu0
      %v6862 = vpop.f32.mrf.mxu0
      %v6863 = vadd.f32 0.0, %v6862
      %v6864 = vpop.f32.mrf.mxu0
      %6865 = vmatprep.mubr.bf16.mxu0 0
      %6866 = vmatmul.mubr.bf16.gmra.mxu0 %v6720
      %v6867 = vpop.f32.mrf.mxu0
      %v6868 = vadd.f32 0.0, %v6867
      %v6869 = vpop.f32.mrf.mxu0
      %v6870 = vpop.f32.mrf.mxu0
      %v6871 = vadd.f32 0.0, %v6870
      %v6872 = vpop.f32.mrf.mxu0
      %6873 = vmatprep.mubr.bf16.mxu0 0
      %6874 = vmatmul.mubr.bf16.gmra.mxu0 %v6723
      %v6875 = vpop.f32.mrf.mxu0
      %v6876 = vadd.f32 0.0, %v6875
      %v6877 = vpop.f32.mrf.mxu0
      %v6878 = vpop.f32.mrf.mxu0
      %v6879 = vadd.f32 0.0, %v6878
      %v6880 = vpop.f32.mrf.mxu0
      %6881 = vmatprep.mubr.bf16.mxu0 0
      %6882 = vmatmul.mubr.bf16.gmra.mxu0 %v6726
      %v6883 = vpop.f32.mrf.mxu0
      %v6884 = vadd.f32 0.0, %v6883
      %v6885 = vpop.f32.mrf.mxu0
      %v6886 = vpop.f32.mrf.mxu0
      %v6887 = vadd.f32 0.0, %v6886
      %v6888 = vpop.f32.mrf.mxu0
      %6889 = vmatprep.mubr.bf16.mxu0 0
      %6890 = vmatmul.mubr.bf16.gmra.mxu0 %v6729
      %v6891 = vpop.f32.mrf.mxu0
      %v6892 = vadd.f32 0.0, %v6891
      %v6893 = vpop.f32.mrf.mxu0
      %v6894 = vpop.f32.mrf.mxu0
      %v6895 = vadd.f32 0.0, %v6894
      %v6896 = vpop.f32.mrf.mxu0
      %6897 = vmatprep.mubr.bf16.mxu0 0
      %6898 = vmatmul.mubr.bf16.gmra.mxu0 %v6732
      %v6899 = vpop.f32.mrf.mxu0
      %v6900 = vadd.f32 0.0, %v6899
      %v6901 = vpop.f32.mrf.mxu0
      %v6902 = vpop.f32.mrf.mxu0
      %v6903 = vadd.f32 0.0, %v6902
      %v6904 = vpop.f32.mrf.mxu0
      %6905 = vmatprep.mubr.bf16.mxu0 0
      %6906 = vmatmul.mubr.bf16.gmra.mxu0 %v6735
      %v6907 = vpop.f32.mrf.mxu0
      %v6908 = vadd.f32 0.0, %v6907
      %v6909 = vpop.f32.mrf.mxu0
      %v6910 = vpop.f32.mrf.mxu0
      %v6911 = vadd.f32 0.0, %v6910
      %v6912 = vpop.f32.mrf.mxu0
      %6913 = vdwg.mxu0
      %v6914 = vadd.f32 %v6463, %v6772
      %v6915 = vadd.f32 %v6464, %v6775
      %v6916 = vadd.f32 %v6465, %v6780
      %v6917 = vadd.f32 %v6466, %v6783
      %v6918 = vadd.f32 %v6467, %v6788
      %v6919 = vadd.f32 %v6468, %v6791
      %v6920 = vadd.f32 %v6469, %v6796
      %v6921 = vadd.f32 %v6470, %v6799
      %v6922 = vadd.f32 %v6471, %v6804
      %v6923 = vadd.f32 %v6472, %v6807
      %v6924 = vadd.f32 %v6473, %v6812
      %v6925 = vadd.f32 %v6474, %v6815
      %v6926 = vadd.f32 %v6475, %v6820
      %v6927 = vadd.f32 %v6476, %v6823
      %v6928 = vadd.f32 %v6477, %v6828
      %v6929 = vadd.f32 %v6478, %v6831
      %v6930 = vadd.f32 %v6479, %v6836
      %v6931 = vadd.f32 %v6480, %v6839
      %v6932 = vadd.f32 %v6481, %v6844
      %v6933 = vadd.f32 %v6482, %v6847
      %v6934 = vadd.f32 %v6483, %v6852
      %v6935 = vadd.f32 %v6484, %v6855
      %v6936 = vadd.f32 %v6485, %v6860
      %v6937 = vadd.f32 %v6486, %v6863
      %v6938 = vadd.f32 %v6487, %v6868
      %v6939 = vadd.f32 %v6488, %v6871
      %v6940 = vadd.f32 %v6489, %v6876
      %v6941 = vadd.f32 %v6490, %v6879
      %v6942 = vadd.f32 %v6491, %v6884
      %v6943 = vadd.f32 %v6492, %v6887
      %v6944 = vadd.f32 %v6493, %v6892
      %v6945 = vadd.f32 %v6494, %v6895
      %v6946 = vadd.f32 %v6495, %v6900
      %v6947 = vadd.f32 %v6496, %v6903
      %v6948 = vadd.f32 %v6497, %v6908
      %v6949 = vadd.f32 %v6498, %v6911
      %v6950 = vld [vmem:[#allocation2 + $0xa0] sm:$0x7]
      %s6951 = scalar_lea.vmem %s2, 112
      %v6952 = vld [vmem:[%s6951] sm:$0xf]
      %v6953 = vld [vmem:[%s6951 + $0x4] sm:$0xf]
      %v6954 = vld [vmem:[%s6951 + $0x8] sm:$0xf]
      %v6955 = vld [vmem:[%s6951 + $0xc] sm:$0xf]
      %v6957 = vunpack.c.l.b16 %v6950
      %v6958 = vpack.c.b16 %v6957, %v6957
      %vm6959 = vsmask.f32 5376
      %v6961 = vshrl.u32 %v6615, 16
      %v6963 = vrot.slane %v6961, 2
      %v6964 = vshll.u32 %v6615, 16
      %v6966 = vrot.slane %v6964, 3
      %v6967 = vor.u32 %v6963, %v6966
      %v6969 = vshrl.u32 %v6616, 16
      %v6971 = vrot.slane %v6969, 2
      %v6972 = vshll.u32 %v6616, 16
      %v6974 = vrot.slane %v6972, 3
      %v6975 = vor.u32 %v6971, %v6974
      %v6976 = vsel %vm6959, %v6967, %v6975
      %v6978 = vshrl.u32 %v6617, 16
      %v6980 = vrot.slane %v6978, 2
      %v6981 = vshll.u32 %v6617, 16
      %v6983 = vrot.slane %v6981, 3
      %v6984 = vor.u32 %v6980, %v6983
      %v6985 = vsel %vm6959, %v6975, %v6984
      %v6987 = vshrl.u32 %v6618, 16
      %v6989 = vrot.slane %v6987, 2
      %v6990 = vshll.u32 %v6618, 16
      %v6992 = vrot.slane %v6990, 3
      %v6993 = vor.u32 %v6989, %v6992
      %v6994 = vsel %vm6959, %v6984, %v6993
      %v6996 = vshrl.u32 %v6619, 16
      %v6998 = vrot.slane %v6996, 2
      %v6999 = vshll.u32 %v6619, 16
      %v7001 = vrot.slane %v6999, 3
      %v7002 = vor.u32 %v6998, %v7001
      %v7003 = vsel %vm6959, %v6993, %v7002
      %v7005 = vshrl.u32 %v6620, 16
      %v7007 = vrot.slane %v7005, 2
      %v7008 = vshll.u32 %v6620, 16
      %v7010 = vrot.slane %v7008, 3
      %v7011 = vor.u32 %v7007, %v7010
      %v7012 = vsel %vm6959, %v7002, %v7011
      %v7014 = vshrl.u32 %v6621, 16
      %v7016 = vrot.slane %v7014, 2
      %v7017 = vshll.u32 %v6621, 16
      %v7019 = vrot.slane %v7017, 3
      %v7020 = vor.u32 %v7016, %v7019
      %v7021 = vsel %vm6959, %v7011, %v7020
      %v7023 = vshrl.u32 %v6622, 16
      %v7025 = vrot.slane %v7023, 2
      %v7026 = vshll.u32 %v6622, 16
      %v7028 = vrot.slane %v7026, 3
      %v7029 = vor.u32 %v7025, %v7028
      %v7030 = vsel %vm6959, %v7020, %v7029
      %v7032 = vshrl.u32 %v6623, 16
      %v7034 = vrot.slane %v7032, 2
      %v7035 = vshll.u32 %v6623, 16
      %v7037 = vrot.slane %v7035, 3
      %v7038 = vor.u32 %v7034, %v7037
      %v7039 = vsel %vm6959, %v7029, %v7038
      %v7041 = vshrl.u32 %v6624, 16
      %v7043 = vrot.slane %v7041, 2
      %v7044 = vshll.u32 %v6624, 16
      %v7046 = vrot.slane %v7044, 3
      %v7047 = vor.u32 %v7043, %v7046
      %v7048 = vsel %vm6959, %v7038, %v7047
      %v7050 = vshrl.u32 %v6625, 16
      %v7052 = vrot.slane %v7050, 2
      %v7053 = vshll.u32 %v6625, 16
      %v7055 = vrot.slane %v7053, 3
      %v7056 = vor.u32 %v7052, %v7055
      %v7057 = vsel %vm6959, %v7047, %v7056
      %v7059 = vshrl.u32 %v6626, 16
      %v7061 = vrot.slane %v7059, 2
      %v7062 = vshll.u32 %v6626, 16
      %v7064 = vrot.slane %v7062, 3
      %v7065 = vor.u32 %v7061, %v7064
      %v7066 = vsel %vm6959, %v7056, %v7065
      %v7068 = vshrl.u32 %v6627, 16
      %v7070 = vrot.slane %v7068, 2
      %v7071 = vshll.u32 %v6627, 16
      %v7073 = vrot.slane %v7071, 3
      %v7074 = vor.u32 %v7070, %v7073
      %v7075 = vsel %vm6959, %v7065, %v7074
      %v7077 = vshrl.u32 %v6628, 16
      %v7079 = vrot.slane %v7077, 2
      %v7080 = vshll.u32 %v6628, 16
      %v7082 = vrot.slane %v7080, 3
      %v7083 = vor.u32 %v7079, %v7082
      %v7084 = vsel %vm6959, %v7074, %v7083
      %v7086 = vshrl.u32 %v6629, 16
      %v7088 = vrot.slane %v7086, 2
      %v7089 = vshll.u32 %v6629, 16
      %v7091 = vrot.slane %v7089, 3
      %v7092 = vor.u32 %v7088, %v7091
      %v7093 = vsel %vm6959, %v7083, %v7092
      %v7095 = vshrl.u32 %v6630, 16
      %v7097 = vrot.slane %v7095, 2
      %v7098 = vshll.u32 %v6630, 16
      %v7100 = vrot.slane %v7098, 3
      %v7101 = vor.u32 %v7097, %v7100
      %v7102 = vsel %vm6959, %v7092, %v7101
      %v7104 = vshrl.u32 %v6631, 16
      %v7106 = vrot.slane %v7104, 2
      %v7107 = vshll.u32 %v6631, 16
      %v7109 = vrot.slane %v7107, 3
      %v7110 = vor.u32 %v7106, %v7109
      %v7111 = vsel %vm6959, %v7101, %v7110
      %v7113 = vshrl.u32 %v6632, 16
      %v7115 = vrot.slane %v7113, 2
      %v7116 = vshll.u32 %v6632, 16
      %v7118 = vrot.slane %v7116, 3
      %v7119 = vor.u32 %v7115, %v7118
      %v7120 = vsel %vm6959, %v7110, %v7119
      %v7122 = vshrl.u32 %v6958, 16
      %v7124 = vrot.slane %v7122, 2
      %v7125 = vshll.u32 %v6958, 16
      %v7127 = vrot.slane %v7125, 3
      %v7128 = vor.u32 %v7124, %v7127
      %v7129 = vsel %vm6959, %v7119, %v7128
      %v7134 = vunpack.c.l.b16 %v6952
      %v7135 = vunpack.c.l.b16 %v6953
      %v7136 = vunpack.c.l.b16 %v6954
      %v7137 = vunpack.c.l.b16 %v6955
      %v7138 = vpack.c.b16 %v7135, %v7134
      %v7139 = vpack.c.b16 %v7137, %v7136
      %v7143 = vsel %vm641, %v6976, 0
      %v7146 = vsel %vm641, %v6985, 0
      %v7149 = vsel %vm641, %v6994, 0
      %v7152 = vsel %vm641, %v7003, 0
      %v7155 = vsel %vm641, %v7012, 0
      %v7158 = vsel %vm641, %v7021, 0
      %v7161 = vsel %vm641, %v7030, 0
      %v7164 = vsel %vm641, %v7039, 0
      %v7167 = vsel %vm641, %v7048, 0
      %v7170 = vsel %vm641, %v7057, 0
      %v7173 = vsel %vm641, %v7066, 0
      %v7176 = vsel %vm641, %v7075, 0
      %v7179 = vsel %vm641, %v7084, 0
      %v7182 = vsel %vm641, %v7093, 0
      %v7185 = vsel %vm641, %v7102, 0
      %v7188 = vsel %vm641, %v7111, 0
      %v7191 = vsel %vm641, %v7120, 0
      %v7194 = vsel %vm641, %v7129, 0
      %7196 = vmatprep.subr.bf16.mxu0 0
      %7197 = vmatpush1.bf16.msra.mxu0 0
      %7198 = vmatprep.subr.bf16.mxu0 0
      %7199 = vmatpush1.bf16.msra.mxu0 0
      %7200 = vmatprep.subr.bf16.mxu0 0
      %7201 = vmatpush1.bf16.msra.mxu0 0
      %7202 = vmatprep.subr.bf16.mxu0 0
      %7203 = vmatpush1.bf16.msra.mxu0 0
      %7204 = vmatprep.subr.bf16.mxu0 0
      %7205 = vmatpush1.bf16.msra.mxu0 0
      %7206 = vmatprep.subr.bf16.mxu0 0
      %7207 = vmatpush1.bf16.msra.mxu0 0
      %7208 = vmatprep.subr.bf16.mxu0 0
      %7209 = vmatpush1.bf16.msra.mxu0 %v7139
      %7210 = vmatprep.subr.bf16.mxu0 0
      %7211 = vmatpush1.bf16.msra.mxu0 %v7138
      %7212 = vmatprep.subr.bf16.mxu0 0
      %7213 = vmatpush2.bf16.msra.mxu0 0
      %7214 = vmatprep.subr.bf16.mxu0 0
      %7215 = vmatpush2.bf16.msra.mxu0 0
      %7216 = vmatprep.subr.bf16.mxu0 0
      %7217 = vmatpush2.bf16.msra.mxu0 0
      %7218 = vmatprep.subr.bf16.mxu0 0
      %7219 = vmatpush2.bf16.msra.mxu0 0
      %7220 = vmatprep.subr.bf16.mxu0 0
      %7221 = vmatpush2.bf16.msra.mxu0 0
      %7222 = vmatprep.subr.bf16.mxu0 0
      %7223 = vmatpush2.bf16.msra.mxu0 0
      %7224 = vmatprep.subr.bf16.mxu0 0
      %7225 = vmatpush2.bf16.msra.mxu0 0
      %7226 = vmatprep.subr.bf16.mxu0 0
      %7227 = vmatpush2.bf16.msra.mxu0 0
      %7228 = vmatprep.mubr.bf16.mxu0 0
      %7229 = vmatmul.mubr.bf16.gmra.mxu0 %v7143
      %v7230 = vpop.f32.mrf.mxu0
      %v7231 = vadd.f32 0.0, %v7230
      %v7232 = vpop.f32.mrf.mxu0
      %v7233 = vpop.f32.mrf.mxu0
      %v7234 = vadd.f32 0.0, %v7233
      %v7235 = vpop.f32.mrf.mxu0
      %7236 = vmatprep.mubr.bf16.mxu0 0
      %7237 = vmatmul.mubr.bf16.gmra.mxu0 %v7146
      %v7238 = vpop.f32.mrf.mxu0
      %v7239 = vadd.f32 0.0, %v7238
      %v7240 = vpop.f32.mrf.mxu0
      %v7241 = vpop.f32.mrf.mxu0
      %v7242 = vadd.f32 0.0, %v7241
      %v7243 = vpop.f32.mrf.mxu0
      %7244 = vmatprep.mubr.bf16.mxu0 0
      %7245 = vmatmul.mubr.bf16.gmra.mxu0 %v7149
      %v7246 = vpop.f32.mrf.mxu0
      %v7247 = vadd.f32 0.0, %v7246
      %v7248 = vpop.f32.mrf.mxu0
      %v7249 = vpop.f32.mrf.mxu0
      %v7250 = vadd.f32 0.0, %v7249
      %v7251 = vpop.f32.mrf.mxu0
      %7252 = vmatprep.mubr.bf16.mxu0 0
      %7253 = vmatmul.mubr.bf16.gmra.mxu0 %v7152
      %v7254 = vpop.f32.mrf.mxu0
      %v7255 = vadd.f32 0.0, %v7254
      %v7256 = vpop.f32.mrf.mxu0
      %v7257 = vpop.f32.mrf.mxu0
      %v7258 = vadd.f32 0.0, %v7257
      %v7259 = vpop.f32.mrf.mxu0
      %7260 = vmatprep.mubr.bf16.mxu0 0
      %7261 = vmatmul.mubr.bf16.gmra.mxu0 %v7155
      %v7262 = vpop.f32.mrf.mxu0
      %v7263 = vadd.f32 0.0, %v7262
      %v7264 = vpop.f32.mrf.mxu0
      %v7265 = vpop.f32.mrf.mxu0
      %v7266 = vadd.f32 0.0, %v7265
      %v7267 = vpop.f32.mrf.mxu0
      %7268 = vmatprep.mubr.bf16.mxu0 0
      %7269 = vmatmul.mubr.bf16.gmra.mxu0 %v7158
      %v7270 = vpop.f32.mrf.mxu0
      %v7271 = vadd.f32 0.0, %v7270
      %v7272 = vpop.f32.mrf.mxu0
      %v7273 = vpop.f32.mrf.mxu0
      %v7274 = vadd.f32 0.0, %v7273
      %v7275 = vpop.f32.mrf.mxu0
      %7276 = vmatprep.mubr.bf16.mxu0 0
      %7277 = vmatmul.mubr.bf16.gmra.mxu0 %v7161
      %v7278 = vpop.f32.mrf.mxu0
      %v7279 = vadd.f32 0.0, %v7278
      %v7280 = vpop.f32.mrf.mxu0
      %v7281 = vpop.f32.mrf.mxu0
      %v7282 = vadd.f32 0.0, %v7281
      %v7283 = vpop.f32.mrf.mxu0
      %7284 = vmatprep.mubr.bf16.mxu0 0
      %7285 = vmatmul.mubr.bf16.gmra.mxu0 %v7164
      %v7286 = vpop.f32.mrf.mxu0
      %v7287 = vadd.f32 0.0, %v7286
      %v7288 = vpop.f32.mrf.mxu0
      %v7289 = vpop.f32.mrf.mxu0
      %v7290 = vadd.f32 0.0, %v7289
      %v7291 = vpop.f32.mrf.mxu0
      %7292 = vmatprep.mubr.bf16.mxu0 0
      %7293 = vmatmul.mubr.bf16.gmra.mxu0 %v7167
      %v7294 = vpop.f32.mrf.mxu0
      %v7295 = vadd.f32 0.0, %v7294
      %v7296 = vpop.f32.mrf.mxu0
      %v7297 = vpop.f32.mrf.mxu0
      %v7298 = vadd.f32 0.0, %v7297
      %v7299 = vpop.f32.mrf.mxu0
      %7300 = vmatprep.mubr.bf16.mxu0 0
      %7301 = vmatmul.mubr.bf16.gmra.mxu0 %v7170
      %v7302 = vpop.f32.mrf.mxu0
      %v7303 = vadd.f32 0.0, %v7302
      %v7304 = vpop.f32.mrf.mxu0
      %v7305 = vpop.f32.mrf.mxu0
      %v7306 = vadd.f32 0.0, %v7305
      %v7307 = vpop.f32.mrf.mxu0
      %7308 = vmatprep.mubr.bf16.mxu0 0
      %7309 = vmatmul.mubr.bf16.gmra.mxu0 %v7173
      %v7310 = vpop.f32.mrf.mxu0
      %v7311 = vadd.f32 0.0, %v7310
      %v7312 = vpop.f32.mrf.mxu0
      %v7313 = vpop.f32.mrf.mxu0
      %v7314 = vadd.f32 0.0, %v7313
      %v7315 = vpop.f32.mrf.mxu0
      %7316 = vmatprep.mubr.bf16.mxu0 0
      %7317 = vmatmul.mubr.bf16.gmra.mxu0 %v7176
      %v7318 = vpop.f32.mrf.mxu0
      %v7319 = vadd.f32 0.0, %v7318
      %v7320 = vpop.f32.mrf.mxu0
      %v7321 = vpop.f32.mrf.mxu0
      %v7322 = vadd.f32 0.0, %v7321
      %v7323 = vpop.f32.mrf.mxu0
      %7324 = vmatprep.mubr.bf16.mxu0 0
      %7325 = vmatmul.mubr.bf16.gmra.mxu0 %v7179
      %v7326 = vpop.f32.mrf.mxu0
      %v7327 = vadd.f32 0.0, %v7326
      %v7328 = vpop.f32.mrf.mxu0
      %v7329 = vpop.f32.mrf.mxu0
      %v7330 = vadd.f32 0.0, %v7329
      %v7331 = vpop.f32.mrf.mxu0
      %7332 = vmatprep.mubr.bf16.mxu0 0
      %7333 = vmatmul.mubr.bf16.gmra.mxu0 %v7182
      %v7334 = vpop.f32.mrf.mxu0
      %v7335 = vadd.f32 0.0, %v7334
      %v7336 = vpop.f32.mrf.mxu0
      %v7337 = vpop.f32.mrf.mxu0
      %v7338 = vadd.f32 0.0, %v7337
      %v7339 = vpop.f32.mrf.mxu0
      %7340 = vmatprep.mubr.bf16.mxu0 0
      %7341 = vmatmul.mubr.bf16.gmra.mxu0 %v7185
      %v7342 = vpop.f32.mrf.mxu0
      %v7343 = vadd.f32 0.0, %v7342
      %v7344 = vpop.f32.mrf.mxu0
      %v7345 = vpop.f32.mrf.mxu0
      %v7346 = vadd.f32 0.0, %v7345
      %v7347 = vpop.f32.mrf.mxu0
      %7348 = vmatprep.mubr.bf16.mxu0 0
      %7349 = vmatmul.mubr.bf16.gmra.mxu0 %v7188
      %v7350 = vpop.f32.mrf.mxu0
      %v7351 = vadd.f32 0.0, %v7350
      %v7352 = vpop.f32.mrf.mxu0
      %v7353 = vpop.f32.mrf.mxu0
      %v7354 = vadd.f32 0.0, %v7353
      %v7355 = vpop.f32.mrf.mxu0
      %7356 = vmatprep.mubr.bf16.mxu0 0
      %7357 = vmatmul.mubr.bf16.gmra.mxu0 %v7191
      %v7358 = vpop.f32.mrf.mxu0
      %v7359 = vadd.f32 0.0, %v7358
      %v7360 = vpop.f32.mrf.mxu0
      %v7361 = vpop.f32.mrf.mxu0
      %v7362 = vadd.f32 0.0, %v7361
      %v7363 = vpop.f32.mrf.mxu0
      %7364 = vmatprep.mubr.bf16.mxu0 0
      %7365 = vmatmul.mubr.bf16.gmra.mxu0 %v7194
      %v7366 = vpop.f32.mrf.mxu0
      %v7367 = vadd.f32 0.0, %v7366
      %v7368 = vpop.f32.mrf.mxu0
      %v7369 = vpop.f32.mrf.mxu0
      %v7370 = vadd.f32 0.0, %v7369
      %v7371 = vpop.f32.mrf.mxu0
      %7372 = vdwg.mxu0
      %v7373 = vadd.f32 %v6914, %v7231
      %v7374 = vadd.f32 %v6915, %v7234
      %v7375 = vadd.f32 %v6916, %v7239
      %v7376 = vadd.f32 %v6917, %v7242
      %v7377 = vadd.f32 %v6918, %v7247
      %v7378 = vadd.f32 %v6919, %v7250
      %v7379 = vadd.f32 %v6920, %v7255
      %v7380 = vadd.f32 %v6921, %v7258
      %v7381 = vadd.f32 %v6922, %v7263
      %v7382 = vadd.f32 %v6923, %v7266
      %v7383 = vadd.f32 %v6924, %v7271
      %v7384 = vadd.f32 %v6925, %v7274
      %v7385 = vadd.f32 %v6926, %v7279
      %v7386 = vadd.f32 %v6927, %v7282
      %v7387 = vadd.f32 %v6928, %v7287
      %v7388 = vadd.f32 %v6929, %v7290
      %v7389 = vadd.f32 %v6930, %v7295
      %v7390 = vadd.f32 %v6931, %v7298
      %v7391 = vadd.f32 %v6932, %v7303
      %v7392 = vadd.f32 %v6933, %v7306
      %v7393 = vadd.f32 %v6934, %v7311
      %v7394 = vadd.f32 %v6935, %v7314
      %v7395 = vadd.f32 %v6936, %v7319
      %v7396 = vadd.f32 %v6937, %v7322
      %v7397 = vadd.f32 %v6938, %v7327
      %v7398 = vadd.f32 %v6939, %v7330
      %v7399 = vadd.f32 %v6940, %v7335
      %v7400 = vadd.f32 %v6941, %v7338
      %v7401 = vadd.f32 %v6942, %v7343
      %v7402 = vadd.f32 %v6943, %v7346
      %v7403 = vadd.f32 %v6944, %v7351
      %v7404 = vadd.f32 %v6945, %v7354
      %v7405 = vadd.f32 %v6946, %v7359
      %v7406 = vadd.f32 %v6947, %v7362
      %v7407 = vadd.f32 %v6948, %v7367
      %v7408 = vadd.f32 %v6949, %v7370
      %v7409 = vld [vmem:[#allocation2 + $0x10] sm:$0x8]
      %s7410 = scalar_lea.vmem %s2, 128
      %v7411 = vld [vmem:[%s7410] sm:$0xf]
      %v7412 = vld [vmem:[%s7410 + $0x4] sm:$0xf]
      %v7413 = vld [vmem:[%s7410 + $0x8] sm:$0xf]
      %v7414 = vld [vmem:[%s7410 + $0xc] sm:$0xf]
      %v7416 = vunpack.c.l.b16 %v7409
      %v7417 = vpack.c.b16 %v6579, %v7416
      %vm7418 = vcmask 1044480
      %v7419 = vrot.slane %v7417, 3
      %v7420 = vrot.slane %v6616, 3
      %v7421 = vsel %vm7418, %v7419, %v7420
      %v7422 = vrot.slane %v6617, 3
      %v7423 = vsel %vm7418, %v7420, %v7422
      %v7424 = vrot.slane %v6618, 3
      %v7425 = vsel %vm7418, %v7422, %v7424
      %v7426 = vrot.slane %v6619, 3
      %v7427 = vsel %vm7418, %v7424, %v7426
      %v7428 = vrot.slane %v6620, 3
      %v7429 = vsel %vm7418, %v7426, %v7428
      %v7430 = vrot.slane %v6621, 3
      %v7431 = vsel %vm7418, %v7428, %v7430
      %v7432 = vrot.slane %v6622, 3
      %v7433 = vsel %vm7418, %v7430, %v7432
      %v7434 = vrot.slane %v6623, 3
      %v7435 = vsel %vm7418, %v7432, %v7434
      %v7436 = vrot.slane %v6624, 3
      %v7437 = vsel %vm7418, %v7434, %v7436
      %v7438 = vrot.slane %v6625, 3
      %v7439 = vsel %vm7418, %v7436, %v7438
      %v7440 = vrot.slane %v6626, 3
      %v7441 = vsel %vm7418, %v7438, %v7440
      %v7442 = vrot.slane %v6627, 3
      %v7443 = vsel %vm7418, %v7440, %v7442
      %v7444 = vrot.slane %v6628, 3
      %v7445 = vsel %vm7418, %v7442, %v7444
      %v7446 = vrot.slane %v6629, 3
      %v7447 = vsel %vm7418, %v7444, %v7446
      %v7448 = vrot.slane %v6630, 3
      %v7449 = vsel %vm7418, %v7446, %v7448
      %v7450 = vrot.slane %v6631, 3
      %v7451 = vsel %vm7418, %v7448, %v7450
      %v7452 = vrot.slane %v6632, 3
      %v7453 = vsel %vm7418, %v7450, %v7452
      %v7454 = vrot.slane %v6958, 3
      %v7455 = vsel %vm7418, %v7452, %v7454
      %v7460 = vunpack.c.l.b16 %v7411
      %v7461 = vunpack.c.l.b16 %v7412
      %v7462 = vunpack.c.l.b16 %v7413
      %v7463 = vunpack.c.l.b16 %v7414
      %v7464 = vpack.c.b16 %v7461, %v7460
      %v7465 = vpack.c.b16 %v7463, %v7462
      %v7469 = vsel %vm641, %v7421, 0
      %v7472 = vsel %vm641, %v7423, 0
      %v7475 = vsel %vm641, %v7425, 0
      %v7478 = vsel %vm641, %v7427, 0
      %v7481 = vsel %vm641, %v7429, 0
      %v7484 = vsel %vm641, %v7431, 0
      %v7487 = vsel %vm641, %v7433, 0
      %v7490 = vsel %vm641, %v7435, 0
      %v7493 = vsel %vm641, %v7437, 0
      %v7496 = vsel %vm641, %v7439, 0
      %v7499 = vsel %vm641, %v7441, 0
      %v7502 = vsel %vm641, %v7443, 0
      %v7505 = vsel %vm641, %v7445, 0
      %v7508 = vsel %vm641, %v7447, 0
      %v7511 = vsel %vm641, %v7449, 0
      %v7514 = vsel %vm641, %v7451, 0
      %v7517 = vsel %vm641, %v7453, 0
      %v7520 = vsel %vm641, %v7455, 0
      %7522 = vmatprep.subr.bf16.mxu0 0
      %7523 = vmatpush1.bf16.msra.mxu0 0
      %7524 = vmatprep.subr.bf16.mxu0 0
      %7525 = vmatpush1.bf16.msra.mxu0 0
      %7526 = vmatprep.subr.bf16.mxu0 0
      %7527 = vmatpush1.bf16.msra.mxu0 0
      %7528 = vmatprep.subr.bf16.mxu0 0
      %7529 = vmatpush1.bf16.msra.mxu0 0
      %7530 = vmatprep.subr.bf16.mxu0 0
      %7531 = vmatpush1.bf16.msra.mxu0 0
      %7532 = vmatprep.subr.bf16.mxu0 0
      %7533 = vmatpush1.bf16.msra.mxu0 0
      %7534 = vmatprep.subr.bf16.mxu0 0
      %7535 = vmatpush1.bf16.msra.mxu0 %v7465
      %7536 = vmatprep.subr.bf16.mxu0 0
      %7537 = vmatpush1.bf16.msra.mxu0 %v7464
      %7538 = vmatprep.subr.bf16.mxu0 0
      %7539 = vmatpush2.bf16.msra.mxu0 0
      %7540 = vmatprep.subr.bf16.mxu0 0
      %7541 = vmatpush2.bf16.msra.mxu0 0
      %7542 = vmatprep.subr.bf16.mxu0 0
      %7543 = vmatpush2.bf16.msra.mxu0 0
      %7544 = vmatprep.subr.bf16.mxu0 0
      %7545 = vmatpush2.bf16.msra.mxu0 0
      %7546 = vmatprep.subr.bf16.mxu0 0
      %7547 = vmatpush2.bf16.msra.mxu0 0
      %7548 = vmatprep.subr.bf16.mxu0 0
      %7549 = vmatpush2.bf16.msra.mxu0 0
      %7550 = vmatprep.subr.bf16.mxu0 0
      %7551 = vmatpush2.bf16.msra.mxu0 0
      %7552 = vmatprep.subr.bf16.mxu0 0
      %7553 = vmatpush2.bf16.msra.mxu0 0
      %7554 = vmatprep.mubr.bf16.mxu0 0
      %7555 = vmatmul.mubr.bf16.gmra.mxu0 %v7469
      %v7556 = vpop.f32.mrf.mxu0
      %v7557 = vadd.f32 0.0, %v7556
      %v7558 = vpop.f32.mrf.mxu0
      %v7559 = vpop.f32.mrf.mxu0
      %v7560 = vadd.f32 0.0, %v7559
      %v7561 = vpop.f32.mrf.mxu0
      %7562 = vmatprep.mubr.bf16.mxu0 0
      %7563 = vmatmul.mubr.bf16.gmra.mxu0 %v7472
      %v7564 = vpop.f32.mrf.mxu0
      %v7565 = vadd.f32 0.0, %v7564
      %v7566 = vpop.f32.mrf.mxu0
      %v7567 = vpop.f32.mrf.mxu0
      %v7568 = vadd.f32 0.0, %v7567
      %v7569 = vpop.f32.mrf.mxu0
      %7570 = vmatprep.mubr.bf16.mxu0 0
      %7571 = vmatmul.mubr.bf16.gmra.mxu0 %v7475
      %v7572 = vpop.f32.mrf.mxu0
      %v7573 = vadd.f32 0.0, %v7572
      %v7574 = vpop.f32.mrf.mxu0
      %v7575 = vpop.f32.mrf.mxu0
      %v7576 = vadd.f32 0.0, %v7575
      %v7577 = vpop.f32.mrf.mxu0
      %7578 = vmatprep.mubr.bf16.mxu0 0
      %7579 = vmatmul.mubr.bf16.gmra.mxu0 %v7478
      %v7580 = vpop.f32.mrf.mxu0
      %v7581 = vadd.f32 0.0, %v7580
      %v7582 = vpop.f32.mrf.mxu0
      %v7583 = vpop.f32.mrf.mxu0
      %v7584 = vadd.f32 0.0, %v7583
      %v7585 = vpop.f32.mrf.mxu0
      %7586 = vmatprep.mubr.bf16.mxu0 0
      %7587 = vmatmul.mubr.bf16.gmra.mxu0 %v7481
      %v7588 = vpop.f32.mrf.mxu0
      %v7589 = vadd.f32 0.0, %v7588
      %v7590 = vpop.f32.mrf.mxu0
      %v7591 = vpop.f32.mrf.mxu0
      %v7592 = vadd.f32 0.0, %v7591
      %v7593 = vpop.f32.mrf.mxu0
      %7594 = vmatprep.mubr.bf16.mxu0 0
      %7595 = vmatmul.mubr.bf16.gmra.mxu0 %v7484
      %v7596 = vpop.f32.mrf.mxu0
      %v7597 = vadd.f32 0.0, %v7596
      %v7598 = vpop.f32.mrf.mxu0
      %v7599 = vpop.f32.mrf.mxu0
      %v7600 = vadd.f32 0.0, %v7599
      %v7601 = vpop.f32.mrf.mxu0
      %7602 = vmatprep.mubr.bf16.mxu0 0
      %7603 = vmatmul.mubr.bf16.gmra.mxu0 %v7487
      %v7604 = vpop.f32.mrf.mxu0
      %v7605 = vadd.f32 0.0, %v7604
      %v7606 = vpop.f32.mrf.mxu0
      %v7607 = vpop.f32.mrf.mxu0
      %v7608 = vadd.f32 0.0, %v7607
      %v7609 = vpop.f32.mrf.mxu0
      %7610 = vmatprep.mubr.bf16.mxu0 0
      %7611 = vmatmul.mubr.bf16.gmra.mxu0 %v7490
      %v7612 = vpop.f32.mrf.mxu0
      %v7613 = vadd.f32 0.0, %v7612
      %v7614 = vpop.f32.mrf.mxu0
      %v7615 = vpop.f32.mrf.mxu0
      %v7616 = vadd.f32 0.0, %v7615
      %v7617 = vpop.f32.mrf.mxu0
      %7618 = vmatprep.mubr.bf16.mxu0 0
      %7619 = vmatmul.mubr.bf16.gmra.mxu0 %v7493
      %v7620 = vpop.f32.mrf.mxu0
      %v7621 = vadd.f32 0.0, %v7620
      %v7622 = vpop.f32.mrf.mxu0
      %v7623 = vpop.f32.mrf.mxu0
      %v7624 = vadd.f32 0.0, %v7623
      %v7625 = vpop.f32.mrf.mxu0
      %7626 = vmatprep.mubr.bf16.mxu0 0
      %7627 = vmatmul.mubr.bf16.gmra.mxu0 %v7496
      %v7628 = vpop.f32.mrf.mxu0
      %v7629 = vadd.f32 0.0, %v7628
      %v7630 = vpop.f32.mrf.mxu0
      %v7631 = vpop.f32.mrf.mxu0
      %v7632 = vadd.f32 0.0, %v7631
      %v7633 = vpop.f32.mrf.mxu0
      %7634 = vmatprep.mubr.bf16.mxu0 0
      %7635 = vmatmul.mubr.bf16.gmra.mxu0 %v7499
      %v7636 = vpop.f32.mrf.mxu0
      %v7637 = vadd.f32 0.0, %v7636
      %v7638 = vpop.f32.mrf.mxu0
      %v7639 = vpop.f32.mrf.mxu0
      %v7640 = vadd.f32 0.0, %v7639
      %v7641 = vpop.f32.mrf.mxu0
      %7642 = vmatprep.mubr.bf16.mxu0 0
      %7643 = vmatmul.mubr.bf16.gmra.mxu0 %v7502
      %v7644 = vpop.f32.mrf.mxu0
      %v7645 = vadd.f32 0.0, %v7644
      %v7646 = vpop.f32.mrf.mxu0
      %v7647 = vpop.f32.mrf.mxu0
      %v7648 = vadd.f32 0.0, %v7647
      %v7649 = vpop.f32.mrf.mxu0
      %7650 = vmatprep.mubr.bf16.mxu0 0
      %7651 = vmatmul.mubr.bf16.gmra.mxu0 %v7505
      %v7652 = vpop.f32.mrf.mxu0
      %v7653 = vadd.f32 0.0, %v7652
      %v7654 = vpop.f32.mrf.mxu0
      %v7655 = vpop.f32.mrf.mxu0
      %v7656 = vadd.f32 0.0, %v7655
      %v7657 = vpop.f32.mrf.mxu0
      %7658 = vmatprep.mubr.bf16.mxu0 0
      %7659 = vmatmul.mubr.bf16.gmra.mxu0 %v7508
      %v7660 = vpop.f32.mrf.mxu0
      %v7661 = vadd.f32 0.0, %v7660
      %v7662 = vpop.f32.mrf.mxu0
      %v7663 = vpop.f32.mrf.mxu0
      %v7664 = vadd.f32 0.0, %v7663
      %v7665 = vpop.f32.mrf.mxu0
      %7666 = vmatprep.mubr.bf16.mxu0 0
      %7667 = vmatmul.mubr.bf16.gmra.mxu0 %v7511
      %v7668 = vpop.f32.mrf.mxu0
      %v7669 = vadd.f32 0.0, %v7668
      %v7670 = vpop.f32.mrf.mxu0
      %v7671 = vpop.f32.mrf.mxu0
      %v7672 = vadd.f32 0.0, %v7671
      %v7673 = vpop.f32.mrf.mxu0
      %7674 = vmatprep.mubr.bf16.mxu0 0
      %7675 = vmatmul.mubr.bf16.gmra.mxu0 %v7514
      %v7676 = vpop.f32.mrf.mxu0
      %v7677 = vadd.f32 0.0, %v7676
      %v7678 = vpop.f32.mrf.mxu0
      %v7679 = vpop.f32.mrf.mxu0
      %v7680 = vadd.f32 0.0, %v7679
      %v7681 = vpop.f32.mrf.mxu0
      %7682 = vmatprep.mubr.bf16.mxu0 0
      %7683 = vmatmul.mubr.bf16.gmra.mxu0 %v7517
      %v7684 = vpop.f32.mrf.mxu0
      %v7685 = vadd.f32 0.0, %v7684
      %v7686 = vpop.f32.mrf.mxu0
      %v7687 = vpop.f32.mrf.mxu0
      %v7688 = vadd.f32 0.0, %v7687
      %v7689 = vpop.f32.mrf.mxu0
      %7690 = vmatprep.mubr.bf16.mxu0 0
      %7691 = vmatmul.mubr.bf16.gmra.mxu0 %v7520
      %v7692 = vpop.f32.mrf.mxu0
      %v7693 = vadd.f32 0.0, %v7692
      %v7694 = vpop.f32.mrf.mxu0
      %v7695 = vpop.f32.mrf.mxu0
      %v7696 = vadd.f32 0.0, %v7695
      %v7697 = vpop.f32.mrf.mxu0
      %7698 = vdwg.mxu0
      %v7699 = vadd.f32 %v7373, %v7557
      %v7700 = vadd.f32 %v7374, %v7560
      %v7701 = vadd.f32 %v7375, %v7565
      %v7702 = vadd.f32 %v7376, %v7568
      %v7703 = vadd.f32 %v7377, %v7573
      %v7704 = vadd.f32 %v7378, %v7576
      %v7705 = vadd.f32 %v7379, %v7581
      %v7706 = vadd.f32 %v7380, %v7584
      %v7707 = vadd.f32 %v7381, %v7589
      %v7708 = vadd.f32 %v7382, %v7592
      %v7709 = vadd.f32 %v7383, %v7597
      %v7710 = vadd.f32 %v7384, %v7600
      %v7711 = vadd.f32 %v7385, %v7605
      %v7712 = vadd.f32 %v7386, %v7608
      %v7713 = vadd.f32 %v7387, %v7613
      %v7714 = vadd.f32 %v7388, %v7616
      %v7715 = vadd.f32 %v7389, %v7621
      %v7716 = vadd.f32 %v7390, %v7624
      %v7717 = vadd.f32 %v7391, %v7629
      %v7718 = vadd.f32 %v7392, %v7632
      %v7719 = vadd.f32 %v7393, %v7637
      %v7720 = vadd.f32 %v7394, %v7640
      %v7721 = vadd.f32 %v7395, %v7645
      %v7722 = vadd.f32 %v7396, %v7648
      %v7723 = vadd.f32 %v7397, %v7653
      %v7724 = vadd.f32 %v7398, %v7656
      %v7725 = vadd.f32 %v7399, %v7661
      %v7726 = vadd.f32 %v7400, %v7664
      %v7727 = vadd.f32 %v7401, %v7669
      %v7728 = vadd.f32 %v7402, %v7672
      %v7729 = vadd.f32 %v7403, %v7677
      %v7730 = vadd.f32 %v7404, %v7680
      %v7731 = vadd.f32 %v7405, %v7685
      %v7732 = vadd.f32 %v7406, %v7688
      %v7733 = vadd.f32 %v7407, %v7693
      %v7734 = vadd.f32 %v7408, %v7696
      %v7735 = vld [vmem:[%s192 + $0x13] sm:$0xff]
      %v7736 = vld [vmem:[%s192 + $0x1b] sm:$0xff]
      %v7737 = vld [vmem:[%s192 + $0x23] sm:$0xff]
      %v7738 = vld [vmem:[%s192 + $0x2b] sm:$0xff]
      %v7739 = vld [vmem:[%s192 + $0x33] sm:$0xff]
      %v7740 = vld [vmem:[%s192 + $0x3b] sm:$0xff]
      %v7741 = vld [vmem:[%s192 + $0x43] sm:$0xff]
      %v7742 = vld [vmem:[%s192 + $0x4b] sm:$0xff]
      %v7743 = vld [vmem:[%s192 + $0x53] sm:$0xff]
      %v7744 = vld [vmem:[%s192 + $0x5b] sm:$0xff]
      %v7745 = vld [vmem:[%s192 + $0x63] sm:$0xff]
      %v7746 = vld [vmem:[%s192 + $0x6b] sm:$0xff]
      %v7747 = vld [vmem:[%s192 + $0x73] sm:$0xff]
      %v7748 = vld [vmem:[%s192 + $0x7b] sm:$0xff]
      %v7749 = vld [vmem:[%s192 + $0x83] sm:$0xff]
      %v7750 = vld [vmem:[%s192 + $0x8b] sm:$0xff]
      %v7751 = vld [vmem:[%s192 + $0x93] sm:$0xff]
      %v7752 = vld [vmem:[%s192 + $0x9b] sm:$0xff]
      %v7753 = vld [vmem:[%s192 + $0xa3] sm:$0xff]
      %v7754 = vld [vmem:[%s192 + $0xab] sm:$0xff]
      %v7755 = vld [vmem:[%s192 + $0xb3] sm:$0xff]
      %v7756 = vld [vmem:[%s192 + $0xbb] sm:$0xff]
      %v7757 = vld [vmem:[%s192 + $0xc3] sm:$0xff]
      %v7758 = vld [vmem:[%s192 + $0xcb] sm:$0xff]
      %v7759 = vld [vmem:[%s192 + $0xd3] sm:$0xff]
      %v7760 = vld [vmem:[%s192 + $0xdb] sm:$0xff]
      %v7761 = vld [vmem:[%s192 + $0xe3] sm:$0xff]
      %v7762 = vld [vmem:[%s192 + $0xeb] sm:$0xff]
      %v7763 = vld [vmem:[%s192 + $0xf3] sm:$0xff]
      %v7764 = vld [vmem:[%s192 + $0xfb] sm:$0xff]
      %v7765 = vld [vmem:[%s192 + $0x103] sm:$0xff]
      %v7766 = vld [vmem:[%s192 + $0x10b] sm:$0xff]
      %v7767 = vld [vmem:[%s192 + $0x113] sm:$0xff]
      %v7768 = vld [vmem:[%s192 + $0x11b] sm:$0xff]
      %v7769 = vld [vmem:[%s192 + $0x123] sm:$0xff]
      %v7770 = vld [vmem:[%s192 + $0x12b] sm:$0xff]
      %v7771 = vlaneseq
      %v7772 = vshrl.u32 %v7771, 7
      %v7773 = vsub.s32 0, %v7772
      %v7774 = vrot.slane %v201, %v7773
      %v7775 = vmul.f32 %v7699, %v7774
      %v7776 = vmul.f32 %v7700, %v7774
      %v7777 = vmul.f32 %v7701, %v7774
      %v7778 = vmul.f32 %v7702, %v7774
      %v7779 = vmul.f32 %v7703, %v7774
      %v7780 = vmul.f32 %v7704, %v7774
      %v7781 = vmul.f32 %v7705, %v7774
      %v7782 = vmul.f32 %v7706, %v7774
      %v7783 = vmul.f32 %v7707, %v7774
      %v7784 = vmul.f32 %v7708, %v7774
      %v7785 = vmul.f32 %v7709, %v7774
      %v7786 = vmul.f32 %v7710, %v7774
      %v7787 = vmul.f32 %v7711, %v7774
      %v7788 = vmul.f32 %v7712, %v7774
      %v7789 = vmul.f32 %v7713, %v7774
      %v7790 = vmul.f32 %v7714, %v7774
      %v7791 = vmul.f32 %v7715, %v7774
      %v7792 = vmul.f32 %v7716, %v7774
      %v7793 = vmul.f32 %v7717, %v7774
      %v7794 = vmul.f32 %v7718, %v7774
      %v7795 = vmul.f32 %v7719, %v7774
      %v7796 = vmul.f32 %v7720, %v7774
      %v7797 = vmul.f32 %v7721, %v7774
      %v7798 = vmul.f32 %v7722, %v7774
      %v7799 = vmul.f32 %v7723, %v7774
      %v7800 = vmul.f32 %v7724, %v7774
      %v7801 = vmul.f32 %v7725, %v7774
      %v7802 = vmul.f32 %v7726, %v7774
      %v7803 = vmul.f32 %v7727, %v7774
      %v7804 = vmul.f32 %v7728, %v7774
      %v7805 = vmul.f32 %v7729, %v7774
      %v7806 = vmul.f32 %v7730, %v7774
      %v7807 = vmul.f32 %v7731, %v7774
      %v7808 = vmul.f32 %v7732, %v7774
      %v7809 = vmul.f32 %v7733, %v7774
      %v7810 = vmul.f32 %v7734, %v7774
      %v7811 = vlaneseq
      %v7812 = vshrl.u32 %v7811, 7
      %v7813 = vsub.s32 0, %v7812
      %v7814 = vrot.slane %v202, %v7813
      %v7815 = vadd.f32 %v7775, %v7814
      %v7816 = vadd.f32 %v7776, %v7814
      %v7817 = vadd.f32 %v7777, %v7814
      %v7818 = vadd.f32 %v7778, %v7814
      %v7819 = vadd.f32 %v7779, %v7814
      %v7820 = vadd.f32 %v7780, %v7814
      %v7821 = vadd.f32 %v7781, %v7814
      %v7822 = vadd.f32 %v7782, %v7814
      %v7823 = vadd.f32 %v7783, %v7814
      %v7824 = vadd.f32 %v7784, %v7814
      %v7825 = vadd.f32 %v7785, %v7814
      %v7826 = vadd.f32 %v7786, %v7814
      %v7827 = vadd.f32 %v7787, %v7814
      %v7828 = vadd.f32 %v7788, %v7814
      %v7829 = vadd.f32 %v7789, %v7814
      %v7830 = vadd.f32 %v7790, %v7814
      %v7831 = vadd.f32 %v7791, %v7814
      %v7832 = vadd.f32 %v7792, %v7814
      %v7833 = vadd.f32 %v7793, %v7814
      %v7834 = vadd.f32 %v7794, %v7814
      %v7835 = vadd.f32 %v7795, %v7814
      %v7836 = vadd.f32 %v7796, %v7814
      %v7837 = vadd.f32 %v7797, %v7814
      %v7838 = vadd.f32 %v7798, %v7814
      %v7839 = vadd.f32 %v7799, %v7814
      %v7840 = vadd.f32 %v7800, %v7814
      %v7841 = vadd.f32 %v7801, %v7814
      %v7842 = vadd.f32 %v7802, %v7814
      %v7843 = vadd.f32 %v7803, %v7814
      %v7844 = vadd.f32 %v7804, %v7814
      %v7845 = vadd.f32 %v7805, %v7814
      %v7846 = vadd.f32 %v7806, %v7814
      %v7847 = vadd.f32 %v7807, %v7814
      %v7848 = vadd.f32 %v7808, %v7814
      %v7849 = vadd.f32 %v7809, %v7814
      %v7850 = vadd.f32 %v7810, %v7814
      %v7851 = vadd.f32 %v7815, %v7735
      %v7852 = vadd.f32 %v7816, %v7736
      %v7853 = vadd.f32 %v7817, %v7737
      %v7854 = vadd.f32 %v7818, %v7738
      %v7855 = vadd.f32 %v7819, %v7739
      %v7856 = vadd.f32 %v7820, %v7740
      %v7857 = vadd.f32 %v7821, %v7741
      %v7858 = vadd.f32 %v7822, %v7742
      %v7859 = vadd.f32 %v7823, %v7743
      %v7860 = vadd.f32 %v7824, %v7744
      %v7861 = vadd.f32 %v7825, %v7745
      %v7862 = vadd.f32 %v7826, %v7746
      %v7863 = vadd.f32 %v7827, %v7747
      %v7864 = vadd.f32 %v7828, %v7748
      %v7865 = vadd.f32 %v7829, %v7749
      %v7866 = vadd.f32 %v7830, %v7750
      %v7867 = vadd.f32 %v7831, %v7751
      %v7868 = vadd.f32 %v7832, %v7752
      %v7869 = vadd.f32 %v7833, %v7753
      %v7870 = vadd.f32 %v7834, %v7754
      %v7871 = vadd.f32 %v7835, %v7755
      %v7872 = vadd.f32 %v7836, %v7756
      %v7873 = vadd.f32 %v7837, %v7757
      %v7874 = vadd.f32 %v7838, %v7758
      %v7875 = vadd.f32 %v7839, %v7759
      %v7876 = vadd.f32 %v7840, %v7760
      %v7877 = vadd.f32 %v7841, %v7761
      %v7878 = vadd.f32 %v7842, %v7762
      %v7879 = vadd.f32 %v7843, %v7763
      %v7880 = vadd.f32 %v7844, %v7764
      %v7881 = vadd.f32 %v7845, %v7765
      %v7882 = vadd.f32 %v7846, %v7766
      %v7883 = vadd.f32 %v7847, %v7767
      %v7884 = vadd.f32 %v7848, %v7768
      %v7885 = vadd.f32 %v7849, %v7769
      %v7886 = vadd.f32 %v7850, %v7770
      %v7887 = vmax.f32 %v7851, 0.0
      %v7888 = vmax.f32 %v7852, 0.0
      %v7889 = vmax.f32 %v7853, 0.0
      %v7890 = vmax.f32 %v7854, 0.0
      %v7891 = vmax.f32 %v7855, 0.0
      %v7892 = vmax.f32 %v7856, 0.0
      %v7893 = vmax.f32 %v7857, 0.0
      %v7894 = vmax.f32 %v7858, 0.0
      %v7895 = vmax.f32 %v7859, 0.0
      %v7896 = vmax.f32 %v7860, 0.0
      %v7897 = vmax.f32 %v7861, 0.0
      %v7898 = vmax.f32 %v7862, 0.0
      %v7899 = vmax.f32 %v7863, 0.0
      %v7900 = vmax.f32 %v7864, 0.0
      %v7901 = vmax.f32 %v7865, 0.0
      %v7902 = vmax.f32 %v7866, 0.0
      %v7903 = vmax.f32 %v7867, 0.0
      %v7904 = vmax.f32 %v7868, 0.0
      %v7905 = vmax.f32 %v7869, 0.0
      %v7906 = vmax.f32 %v7870, 0.0
      %v7907 = vmax.f32 %v7871, 0.0
      %v7908 = vmax.f32 %v7872, 0.0
      %v7909 = vmax.f32 %v7873, 0.0
      %v7910 = vmax.f32 %v7874, 0.0
      %v7911 = vmax.f32 %v7875, 0.0
      %v7912 = vmax.f32 %v7876, 0.0
      %v7913 = vmax.f32 %v7877, 0.0
      %v7914 = vmax.f32 %v7878, 0.0
      %v7915 = vmax.f32 %v7879, 0.0
      %v7916 = vmax.f32 %v7880, 0.0
      %v7917 = vmax.f32 %v7881, 0.0
      %v7918 = vmax.f32 %v7882, 0.0
      %v7919 = vmax.f32 %v7883, 0.0
      %v7920 = vmax.f32 %v7884, 0.0
      %v7921 = vmax.f32 %v7885, 0.0
      %v7922 = vmax.f32 %v7886, 0.0
      %7923 = vst.msk [vmem:[%s197] sm:$0xff] %vm641, %v7887
      %7924 = vst.msk [vmem:[%s197 + $0x8] sm:$0xff] %vm641, %v7888
      %7925 = vst.msk [vmem:[%s197 + $0x10] sm:$0xff] %vm641, %v7889
      %7926 = vst.msk [vmem:[%s197 + $0x18] sm:$0xff] %vm641, %v7890
      %7927 = vst.msk [vmem:[%s197 + $0x20] sm:$0xff] %vm641, %v7891
      %7928 = vst.msk [vmem:[%s197 + $0x28] sm:$0xff] %vm641, %v7892
      %7929 = vst.msk [vmem:[%s197 + $0x30] sm:$0xff] %vm641, %v7893
      %7930 = vst.msk [vmem:[%s197 + $0x38] sm:$0xff] %vm641, %v7894
      %7931 = vst.msk [vmem:[%s197 + $0x40] sm:$0xff] %vm641, %v7895
      %7932 = vst.msk [vmem:[%s197 + $0x48] sm:$0xff] %vm641, %v7896
      %7933 = vst.msk [vmem:[%s197 + $0x50] sm:$0xff] %vm641, %v7897
      %7934 = vst.msk [vmem:[%s197 + $0x58] sm:$0xff] %vm641, %v7898
      %7935 = vst.msk [vmem:[%s197 + $0x60] sm:$0xff] %vm641, %v7899
      %7936 = vst.msk [vmem:[%s197 + $0x68] sm:$0xff] %vm641, %v7900
      %7937 = vst.msk [vmem:[%s197 + $0x70] sm:$0xff] %vm641, %v7901
      %7938 = vst.msk [vmem:[%s197 + $0x78] sm:$0xff] %vm641, %v7902
      %7939 = vst.msk [vmem:[%s197 + $0x80] sm:$0xff] %vm641, %v7903
      %7940 = vst.msk [vmem:[%s197 + $0x88] sm:$0xff] %vm641, %v7904
      %7941 = vst.msk [vmem:[%s197 + $0x90] sm:$0xff] %vm641, %v7905
      %7942 = vst.msk [vmem:[%s197 + $0x98] sm:$0xff] %vm641, %v7906
      %7943 = vst.msk [vmem:[%s197 + $0xa0] sm:$0xff] %vm641, %v7907
      %7944 = vst.msk [vmem:[%s197 + $0xa8] sm:$0xff] %vm641, %v7908
      %7945 = vst.msk [vmem:[%s197 + $0xb0] sm:$0xff] %vm641, %v7909
      %7946 = vst.msk [vmem:[%s197 + $0xb8] sm:$0xff] %vm641, %v7910
      %7947 = vst.msk [vmem:[%s197 + $0xc0] sm:$0xff] %vm641, %v7911
      %7948 = vst.msk [vmem:[%s197 + $0xc8] sm:$0xff] %vm641, %v7912
      %7949 = vst.msk [vmem:[%s197 + $0xd0] sm:$0xff] %vm641, %v7913
      %7950 = vst.msk [vmem:[%s197 + $0xd8] sm:$0xff] %vm641, %v7914
      %7951 = vst.msk [vmem:[%s197 + $0xe0] sm:$0xff] %vm641, %v7915
      %7952 = vst.msk [vmem:[%s197 + $0xe8] sm:$0xff] %vm641, %v7916
      %7953 = vst.msk [vmem:[%s197 + $0xf0] sm:$0xff] %vm641, %v7917
      %7954 = vst.msk [vmem:[%s197 + $0xf8] sm:$0xff] %vm641, %v7918
      %7955 = vst.msk [vmem:[%s197 + $0x100] sm:$0xff] %vm641, %v7919
      %7956 = vst.msk [vmem:[%s197 + $0x108] sm:$0xff] %vm641, %v7920
      %7957 = vst.msk [vmem:[%s197 + $0x110] sm:$0xff] %vm641, %v7921
      %7958 = vst.msk [vmem:[%s197 + $0x118] sm:$0xff] %vm641, %v7922
      %p7959 = scmp.lt.s32.totalorder %s15, 1
      %s7960 = scalar_select %p7959, %s15, 1
      %s7961 = smul.addr %s7960, 36
      %s7962 = smul.addr %s7961, 8
      %s7963 = scalar_lea.vmem %s4, %s7962
      // Predicated region
      $region37: #{resblock_forward.1} parent=35 // pred_check
        %p7964 = pneg %p122
      $region38: #{resblock_forward.1} parent=35 // pred_check_branch
        %7966 = sbr.rel (%p7964) target = $region40
      $region39: #{resblock_forward.1} parent=35 // pred_region
        _
      $region40: #{resblock_forward.1} parent=35 // pred_fallthru
        _
    $region36: #{resblock_forward.1} parent=5 // pred_fallthru
      _
    %p7967 = scmp.le.s32.totalorder 2, %s10
    // Predicated region
    $region41: #{resblock_forward.1} parent=5 // pred_check
      %p7968 = pneg %p7967
    $region42: #{resblock_forward.1} parent=5 // pred_check_branch
      %7970 = sbr.rel (%p7968) target = $region44
    $region43: #{resblock_forward.1} parent=5 // pred_region
      %s7971 = ssub.s32 %s10, 2
      // Predicated region
      $region45: #{resblock_forward.1} parent=43 // pred_check
        %p7972 = pneg %p128
      $region46: #{resblock_forward.1} parent=43 // pred_check_branch
        %7974 = sbr.rel (%p7972) target = $region48
      $region47: #{resblock_forward.1} parent=43 // pred_region
        %p7975 = scmp.lt.s32.totalorder %s16, 1
        %s7976 = scalar_select %p7975, %s16, 1
        %s7977 = smul.addr %s7976, 36
        %s7978 = smul.addr %s7977, 8
        %s7979 = scalar_lea.vmem %s4, %s7978
      $region48: #{resblock_forward.1} parent=43 // pred_fallthru
        _
    $region44: #{resblock_forward.1} parent=5 // pred_fallthru
      _
  $region6: #{resblock_forward.1} parent=0 // loop_footer
    %s14 = sadd.s32 1, %s10
  $region7: #{resblock_forward.1} parent=0 // loop_footer_branch
    %9 = sbr.rel target = $region3
  $region8: #{resblock_forward.1} parent=0 // loop_exit
    _

</llo_original>
